<compile_context>
chip_gen: v7x
topology: tpu7x:2x2x1
jax: 0.10.0
libtpu: 0.0.40
codegen_flags: <defaults>
</compile_context>

<pallas_src>
import functools

import jax
import jax.numpy as jnp
from jax.experimental import pallas as pl
from jax.experimental.pallas import tpu as pltpu


# ------------------------------ helpers ------------------------------

def _round_up(x, m):
    return ((x + m - 1) // m) * m


def _m_tiles(m, cap=256):
    """Pick an 8-aligned M tile (<= cap) and the padded M extent it divides."""
    m8 = _round_up(m, 8)
    tm = min(cap, m8)
    return tm, _round_up(m, tm)


# ------------------------------ Pallas kernels ------------------------------

def _matmul_bias_kernel(x_ref, w_ref, b_ref, o_ref, acc_ref):
    # x_ref: (tm, tk) bf16   w_ref: (tk, tn) bf16   b_ref: (1, tn) f32
    # o_ref: (tm, tn)        acc_ref: (tm, tn) f32 scratch
    @pl.when(pl.program_id(2) == 0)
    def _():
        acc_ref[...] = jnp.zeros_like(acc_ref)

    acc_ref[...] += jnp.dot(x_ref[...], w_ref[...],
                            preferred_element_type=jnp.float32)

    @pl.when(pl.program_id(2) == pl.num_programs(2) - 1)
    def _():
        o_ref[...] = (acc_ref[...] + b_ref[...]).astype(o_ref.dtype)


def _layernorm_kernel(x_ref, g_ref, b_ref, o_ref):
    # x_ref: (tm, D)   g_ref/b_ref: (1, D) f32
    x = x_ref[...].astype(jnp.float32)
    mu = jnp.mean(x, axis=-1, keepdims=True)
    var = jnp.mean(jnp.square(x - mu), axis=-1, keepdims=True)
    y = (x - mu) * jax.lax.rsqrt(var + 1e-5)
    o_ref[...] = (y * g_ref[...] + b_ref[...]).astype(o_ref.dtype)


def _linear_layernorm_kernel(x_ref, w_ref, b_ref, g_ref, beta_ref, o_ref):
    # vision_proj followed by vis_ln, fused.  x bf16, w bf16, rest f32.
    # TODO(synk): for very large hidden sizes this weight should be K-tiled with an
    # accumulator like _matmul_bias_kernel; at LN-sized N it stays full-width here.
    y = jnp.dot(x_ref[...], w_ref[...],
                preferred_element_type=jnp.float32) + b_ref[...]
    mu = jnp.mean(y, axis=-1, keepdims=True)
    var = jnp.mean(jnp.square(y - mu), axis=-1, keepdims=True)
    yn = (y - mu) * jax.lax.rsqrt(var + 1e-5)
    o_ref[...] = (yn * g_ref[...] + beta_ref[...]).astype(o_ref.dtype)


def _vision_encode_kernel(xp_ref, w_ref, add_ref, g_ref, beta_ref, o_ref):
    # Fused vision stand-in: patch-embed matmul + (bias + pos-embed) add + final LN.
    # xp_ref: (1, Np, Pdim) bf16   w_ref: (Pdim, Dv) bf16   add_ref: (1, Np, Dv) f32
    y = jnp.dot(xp_ref[0], w_ref[...],
                preferred_element_type=jnp.float32) + add_ref[0]
    mu = jnp.mean(y, axis=-1, keepdims=True)
    var = jnp.mean(jnp.square(y - mu), axis=-1, keepdims=True)
    yn = (y - mu) * jax.lax.rsqrt(var + 1e-5)
    o_ref[0] = (yn * g_ref[...] + beta_ref[...]).astype(o_ref.dtype)


def _attn_relevance_kernel(patch_ref, text_ref, score_ref, gram_ref, *, np_true, t_true):
    # patch_ref: (1, Np_p, D) bf16    text_ref: (1, T_p, D) bf16 (zero padded to T_p)
    # score_ref: (1, 1, Np_p) f32 (lane-dense)   gram_ref: (1, T_p, T_p) f32
    p = patch_ref[0]                                            # (Np_p, D)
    t = text_ref[0]                                             # (T_p, D)
    s = jnp.dot(p, t.T, preferred_element_type=jnp.float32)     # (Np_p, T_p)

    np_p, t_p = s.shape
    colmask = (jax.lax.broadcasted_iota(jnp.int32, (1, t_p), 1) < t_true
               ).astype(jnp.float32)                            # (1, T_p)
    rowmask = (jax.lax.broadcasted_iota(jnp.int32, (np_p, 1), 0) < np_true
               ).astype(jnp.float32)                            # (Np_p, 1)

    # softmax over the real text columns (shift-invariant, padded cols zeroed)
    m = jnp.max(s, axis=-1, keepdims=True)
    e = jnp.exp(s - m) * colmask
    denom = jnp.sum(e, axis=-1, keepdims=True)
    soft = e * pl.reciprocal(denom, approx=True)
    soft = soft * rowmask                                       # drop padded patch rows

    # rater mask (text relevance >= its mean over the real text tokens)
    text_rel = jnp.sum(soft, axis=0, keepdims=True) * (1.0 / np_true)   # (1, T_p)
    mean_rel = jnp.sum(text_rel, axis=-1, keepdims=True) * (1.0 / t_true)
    raters = jnp.where(text_rel >= mean_rel, 1.0, 0.0) * colmask        # (1, T_p)

    masked = soft * raters                                      # (Np_p, T_p)
    denom_r = jnp.maximum(jnp.sum(raters, axis=-1, keepdims=True), 1e-5)

    masked_t = masked.T                                         # (T_p, Np_p)
    vscores = jnp.sum(masked_t, axis=0, keepdims=True) * pl.reciprocal(denom_r,
                                                                       approx=True)
    score_ref[0] = vscores                                      # (1, Np_p) lane-dense

    # Gram of P = masked^T  (rank(P) == rank(P P^T)); only O(T^2) leaves the kernel.
    gram_ref[0] = jnp.dot(masked_t, masked, preferred_element_type=jnp.float32)


# ------------------------------ pallas_call wrappers ------------------------------

def linear(x, w, b, out_dtype=jnp.float32, tm_cap=256, tn_cap=512, tk_cap=512):
    """[..., K] @ [K, N] + [N] with M/N/K tiling and a VMEM f32 accumulator."""
    lead, K = x.shape[:-1], x.shape[-1]
    N = w.shape[1]
    x2 = x.reshape(-1, K).astype(jnp.bfloat16)
    M = x2.shape[0]

    tm, Mp = _m_tiles(M, tm_cap)
    tk = min(tk_cap, _round_up(K, 128))
    Kp = _round_up(K, tk)
    tn = min(tn_cap, _round_up(N, 128))
    Np_ = _round_up(N, tn)

    x2 = jnp.pad(x2, ((0, Mp - M), (0, Kp - K)))
    w2 = jnp.pad(w.astype(jnp.bfloat16), ((0, Kp - K), (0, Np_ - N)))
    b2 = jnp.pad(b.astype(jnp.float32), ((0, Np_ - N),)).reshape(1, Np_)

    out = pl.pallas_call(
        _matmul_bias_kernel,
        out_shape=jax.ShapeDtypeStruct((Mp, Np_), out_dtype),
        grid_spec=pltpu.PrefetchScalarGridSpec(
            num_scalar_prefetch=0,
            grid=(Mp // tm, Np_ // tn, Kp // tk),
            in_specs=[pl.BlockSpec((tm, tk), lambda i, j, k: (i, k)),
                      pl.BlockSpec((tk, tn), lambda i, j, k: (k, j)),
                      pl.BlockSpec((1, tn), lambda i, j, k: (0, j))],
            out_specs=pl.BlockSpec((tm, tn), lambda i, j, k: (i, j)),
            scratch_shapes=[pltpu.VMEM((tm, tn), jnp.float32)]),
        compiler_params=pltpu.CompilerParams(
            dimension_semantics=("parallel", "parallel", "arbitrary")),
    )(x2, w2, b2)
    return out[:M, :N].reshape(*lead, N)


def layernorm(x, gamma, beta, out_dtype=jnp.bfloat16):
    D = x.shape[-1]
    x2 = x.reshape(-1, D)
    M = x2.shape[0]
    tm, Mp = _m_tiles(M)
    x2 = jnp.pad(x2, ((0, Mp - M), (0, 0)))
    out = pl.pallas_call(
        _layernorm_kernel,
        out_shape=jax.ShapeDtypeStruct((Mp, D), out_dtype),
        grid_spec=pltpu.PrefetchScalarGridSpec(
            num_scalar_prefetch=0, grid=(Mp // tm,),
            in_specs=[pl.BlockSpec((tm, D), lambda i: (i, 0)),
                      pl.BlockSpec((1, D), lambda i: (0, 0)),
                      pl.BlockSpec((1, D), lambda i: (0, 0))],
            out_specs=pl.BlockSpec((tm, D), lambda i: (i, 0))),
        compiler_params=pltpu.CompilerParams(dimension_semantics=("parallel",)),
    )(x2, gamma.astype(jnp.float32).reshape(1, D),
      beta.astype(jnp.float32).reshape(1, D))
    return out[:M].reshape(x.shape)


def linear_layernorm(x, w, b, gamma, beta, out_dtype=jnp.bfloat16):
    K = x.shape[-1]
    N = w.shape[1]
    x2 = x.reshape(-1, K).astype(jnp.bfloat16)
    M = x2.shape[0]
    tm, Mp = _m_tiles(M)
    x2 = jnp.pad(x2, ((0, Mp - M), (0, 0)))
    out = pl.pallas_call(
        _linear_layernorm_kernel,
        out_shape=jax.ShapeDtypeStruct((Mp, N), out_dtype),
        grid_spec=pltpu.PrefetchScalarGridSpec(
            num_scalar_prefetch=0, grid=(Mp // tm,),
            in_specs=[pl.BlockSpec((tm, K), lambda i: (i, 0)),
                      pl.BlockSpec((K, N), lambda i: (0, 0)),
                      pl.BlockSpec((1, N), lambda i: (0, 0)),
                      pl.BlockSpec((1, N), lambda i: (0, 0)),
                      pl.BlockSpec((1, N), lambda i: (0, 0))],
            out_specs=pl.BlockSpec((tm, N), lambda i: (i, 0))),
        compiler_params=pltpu.CompilerParams(dimension_semantics=("parallel",)),
    )(x2, w.astype(jnp.bfloat16),
      b.astype(jnp.float32).reshape(1, N),
      gamma.astype(jnp.float32).reshape(1, N),
      beta.astype(jnp.float32).reshape(1, N))
    return out[:M].reshape(*x.shape[:-1], N)


def vision_encoder(params, patches_flat):
    """Fused patch-embed matmul + pos-embed add + final LayerNorm (CLIP-ViT stand-in).

    TODO(synk): the pretrained CLIP-ViT transformer stack is not reproduced; since this
    stand-in has no attention layers and the forward drops the CLS row, the CLS token
    does not influence the patch outputs and is not materialized.
    """
    B, Np0, Pdim = patches_flat.shape
    Dv = params["w_patch"].shape[1]
    addend = (params["pos_embed"][:, 1:, :] +
              params["b_patch"][None, None, :]).astype(jnp.float32)   # (1, Np, Dv)
    return pl.pallas_call(
        _vision_encode_kernel,
        out_shape=jax.ShapeDtypeStruct((B, Np0, Dv), jnp.bfloat16),
        grid_spec=pltpu.PrefetchScalarGridSpec(
            num_scalar_prefetch=0, grid=(B,),
            in_specs=[pl.BlockSpec((1, Np0, Pdim), lambda i: (i, 0, 0)),
                      pl.BlockSpec((Pdim, Dv), lambda i: (0, 0)),
                      pl.BlockSpec((1, Np0, Dv), lambda i: (0, 0, 0)),
                      pl.BlockSpec((1, Dv), lambda i: (0, 0)),
                      pl.BlockSpec((1, Dv), lambda i: (0, 0))],
            out_specs=pl.BlockSpec((1, Np0, Dv), lambda i: (i, 0, 0))),
        compiler_params=pltpu.CompilerParams(dimension_semantics=("parallel",)),
    )(patches_flat.astype(jnp.bfloat16),
      params["w_patch"].astype(jnp.bfloat16),
      addend,
      params["ln_vis_enc_g"].astype(jnp.float32).reshape(1, Dv),
      params["ln_vis_enc_b"].astype(jnp.float32).reshape(1, Dv))


def attn_relevance(patch_tokens, text_embeds):
    """Returns (vision_scores [B, Np] f32, gram [B, Tp, Tp] f32 of masked_attn^T)."""
    B, Np0, D = patch_tokens.shape
    T0 = text_embeds.shape[1]
    Np_p = _round_up(Np0, 8)
    T_p = _round_up(T0, 128)          # lane-align the text axis; padded cols are masked
    p = jnp.pad(patch_tokens.astype(jnp.bfloat16), ((0, 0), (0, Np_p - Np0), (0, 0)))
    t = jnp.pad(text_embeds.astype(jnp.bfloat16), ((0, 0), (0, T_p - T0), (0, 0)))
    kernel = functools.partial(_attn_relevance_kernel, np_true=Np0, t_true=T0)
    scores, gram = pl.pallas_call(
        kernel,
        out_shape=(jax.ShapeDtypeStruct((B, 1, Np_p), jnp.float32),
                   jax.ShapeDtypeStruct((B, T_p, T_p), jnp.float32)),
        grid_spec=pltpu.PrefetchScalarGridSpec(
            num_scalar_prefetch=0, grid=(B,),
            in_specs=[pl.BlockSpec((1, Np_p, D), lambda i: (i, 0, 0)),
                      pl.BlockSpec((1, T_p, D), lambda i: (i, 0, 0))],
            out_specs=[pl.BlockSpec((1, 1, Np_p), lambda i: (i, 0, 0)),
                       pl.BlockSpec((1, T_p, T_p), lambda i: (i, 0, 0))]),
        compiler_params=pltpu.CompilerParams(dimension_semantics=("parallel",)),
    )(p, t)
    return scores[:, 0, :Np0], gram


# ------------------------------ model (stand-in params) ------------------------------

def init_params(key, *, in_channels=3, image=32, patch=8,
                vision_hidden=128, text_hidden=128, vocab=256):
    ks = jax.random.split(key, 6)
    patch_dim = in_channels * patch * patch
    n_patches = (image // patch) ** 2
    s = 0.02
    return {
        # vision encoder stand-in (CLIP-ViT patch embed + pos embed + final LN)
        "w_patch": s * jax.random.normal(ks[0], (patch_dim, vision_hidden), jnp.float32),
        "b_patch": jnp.zeros((vision_hidden,), jnp.float32),
        "cls_token": s * jax.random.normal(ks[1], (1, 1, vision_hidden), jnp.float32),
        "pos_embed": s * jax.random.normal(ks[2], (1, n_patches + 1, vision_hidden),
                                           jnp.float32),
        "ln_vis_enc_g": jnp.ones((vision_hidden,), jnp.float32),
        "ln_vis_enc_b": jnp.zeros((vision_hidden,), jnp.float32),
        # language model stand-in (token embedding + LM head)
        "embed_tokens": s * jax.random.normal(ks[3], (vocab, text_hidden), jnp.float32),
        "w_head": s * jax.random.normal(ks[4], (text_hidden, vocab), jnp.float32),
        "b_head": jnp.zeros((vocab,), jnp.float32),
        # SparseVLM-specific params from __init__
        "w_proj": s * jax.random.normal(ks[5], (vision_hidden, text_hidden), jnp.float32),
        "b_proj": jnp.zeros((text_hidden,), jnp.float32),
        "vis_ln_g": jnp.ones((text_hidden,), jnp.float32),
        "vis_ln_b": jnp.zeros((text_hidden,), jnp.float32),
        "txt_ln_g": jnp.ones((text_hidden,), jnp.float32),
        "txt_ln_b": jnp.zeros((text_hidden,), jnp.float32),
    }


def sparsevlm_forward(params, pixel_values, input_ids, labels=None, *, patch=8):
    B, C, H, W = pixel_values.shape
    gh, gw = H // patch, W // patch
    x = pixel_values.reshape(B, C, gh, patch, gw, patch)
    x = x.transpose(0, 2, 4, 1, 3, 5).reshape(B, gh * gw, C * patch * patch)

    patch_tokens = vision_encoder(params, x)                          # [B, Np, Dv] bf16
    text_embeds = jnp.take(params["embed_tokens"], input_ids, axis=0)  # [B, T, Dt] f32

    # cross-attention relevance: lane-dense vision scores + T x T Gram matrix in-kernel
    vision_scores, gram = attn_relevance(patch_tokens, text_embeds)
    Np = patch_tokens.shape[1]
    T = input_ids.shape[1]

    # rank(P) == rank(P P^T): count eigenvalues of the Gram matrix above the same
    # relative tolerance torch.linalg.matrix_rank uses (applied to squared singular
    # values).  Replaces the per-sample SVD, which dominates wall time on TPU.
    # TODO(synk): eigenvalue thresholding is mathematically equivalent to the SVD-based
    # matrix_rank but can differ by +-1 for singular values sitting exactly at tol.
    eig = jnp.linalg.eigvalsh(gram)                                   # [B, Tp] ascending
    eig_max = eig[:, -1:]
    eps = float(jnp.finfo(jnp.float32).eps)
    tol_sq = eig_max * (float(max(Np, T)) * eps) ** 2
    ranks = jnp.sum(eig > tol_sq, axis=-1).astype(jnp.int32)          # [B]

    prune_counts = (0.5 * (Np - ranks)).astype(jnp.int32)             # trunc == torch .int()
    keep_counts = Np - prune_counts                                   # [B]

    # top-K selection with per-sample K, kept as a static [B, Np] slab (zero padded;
    # padded rows then pass through vision_proj + vis_ln exactly as pad_sequence's zero
    # rows do in the PyTorch reference).
    # TODO(synk): variable-length K_i + recycle_and_cluster produce data-dependent
    # shapes; the cluster-recycling path is skipped and the sequence is padded to Np
    # instead of the batch-max K.
    order = jnp.argsort(-vision_scores, axis=-1)                      # descending
    sorted_tokens = jnp.take_along_axis(patch_tokens, order[..., None], axis=1)
    pos = jnp.arange(Np)[None, :]
    keep_mask = (pos < keep_counts[:, None]).astype(sorted_tokens.dtype)
    topk_tokens = sorted_tokens * keep_mask[..., None]                # [B, Np, Dv]

    # vision_proj + vis_ln fused; txt_ln tiled over B*T
    visual_embeds = linear_layernorm(topk_tokens, params["w_proj"], params["b_proj"],
                                     params["vis_ln_g"], params["vis_ln_b"])
    input_embeds = layernorm(text_embeds, params["txt_ln_g"], params["txt_ln_b"])
    combined_embeds = jnp.concatenate(
        [visual_embeds, input_embeds.astype(visual_embeds.dtype)], axis=1)

    if labels is not None:
        visual_pad = jnp.full((labels.shape[0], visual_embeds.shape[1]), -100,
                              labels.dtype)
        padded_labels = jnp.concatenate([visual_pad, labels], axis=1)
    else:
        padded_labels = None

    # TODO(synk): pretrained GPT-Neo decoder stack is not reproduced; stand-in LM head
    # only (M/N/K-tiled matmul with f32 accumulator).
    logits = linear(combined_embeds, params["w_head"], params["b_head"],
                    out_dtype=jnp.float32)
    return logits, padded_labels


# ------------------------------ demo ------------------------------

if __name__ == "__main__":
    key = jax.random.PRNGKey(0)
    k_param, k_pix, k_ids = jax.random.split(key, 3)

    B, C, H, W = 2, 3, 32, 32          # 8x8 patches -> 16 patch tokens
    PATCH = 8
    T, vocab, hidden = 8, 256, 128     # lane-aligned hidden / vocab

    params = init_params(k_param, in_channels=C, image=H, patch=PATCH,
                         vision_hidden=hidden, text_hidden=hidden, vocab=vocab)
    pixel_values = jax.random.normal(k_pix, (B, C, H, W), jnp.float32)
    input_ids = jax.random.randint(k_ids, (B, T), 0, vocab, jnp.int32)

    forward = jax.jit(functools.partial(sparsevlm_forward, patch=PATCH))
    logits, padded_labels = forward(params, pixel_values, input_ids)
    jax.block_until_ready(logits)

    n_patches = (H // PATCH) * (W // PATCH)
    assert logits.shape == (B, n_patches + T, vocab), logits.shape
    assert logits.dtype == jnp.float32
    print("KERNEL_OK")
</pallas_src>

<mosaic_0001>
module attributes {stable_mosaic.version = 11 : i64} {
  func.func @_layernorm_kernel(%arg0: i32, %arg1: memref<16x128xf32, #tpu.memory_space<vmem>>, %arg2: memref<1x128xf32, #tpu.memory_space<vmem>>, %arg3: memref<1x128xf32, #tpu.memory_space<vmem>>, %arg4: memref<16x128xbf16, #tpu.memory_space<vmem>>) attributes {dimension_semantics = [#tpu.dimension_semantics<parallel>], iteration_bounds = array<i64: 1>, scalar_prefetch = 0 : i64, scratch_operands = 0 : i64, tpu.core_type = #tpu.core_type<tc>, window_params = [{transform_indices = @transform_0, window_bounds = array<i64: 16, 128>}, {pipeline_mode = #tpu.pipeline_mode<synchronous>, transform_indices = @transform_1, window_bounds = array<i64: 1, 128>}, {pipeline_mode = #tpu.pipeline_mode<synchronous>, transform_indices = @transform_2, window_bounds = array<i64: 1, 128>}, {transform_indices = @transform_3, window_bounds = array<i64: 16, 128>}]} {
    %c0 = arith.constant 0 : index
    %c0_0 = arith.constant 0 : index
    %0 = vector.load %arg1[%c0, %c0_0] : memref<16x128xf32, #tpu.memory_space<vmem>>, vector<16x128xf32>
    %cst = arith.constant dense<0.000000e+00> : vector<16xf32>
    %1 = vector.multi_reduction <add>, %0, %cst [1] : vector<16x128xf32> to vector<16xf32>
    %2 = vector.shape_cast %1 : vector<16xf32> to vector<16x1xf32>
    %cst_1 = arith.constant 1.280000e+02 : f32
    %3 = vector.broadcast %cst_1 : f32 to vector<16x1xf32>
    %4 = arith.divf %2, %3 : vector<16x1xf32>
    %5 = vector.broadcast %4 : vector<16x1xf32> to vector<16x128xf32>
    %6 = arith.subf %0, %5 : vector<16x128xf32>
    %7 = arith.mulf %6, %6 : vector<16x128xf32>
    %cst_2 = arith.constant dense<0.000000e+00> : vector<16xf32>
    %8 = vector.multi_reduction <add>, %7, %cst_2 [1] : vector<16x128xf32> to vector<16xf32>
    %9 = vector.shape_cast %8 : vector<16xf32> to vector<16x1xf32>
    %cst_3 = arith.constant 1.280000e+02 : f32
    %10 = vector.broadcast %cst_3 : f32 to vector<16x1xf32>
    %11 = arith.divf %9, %10 : vector<16x1xf32>
    %12 = vector.broadcast %4 : vector<16x1xf32> to vector<16x128xf32>
    %13 = arith.subf %0, %12 : vector<16x128xf32>
    %cst_4 = arith.constant 9.99999974E-6 : f32
    %14 = vector.broadcast %cst_4 : f32 to vector<16x1xf32>
    %15 = arith.addf %11, %14 : vector<16x1xf32>
    %16 = math.rsqrt %15 : vector<16x1xf32>
    %17 = vector.broadcast %16 : vector<16x1xf32> to vector<16x128xf32>
    %18 = arith.mulf %13, %17 : vector<16x128xf32>
    %c0_5 = arith.constant 0 : index
    %c0_6 = arith.constant 0 : index
    %19 = vector.load %arg2[%c0_5, %c0_6] : memref<1x128xf32, #tpu.memory_space<vmem>>, vector<1x128xf32>
    %20 = vector.broadcast %19 : vector<1x128xf32> to vector<16x128xf32>
    %21 = arith.mulf %18, %20 : vector<16x128xf32>
    %c0_7 = arith.constant 0 : index
    %c0_8 = arith.constant 0 : index
    %22 = vector.load %arg3[%c0_7, %c0_8] : memref<1x128xf32, #tpu.memory_space<vmem>>, vector<1x128xf32>
    %23 = vector.broadcast %22 : vector<1x128xf32> to vector<16x128xf32>
    %24 = arith.addf %21, %23 : vector<16x128xf32>
    %25 = arith.truncf %24 : vector<16x128xf32> to vector<16x128xbf16>
    %c0_9 = arith.constant 0 : index
    %c0_10 = arith.constant 0 : index
    %26 = vector.load %arg4[%c0_9, %c0_10] : memref<16x128xbf16, #tpu.memory_space<vmem>>, vector<16x128xbf16>
    tpu.vector_store %arg4[%c0_9, %c0_10], %25 {strides = array<i32>} : memref<16x128xbf16, #tpu.memory_space<vmem>>, vector<16x128xbf16>,
    return
  }
  func.func @transform_0(%arg0: i32) -> (i32, i32) {
    %c0_i32 = arith.constant 0 : i32
    %c0_i32_0 = arith.constant 0 : i32
    return %arg0, %c0_i32 : i32, i32
  }
  func.func @transform_1(%arg0: i32) -> (i32, i32) {
    %c0_i32 = arith.constant 0 : i32
    %c0_i32_0 = arith.constant 0 : i32
    %c0_i32_1 = arith.constant 0 : i32
    return %c0_i32, %c0_i32_0 : i32, i32
  }
  func.func @transform_2(%arg0: i32) -> (i32, i32) {
    %c0_i32 = arith.constant 0 : i32
    %c0_i32_0 = arith.constant 0 : i32
    %c0_i32_1 = arith.constant 0 : i32
    return %c0_i32, %c0_i32_0 : i32, i32
  }
  func.func @transform_3(%arg0: i32) -> (i32, i32) {
    %c0_i32 = arith.constant 0 : i32
    %c0_i32_0 = arith.constant 0 : i32
    return %arg0, %c0_i32 : i32, i32
  }
}

module attributes {stable_mosaic.version = 11 : i64} {
  func.func @_vision_encode_kernel(%arg0: i32, %arg1: memref<1x16x192xbf16, #tpu.memory_space<vmem>>, %arg2: memref<192x128xbf16, #tpu.memory_space<vmem>>, %arg3: memref<1x16x128xf32, #tpu.memory_space<vmem>>, %arg4: memref<1x128xf32, #tpu.memory_space<vmem>>, %arg5: memref<1x128xf32, #tpu.memory_space<vmem>>, %arg6: memref<1x16x128xbf16, #tpu.memory_space<vmem>>) attributes {dimension_semantics = [#tpu.dimension_semantics<parallel>], iteration_bounds = array<i64: 2>, scalar_prefetch = 0 : i64, scratch_operands = 0 : i64, tpu.core_type = #tpu.core_type<tc>, window_params = [{transform_indices = @transform_0, window_bounds = array<i64: 1, 16, 192>}, {pipeline_mode = #tpu.pipeline_mode<synchronous>, transform_indices = @transform_1, window_bounds = array<i64: 192, 128>}, {pipeline_mode = #tpu.pipeline_mode<synchronous>, transform_indices = @transform_2, window_bounds = array<i64: 1, 16, 128>}, {pipeline_mode = #tpu.pipeline_mode<synchronous>, transform_indices = @transform_3, window_bounds = array<i64: 1, 128>}, {pipeline_mode = #tpu.pipeline_mode<synchronous>, transform_indices = @transform_4, window_bounds = array<i64: 1, 128>}, {transform_indices = @transform_5, window_bounds = array<i64: 1, 16, 128>}]} {
    %c0 = arith.constant 0 : index
    %c0_0 = arith.constant 0 : index
    %c0_1 = arith.constant 0 : index
    %0 = vector.load %arg1[%c0, %c0_0, %c0_1] : memref<1x16x192xbf16, #tpu.memory_space<vmem>>, vector<1x16x192xbf16>
    %1 = vector.shape_cast %0 : vector<1x16x192xbf16> to vector<16x192xbf16>
    %c0_2 = arith.constant 0 : index
    %c0_3 = arith.constant 0 : index
    %2 = vector.load %arg2[%c0_2, %c0_3] : memref<192x128xbf16, #tpu.memory_space<vmem>>, vector<192x128xbf16>
    %cst = arith.constant dense<0.000000e+00> : vector<16x128xf32>
    %3 = tpu.matmul %1, %2, %cst {dimension_numbers = #tpu.dot_dimension_numbers<[1], [0], [0], [1], [0, 0, 1, 1], [], []>} : vector<16x192xbf16>, vector<192x128xbf16>, vector<16x128xf32> -> vector<16x128xf32>
    %c0_4 = arith.constant 0 : index
    %c0_5 = arith.constant 0 : index
    %c0_6 = arith.constant 0 : index
    %4 = vector.load %arg3[%c0_4, %c0_5, %c0_6] : memref<1x16x128xf32, #tpu.memory_space<vmem>>, vector<1x16x128xf32>
    %5 = vector.shape_cast %4 : vector<1x16x128xf32> to vector<16x128xf32>
    %6 = arith.addf %3, %5 : vector<16x128xf32>
    %cst_7 = arith.constant dense<0.000000e+00> : vector<16xf32>
    %7 = vector.multi_reduction <add>, %6, %cst_7 [1] : vector<16x128xf32> to vector<16xf32>
    %8 = vector.shape_cast %7 : vector<16xf32> to vector<16x1xf32>
    %cst_8 = arith.constant 1.280000e+02 : f32
    %9 = vector.broadcast %cst_8 : f32 to vector<16x1xf32>
    %10 = arith.divf %8, %9 : vector<16x1xf32>
    %11 = vector.broadcast %10 : vector<16x1xf32> to vector<16x128xf32>
    %12 = arith.subf %6, %11 : vector<16x128xf32>
    %13 = arith.mulf %12, %12 : vector<16x128xf32>
    %cst_9 = arith.constant dense<0.000000e+00> : vector<16xf32>
    %14 = vector.multi_reduction <add>, %13, %cst_9 [1] : vector<16x128xf32> to vector<16xf32>
    %15 = vector.shape_cast %14 : vector<16xf32> to vector<16x1xf32>
    %cst_10 = arith.constant 1.280000e+02 : f32
    %16 = vector.broadcast %cst_10 : f32 to vector<16x1xf32>
    %17 = arith.divf %15, %16 : vector<16x1xf32>
    %18 = vector.broadcast %10 : vector<16x1xf32> to vector<16x128xf32>
    %19 = arith.subf %6, %18 : vector<16x128xf32>
    %cst_11 = arith.constant 9.99999974E-6 : f32
    %20 = vector.broadcast %cst_11 : f32 to vector<16x1xf32>
    %21 = arith.addf %17, %20 : vector<16x1xf32>
    %22 = math.rsqrt %21 : vector<16x1xf32>
    %23 = vector.broadcast %22 : vector<16x1xf32> to vector<16x128xf32>
    %24 = arith.mulf %19, %23 : vector<16x128xf32>
    %c0_12 = arith.constant 0 : index
    %c0_13 = arith.constant 0 : index
    %25 = vector.load %arg4[%c0_12, %c0_13] : memref<1x128xf32, #tpu.memory_space<vmem>>, vector<1x128xf32>
    %26 = vector.broadcast %25 : vector<1x128xf32> to vector<16x128xf32>
    %27 = arith.mulf %24, %26 : vector<16x128xf32>
    %c0_14 = arith.constant 0 : index
    %c0_15 = arith.constant 0 : index
    %28 = vector.load %arg5[%c0_14, %c0_15] : memref<1x128xf32, #tpu.memory_space<vmem>>, vector<1x128xf32>
    %29 = vector.broadcast %28 : vector<1x128xf32> to vector<16x128xf32>
    %30 = arith.addf %27, %29 : vector<16x128xf32>
    %31 = arith.truncf %30 : vector<16x128xf32> to vector<16x128xbf16>
    %c0_16 = arith.constant 0 : index
    %c0_17 = arith.constant 0 : index
    %c0_18 = arith.constant 0 : index
    %32 = vector.load %arg6[%c0_16, %c0_17, %c0_18] : memref<1x16x128xbf16, #tpu.memory_space<vmem>>, vector<1x16x128xbf16>
    %33 = vector.shape_cast %32 : vector<1x16x128xbf16> to vector<16x128xbf16>
    %34 = vector.shape_cast %31 : vector<16x128xbf16> to vector<1x16x128xbf16>
    tpu.vector_store %arg6[%c0_16, %c0_17, %c0_18], %34 {strides = array<i32>} : memref<1x16x128xbf16, #tpu.memory_space<vmem>>, vector<1x16x128xbf16>,
    return
  }
  func.func @transform_0(%arg0: i32) -> (i32, i32, i32) {
    %c0_i32 = arith.constant 0 : i32
    %c0_i32_0 = arith.constant 0 : i32
    %c0_i32_1 = arith.constant 0 : i32
    return %arg0, %c0_i32, %c0_i32_0 : i32, i32, i32
  }
  func.func @transform_1(%arg0: i32) -> (i32, i32) {
    %c0_i32 = arith.constant 0 : i32
    %c0_i32_0 = arith.constant 0 : i32
    %c0_i32_1 = arith.constant 0 : i32
    return %c0_i32, %c0_i32_0 : i32, i32
  }
  func.func @transform_2(%arg0: i32) -> (i32, i32, i32) {
    %c0_i32 = arith.constant 0 : i32
    %c0_i32_0 = arith.constant 0 : i32
    %c0_i32_1 = arith.constant 0 : i32
    %c0_i32_2 = arith.constant 0 : i32
    return %c0_i32, %c0_i32_0, %c0_i32_1 : i32, i32, i32
  }
  func.func @transform_3(%arg0: i32) -> (i32, i32) {
    %c0_i32 = arith.constant 0 : i32
    %c0_i32_0 = arith.constant 0 : i32
    %c0_i32_1 = arith.constant 0 : i32
    return %c0_i32, %c0_i32_0 : i32, i32
  }
  func.func @transform_4(%arg0: i32) -> (i32, i32) {
    %c0_i32 = arith.constant 0 : i32
    %c0_i32_0 = arith.constant 0 : i32
    %c0_i32_1 = arith.constant 0 : i32
    return %c0_i32, %c0_i32_0 : i32, i32
  }
  func.func @transform_5(%arg0: i32) -> (i32, i32, i32) {
    %c0_i32 = arith.constant 0 : i32
    %c0_i32_0 = arith.constant 0 : i32
    %c0_i32_1 = arith.constant 0 : i32
    return %arg0, %c0_i32, %c0_i32_0 : i32, i32, i32
  }
}

module attributes {stable_mosaic.version = 11 : i64} {
  func.func @_attn_relevance_kernel(%arg0: i32, %arg1: memref<1x16x128xbf16, #tpu.memory_space<vmem>>, %arg2: memref<1x128x128xbf16, #tpu.memory_space<vmem>>, %arg3: memref<1x1x16xf32, #tpu.memory_space<vmem>>, %arg4: memref<1x128x128xf32, #tpu.memory_space<vmem>>) attributes {dimension_semantics = [#tpu.dimension_semantics<parallel>], iteration_bounds = array<i64: 2>, scalar_prefetch = 0 : i64, scratch_operands = 0 : i64, tpu.core_type = #tpu.core_type<tc>, window_params = [{transform_indices = @transform_0, window_bounds = array<i64: 1, 16, 128>}, {transform_indices = @transform_1, window_bounds = array<i64: 1, 128, 128>}, {transform_indices = @transform_2, window_bounds = array<i64: 1, 1, 16>}, {transform_indices = @transform_3, window_bounds = array<i64: 1, 128, 128>}]} {
    %c0 = arith.constant 0 : index
    %c0_0 = arith.constant 0 : index
    %c0_1 = arith.constant 0 : index
    %0 = vector.load %arg1[%c0, %c0_0, %c0_1] : memref<1x16x128xbf16, #tpu.memory_space<vmem>>, vector<1x16x128xbf16>
    %1 = vector.shape_cast %0 : vector<1x16x128xbf16> to vector<16x128xbf16>
    %c0_2 = arith.constant 0 : index
    %c0_3 = arith.constant 0 : index
    %c0_4 = arith.constant 0 : index
    %2 = vector.load %arg2[%c0_2, %c0_3, %c0_4] : memref<1x128x128xbf16, #tpu.memory_space<vmem>>, vector<1x128x128xbf16>
    %3 = vector.shape_cast %2 : vector<1x128x128xbf16> to vector<128x128xbf16>
    %4 = tpu.transpose %3, [1, 0] : vector<128x128xbf16> -> vector<128x128xbf16>
    %cst = arith.constant dense<0.000000e+00> : vector<16x128xf32>
    %5 = tpu.matmul %1, %4, %cst {dimension_numbers = #tpu.dot_dimension_numbers<[1], [0], [0], [1], [0, 0, 1, 1], [], []>} : vector<16x128xbf16>, vector<128x128xbf16>, vector<16x128xf32> -> vector<16x128xf32>
    %6 = tpu.iota {dimensions = array<i32: 1>} : vector<1x128xi32>
    %c8_i32 = arith.constant 8 : i32
    %7 = vector.broadcast %c8_i32 : i32 to vector<1x128xi32>
    %8 = arith.cmpi slt, %6, %7 : vector<1x128xi32>
    %9 = arith.extui %8 : vector<1x128xi1> to vector<1x128xi32>
    %10 = arith.sitofp %9 : vector<1x128xi32> to vector<1x128xf32>
    %11 = tpu.iota {dimensions = array<i32: 0>} : vector<16x1xi32>
    %c16_i32 = arith.constant 16 : i32
    %12 = vector.broadcast %c16_i32 : i32 to vector<16x1xi32>
    %13 = arith.cmpi slt, %11, %12 : vector<16x1xi32>
    %14 = arith.extui %13 : vector<16x1xi1> to vector<16x1xi32>
    %15 = arith.sitofp %14 : vector<16x1xi32> to vector<16x1xf32>
    %cst_5 = arith.constant dense<0xFF800000> : vector<16xf32>
    %16 = vector.multi_reduction <maximumf>, %5, %cst_5 [1] : vector<16x128xf32> to vector<16xf32>
    %17 = vector.shape_cast %16 : vector<16xf32> to vector<16x1xf32>
    %18 = vector.broadcast %17 : vector<16x1xf32> to vector<16x128xf32>
    %19 = arith.subf %5, %18 : vector<16x128xf32>
    %20 = math.exp %19 : vector<16x128xf32>
    %21 = vector.broadcast %10 : vector<1x128xf32> to vector<16x128xf32>
    %22 = arith.mulf %20, %21 : vector<16x128xf32>
    %cst_6 = arith.constant dense<0.000000e+00> : vector<16xf32>
    %23 = vector.multi_reduction <add>, %22, %cst_6 [1] : vector<16x128xf32> to vector<16xf32>
    %24 = vector.shape_cast %23 : vector<16xf32> to vector<16x1xf32>
    %25 = tpu.reciprocal %24 {approx = true} : vector<16x1xf32> -> vector<16x1xf32>
    %26 = vector.broadcast %25 : vector<16x1xf32> to vector<16x128xf32>
    %27 = arith.mulf %22, %26 : vector<16x128xf32>
    %28 = vector.broadcast %15 : vector<16x1xf32> to vector<16x128xf32>
    %29 = arith.mulf %27, %28 : vector<16x128xf32>
    %cst_7 = arith.constant dense<0.000000e+00> : vector<128xf32>
    %30 = vector.multi_reduction <add>, %29, %cst_7 [0] : vector<16x128xf32> to vector<128xf32>
    %31 = vector.shape_cast %30 : vector<128xf32> to vector<1x128xf32>
    %cst_8 = arith.constant 6.250000e-02 : f32
    %32 = vector.broadcast %cst_8 : f32 to vector<1x128xf32>
    %33 = arith.mulf %31, %32 : vector<1x128xf32>
    %cst_9 = arith.constant dense<0.000000e+00> : vector<1xf32>
    %34 = vector.multi_reduction <add>, %33, %cst_9 [1] : vector<1x128xf32> to vector<1xf32>
    %35 = vector.shape_cast %34 : vector<1xf32> to vector<1x1xf32>
    %cst_10 = arith.constant 1.250000e-01 : f32
    %36 = vector.broadcast %cst_10 : f32 to vector<1x1xf32>
    %37 = arith.mulf %35, %36 : vector<1x1xf32>
    %38 = vector.broadcast %37 : vector<1x1xf32> to vector<1x128xf32>
    %39 = arith.cmpf oge, %33, %38 : vector<1x128xf32>
    %cst_11 = arith.constant 1.000000e+00 : f32
    %cst_12 = arith.constant 0.000000e+00 : f32
    %40 = vector.broadcast %cst_11 : f32 to vector<1x128xf32>
    %41 = vector.broadcast %cst_12 : f32 to vector<1x128xf32>
    %42 = arith.select %39, %40, %41 : vector<1x128xi1>, vector<1x128xf32>
    %43 = arith.mulf %42, %10 : vector<1x128xf32>
    %44 = vector.broadcast %43 : vector<1x128xf32> to vector<16x128xf32>
    %45 = arith.mulf %29, %44 : vector<16x128xf32>
    %cst_13 = arith.constant dense<0.000000e+00> : vector<1xf32>
    %46 = vector.multi_reduction <add>, %43, %cst_13 [1] : vector<1x128xf32> to vector<1xf32>
    %47 = vector.shape_cast %46 : vector<1xf32> to vector<1x1xf32>
    %cst_14 = arith.constant 9.99999974E-6 : f32
    %48 = vector.broadcast %cst_14 : f32 to vector<1x1xf32>
    %49 = arith.maximumf %47, %48 : vector<1x1xf32>
    %50 = tpu.transpose %45, [1, 0] : vector<16x128xf32> -> vector<128x16xf32>
    %cst_15 = arith.constant dense<0.000000e+00> : vector<16xf32>
    %51 = vector.multi_reduction <add>, %50, %cst_15 [0] : vector<128x16xf32> to vector<16xf32>
    %52 = vector.shape_cast %51 : vector<16xf32> to vector<1x16xf32>
    %53 = tpu.reciprocal %49 {approx = true} : vector<1x1xf32> -> vector<1x1xf32>
    %54 = vector.broadcast %53 : vector<1x1xf32> to vector<1x16xf32>
    %55 = arith.mulf %52, %54 : vector<1x16xf32>
    %c0_16 = arith.constant 0 : index
    %c0_17 = arith.constant 0 : index
    %c0_18 = arith.constant 0 : index
    %56 = vector.load %arg3[%c0_16, %c0_17, %c0_18] : memref<1x1x16xf32, #tpu.memory_space<vmem>>, vector<1x1x16xf32>
    %57 = vector.shape_cast %56 : vector<1x1x16xf32> to vector<1x16xf32>
    %58 = vector.shape_cast %55 : vector<1x16xf32> to vector<1x1x16xf32>
    tpu.vector_store %arg3[%c0_16, %c0_17, %c0_18], %58 {strides = array<i32>} : memref<1x1x16xf32, #tpu.memory_space<vmem>>, vector<1x1x16xf32>,
    %cst_19 = arith.constant dense<0.000000e+00> : vector<128x128xf32>
    %59 = tpu.matmul %50, %45, %cst_19 {dimension_numbers = #tpu.dot_dimension_numbers<[1], [0], [0], [1], [0, 0, 1, 1], [], []>} : vector<128x16xf32>, vector<16x128xf32>, vector<128x128xf32> -> vector<128x128xf32>
    %c0_20 = arith.constant 0 : index
    %c0_21 = arith.constant 0 : index
    %c0_22 = arith.constant 0 : index
    %60 = vector.load %arg4[%c0_20, %c0_21, %c0_22] : memref<1x128x128xf32, #tpu.memory_space<vmem>>, vector<1x128x128xf32>
    %61 = vector.shape_cast %60 : vector<1x128x128xf32> to vector<128x128xf32>
    %62 = vector.shape_cast %59 : vector<128x128xf32> to vector<1x128x128xf32>
    tpu.vector_store %arg4[%c0_20, %c0_21, %c0_22], %62 {strides = array<i32>} : memref<1x128x128xf32, #tpu.memory_space<vmem>>, vector<1x128x128xf32>,
    return
  }
  func.func @transform_0(%arg0: i32) -> (i32, i32, i32) {
    %c0_i32 = arith.constant 0 : i32
    %c0_i32_0 = arith.constant 0 : i32
    %c0_i32_1 = arith.constant 0 : i32
    return %arg0, %c0_i32, %c0_i32_0 : i32, i32, i32
  }
  func.func @transform_1(%arg0: i32) -> (i32, i32, i32) {
    %c0_i32 = arith.constant 0 : i32
    %c0_i32_0 = arith.constant 0 : i32
    %c0_i32_1 = arith.constant 0 : i32
    return %arg0, %c0_i32, %c0_i32_0 : i32, i32, i32
  }
  func.func @transform_2(%arg0: i32) -> (i32, i32, i32) {
    %c0_i32 = arith.constant 0 : i32
    %c0_i32_0 = arith.constant 0 : i32
    %c0_i32_1 = arith.constant 0 : i32
    return %arg0, %c0_i32, %c0_i32_0 : i32, i32, i32
  }
  func.func @transform_3(%arg0: i32) -> (i32, i32, i32) {
    %c0_i32 = arith.constant 0 : i32
    %c0_i32_0 = arith.constant 0 : i32
    %c0_i32_1 = arith.constant 0 : i32
    return %arg0, %c0_i32, %c0_i32_0 : i32, i32, i32
  }
}

module attributes {stable_mosaic.version = 11 : i64} {
  func.func @_linear_layernorm_kernel(%arg0: i32, %arg1: memref<32x128xbf16, #tpu.memory_space<vmem>>, %arg2: memref<128x128xbf16, #tpu.memory_space<vmem>>, %arg3: memref<1x128xf32, #tpu.memory_space<vmem>>, %arg4: memref<1x128xf32, #tpu.memory_space<vmem>>, %arg5: memref<1x128xf32, #tpu.memory_space<vmem>>, %arg6: memref<32x128xbf16, #tpu.memory_space<vmem>>) attributes {dimension_semantics = [#tpu.dimension_semantics<parallel>], iteration_bounds = array<i64: 1>, scalar_prefetch = 0 : i64, scratch_operands = 0 : i64, tpu.core_type = #tpu.core_type<tc>, window_params = [{transform_indices = @transform_0, window_bounds = array<i64: 32, 128>}, {pipeline_mode = #tpu.pipeline_mode<synchronous>, transform_indices = @transform_1, window_bounds = array<i64: 128, 128>}, {pipeline_mode = #tpu.pipeline_mode<synchronous>, transform_indices = @transform_2, window_bounds = array<i64: 1, 128>}, {pipeline_mode = #tpu.pipeline_mode<synchronous>, transform_indices = @transform_3, window_bounds = array<i64: 1, 128>}, {pipeline_mode = #tpu.pipeline_mode<synchronous>, transform_indices = @transform_4, window_bounds = array<i64: 1, 128>}, {transform_indices = @transform_5, window_bounds = array<i64: 32, 128>}]} {
    %c0 = arith.constant 0 : index
    %c0_0 = arith.constant 0 : index
    %0 = vector.load %arg1[%c0, %c0_0] : memref<32x128xbf16, #tpu.memory_space<vmem>>, vector<32x128xbf16>
    %c0_1 = arith.constant 0 : index
    %c0_2 = arith.constant 0 : index
    %1 = vector.load %arg2[%c0_1, %c0_2] : memref<128x128xbf16, #tpu.memory_space<vmem>>, vector<128x128xbf16>
    %cst = arith.constant dense<0.000000e+00> : vector<32x128xf32>
    %2 = tpu.matmul %0, %1, %cst {dimension_numbers = #tpu.dot_dimension_numbers<[1], [0], [0], [1], [0, 0, 1, 1], [], []>} : vector<32x128xbf16>, vector<128x128xbf16>, vector<32x128xf32> -> vector<32x128xf32>
    %c0_3 = arith.constant 0 : index
    %c0_4 = arith.constant 0 : index
    %3 = vector.load %arg3[%c0_3, %c0_4] : memref<1x128xf32, #tpu.memory_space<vmem>>, vector<1x128xf32>
    %4 = vector.broadcast %3 : vector<1x128xf32> to vector<32x128xf32>
    %5 = arith.addf %2, %4 : vector<32x128xf32>
    %cst_5 = arith.constant dense<0.000000e+00> : vector<32xf32>
    %6 = vector.multi_reduction <add>, %5, %cst_5 [1] : vector<32x128xf32> to vector<32xf32>
    %7 = vector.shape_cast %6 : vector<32xf32> to vector<32x1xf32>
    %cst_6 = arith.constant 1.280000e+02 : f32
    %8 = vector.broadcast %cst_6 : f32 to vector<32x1xf32>
    %9 = arith.divf %7, %8 : vector<32x1xf32>
    %10 = vector.broadcast %9 : vector<32x1xf32> to vector<32x128xf32>
    %11 = arith.subf %5, %10 : vector<32x128xf32>
    %12 = arith.mulf %11, %11 : vector<32x128xf32>
    %cst_7 = arith.constant dense<0.000000e+00> : vector<32xf32>
    %13 = vector.multi_reduction <add>, %12, %cst_7 [1] : vector<32x128xf32> to vector<32xf32>
    %14 = vector.shape_cast %13 : vector<32xf32> to vector<32x1xf32>
    %cst_8 = arith.constant 1.280000e+02 : f32
    %15 = vector.broadcast %cst_8 : f32 to vector<32x1xf32>
    %16 = arith.divf %14, %15 : vector<32x1xf32>
    %17 = vector.broadcast %9 : vector<32x1xf32> to vector<32x128xf32>
    %18 = arith.subf %5, %17 : vector<32x128xf32>
    %cst_9 = arith.constant 9.99999974E-6 : f32
    %19 = vector.broadcast %cst_9 : f32 to vector<32x1xf32>
    %20 = arith.addf %16, %19 : vector<32x1xf32>
    %21 = math.rsqrt %20 : vector<32x1xf32>
    %22 = vector.broadcast %21 : vector<32x1xf32> to vector<32x128xf32>
    %23 = arith.mulf %18, %22 : vector<32x128xf32>
    %c0_10 = arith.constant 0 : index
    %c0_11 = arith.constant 0 : index
    %24 = vector.load %arg4[%c0_10, %c0_11] : memref<1x128xf32, #tpu.memory_space<vmem>>, vector<1x128xf32>
    %25 = vector.broadcast %24 : vector<1x128xf32> to vector<32x128xf32>
    %26 = arith.mulf %23, %25 : vector<32x128xf32>
    %c0_12 = arith.constant 0 : index
    %c0_13 = arith.constant 0 : index
    %27 = vector.load %arg5[%c0_12, %c0_13] : memref<1x128xf32, #tpu.memory_space<vmem>>, vector<1x128xf32>
    %28 = vector.broadcast %27 : vector<1x128xf32> to vector<32x128xf32>
    %29 = arith.addf %26, %28 : vector<32x128xf32>
    %30 = arith.truncf %29 : vector<32x128xf32> to vector<32x128xbf16>
    %c0_14 = arith.constant 0 : index
    %c0_15 = arith.constant 0 : index
    %31 = vector.load %arg6[%c0_14, %c0_15] : memref<32x128xbf16, #tpu.memory_space<vmem>>, vector<32x128xbf16>
    tpu.vector_store %arg6[%c0_14, %c0_15], %30 {strides = array<i32>} : memref<32x128xbf16, #tpu.memory_space<vmem>>, vector<32x128xbf16>,
    return
  }
  func.func @transform_0(%arg0: i32) -> (i32, i32) {
    %c0_i32 = arith.constant 0 : i32
    %c0_i32_0 = arith.constant 0 : i32
    return %arg0, %c0_i32 : i32, i32
  }
  func.func @transform_1(%arg0: i32) -> (i32, i32) {
    %c0_i32 = arith.constant 0 : i32
    %c0_i32_0 = arith.constant 0 : i32
    %c0_i32_1 = arith.constant 0 : i32
    return %c0_i32, %c0_i32_0 : i32, i32
  }
  func.func @transform_2(%arg0: i32) -> (i32, i32) {
    %c0_i32 = arith.constant 0 : i32
    %c0_i32_0 = arith.constant 0 : i32
    %c0_i32_1 = arith.constant 0 : i32
    return %c0_i32, %c0_i32_0 : i32, i32
  }
  func.func @transform_3(%arg0: i32) -> (i32, i32) {
    %c0_i32 = arith.constant 0 : i32
    %c0_i32_0 = arith.constant 0 : i32
    %c0_i32_1 = arith.constant 0 : i32
    return %c0_i32, %c0_i32_0 : i32, i32
  }
  func.func @transform_4(%arg0: i32) -> (i32, i32) {
    %c0_i32 = arith.constant 0 : i32
    %c0_i32_0 = arith.constant 0 : i32
    %c0_i32_1 = arith.constant 0 : i32
    return %c0_i32, %c0_i32_0 : i32, i32
  }
  func.func @transform_5(%arg0: i32) -> (i32, i32) {
    %c0_i32 = arith.constant 0 : i32
    %c0_i32_0 = arith.constant 0 : i32
    return %arg0, %c0_i32 : i32, i32
  }
}

module attributes {stable_mosaic.version = 11 : i64} {
  func.func @_matmul_bias_kernel(%arg0: i32, %arg1: i32, %arg2: i32, %arg3: memref<48x128xbf16, #tpu.memory_space<vmem>>, %arg4: memref<128x256xbf16, #tpu.memory_space<vmem>>, %arg5: memref<1x256xf32, #tpu.memory_space<vmem>>, %arg6: memref<48x256xf32, #tpu.memory_space<vmem>>, %arg7: memref<48x256xf32, #tpu.memory_space<vmem>>) attributes {dimension_semantics = [#tpu.dimension_semantics<parallel>, #tpu.dimension_semantics<parallel>, #tpu.dimension_semantics<arbitrary>], iteration_bounds = array<i64: 1, 1, 1>, scalar_prefetch = 0 : i64, scratch_operands = 1 : i64, tpu.core_type = #tpu.core_type<tc>, window_params = [{transform_indices = @transform_0, window_bounds = array<i64: 48, 128>}, {transform_indices = @transform_1, window_bounds = array<i64: 128, 256>}, {transform_indices = @transform_2, window_bounds = array<i64: 1, 256>}, {transform_indices = @transform_3, window_bounds = array<i64: 48, 256>}]} {
    %c0_i32 = arith.constant 0 : i32
    %0 = arith.cmpi eq, %arg2, %c0_i32 : i32
    %1 = arith.extui %0 : i1 to i32
    %c0_i32_0 = arith.constant 0 : i32
    %2 = arith.cmpi ne, %1, %c0_i32_0 : i32
    scf.if %2 {
      %cst_10 = arith.constant 0.000000e+00 : f32
      %12 = vector.broadcast %cst_10 : f32 to vector<48x256xf32>
      %c0_11 = arith.constant 0 : index
      %c0_12 = arith.constant 0 : index
      %13 = vector.load %arg7[%c0_11, %c0_12] : memref<48x256xf32, #tpu.memory_space<vmem>>, vector<48x256xf32>
      tpu.vector_store %arg7[%c0_11, %c0_12], %12 {strides = array<i32>} : memref<48x256xf32, #tpu.memory_space<vmem>>, vector<48x256xf32>,
    } else {
    }
    %c0 = arith.constant 0 : index
    %c0_1 = arith.constant 0 : index
    %3 = vector.load %arg7[%c0, %c0_1] : memref<48x256xf32, #tpu.memory_space<vmem>>, vector<48x256xf32>
    %c0_2 = arith.constant 0 : index
    %c0_3 = arith.constant 0 : index
    %4 = vector.load %arg3[%c0_2, %c0_3] : memref<48x128xbf16, #tpu.memory_space<vmem>>, vector<48x128xbf16>
    %c0_4 = arith.constant 0 : index
    %c0_5 = arith.constant 0 : index
    %5 = vector.load %arg4[%c0_4, %c0_5] : memref<128x256xbf16, #tpu.memory_space<vmem>>, vector<128x256xbf16>
    %cst = arith.constant dense<0.000000e+00> : vector<48x256xf32>
    %6 = tpu.matmul %4, %5, %cst {dimension_numbers = #tpu.dot_dimension_numbers<[1], [0], [0], [1], [0, 0, 1, 1], [], []>} : vector<48x128xbf16>, vector<128x256xbf16>, vector<48x256xf32> -> vector<48x256xf32>
    %7 = arith.addf %3, %6 : vector<48x256xf32>
    %c0_6 = arith.constant 0 : index
    %c0_7 = arith.constant 0 : index
    %8 = vector.load %arg7[%c0_6, %c0_7] : memref<48x256xf32, #tpu.memory_space<vmem>>, vector<48x256xf32>
    tpu.vector_store %arg7[%c0_6, %c0_7], %7 {strides = array<i32>} : memref<48x256xf32, #tpu.memory_space<vmem>>, vector<48x256xf32>,
    %c0_i32_8 = arith.constant 0 : i32
    %9 = arith.cmpi eq, %arg2, %c0_i32_8 : i32
    %10 = arith.extui %9 : i1 to i32
    %c0_i32_9 = arith.constant 0 : i32
    %11 = arith.cmpi ne, %10, %c0_i32_9 : i32
    scf.if %11 {
      %c0_10 = arith.constant 0 : index
      %c0_11 = arith.constant 0 : index
      %12 = vector.load %arg7[%c0_10, %c0_11] : memref<48x256xf32, #tpu.memory_space<vmem>>, vector<48x256xf32>
      %c0_12 = arith.constant 0 : index
      %c0_13 = arith.constant 0 : index
      %13 = vector.load %arg5[%c0_12, %c0_13] : memref<1x256xf32, #tpu.memory_space<vmem>>, vector<1x256xf32>
      %14 = vector.broadcast %13 : vector<1x256xf32> to vector<48x256xf32>
      %15 = arith.addf %12, %14 : vector<48x256xf32>
      %c0_14 = arith.constant 0 : index
      %c0_15 = arith.constant 0 : index
      %16 = vector.load %arg6[%c0_14, %c0_15] : memref<48x256xf32, #tpu.memory_space<vmem>>, vector<48x256xf32>
      tpu.vector_store %arg6[%c0_14, %c0_15], %15 {strides = array<i32>} : memref<48x256xf32, #tpu.memory_space<vmem>>, vector<48x256xf32>,
    } else {
    }
    return
  }
  func.func @transform_0(%arg0: i32, %arg1: i32, %arg2: i32) -> (i32, i32) {
    %c0_i32 = arith.constant 0 : i32
    return %arg0, %arg2 : i32, i32
  }
  func.func @transform_1(%arg0: i32, %arg1: i32, %arg2: i32) -> (i32, i32) {
    %c0_i32 = arith.constant 0 : i32
    return %arg2, %arg1 : i32, i32
  }
  func.func @transform_2(%arg0: i32, %arg1: i32, %arg2: i32) -> (i32, i32) {
    %c0_i32 = arith.constant 0 : i32
    %c0_i32_0 = arith.constant 0 : i32
    return %c0_i32, %arg1 : i32, i32
  }
  func.func @transform_3(%arg0: i32, %arg1: i32, %arg2: i32) -> (i32, i32) {
    %c0_i32 = arith.constant 0 : i32
    return %arg0, %arg1 : i32, i32
  }
}

</mosaic_0001>

<llo_original>
// kernel: sparsevlm_forward.8
$region0: #{sparsevlm_forward.8}
  #allocation0 [shape = 'u32[]', space=smem, size = 0x4, offset = 0x4, fixed_abs, tag = 'smem constant byte address 0x4 - core index']
  #allocation1 [shape = 'u32[144,128]{1,0:T(1,128)}', space=vmem, size = 0x12000, scoped, tag = 'internal scratch']
  %s0 = inlined_call_operand.vmem [shape: f32[16,128], index: 0, kind: input, shape index: {}]
  %s1 = inlined_call_operand.vmem [shape: f32[1,128], index: 1, kind: input, shape index: {}]
  %s2 = inlined_call_operand.vmem [shape: f32[1,128], index: 2, kind: input, shape index: {}]
  %s3 = inlined_call_operand.vmem [shape: bf16[16,128], index: 3, kind: output, shape index: {}]
  %s4 = sld [smem:[#allocation0]]
  $region22: #{sparsevlm_forward.8} parent=0
    _
  %s6 = ssub.s32 1, %s4
  %s7 = scalar_select 0, %s6, %s4
  // Predicated region
  $region2: #{sparsevlm_forward.8} parent=0 // pred_check
    _
  $region3: #{sparsevlm_forward.8} parent=0 // pred_check_branch
    %9 = sbr.rel (0) target = $region5
  $region4: #{sparsevlm_forward.8} parent=0 // pred_region
    _
  $region5: #{sparsevlm_forward.8} parent=0 // pred_fallthru
    _
  // Predicated region
  $region6: #{sparsevlm_forward.8} parent=0 // pred_check
    _
  $region7: #{sparsevlm_forward.8} parent=0 // pred_check_branch
    %11 = sbr.rel (0) target = $region9
  $region8: #{sparsevlm_forward.8} parent=0 // pred_region
    _
  $region9: #{sparsevlm_forward.8} parent=0 // pred_fallthru
    _
  // Predicated region
  $region10: #{sparsevlm_forward.8} parent=0 // pred_check
    _
  $region11: #{sparsevlm_forward.8} parent=0 // pred_check_branch
    %13 = sbr.rel (0) target = $region13
  $region12: #{sparsevlm_forward.8} parent=0 // pred_region
    _
  $region13: #{sparsevlm_forward.8} parent=0 // pred_fallthru
    _
  %v14 = vld [vmem:[%s0] sm:$0xff]
  %v15 = vld [vmem:[%s0 + $0x8] sm:$0xff]
  %16 = vadd.xlane.f32.xlu0 %v14
  %v17 = vpop.xlane.xlu0 %16
  %18 = vadd.xlane.f32.xlu0 %v15
  %v19 = vpop.xlane.xlu0 %18
  %v20 = vrcp.pop 128.0
  %v21 = vmul.f32 %v17, %v20
  %v22 = vmul.f32 %v19, %v20
  %v23 = vsub.f32 %v14, %v21
  %v24 = vsub.f32 %v15, %v22
  %v25 = vmul.f32 %v23, %v23
  %v26 = vmul.f32 %v24, %v24
  %27 = vadd.xlane.f32.xlu0 %v25
  %v28 = vpop.xlane.xlu0 %27
  %29 = vadd.xlane.f32.xlu0 %v26
  %v30 = vpop.xlane.xlu0 %29
  %v31 = vmul.f32 %v28, %v20
  %v32 = vmul.f32 %v30, %v20
  %v33 = vadd.f32 %v31, 1e-05
  %v34 = vadd.f32 %v32, 1e-05
  %v35 = vrsqrt.pop %v33
  %v36 = vrsqrt.pop %v34
  %v37 = vmul.f32 %v23, %v35
  %v38 = vmul.f32 %v24, %v36
  %v39 = vld [vmem:[%s1] sm:$0x1]
  %v41 = vlaneseq
  %v42 = vshrl.u32 %v41, 7
  %v43 = vsub.s32 0, %v42
  %v44 = vrot.slane %v39, %v43
  %v46 = vmul.f32 %v37, %v44
  %v47 = vmul.f32 %v38, %v44
  %v48 = vld [vmem:[%s2] sm:$0x1]
  %v50 = vlaneseq
  %v51 = vshrl.u32 %v50, 7
  %v52 = vsub.s32 0, %v51
  %v53 = vrot.slane %v48, %v52
  %v55 = vadd.f32 %v46, %v53
  %v56 = vadd.f32 %v47, %v53
  %v57 = vpack.c.bf16 %v56, %v55
  %v59 = vunpack.c.l.b16 %v57
  %v60 = vunpack.c.h.b16 %v57
  %v61 = vpack.c.b16 %v59, %v59
  %v62 = vpack.c.b16 %v60, %v60
  %65 = vst [vmem:[%s3] sm:$0xf] %v61
  %66 = vst [vmem:[%s3 + $0x4] sm:$0xf] %v62
  // Predicated region
  $region14: #{sparsevlm_forward.8} parent=0 // pred_check
    _
  $region15: #{sparsevlm_forward.8} parent=0 // pred_check_branch
    %68 = sbr.rel (0) target = $region17
  $region16: #{sparsevlm_forward.8} parent=0 // pred_region
    _
  $region17: #{sparsevlm_forward.8} parent=0 // pred_fallthru
    _
  // Predicated region
  $region18: #{sparsevlm_forward.8} parent=0 // pred_check
    _
  $region19: #{sparsevlm_forward.8} parent=0 // pred_check_branch
    %70 = sbr.rel (0) target = $region21
  $region20: #{sparsevlm_forward.8} parent=0 // pred_region
    _
  $region21: #{sparsevlm_forward.8} parent=0 // pred_fallthru
    _

// kernel: neg.0
$region0: #{neg.0}
  #allocation0 [shape = 's32[1]{0}', space=sflag, size = 0x4, scoped, tag = 'scoped memory for neg.0']
  %s0 = inlined_call_operand.vmem [shape: f32[2,1,16], index: 0, kind: input, shape index: {}]
  %s1 = inlined_call_operand.vmem [shape: f32[2,1,16], index: 1, kind: output, shape index: {}]
  %v2 = vld [vmem:[%s0] sm:$0x1]
  %3 = xla_tuple %v2
  %4 = xla_tuple %3
  %v5 = vxor.u32 %v2, 2147483648
  %6 = xla_tuple %v5
  %7 = vst [vmem:[%s1] sm:$0x1] %v5
  %s8 = scalar_lea.vmem %s0, 1
  %v9 = vld [vmem:[%s8] sm:$0x1]
  %10 = xla_tuple %v9
  %11 = xla_tuple %10
  %v12 = vxor.u32 %v9, 2147483648
  %13 = xla_tuple %v12
  %s14 = scalar_lea.vmem %s1, 1
  %15 = vst [vmem:[%s14] sm:$0x1] %v12

// kernel: sparsevlm_forward.5
$region0: #{sparsevlm_forward.5}
  #allocation0 [shape = 'u32[]', space=smem, size = 0x4, offset = 0x4, fixed_abs, tag = 'smem constant byte address 0x4 - core index']
  #allocation1 [shape = 'u32[144,128]{1,0:T(1,128)}', space=vmem, size = 0x12000, scoped, tag = 'internal scratch']
  %s0 = inlined_call_operand.vmem [shape: bf16[2,16,192], index: 0, kind: input, shape index: {}]
  %s1 = inlined_call_operand.vmem [shape: bf16[192,128], index: 1, kind: input, shape index: {}]
  %s2 = inlined_call_operand.vmem [shape: f32[1,16,128], index: 2, kind: input, shape index: {}]
  %s3 = inlined_call_operand.vmem [shape: f32[1,128], index: 3, kind: input, shape index: {}]
  %s4 = inlined_call_operand.vmem [shape: f32[1,128], index: 4, kind: input, shape index: {}]
  %s5 = inlined_call_operand.vmem [shape: bf16[2,16,128], index: 5, kind: output, shape index: {}]
  %s6 = sld [smem:[#allocation0]]
  $region53: #{sparsevlm_forward.5} parent=0
    _
  %s8 = ssub.s32 1, %s6
  %s9 = scalar_select 0, %s8, %s6
  loop: start=0, step=1, limit=4
  $region2: #{sparsevlm_forward.5} parent=0 // loop_pre_header
    _
  $region3: #{sparsevlm_forward.5} parent=0 // loop_header
    %s11 = sphi 0, %s15
    %p12 = scmp.ge.s32.totalorder %s11, 4
    %s21 = sphi 0, %s23
    %s24 = sphi 0, %s21
    %s25 = sphi 0, %s24
    %s41 = sphi 0, %s25
    %s45 = sphi 0, %s45
    %s47 = sphi 0, %s45
    %s48 = sphi 0, %s47
    %s62 = sphi 0, %s48
    %s66 = sphi 0, %s66
    %s68 = sphi 0, %s66
    %s69 = sphi 0, %s68
    %s83 = sphi 0, %s69
    %s87 = sphi 0, %s87
    %s89 = sphi 0, %s87
    %s90 = sphi 0, %s89
    %s104 = sphi 0, %s90
    %s108 = sphi 0, %s108
    %s110 = sphi 0, %s108
    %s111 = sphi 0, %s110
    %s125 = sphi 0, %s111
    %s131 = sphi 0, %s133
    %s134 = sphi 0, %s131
    %s135 = sphi 0, %s134
    %s151 = sphi 0, %s135
  $region4: #{sparsevlm_forward.5} parent=0 // loop_header_branch
    %14 = sbr.rel (%p12) target = $region8
  $region5: #{sparsevlm_forward.5} parent=0 // loop_body
    %s16 = ssub.s32 %s11, 1
    %s17 = ssub.s32 %s11, 2
    %s18 = sadd.s32 %s11, 1
    %s19 = ssub.s32 %s11, %s18
    %p20 = scmp.eq.s32.totalorder %s19, 0
    %s22 = sadd.s32 %s21, 1
    %s23 = scalar_select %p20, %s21, %s22
    %p26 = pneg %p20
    %p27 = scmp.eq.s32.totalorder %s11, 1
    %p28 = por %p26, %p27
    %p29 = scmp.ne.s32.totalorder %s21, %s24
    %p30 = scmp.eq.s32.totalorder %s11, 0
    %p31 = por %p29, %p30
    %p32 = scmp.ne.s32.totalorder %s21, %s24
    %p33 = scmp.eq.s32.totalorder %s16, 1
    %p34 = por %p32, %p33
    %p35 = scmp.ne.s32.totalorder %s24, %s25
    %p36 = scmp.eq.s32.totalorder %s16, 0
    %p37 = por %p35, %p36
    %p38 = scmp.ne.s32.totalorder %s24, %s25
    %p39 = scmp.eq.s32.totalorder %s17, 1
    %p40 = por %p38, %p39
    %p42 = scmp.ne.s32.totalorder %s25, %s41
    %p43 = scmp.eq.s32.totalorder %s17, 0
    %p44 = por %p42, %p43
    %s46 = sadd.s32 %s45, 1
    %p49 = scmp.eq.s32.totalorder %s11, 1
    %p50 = scmp.ne.s32.totalorder %s45, %s47
    %p51 = scmp.eq.s32.totalorder %s11, 0
    %p52 = por %p50, %p51
    %p53 = scmp.ne.s32.totalorder %s45, %s47
    %p54 = scmp.eq.s32.totalorder %s16, 1
    %p55 = por %p53, %p54
    %p56 = scmp.ne.s32.totalorder %s47, %s48
    %p57 = scmp.eq.s32.totalorder %s16, 0
    %p58 = por %p56, %p57
    %p59 = scmp.ne.s32.totalorder %s47, %s48
    %p60 = scmp.eq.s32.totalorder %s17, 1
    %p61 = por %p59, %p60
    %p63 = scmp.ne.s32.totalorder %s48, %s62
    %p64 = scmp.eq.s32.totalorder %s17, 0
    %p65 = por %p63, %p64
    %s67 = sadd.s32 %s66, 1
    %p70 = scmp.eq.s32.totalorder %s11, 1
    %p71 = scmp.ne.s32.totalorder %s66, %s68
    %p72 = scmp.eq.s32.totalorder %s11, 0
    %p73 = por %p71, %p72
    %p74 = scmp.ne.s32.totalorder %s66, %s68
    %p75 = scmp.eq.s32.totalorder %s16, 1
    %p76 = por %p74, %p75
    %p77 = scmp.ne.s32.totalorder %s68, %s69
    %p78 = scmp.eq.s32.totalorder %s16, 0
    %p79 = por %p77, %p78
    %p80 = scmp.ne.s32.totalorder %s68, %s69
    %p81 = scmp.eq.s32.totalorder %s17, 1
    %p82 = por %p80, %p81
    %p84 = scmp.ne.s32.totalorder %s69, %s83
    %p85 = scmp.eq.s32.totalorder %s17, 0
    %p86 = por %p84, %p85
    %s88 = sadd.s32 %s87, 1
    %p91 = scmp.eq.s32.totalorder %s11, 1
    %p92 = scmp.ne.s32.totalorder %s87, %s89
    %p93 = scmp.eq.s32.totalorder %s11, 0
    %p94 = por %p92, %p93
    %p95 = scmp.ne.s32.totalorder %s87, %s89
    %p96 = scmp.eq.s32.totalorder %s16, 1
    %p97 = por %p95, %p96
    %p98 = scmp.ne.s32.totalorder %s89, %s90
    %p99 = scmp.eq.s32.totalorder %s16, 0
    %p100 = por %p98, %p99
    %p101 = scmp.ne.s32.totalorder %s89, %s90
    %p102 = scmp.eq.s32.totalorder %s17, 1
    %p103 = por %p101, %p102
    %p105 = scmp.ne.s32.totalorder %s90, %s104
    %p106 = scmp.eq.s32.totalorder %s17, 0
    %p107 = por %p105, %p106
    %s109 = sadd.s32 %s108, 1
    %p112 = scmp.eq.s32.totalorder %s11, 1
    %p113 = scmp.ne.s32.totalorder %s108, %s110
    %p114 = scmp.eq.s32.totalorder %s11, 0
    %p115 = por %p113, %p114
    %p116 = scmp.ne.s32.totalorder %s108, %s110
    %p117 = scmp.eq.s32.totalorder %s16, 1
    %p118 = por %p116, %p117
    %p119 = scmp.ne.s32.totalorder %s110, %s111
    %p120 = scmp.eq.s32.totalorder %s16, 0
    %p121 = por %p119, %p120
    %p122 = scmp.ne.s32.totalorder %s110, %s111
    %p123 = scmp.eq.s32.totalorder %s17, 1
    %p124 = por %p122, %p123
    %p126 = scmp.ne.s32.totalorder %s111, %s125
    %p127 = scmp.eq.s32.totalorder %s17, 0
    %p128 = por %p126, %p127
    %s129 = ssub.s32 %s11, %s18
    %p130 = scmp.eq.s32.totalorder %s129, 0
    %s132 = sadd.s32 %s131, 1
    %s133 = scalar_select %p130, %s131, %s132
    %p136 = pneg %p130
    %p137 = scmp.eq.s32.totalorder %s11, 1
    %p138 = por %p136, %p137
    %p139 = scmp.ne.s32.totalorder %s131, %s134
    %p140 = scmp.eq.s32.totalorder %s11, 0
    %p141 = por %p139, %p140
    %p142 = scmp.ne.s32.totalorder %s131, %s134
    %p143 = scmp.eq.s32.totalorder %s16, 1
    %p144 = por %p142, %p143
    %p145 = scmp.ne.s32.totalorder %s134, %s135
    %p146 = scmp.eq.s32.totalorder %s16, 0
    %p147 = por %p145, %p146
    %p148 = scmp.ne.s32.totalorder %s134, %s135
    %p149 = scmp.eq.s32.totalorder %s17, 1
    %p150 = por %p148, %p149
    %p152 = scmp.ne.s32.totalorder %s135, %s151
    %p153 = scmp.eq.s32.totalorder %s17, 0
    %p154 = por %p152, %p153
    %p155 = scmp.le.s32.totalorder 1, %s11
    %p156 = scmp.lt.s32.totalorder %s11, 3
    %p157 = pnand %p155, %p156
    %p158 = pneg %p157
    // Predicated region
    $region9: #{sparsevlm_forward.5} parent=5 // pred_check
      _
    $region10: #{sparsevlm_forward.5} parent=5 // pred_check_branch
      %160 = sbr.rel (%p157) target = $region12
    $region11: #{sparsevlm_forward.5} parent=5 // pred_region
      %s161 = ssub.s32 %s11, 1
      // Predicated region
      $region13: #{sparsevlm_forward.5} parent=11 // pred_check
        %p162 = pneg %p58
      $region14: #{sparsevlm_forward.5} parent=11 // pred_check_branch
        %164 = sbr.rel (%p162) target = $region16
      $region15: #{sparsevlm_forward.5} parent=11 // pred_region
        _
      $region16: #{sparsevlm_forward.5} parent=11 // pred_fallthru
        _
      // Predicated region
      $region17: #{sparsevlm_forward.5} parent=11 // pred_check
        %p165 = pneg %p79
      $region18: #{sparsevlm_forward.5} parent=11 // pred_check_branch
        %167 = sbr.rel (%p165) target = $region20
      $region19: #{sparsevlm_forward.5} parent=11 // pred_region
        _
      $region20: #{sparsevlm_forward.5} parent=11 // pred_fallthru
        _
      // Predicated region
      $region21: #{sparsevlm_forward.5} parent=11 // pred_check
        %p168 = pneg %p100
      $region22: #{sparsevlm_forward.5} parent=11 // pred_check_branch
        %170 = sbr.rel (%p168) target = $region24
      $region23: #{sparsevlm_forward.5} parent=11 // pred_region
        _
      $region24: #{sparsevlm_forward.5} parent=11 // pred_fallthru
        _
      // Predicated region
      $region25: #{sparsevlm_forward.5} parent=11 // pred_check
        %p171 = pneg %p121
      $region26: #{sparsevlm_forward.5} parent=11 // pred_check_branch
        %173 = sbr.rel (%p171) target = $region28
      $region27: #{sparsevlm_forward.5} parent=11 // pred_region
        _
      $region28: #{sparsevlm_forward.5} parent=11 // pred_fallthru
        _
    $region12: #{sparsevlm_forward.5} parent=5 // pred_fallthru
      _
    %p174 = scmp.lt.s32.totalorder %s11, 2
    // Predicated region
    $region29: #{sparsevlm_forward.5} parent=5 // pred_check
      %p175 = pneg %p174
    $region30: #{sparsevlm_forward.5} parent=5 // pred_check_branch
      %177 = sbr.rel (%p175) target = $region32
    $region31: #{sparsevlm_forward.5} parent=5 // pred_region
      // Predicated region
      $region33: #{sparsevlm_forward.5} parent=31 // pred_check
        %p178 = pneg %p31
      $region34: #{sparsevlm_forward.5} parent=31 // pred_check_branch
        %180 = sbr.rel (%p178) target = $region36
      $region35: #{sparsevlm_forward.5} parent=31 // pred_region
        %p181 = scmp.lt.s32.totalorder %s11, 1
        %s182 = scalar_select %p181, %s11, 1
        %s183 = smul.addr %s182, 4
        %s184 = smul.addr %s183, 4
        %s185 = scalar_lea.vmem %s0, %s184
      $region36: #{sparsevlm_forward.5} parent=31 // pred_fallthru
        _
    $region32: #{sparsevlm_forward.5} parent=5 // pred_fallthru
      _
    %p186 = scmp.le.s32.totalorder 1, %s11
    %p187 = scmp.lt.s32.totalorder %s11, 3
    %p188 = pnand %p186, %p187
    %p189 = pneg %p188
    // Predicated region
    $region37: #{sparsevlm_forward.5} parent=5 // pred_check
      _
    $region38: #{sparsevlm_forward.5} parent=5 // pred_check_branch
      %191 = sbr.rel (%p188) target = $region40
    $region39: #{sparsevlm_forward.5} parent=5 // pred_region
      %s192 = ssub.s32 %s11, 1
      %p193 = scmp.lt.s32.totalorder %s16, 1
      %s194 = scalar_select %p193, %s16, 1
      %s195 = smul.addr %s194, 4
      %s196 = smul.addr %s195, 4
      %s197 = scalar_lea.vmem %s0, %s196
      %p198 = pneg %p37
      %p199 = pneg %p34
      %p200 = pneg %p58
      %p201 = pneg %p55
      %p202 = pneg %p79
      %p203 = pneg %p76
      %p204 = pneg %p100
      %p205 = pneg %p97
      %p206 = pneg %p121
      %p207 = pneg %p118
      %p208 = pneg %p147
      %p209 = pneg %p144
      %p210 = scmp.lt.s32.totalorder %s16, 1
      %s211 = scalar_select %p210, %s16, 1
      %s212 = smul.addr %s211, 2
      %s213 = smul.addr %s212, 4
      %s214 = scalar_lea.vmem %s5, %s213
      %p215 = scmp.lt.s32.totalorder %s16, 1
      %s216 = scalar_select %p215, %s16, 1
      %s217 = smul.addr %s216, 4
      %s218 = smul.addr %s217, 4
      %s219 = scalar_lea.vmem %s0, %s218
      %p220 = scmp.lt.s32.totalorder %s16, 1
      %s221 = scalar_select %p220, %s16, 1
      %s222 = smul.addr %s221, 2
      %s223 = smul.addr %s222, 4
      %s224 = scalar_lea.vmem %s5, %s223
      %v226 = vld [vmem:[%s219] sm:$0xff]
      %v227 = vld [vmem:[%s219 + $0x8] sm:$0xff]
      %v228 = vld [vmem:[%s1] sm:$0xf]
      %v229 = vld [vmem:[%s1 + $0x4] sm:$0xf]
      %v230 = vld [vmem:[%s1 + $0x8] sm:$0xf]
      %v231 = vld [vmem:[%s1 + $0xc] sm:$0xf]
      %v232 = vld [vmem:[%s1 + $0x10] sm:$0xf]
      %v233 = vld [vmem:[%s1 + $0x14] sm:$0xf]
      %v234 = vld [vmem:[%s1 + $0x18] sm:$0xf]
      %v235 = vld [vmem:[%s1 + $0x1c] sm:$0xf]
      %v236 = vld [vmem:[%s1 + $0x20] sm:$0xf]
      %v237 = vld [vmem:[%s1 + $0x24] sm:$0xf]
      %v238 = vld [vmem:[%s1 + $0x28] sm:$0xf]
      %v239 = vld [vmem:[%s1 + $0x2c] sm:$0xf]
      %v240 = vld [vmem:[%s1 + $0x30] sm:$0xf]
      %v241 = vld [vmem:[%s1 + $0x34] sm:$0xf]
      %v242 = vld [vmem:[%s1 + $0x38] sm:$0xf]
      %v243 = vld [vmem:[%s1 + $0x3c] sm:$0xf]
      %v244 = vld [vmem:[%s1 + $0x40] sm:$0xf]
      %v245 = vld [vmem:[%s1 + $0x44] sm:$0xf]
      %v246 = vld [vmem:[%s1 + $0x48] sm:$0xf]
      %v247 = vld [vmem:[%s1 + $0x4c] sm:$0xf]
      %v248 = vld [vmem:[%s1 + $0x50] sm:$0xf]
      %v249 = vld [vmem:[%s1 + $0x54] sm:$0xf]
      %v250 = vld [vmem:[%s1 + $0x58] sm:$0xf]
      %v251 = vld [vmem:[%s1 + $0x5c] sm:$0xf]
      %v252 = vld [vmem:[%s2] sm:$0xff]
      %v253 = vld [vmem:[%s2 + $0x8] sm:$0xff]
      %v256 = vunpack.c.l.b16 %v226
      %v257 = vunpack.c.h.b16 %v226
      %v258 = vunpack.c.l.b16 %v227
      %v259 = vunpack.c.h.b16 %v227
      %v260 = vpack.c.b16 %v258, %v256
      %v261 = vpack.c.b16 %v259, %v257
      %v287 = vunpack.c.l.b16 %v228
      %v288 = vunpack.c.l.b16 %v229
      %v289 = vunpack.c.l.b16 %v230
      %v290 = vunpack.c.l.b16 %v231
      %v291 = vunpack.c.l.b16 %v232
      %v292 = vunpack.c.l.b16 %v233
      %v293 = vunpack.c.l.b16 %v234
      %v294 = vunpack.c.l.b16 %v235
      %v295 = vunpack.c.l.b16 %v236
      %v296 = vunpack.c.l.b16 %v237
      %v297 = vunpack.c.l.b16 %v238
      %v298 = vunpack.c.l.b16 %v239
      %v299 = vunpack.c.l.b16 %v240
      %v300 = vunpack.c.l.b16 %v241
      %v301 = vunpack.c.l.b16 %v242
      %v302 = vunpack.c.l.b16 %v243
      %v303 = vunpack.c.l.b16 %v244
      %v304 = vunpack.c.l.b16 %v245
      %v305 = vunpack.c.l.b16 %v246
      %v306 = vunpack.c.l.b16 %v247
      %v307 = vunpack.c.l.b16 %v248
      %v308 = vunpack.c.l.b16 %v249
      %v309 = vunpack.c.l.b16 %v250
      %v310 = vunpack.c.l.b16 %v251
      %v311 = vpack.c.b16 %v288, %v287
      %v312 = vpack.c.b16 %v290, %v289
      %v313 = vpack.c.b16 %v292, %v291
      %v314 = vpack.c.b16 %v294, %v293
      %v315 = vpack.c.b16 %v296, %v295
      %v316 = vpack.c.b16 %v298, %v297
      %v317 = vpack.c.b16 %v300, %v299
      %v318 = vpack.c.b16 %v302, %v301
      %v319 = vpack.c.b16 %v304, %v303
      %v320 = vpack.c.b16 %v306, %v305
      %v321 = vpack.c.b16 %v308, %v307
      %v322 = vpack.c.b16 %v310, %v309
      %vm335 = vcmask 523264
      %v337 = vsel %vm335, %v261, 0
      %339 = vmatprep.subr.bf16.mxu0 0
      %340 = vmatpush1.bf16.msra.mxu0 %v311
      %341 = vmatprep.subr.bf16.mxu0 0
      %342 = vmatpush1.bf16.msra.mxu0 %v312
      %343 = vmatprep.subr.bf16.mxu0 0
      %344 = vmatpush1.bf16.msra.mxu0 %v313
      %345 = vmatprep.subr.bf16.mxu0 0
      %346 = vmatpush1.bf16.msra.mxu0 %v314
      %347 = vmatprep.subr.bf16.mxu0 0
      %348 = vmatpush1.bf16.msra.mxu0 %v315
      %349 = vmatprep.subr.bf16.mxu0 0
      %350 = vmatpush1.bf16.msra.mxu0 %v316
      %351 = vmatprep.subr.bf16.mxu0 0
      %352 = vmatpush1.bf16.msra.mxu0 %v317
      %353 = vmatprep.subr.bf16.mxu0 0
      %354 = vmatpush1.bf16.msra.mxu0 %v318
      %355 = vmatprep.subr.bf16.mxu0 0
      %356 = vmatpush1.bf16.msra.mxu0 %v319
      %357 = vmatprep.subr.bf16.mxu0 0
      %358 = vmatpush1.bf16.msra.mxu0 %v320
      %359 = vmatprep.subr.bf16.mxu0 0
      %360 = vmatpush1.bf16.msra.mxu0 %v321
      %361 = vmatprep.subr.bf16.mxu0 0
      %362 = vmatpush1.bf16.msra.mxu0 %v322
      %363 = vmatprep.subr.bf16.mxu0 0
      %364 = vmatpush1.bf16.msra.mxu0 0
      %365 = vmatprep.subr.bf16.mxu0 0
      %366 = vmatpush1.bf16.msra.mxu0 0
      %367 = vmatprep.subr.bf16.mxu0 0
      %368 = vmatpush1.bf16.msra.mxu0 0
      %369 = vmatprep.subr.bf16.mxu0 0
      %370 = vmatpush1.bf16.msra.mxu0 0
      %371 = vmatprep.mubr.bf16.mxu0 %v337
      %372 = vmatmul.mubr.bf16.gmra.mrb[0].mxu0 %v260
      %v373 = vpop.f32.mrb[0].mxu0
      %v374 = vadd.f32 %v252, %v373
      %v375 = vpop.f32.mrb[0].mxu0
      %v376 = vpop.f32.mrb[0].mxu0
      %v377 = vadd.f32 %v253, %v376
      %v378 = vpop.f32.mrb[0].mxu0
      %379 = vdwg.mxu0
      %380 = vadd.xlane.f32.xlu0 %v374
      %v381 = vpop.xlane.xlu0 %380
      %382 = vadd.xlane.f32.xlu0 %v377
      %v383 = vpop.xlane.xlu0 %382
      %v384 = vrcp.pop 128.0
      %v385 = vmul.f32 %v381, %v384
      %v386 = vmul.f32 %v383, %v384
      %v387 = vsub.f32 %v374, %v385
      %v388 = vsub.f32 %v377, %v386
      %v389 = vmul.f32 %v387, %v387
      %v390 = vmul.f32 %v388, %v388
      %391 = vadd.xlane.f32.xlu0 %v389
      %v392 = vpop.xlane.xlu0 %391
      %393 = vadd.xlane.f32.xlu0 %v390
      %v394 = vpop.xlane.xlu0 %393
      %v395 = vmul.f32 %v392, %v384
      %v396 = vmul.f32 %v394, %v384
      %v397 = vadd.f32 %v395, 1e-05
      %v398 = vadd.f32 %v396, 1e-05
      %v399 = vrsqrt.pop %v397
      %v400 = vrsqrt.pop %v398
      %v401 = vmul.f32 %v387, %v399
      %v402 = vmul.f32 %v388, %v400
      %v403 = vld [vmem:[%s3] sm:$0x1]
      %v405 = vlaneseq
      %v406 = vshrl.u32 %v405, 7
      %v407 = vsub.s32 0, %v406
      %v408 = vrot.slane %v403, %v407
      %v410 = vmul.f32 %v401, %v408
      %v411 = vmul.f32 %v402, %v408
      %v412 = vld [vmem:[%s4] sm:$0x1]
      %v414 = vlaneseq
      %v415 = vshrl.u32 %v414, 7
      %v416 = vsub.s32 0, %v415
      %v417 = vrot.slane %v412, %v416
      %v419 = vadd.f32 %v410, %v417
      %v420 = vadd.f32 %v411, %v417
      %v421 = vpack.c.bf16 %v420, %v419
      %v423 = vunpack.c.l.b16 %v421
      %v424 = vunpack.c.h.b16 %v421
      %v425 = vpack.c.b16 %v423, %v423
      %v426 = vpack.c.b16 %v424, %v424
      %429 = vst [vmem:[%s224] sm:$0xf] %v425
      %430 = vst [vmem:[%s224 + $0x4] sm:$0xf] %v426
      %p431 = scmp.lt.s32.totalorder %s16, 1
      %s432 = scalar_select %p431, %s16, 1
      %s433 = smul.addr %s432, 2
      %s434 = smul.addr %s433, 4
      %s435 = scalar_lea.vmem %s5, %s434
      // Predicated region
      $region41: #{sparsevlm_forward.5} parent=39 // pred_check
        %p436 = pneg %p144
      $region42: #{sparsevlm_forward.5} parent=39 // pred_check_branch
        %438 = sbr.rel (%p436) target = $region44
      $region43: #{sparsevlm_forward.5} parent=39 // pred_region
        _
      $region44: #{sparsevlm_forward.5} parent=39 // pred_fallthru
        _
    $region40: #{sparsevlm_forward.5} parent=5 // pred_fallthru
      _
    %p439 = scmp.le.s32.totalorder 2, %s11
    // Predicated region
    $region45: #{sparsevlm_forward.5} parent=5 // pred_check
      %p440 = pneg %p439
    $region46: #{sparsevlm_forward.5} parent=5 // pred_check_branch
      %442 = sbr.rel (%p440) target = $region48
    $region47: #{sparsevlm_forward.5} parent=5 // pred_region
      %s443 = ssub.s32 %s11, 2
      // Predicated region
      $region49: #{sparsevlm_forward.5} parent=47 // pred_check
        %p444 = pneg %p150
      $region50: #{sparsevlm_forward.5} parent=47 // pred_check_branch
        %446 = sbr.rel (%p444) target = $region52
      $region51: #{sparsevlm_forward.5} parent=47 // pred_region
        %p447 = scmp.lt.s32.totalorder %s17, 1
        %s448 = scalar_select %p447, %s17, 1
        %s449 = smul.addr %s448, 2
        %s450 = smul.addr %s449, 4
        %s451 = scalar_lea.vmem %s5, %s450
      $region52: #{sparsevlm_forward.5} parent=47 // pred_fallthru
        _
    $region48: #{sparsevlm_forward.5} parent=5 // pred_fallthru
      _
  $region6: #{sparsevlm_forward.5} parent=0 // loop_footer
    %s15 = sadd.s32 1, %s11
  $region7: #{sparsevlm_forward.5} parent=0 // loop_footer_branch
    %10 = sbr.rel target = $region3
  $region8: #{sparsevlm_forward.5} parent=0 // loop_exit
    _

// kernel: sparsevlm_forward.6
$region0: #{sparsevlm_forward.6}
  #allocation0 [shape = 'u32[]', space=smem, size = 0x4, offset = 0x4, fixed_abs, tag = 'smem constant byte address 0x4 - core index']
  #allocation1 [shape = 'u32[144,128]{1,0:T(1,128)}', space=vmem, size = 0x12000, scoped, tag = 'internal scratch']
  %s0 = inlined_call_operand.vmem [shape: bf16[2,16,128], index: 0, kind: input, shape index: {}]
  %s1 = inlined_call_operand.vmem [shape: bf16[2,128,128], index: 1, kind: input, shape index: {}]
  %s2 = inlined_call_operand.vmem [shape: f32[2,1,16], index: 2, kind: output, shape index: {0}]
  %s3 = inlined_call_operand.vmem [shape: f32[2,128,128], index: 3, kind: output, shape index: {1}]
  %4 = xla_tuple %s2, %s3
  %s5 = sld [smem:[#allocation0]]
  $region49: #{sparsevlm_forward.6} parent=0
    _
  %s7 = ssub.s32 1, %s5
  %s8 = scalar_select 0, %s7, %s5
  loop: start=0, step=1, limit=4
  $region2: #{sparsevlm_forward.6} parent=0 // loop_pre_header
    _
  $region3: #{sparsevlm_forward.6} parent=0 // loop_header
    %s10 = sphi 0, %s14
    %p11 = scmp.ge.s32.totalorder %s10, 4
    %s20 = sphi 0, %s22
    %s23 = sphi 0, %s20
    %s24 = sphi 0, %s23
    %s40 = sphi 0, %s24
    %s46 = sphi 0, %s48
    %s49 = sphi 0, %s46
    %s50 = sphi 0, %s49
    %s66 = sphi 0, %s50
    %s72 = sphi 0, %s74
    %s75 = sphi 0, %s72
    %s76 = sphi 0, %s75
    %s92 = sphi 0, %s76
    %s98 = sphi 0, %s100
    %s101 = sphi 0, %s98
    %s102 = sphi 0, %s101
    %s118 = sphi 0, %s102
  $region4: #{sparsevlm_forward.6} parent=0 // loop_header_branch
    %13 = sbr.rel (%p11) target = $region8
  $region5: #{sparsevlm_forward.6} parent=0 // loop_body
    %s15 = ssub.s32 %s10, 1
    %s16 = ssub.s32 %s10, 2
    %s17 = sadd.s32 %s10, 1
    %s18 = ssub.s32 %s10, %s17
    %p19 = scmp.eq.s32.totalorder %s18, 0
    %s21 = sadd.s32 %s20, 1
    %s22 = scalar_select %p19, %s20, %s21
    %p25 = pneg %p19
    %p26 = scmp.eq.s32.totalorder %s10, 1
    %p27 = por %p25, %p26
    %p28 = scmp.ne.s32.totalorder %s20, %s23
    %p29 = scmp.eq.s32.totalorder %s10, 0
    %p30 = por %p28, %p29
    %p31 = scmp.ne.s32.totalorder %s20, %s23
    %p32 = scmp.eq.s32.totalorder %s15, 1
    %p33 = por %p31, %p32
    %p34 = scmp.ne.s32.totalorder %s23, %s24
    %p35 = scmp.eq.s32.totalorder %s15, 0
    %p36 = por %p34, %p35
    %p37 = scmp.ne.s32.totalorder %s23, %s24
    %p38 = scmp.eq.s32.totalorder %s16, 1
    %p39 = por %p37, %p38
    %p41 = scmp.ne.s32.totalorder %s24, %s40
    %p42 = scmp.eq.s32.totalorder %s16, 0
    %p43 = por %p41, %p42
    %s44 = ssub.s32 %s10, %s17
    %p45 = scmp.eq.s32.totalorder %s44, 0
    %s47 = sadd.s32 %s46, 1
    %s48 = scalar_select %p45, %s46, %s47
    %p51 = pneg %p45
    %p52 = scmp.eq.s32.totalorder %s10, 1
    %p53 = por %p51, %p52
    %p54 = scmp.ne.s32.totalorder %s46, %s49
    %p55 = scmp.eq.s32.totalorder %s10, 0
    %p56 = por %p54, %p55
    %p57 = scmp.ne.s32.totalorder %s46, %s49
    %p58 = scmp.eq.s32.totalorder %s15, 1
    %p59 = por %p57, %p58
    %p60 = scmp.ne.s32.totalorder %s49, %s50
    %p61 = scmp.eq.s32.totalorder %s15, 0
    %p62 = por %p60, %p61
    %p63 = scmp.ne.s32.totalorder %s49, %s50
    %p64 = scmp.eq.s32.totalorder %s16, 1
    %p65 = por %p63, %p64
    %p67 = scmp.ne.s32.totalorder %s50, %s66
    %p68 = scmp.eq.s32.totalorder %s16, 0
    %p69 = por %p67, %p68
    %s70 = ssub.s32 %s10, %s17
    %p71 = scmp.eq.s32.totalorder %s70, 0
    %s73 = sadd.s32 %s72, 1
    %s74 = scalar_select %p71, %s72, %s73
    %p77 = pneg %p71
    %p78 = scmp.eq.s32.totalorder %s10, 1
    %p79 = por %p77, %p78
    %p80 = scmp.ne.s32.totalorder %s72, %s75
    %p81 = scmp.eq.s32.totalorder %s10, 0
    %p82 = por %p80, %p81
    %p83 = scmp.ne.s32.totalorder %s72, %s75
    %p84 = scmp.eq.s32.totalorder %s15, 1
    %p85 = por %p83, %p84
    %p86 = scmp.ne.s32.totalorder %s75, %s76
    %p87 = scmp.eq.s32.totalorder %s15, 0
    %p88 = por %p86, %p87
    %p89 = scmp.ne.s32.totalorder %s75, %s76
    %p90 = scmp.eq.s32.totalorder %s16, 1
    %p91 = por %p89, %p90
    %p93 = scmp.ne.s32.totalorder %s76, %s92
    %p94 = scmp.eq.s32.totalorder %s16, 0
    %p95 = por %p93, %p94
    %s96 = ssub.s32 %s10, %s17
    %p97 = scmp.eq.s32.totalorder %s96, 0
    %s99 = sadd.s32 %s98, 1
    %s100 = scalar_select %p97, %s98, %s99
    %p103 = pneg %p97
    %p104 = scmp.eq.s32.totalorder %s10, 1
    %p105 = por %p103, %p104
    %p106 = scmp.ne.s32.totalorder %s98, %s101
    %p107 = scmp.eq.s32.totalorder %s10, 0
    %p108 = por %p106, %p107
    %p109 = scmp.ne.s32.totalorder %s98, %s101
    %p110 = scmp.eq.s32.totalorder %s15, 1
    %p111 = por %p109, %p110
    %p112 = scmp.ne.s32.totalorder %s101, %s102
    %p113 = scmp.eq.s32.totalorder %s15, 0
    %p114 = por %p112, %p113
    %p115 = scmp.ne.s32.totalorder %s101, %s102
    %p116 = scmp.eq.s32.totalorder %s16, 1
    %p117 = por %p115, %p116
    %p119 = scmp.ne.s32.totalorder %s102, %s118
    %p120 = scmp.eq.s32.totalorder %s16, 0
    %p121 = por %p119, %p120
    %p122 = scmp.le.s32.totalorder 1, %s10
    %p123 = scmp.lt.s32.totalorder %s10, 3
    %p124 = pnand %p122, %p123
    %p125 = pneg %p124
    // Predicated region
    $region9: #{sparsevlm_forward.6} parent=5 // pred_check
      _
    $region10: #{sparsevlm_forward.6} parent=5 // pred_check_branch
      %127 = sbr.rel (%p124) target = $region12
    $region11: #{sparsevlm_forward.6} parent=5 // pred_region
      %s128 = ssub.s32 %s10, 1
    $region12: #{sparsevlm_forward.6} parent=5 // pred_fallthru
      _
    %p129 = scmp.lt.s32.totalorder %s10, 2
    // Predicated region
    $region13: #{sparsevlm_forward.6} parent=5 // pred_check
      %p130 = pneg %p129
    $region14: #{sparsevlm_forward.6} parent=5 // pred_check_branch
      %132 = sbr.rel (%p130) target = $region16
    $region15: #{sparsevlm_forward.6} parent=5 // pred_region
      // Predicated region
      $region17: #{sparsevlm_forward.6} parent=15 // pred_check
        %p133 = pneg %p30
      $region18: #{sparsevlm_forward.6} parent=15 // pred_check_branch
        %135 = sbr.rel (%p133) target = $region20
      $region19: #{sparsevlm_forward.6} parent=15 // pred_region
        %p136 = scmp.lt.s32.totalorder %s10, 1
        %s137 = scalar_select %p136, %s10, 1
        %s138 = smul.addr %s137, 2
        %s139 = smul.addr %s138, 4
        %s140 = scalar_lea.vmem %s0, %s139
      $region20: #{sparsevlm_forward.6} parent=15 // pred_fallthru
        _
      // Predicated region
      $region21: #{sparsevlm_forward.6} parent=15 // pred_check
        %p141 = pneg %p56
      $region22: #{sparsevlm_forward.6} parent=15 // pred_check_branch
        %143 = sbr.rel (%p141) target = $region24
      $region23: #{sparsevlm_forward.6} parent=15 // pred_region
        %p144 = scmp.lt.s32.totalorder %s10, 1
        %s145 = scalar_select %p144, %s10, 1
        %s146 = smul.addr %s145, 16
        %s147 = smul.addr %s146, 4
        %s148 = scalar_lea.vmem %s1, %s147
      $region24: #{sparsevlm_forward.6} parent=15 // pred_fallthru
        _
    $region16: #{sparsevlm_forward.6} parent=5 // pred_fallthru
      _
    %p149 = scmp.le.s32.totalorder 1, %s10
    %p150 = scmp.lt.s32.totalorder %s10, 3
    %p151 = pnand %p149, %p150
    %p152 = pneg %p151
    // Predicated region
    $region25: #{sparsevlm_forward.6} parent=5 // pred_check
      _
    $region26: #{sparsevlm_forward.6} parent=5 // pred_check_branch
      %154 = sbr.rel (%p151) target = $region28
    $region27: #{sparsevlm_forward.6} parent=5 // pred_region
      %s155 = ssub.s32 %s10, 1
      %p156 = scmp.lt.s32.totalorder %s15, 1
      %s157 = scalar_select %p156, %s15, 1
      %s158 = smul.addr %s157, 2
      %s159 = smul.addr %s158, 4
      %s160 = scalar_lea.vmem %s0, %s159
      %p161 = pneg %p36
      %p162 = pneg %p33
      %p163 = scmp.lt.s32.totalorder %s15, 1
      %s164 = scalar_select %p163, %s15, 1
      %s165 = smul.addr %s164, 16
      %s166 = smul.addr %s165, 4
      %s167 = scalar_lea.vmem %s1, %s166
      %p168 = pneg %p62
      %p169 = pneg %p59
      %p170 = pneg %p88
      %p171 = pneg %p85
      %p172 = scmp.lt.s32.totalorder %s15, 1
      %s173 = scalar_select %p172, %s15, 1
      %s174 = scalar_lea.vmem %s2, %s173
      %p175 = pneg %p114
      %p176 = pneg %p111
      %p177 = scmp.lt.s32.totalorder %s15, 1
      %s178 = scalar_select %p177, %s15, 1
      %s179 = smul.addr %s178, 16
      %s180 = smul.addr %s179, 8
      %s181 = scalar_lea.vmem %s3, %s180
      %p182 = scmp.lt.s32.totalorder %s15, 1
      %s183 = scalar_select %p182, %s15, 1
      %s184 = smul.addr %s183, 2
      %s185 = smul.addr %s184, 4
      %s186 = scalar_lea.vmem %s0, %s185
      %p187 = scmp.lt.s32.totalorder %s15, 1
      %s188 = scalar_select %p187, %s15, 1
      %s189 = smul.addr %s188, 16
      %s190 = smul.addr %s189, 4
      %s191 = scalar_lea.vmem %s1, %s190
      %p192 = scmp.lt.s32.totalorder %s15, 1
      %s193 = scalar_select %p192, %s15, 1
      %s194 = scalar_lea.vmem %s2, %s193
      %p195 = scmp.lt.s32.totalorder %s15, 1
      %s196 = scalar_select %p195, %s15, 1
      %s197 = smul.addr %s196, 16
      %s198 = smul.addr %s197, 8
      %s199 = scalar_lea.vmem %s3, %s198
      %v201 = vld [vmem:[%s186] sm:$0xf]
      %v202 = vld [vmem:[%s186 + $0x4] sm:$0xf]
      %v203 = vld [vmem:[%s191] sm:$0xf]
      %v204 = vld [vmem:[%s191 + $0x4] sm:$0xf]
      %v205 = vld [vmem:[%s191 + $0x8] sm:$0xf]
      %v206 = vld [vmem:[%s191 + $0xc] sm:$0xf]
      %v207 = vld [vmem:[%s191 + $0x10] sm:$0xf]
      %v208 = vld [vmem:[%s191 + $0x14] sm:$0xf]
      %v209 = vld [vmem:[%s191 + $0x18] sm:$0xf]
      %v210 = vld [vmem:[%s191 + $0x1c] sm:$0xf]
      %v211 = vld [vmem:[%s191 + $0x20] sm:$0xf]
      %v212 = vld [vmem:[%s191 + $0x24] sm:$0xf]
      %v213 = vld [vmem:[%s191 + $0x28] sm:$0xf]
      %v214 = vld [vmem:[%s191 + $0x2c] sm:$0xf]
      %v215 = vld [vmem:[%s191 + $0x30] sm:$0xf]
      %v216 = vld [vmem:[%s191 + $0x34] sm:$0xf]
      %v217 = vld [vmem:[%s191 + $0x38] sm:$0xf]
      %v218 = vld [vmem:[%s191 + $0x3c] sm:$0xf]
      %v221 = vunpack.c.l.b16 %v201
      %v222 = vunpack.c.l.b16 %v202
      %v223 = vpack.c.b16 %v222, %v221
      %v241 = vunpack.c.l.b16 %v203
      %v242 = vunpack.c.l.b16 %v204
      %v243 = vunpack.c.l.b16 %v205
      %v244 = vunpack.c.l.b16 %v206
      %v245 = vunpack.c.l.b16 %v207
      %v246 = vunpack.c.l.b16 %v208
      %v247 = vunpack.c.l.b16 %v209
      %v248 = vunpack.c.l.b16 %v210
      %v249 = vunpack.c.l.b16 %v211
      %v250 = vunpack.c.l.b16 %v212
      %v251 = vunpack.c.l.b16 %v213
      %v252 = vunpack.c.l.b16 %v214
      %v253 = vunpack.c.l.b16 %v215
      %v254 = vunpack.c.l.b16 %v216
      %v255 = vunpack.c.l.b16 %v217
      %v256 = vunpack.c.l.b16 %v218
      %v257 = vpack.c.b16 %v242, %v241
      %v258 = vpack.c.b16 %v244, %v243
      %v259 = vpack.c.b16 %v246, %v245
      %v260 = vpack.c.b16 %v248, %v247
      %v261 = vpack.c.b16 %v250, %v249
      %v262 = vpack.c.b16 %v252, %v251
      %v263 = vpack.c.b16 %v254, %v253
      %v264 = vpack.c.b16 %v256, %v255
      %273 = vmatprep.subr.bf16.mxu0 0
      %274 = vmatpush1.bf16.xpose.msra.mxu0 %v257
      %275 = vmatprep.subr.bf16.mxu0 0
      %276 = vmatpush1.bf16.xpose.msra.mxu0 %v258
      %277 = vmatprep.subr.bf16.mxu0 0
      %278 = vmatpush1.bf16.xpose.msra.mxu0 %v259
      %279 = vmatprep.subr.bf16.mxu0 0
      %280 = vmatpush1.bf16.xpose.msra.mxu0 %v260
      %281 = vmatprep.subr.bf16.mxu0 0
      %282 = vmatpush1.bf16.xpose.msra.mxu0 %v261
      %283 = vmatprep.subr.bf16.mxu0 0
      %284 = vmatpush1.bf16.xpose.msra.mxu0 %v262
      %285 = vmatprep.subr.bf16.mxu0 0
      %286 = vmatpush1.bf16.xpose.msra.mxu0 %v263
      %287 = vmatprep.subr.bf16.mxu0 0
      %288 = vmatpush1.bf16.xpose.msra.mxu0 %v264
      %289 = vmatprep.subr.bf16.mxu0 0
      %290 = vmatpush1.bf16.xpose.msra.mxu0 0
      %291 = vmatprep.subr.bf16.mxu0 0
      %292 = vmatpush1.bf16.xpose.msra.mxu0 0
      %293 = vmatprep.subr.bf16.mxu0 0
      %294 = vmatpush1.bf16.xpose.msra.mxu0 0
      %295 = vmatprep.subr.bf16.mxu0 0
      %296 = vmatpush1.bf16.xpose.msra.mxu0 0
      %297 = vmatprep.subr.bf16.mxu0 0
      %298 = vmatpush1.bf16.xpose.msra.mxu0 0
      %299 = vmatprep.subr.bf16.mxu0 0
      %300 = vmatpush1.bf16.xpose.msra.mxu0 0
      %301 = vmatprep.subr.bf16.mxu0 0
      %302 = vmatpush1.bf16.xpose.msra.mxu0 0
      %303 = vmatprep.subr.bf16.mxu0 0
      %304 = vmatpush1.bf16.xpose.msra.mxu0 0
      %305 = vmatprep.mubr.bf16.mxu0 0
      %306 = vmatmul.mubr.bf16.gmra.mrb[0].mxu0 %v223
      %v307 = vpop.f32.mrb[0].mxu0
      %v308 = vadd.f32 0.0, %v307
      %v309 = vpop.f32.mrb[0].mxu0
      %v310 = vpop.f32.mrb[0].mxu0
      %v311 = vadd.f32 0.0, %v310
      %v312 = vpop.f32.mrb[0].mxu0
      %313 = vdwg.mxu0
      %v314 = vlaneseq
      %v315 = vand.u32 %v314, 127
      %vm316 = vcmp.lt.s32.totalorder %v315, 8
      %v317 = vsel %vm316, 1, 0
      %v318 = vcvt.s32.f32 %v317
      %v319 = vlaneseq
      %v320 = vshrl.u32 %v319, 7
      %v321 = vadd.s32 %v320, 8
      %vm322 = vcmp.lt.s32.totalorder %v320, 16
      %vm323 = vcmp.lt.s32.totalorder %v321, 16
      %v324 = vsel %vm322, 1, 0
      %v325 = vsel %vm323, 1, 0
      %v326 = vcvt.s32.f32 %v324
      %v327 = vcvt.s32.f32 %v325
      %328 = vmax.xlane.f32.xlu0 %v308
      %v329 = vpop.xlane.xlu0 %328
      %330 = vmax.xlane.f32.xlu0 %v311
      %v331 = vpop.xlane.xlu0 %330
      %v332 = vsub.f32 %v308, %v329
      %v333 = vsub.f32 %v311, %v331
      %v334 = vmul.f32 %v332, 1.442695
      %v335 = vpow.pop %v334
      %v336 = vmul.f32 %v333, 1.442695
      %v337 = vpow.pop %v336
      %v338 = vmul.f32 %v335, %v318
      %v339 = vmul.f32 %v337, %v318
      %340 = vadd.xlane.f32.xlu0 %v338
      %v341 = vpop.xlane.xlu0 %340
      %342 = vadd.xlane.f32.xlu0 %v339
      %v343 = vpop.xlane.xlu0 %342
      %v344 = vrcp.pop %v341
      %v345 = vrcp.pop %v343
      %v346 = vmul.f32 %v338, %v344
      %v347 = vmul.f32 %v339, %v345
      %v348 = vmul.f32 %v346, %v326
      %v349 = vmul.f32 %v347, %v327
      %v350 = vadd.f32 %v348, %v349
      %v351 = vrot.slane %v350, 4
      %v352 = vadd.f32 %v350, %v351
      %v353 = vrot.slane %v352, 2
      %v354 = vadd.f32 %v352, %v353
      %v355 = vrot.slane %v354, 1
      %v356 = vadd.f32 %v354, %v355
      %v357 = vmul.f32 %v356, 0.0625
      %358 = vadd.xlane.f32.xlu0 %v357
      %v359 = vpop.xlane.xlu0 %358
      %v360 = vmul.f32 %v359, 0.125
      %vm361 = vcmp.ge.f32.partialorder %v357, %v360
      %v362 = vsel %vm361, 1.0, 0.0
      %v363 = vmul.f32 %v362, %v318
      %v364 = vmul.f32 %v348, %v363
      %v365 = vmul.f32 %v349, %v363
      %366 = vadd.xlane.f32.xlu0 %v363
      %v367 = vpop.xlane.xlu0 %366
      %v368 = vmax.f32 %v367, 1e-05
      %369 = vxpose.xlu0.b32.start [1/16] %v364, 128
      %370 = vxpose.xlu0.b32.cont [2/16] %v365, 128
      %371 = vxpose.xlu0.b32.cont [3/16] 0.0, 128
      %372 = vxpose.xlu0.b32.cont [4/16] 0.0, 128
      %373 = vxpose.xlu0.b32.cont [5/16] 0.0, 128
      %374 = vxpose.xlu0.b32.cont [6/16] 0.0, 128
      %375 = vxpose.xlu0.b32.cont [7/16] 0.0, 128
      %376 = vxpose.xlu0.b32.cont [8/16] 0.0, 128
      %377 = vxpose.xlu0.b32.cont [9/16] 0.0, 128
      %378 = vxpose.xlu0.b32.cont [10/16] 0.0, 128
      %379 = vxpose.xlu0.b32.cont [11/16] 0.0, 128
      %380 = vxpose.xlu0.b32.cont [12/16] 0.0, 128
      %381 = vxpose.xlu0.b32.cont [13/16] 0.0, 128
      %382 = vxpose.xlu0.b32.cont [14/16] 0.0, 128
      %383 = vxpose.xlu0.b32.cont [15/16] 0.0, 128
      %384 = vxpose.xlu0.b32.end [16/16] 0.0, 128
      %v385 = vpop.trf.xlu0
      %v386 = vpop.trf.xlu0
      %v387 = vpop.trf.xlu0
      %v388 = vpop.trf.xlu0
      %v389 = vpop.trf.xlu0
      %v390 = vpop.trf.xlu0
      %v391 = vpop.trf.xlu0
      %v392 = vpop.trf.xlu0
      %v393 = vpop.trf.xlu0
      %v394 = vpop.trf.xlu0
      %v395 = vpop.trf.xlu0
      %v396 = vpop.trf.xlu0
      %v397 = vpop.trf.xlu0
      %v398 = vpop.trf.xlu0
      %v399 = vpop.trf.xlu0
      %v400 = vpop.trf.xlu0
      %vm401 = vcmask 130048
      %v402 = vsel %vm401, %v385, 0.0
      %v403 = vsel %vm401, %v386, 0.0
      %v404 = vadd.f32 %v402, %v403
      %v405 = vsel %vm401, %v387, 0.0
      %v406 = vadd.f32 %v404, %v405
      %v407 = vsel %vm401, %v388, 0.0
      %v408 = vadd.f32 %v406, %v407
      %v409 = vsel %vm401, %v389, 0.0
      %v410 = vadd.f32 %v408, %v409
      %v411 = vsel %vm401, %v390, 0.0
      %v412 = vadd.f32 %v410, %v411
      %v413 = vsel %vm401, %v391, 0.0
      %v414 = vadd.f32 %v412, %v413
      %v415 = vsel %vm401, %v392, 0.0
      %v416 = vadd.f32 %v414, %v415
      %v417 = vsel %vm401, %v393, 0.0
      %v418 = vadd.f32 %v416, %v417
      %v419 = vsel %vm401, %v394, 0.0
      %v420 = vadd.f32 %v418, %v419
      %v421 = vsel %vm401, %v395, 0.0
      %v422 = vadd.f32 %v420, %v421
      %v423 = vsel %vm401, %v396, 0.0
      %v424 = vadd.f32 %v422, %v423
      %v425 = vsel %vm401, %v397, 0.0
      %v426 = vadd.f32 %v424, %v425
      %v427 = vsel %vm401, %v398, 0.0
      %v428 = vadd.f32 %v426, %v427
      %v429 = vsel %vm401, %v399, 0.0
      %v430 = vadd.f32 %v428, %v429
      %v431 = vsel %vm401, %v400, 0.0
      %v432 = vadd.f32 %v430, %v431
      %v433 = vrot.slane %v432, 4
      %v434 = vadd.f32 %v432, %v433
      %v435 = vrot.slane %v434, 2
      %v436 = vadd.f32 %v434, %v435
      %v437 = vrot.slane %v436, 1
      %v438 = vadd.f32 %v436, %v437
      %v439 = vrcp.pop %v368
      %v440 = vmul.f32 %v438, %v439
      %vm441 = vcmask 122880
      %442 = vst.msk [vmem:[%s194] sm:$0x1] %vm441, %v440
      %v444 = vsel %vm401, %v385, 0
      %v447 = vsel %vm401, %v386, 0
      %v450 = vsel %vm401, %v387, 0
      %v453 = vsel %vm401, %v388, 0
      %v456 = vsel %vm401, %v389, 0
      %v459 = vsel %vm401, %v390, 0
      %v462 = vsel %vm401, %v391, 0
      %v465 = vsel %vm401, %v392, 0
      %v468 = vsel %vm401, %v393, 0
      %v471 = vsel %vm401, %v394, 0
      %v474 = vsel %vm401, %v395, 0
      %v477 = vsel %vm401, %v396, 0
      %v480 = vsel %vm401, %v397, 0
      %v483 = vsel %vm401, %v398, 0
      %v486 = vsel %vm401, %v399, 0
      %v489 = vsel %vm401, %v400, 0
      %491 = vmatprep.subr.mxu0 0.0
      %492 = vmatpush1.msra.mxu0 %v364
      %493 = vmatprep.subr.mxu0 0.0
      %494 = vmatpush1.msra.mxu0 %v365
      %495 = vmatprep.subr.mxu0 0.0
      %496 = vmatpush1.msra.mxu0 0.0
      %497 = vmatprep.subr.mxu0 0.0
      %498 = vmatpush1.msra.mxu0 0.0
      %499 = vmatprep.subr.mxu0 0.0
      %500 = vmatpush1.msra.mxu0 0.0
      %501 = vmatprep.subr.mxu0 0.0
      %502 = vmatpush1.msra.mxu0 0.0
      %503 = vmatprep.subr.mxu0 0.0
      %504 = vmatpush1.msra.mxu0 0.0
      %505 = vmatprep.subr.mxu0 0.0
      %506 = vmatpush1.msra.mxu0 0.0
      %507 = vmatprep.subr.mxu0 0.0
      %508 = vmatpush1.msra.mxu0 0.0
      %509 = vmatprep.subr.mxu0 0.0
      %510 = vmatpush1.msra.mxu0 0.0
      %511 = vmatprep.subr.mxu0 0.0
      %512 = vmatpush1.msra.mxu0 0.0
      %513 = vmatprep.subr.mxu0 0.0
      %514 = vmatpush1.msra.mxu0 0.0
      %515 = vmatprep.subr.mxu0 0.0
      %516 = vmatpush1.msra.mxu0 0.0
      %517 = vmatprep.subr.mxu0 0.0
      %518 = vmatpush1.msra.mxu0 0.0
      %519 = vmatprep.subr.mxu0 0.0
      %520 = vmatpush1.msra.mxu0 0.0
      %521 = vmatprep.subr.mxu0 0.0
      %522 = vmatpush1.msra.mxu0 0.0
      %523 = vmatprep.subr.mxu0 0.0
      %524 = vmatpush1.msra.mxu0 0.0
      %525 = vmatprep.subr.mxu0 0.0
      %526 = vmatpush1.msra.mxu0 0.0
      %527 = vmatprep.subr.mxu0 0.0
      %528 = vmatpush1.msra.mxu0 0.0
      %529 = vmatprep.subr.mxu0 0.0
      %530 = vmatpush1.msra.mxu0 0.0
      %531 = vmatprep.subr.mxu0 0.0
      %532 = vmatpush1.msra.mxu0 0.0
      %533 = vmatprep.subr.mxu0 0.0
      %534 = vmatpush1.msra.mxu0 0.0
      %535 = vmatprep.subr.mxu0 0.0
      %536 = vmatpush1.msra.mxu0 0.0
      %537 = vmatprep.subr.mxu0 0.0
      %538 = vmatpush1.msra.mxu0 0.0
      %539 = vmatprep.subr.mxu0 0.0
      %540 = vmatpush1.msra.mxu0 0.0
      %541 = vmatprep.subr.mxu0 0.0
      %542 = vmatpush1.msra.mxu0 0.0
      %543 = vmatprep.subr.mxu0 0.0
      %544 = vmatpush1.msra.mxu0 0.0
      %545 = vmatprep.subr.mxu0 0.0
      %546 = vmatpush1.msra.mxu0 0.0
      %547 = vmatprep.subr.mxu0 0.0
      %548 = vmatpush1.msra.mxu0 0.0
      %549 = vmatprep.subr.mxu0 0.0
      %550 = vmatpush1.msra.mxu0 0.0
      %551 = vmatprep.subr.mxu0 0.0
      %552 = vmatpush1.msra.mxu0 0.0
      %553 = vmatprep.subr.mxu0 0.0
      %554 = vmatpush1.msra.mxu0 0.0
      %555 = vmatprep.mubr.f32.mxu0 0.0
      %556 = vmatmul.mubr.f32.gmra.mrb[0].mxu0 %v444
      %v557 = vpop.f32.mrb[0].mxu0
      %v558 = vadd.f32 0.0, %v557
      %v559 = vpop.f32.mrb[0].mxu0
      %560 = vmatprep.mubr.f32.mxu0 0.0
      %561 = vmatmul.mubr.f32.gmra.mrb[0].mxu0 %v447
      %v562 = vpop.f32.mrb[0].mxu0
      %v563 = vadd.f32 0.0, %v562
      %v564 = vpop.f32.mrb[0].mxu0
      %565 = vmatprep.mubr.f32.mxu0 0.0
      %566 = vmatmul.mubr.f32.gmra.mrb[0].mxu0 %v450
      %v567 = vpop.f32.mrb[0].mxu0
      %v568 = vadd.f32 0.0, %v567
      %v569 = vpop.f32.mrb[0].mxu0
      %570 = vmatprep.mubr.f32.mxu0 0.0
      %571 = vmatmul.mubr.f32.gmra.mrb[0].mxu0 %v453
      %v572 = vpop.f32.mrb[0].mxu0
      %v573 = vadd.f32 0.0, %v572
      %v574 = vpop.f32.mrb[0].mxu0
      %575 = vmatprep.mubr.f32.mxu0 0.0
      %576 = vmatmul.mubr.f32.gmra.mrb[0].mxu0 %v456
      %v577 = vpop.f32.mrb[0].mxu0
      %v578 = vadd.f32 0.0, %v577
      %v579 = vpop.f32.mrb[0].mxu0
      %580 = vmatprep.mubr.f32.mxu0 0.0
      %581 = vmatmul.mubr.f32.gmra.mrb[0].mxu0 %v459
      %v582 = vpop.f32.mrb[0].mxu0
      %v583 = vadd.f32 0.0, %v582
      %v584 = vpop.f32.mrb[0].mxu0
      %585 = vmatprep.mubr.f32.mxu0 0.0
      %586 = vmatmul.mubr.f32.gmra.mrb[0].mxu0 %v462
      %v587 = vpop.f32.mrb[0].mxu0
      %v588 = vadd.f32 0.0, %v587
      %v589 = vpop.f32.mrb[0].mxu0
      %590 = vmatprep.mubr.f32.mxu0 0.0
      %591 = vmatmul.mubr.f32.gmra.mrb[0].mxu0 %v465
      %v592 = vpop.f32.mrb[0].mxu0
      %v593 = vadd.f32 0.0, %v592
      %v594 = vpop.f32.mrb[0].mxu0
      %595 = vmatprep.mubr.f32.mxu0 0.0
      %596 = vmatmul.mubr.f32.gmra.mrb[0].mxu0 %v468
      %v597 = vpop.f32.mrb[0].mxu0
      %v598 = vadd.f32 0.0, %v597
      %v599 = vpop.f32.mrb[0].mxu0
      %600 = vmatprep.mubr.f32.mxu0 0.0
      %601 = vmatmul.mubr.f32.gmra.mrb[0].mxu0 %v471
      %v602 = vpop.f32.mrb[0].mxu0
      %v603 = vadd.f32 0.0, %v602
      %v604 = vpop.f32.mrb[0].mxu0
      %605 = vmatprep.mubr.f32.mxu0 0.0
      %606 = vmatmul.mubr.f32.gmra.mrb[0].mxu0 %v474
      %v607 = vpop.f32.mrb[0].mxu0
      %v608 = vadd.f32 0.0, %v607
      %v609 = vpop.f32.mrb[0].mxu0
      %610 = vmatprep.mubr.f32.mxu0 0.0
      %611 = vmatmul.mubr.f32.gmra.mrb[0].mxu0 %v477
      %v612 = vpop.f32.mrb[0].mxu0
      %v613 = vadd.f32 0.0, %v612
      %v614 = vpop.f32.mrb[0].mxu0
      %615 = vmatprep.mubr.f32.mxu0 0.0
      %616 = vmatmul.mubr.f32.gmra.mrb[0].mxu0 %v480
      %v617 = vpop.f32.mrb[0].mxu0
      %v618 = vadd.f32 0.0, %v617
      %v619 = vpop.f32.mrb[0].mxu0
      %620 = vmatprep.mubr.f32.mxu0 0.0
      %621 = vmatmul.mubr.f32.gmra.mrb[0].mxu0 %v483
      %v622 = vpop.f32.mrb[0].mxu0
      %v623 = vadd.f32 0.0, %v622
      %v624 = vpop.f32.mrb[0].mxu0
      %625 = vmatprep.mubr.f32.mxu0 0.0
      %626 = vmatmul.mubr.f32.gmra.mrb[0].mxu0 %v486
      %v627 = vpop.f32.mrb[0].mxu0
      %v628 = vadd.f32 0.0, %v627
      %v629 = vpop.f32.mrb[0].mxu0
      %630 = vmatprep.mubr.f32.mxu0 0.0
      %631 = vmatmul.mubr.f32.gmra.mrb[0].mxu0 %v489
      %v632 = vpop.f32.mrb[0].mxu0
      %v633 = vadd.f32 0.0, %v632
      %v634 = vpop.f32.mrb[0].mxu0
      %635 = vdwg.mxu0
      %636 = vst [vmem:[%s199] sm:$0xff] %v558
      %637 = vst [vmem:[%s199 + $0x8] sm:$0xff] %v563
      %638 = vst [vmem:[%s199 + $0x10] sm:$0xff] %v568
      %639 = vst [vmem:[%s199 + $0x18] sm:$0xff] %v573
      %640 = vst [vmem:[%s199 + $0x20] sm:$0xff] %v578
      %641 = vst [vmem:[%s199 + $0x28] sm:$0xff] %v583
      %642 = vst [vmem:[%s199 + $0x30] sm:$0xff] %v588
      %643 = vst [vmem:[%s199 + $0x38] sm:$0xff] %v593
      %644 = vst [vmem:[%s199 + $0x40] sm:$0xff] %v598
      %645 = vst [vmem:[%s199 + $0x48] sm:$0xff] %v603
      %646 = vst [vmem:[%s199 + $0x50] sm:$0xff] %v608
      %647 = vst [vmem:[%s199 + $0x58] sm:$0xff] %v613
      %648 = vst [vmem:[%s199 + $0x60] sm:$0xff] %v618
      %649 = vst [vmem:[%s199 + $0x68] sm:$0xff] %v623
      %650 = vst [vmem:[%s199 + $0x70] sm:$0xff] %v628
      %651 = vst [vmem:[%s199 + $0x78] sm:$0xff] %v633
      %p652 = scmp.lt.s32.totalorder %s15, 1
      %s653 = scalar_select %p652, %s15, 1
      %s654 = scalar_lea.vmem %s2, %s653
      %p655 = scmp.lt.s32.totalorder %s15, 1
      %s656 = scalar_select %p655, %s15, 1
      %s657 = smul.addr %s656, 16
      %s658 = smul.addr %s657, 8
      %s659 = scalar_lea.vmem %s3, %s658
      // Predicated region
      $region29: #{sparsevlm_forward.6} parent=27 // pred_check
        %p660 = pneg %p85
      $region30: #{sparsevlm_forward.6} parent=27 // pred_check_branch
        %662 = sbr.rel (%p660) target = $region32
      $region31: #{sparsevlm_forward.6} parent=27 // pred_region
        _
      $region32: #{sparsevlm_forward.6} parent=27 // pred_fallthru
        _
      // Predicated region
      $region33: #{sparsevlm_forward.6} parent=27 // pred_check
        %p663 = pneg %p111
      $region34: #{sparsevlm_forward.6} parent=27 // pred_check_branch
        %665 = sbr.rel (%p663) target = $region36
      $region35: #{sparsevlm_forward.6} parent=27 // pred_region
        _
      $region36: #{sparsevlm_forward.6} parent=27 // pred_fallthru
        _
    $region28: #{sparsevlm_forward.6} parent=5 // pred_fallthru
      _
    %p666 = scmp.le.s32.totalorder 2, %s10
    // Predicated region
    $region37: #{sparsevlm_forward.6} parent=5 // pred_check
      %p667 = pneg %p666
    $region38: #{sparsevlm_forward.6} parent=5 // pred_check_branch
      %669 = sbr.rel (%p667) target = $region40
    $region39: #{sparsevlm_forward.6} parent=5 // pred_region
      %s670 = ssub.s32 %s10, 2
      // Predicated region
      $region41: #{sparsevlm_forward.6} parent=39 // pred_check
        %p671 = pneg %p91
      $region42: #{sparsevlm_forward.6} parent=39 // pred_check_branch
        %673 = sbr.rel (%p671) target = $region44
      $region43: #{sparsevlm_forward.6} parent=39 // pred_region
        %p674 = scmp.lt.s32.totalorder %s16, 1
        %s675 = scalar_select %p674, %s16, 1
        %s676 = scalar_lea.vmem %s2, %s675
      $region44: #{sparsevlm_forward.6} parent=39 // pred_fallthru
        _
      // Predicated region
      $region45: #{sparsevlm_forward.6} parent=39 // pred_check
        %p677 = pneg %p117
      $region46: #{sparsevlm_forward.6} parent=39 // pred_check_branch
        %679 = sbr.rel (%p677) target = $region48
      $region47: #{sparsevlm_forward.6} parent=39 // pred_region
        %p680 = scmp.lt.s32.totalorder %s16, 1
        %s681 = scalar_select %p680, %s16, 1
        %s682 = smul.addr %s681, 16
        %s683 = smul.addr %s682, 8
        %s684 = scalar_lea.vmem %s3, %s683
      $region48: #{sparsevlm_forward.6} parent=39 // pred_fallthru
        _
    $region40: #{sparsevlm_forward.6} parent=5 // pred_fallthru
      _
  $region6: #{sparsevlm_forward.6} parent=0 // loop_footer
    %s14 = sadd.s32 1, %s10
  $region7: #{sparsevlm_forward.6} parent=0 // loop_footer_branch
    %9 = sbr.rel target = $region3
  $region8: #{sparsevlm_forward.6} parent=0 // loop_exit
    _

// kernel: custom-call.3
$region0: #{custom-call.3}
  %s0 = inlined_call_operand.vmem [shape: f32[2,64,64], index: 0, kind: input, shape index: {}]
  %s1 = inlined_call_operand.vmem [shape: f32[2,64,64], index: 1, kind: input, shape index: {}]
  %s2 = inlined_call_operand.vmem [shape: f32[2,64,64], index: 2, kind: input, shape index: {}]
  %s3 = inlined_call_operand.vmem [shape: f32[2,64,64], index: 3, kind: input, shape index: {}]
  %s4 = inlined_call_operand.vmem [shape: f32[2,64], index: 4, kind: output, shape index: {0}]
  %s5 = inlined_call_operand.vmem [shape: f32[2,64], index: 5, kind: output, shape index: {1}]
  %s6 = inlined_call_operand.hbm [shape: f32[2,64,64], index: 6, kind: output, shape index: {2}]
  %s7 = inlined_call_operand.hbm [shape: f32[2,64,64], index: 7, kind: output, shape index: {3}]
  %s8 = inlined_call_operand.hbm [shape: f32[2,64,64], index: 8, kind: output, shape index: {4}]
  %s9 = inlined_call_operand.hbm [shape: f32[2,64,64], index: 9, kind: output, shape index: {5}]
  %10 = xla_tuple %s4, %s5, %s6, %s7, %s8, %s9
  $region1: #{custom-call.3} parent=0
    #allocation0 [shape = 'u8[65536]{0}', space=vmem, size = 0x10000, scoped, tag = 'operand span for operand 0']
    #allocation1 [shape = 'u8[65536]{0}', space=vmem, size = 0x10000, scoped, tag = 'operand span for operand 1']
    #allocation2 [shape = 'u8[65536]{0}', space=vmem, size = 0x10000, scoped, tag = 'operand span for operand 2']
    #allocation3 [shape = 'u8[65536]{0}', space=vmem, size = 0x10000, scoped, tag = 'operand span for operand 3']
    #allocation4 [shape = 'u8[4096]{0}', space=vmem, size = 0x1000, scoped, tag = 'operand span for operand 4']
    #allocation5 [shape = 'u8[2048]{0}', space=vmem, size = 0x800, scoped, tag = 'packed  for operand 4']
    #allocation6 [shape = 'u8[4096]{0}', space=vmem, size = 0x1000, scoped, tag = 'operand span for operand 5']
    #allocation7 [shape = 'u8[2048]{0}', space=vmem, size = 0x800, scoped, tag = 'packed  for operand 5']
    #allocation8 [shape = 'u8[65536]{0}', space=vmem, size = 0x10000, scoped, tag = 'operand span for operand 6']
    #allocation9 [shape = 's32[2]{0}', space=sflag, size = 0x8, scoped, tag = 'scoped memory for custom-call.3']
    #allocation10 [shape = 'u8[65536]{0}', space=vmem, size = 0x10000, scoped, tag = 'operand span for operand 7']
    #allocation11 [shape = 's32[2]{0}', space=sflag, size = 0x8, scoped, tag = 'scoped memory for custom-call.3']
    #allocation12 [shape = 'u8[65536]{0}', space=vmem, size = 0x10000, scoped, tag = 'operand span for operand 8']
    #allocation13 [shape = 'u8[65536]{0}', space=vmem, size = 0x10000, scoped, tag = 'operand span for operand 9']
    #allocation14 [shape = 's32[2]{0}', space=sflag, size = 0x8, scoped, tag = 'scoped memory for custom-call.3']
    %11 = vsyncpa [#allocation9], 0
    %s12 = scalar_lea.sflag [#allocation9], 1
    %13 = vsyncpa %s12, 0
    %14 = vsyncpa [#allocation11], 0
    %s15 = scalar_lea.sflag [#allocation11], 1
    %16 = vsyncpa %s15, 0
    %17 = vsyncpa [#allocation14], 0
    %s18 = scalar_lea.sflag [#allocation14], 1
    %19 = vsyncpa %s18, 0
    loop: start=0, step=1, limit=4
    $region2: #{custom-call.3} parent=1 // loop_pre_header
      _
    $region3: #{custom-call.3} parent=1 // loop_header
      %s21 = sphi 0, %s25
      %p22 = scmp.ge.s32.totalorder %s21, 4
      %s33 = sphi 0, %s35
      %s36 = sphi 0, %s33
      %s37 = sphi 0, %s36
      %s53 = sphi 0, %s37
      %s61 = sphi 0, %s63
      %s64 = sphi 0, %s61
      %s65 = sphi 0, %s64
      %s81 = sphi 0, %s65
    $region4: #{custom-call.3} parent=1 // loop_header_branch
      %24 = sbr.rel (%p22) target = $region8
    $region5: #{custom-call.3} parent=1 // loop_body
      %s26 = ssub.s32 %s21, 1
      %s27 = ssub.s32 %s21, 2
      %s28 = sadd.s32 %s21, 1
      %s29 = sshrl.u32 %s21, 3
      %s30 = sshrl.u32 %s28, 3
      %s31 = ssub.s32 %s29, %s30
      %p32 = scmp.eq.s32.totalorder %s31, 0
      %s34 = sadd.s32 %s33, 1
      %s35 = scalar_select %p32, %s33, %s34
      %p38 = pneg %p32
      %p39 = scmp.eq.s32.totalorder %s21, 1
      %p40 = por %p38, %p39
      %p41 = scmp.ne.s32.totalorder %s33, %s36
      %p42 = scmp.eq.s32.totalorder %s21, 0
      %p43 = por %p41, %p42
      %p44 = scmp.ne.s32.totalorder %s33, %s36
      %p45 = scmp.eq.s32.totalorder %s26, 1
      %p46 = por %p44, %p45
      %p47 = scmp.ne.s32.totalorder %s36, %s37
      %p48 = scmp.eq.s32.totalorder %s26, 0
      %p49 = por %p47, %p48
      %p50 = scmp.ne.s32.totalorder %s36, %s37
      %p51 = scmp.eq.s32.totalorder %s27, 1
      %p52 = por %p50, %p51
      %p54 = scmp.ne.s32.totalorder %s37, %s53
      %p55 = scmp.eq.s32.totalorder %s27, 0
      %p56 = por %p54, %p55
      %s57 = sshrl.u32 %s21, 3
      %s58 = sshrl.u32 %s28, 3
      %s59 = ssub.s32 %s57, %s58
      %p60 = scmp.eq.s32.totalorder %s59, 0
      %s62 = sadd.s32 %s61, 1
      %s63 = scalar_select %p60, %s61, %s62
      %p66 = pneg %p60
      %p67 = scmp.eq.s32.totalorder %s21, 1
      %p68 = por %p66, %p67
      %p69 = scmp.ne.s32.totalorder %s61, %s64
      %p70 = scmp.eq.s32.totalorder %s21, 0
      %p71 = por %p69, %p70
      %p72 = scmp.ne.s32.totalorder %s61, %s64
      %p73 = scmp.eq.s32.totalorder %s26, 1
      %p74 = por %p72, %p73
      %p75 = scmp.ne.s32.totalorder %s64, %s65
      %p76 = scmp.eq.s32.totalorder %s26, 0
      %p77 = por %p75, %p76
      %p78 = scmp.ne.s32.totalorder %s64, %s65
      %p79 = scmp.eq.s32.totalorder %s27, 1
      %p80 = por %p78, %p79
      %p82 = scmp.ne.s32.totalorder %s65, %s81
      %p83 = scmp.eq.s32.totalorder %s27, 0
      %p84 = por %p82, %p83
      %p85 = scmp.le.s32.totalorder 1, %s21
      %p86 = scmp.lt.s32.totalorder %s21, 3
      %p87 = pnand %p85, %p86
      %p88 = pneg %p87
      // Predicated region
      $region9: #{custom-call.3} parent=5 // pred_check
        _
      $region10: #{custom-call.3} parent=5 // pred_check_branch
        %90 = sbr.rel (%p87) target = $region12
      $region11: #{custom-call.3} parent=5 // pred_region
        %s91 = ssub.s32 %s21, 1
      $region12: #{custom-call.3} parent=5 // pred_fallthru
        _
      %p92 = scmp.lt.s32.totalorder %s21, 2
      // Predicated region
      $region13: #{custom-call.3} parent=5 // pred_check
        %p93 = pneg %p92
      $region14: #{custom-call.3} parent=5 // pred_check_branch
        %95 = sbr.rel (%p93) target = $region16
      $region15: #{custom-call.3} parent=5 // pred_region
        %s96 = sand.u32 %s21, 1
        %s97 = sand.u32 %s21, 1
        %s98 = smul.addr %s97, 64
        %s99 = scalar_lea.vmem [#allocation0], %s98
        %s100 = smul.addr %s21, 64
        %s101 = scalar_lea.vmem %s0, %s100
        // Predicated region
        $region17: #{custom-call.3} parent=15 // pred_check
          _
        $region18: #{custom-call.3} parent=15 // pred_check_branch
          %103 = sbr.rel (0) target = $region20
        $region19: #{custom-call.3} parent=15 // pred_region
          // Predicated region
          $region21: #{custom-call.3} parent=19 // pred_check
            _
          $region22: #{custom-call.3} parent=19 // pred_check_branch
            %105 = sbr.rel (0) target = $region24
          $region23: #{custom-call.3} parent=19 // pred_region
            loop: start=0, step=1, limit=1
            $region25: #{custom-call.3} parent=23 // loop_pre_header
              _
            $region26: #{custom-call.3} parent=23 // loop_header
              %s107 = sphi 0, %s111
              %p108 = scmp.ge.s32.totalorder %s107, 1
              %s112 = sphi %s101, %s101
              %s113 = sphi %s99, %s99
            $region27: #{custom-call.3} parent=23 // loop_header_branch
              %110 = sbr.rel (%p108) target = $region31
            $region28: #{custom-call.3} parent=23 // loop_body
              %v114 = vld [vmem:[%s112] sm:$0xff]
              %115 = vst [vmem:[%s113] sm:$0xff] %v114
              %v116 = vld [vmem:[%s112 + $0x8] sm:$0xff]
              %117 = vst [vmem:[%s113 + $0x8] sm:$0xff] %v116
              %v118 = vld [vmem:[%s112 + $0x10] sm:$0xff]
              %119 = vst [vmem:[%s113 + $0x10] sm:$0xff] %v118
              %v120 = vld [vmem:[%s112 + $0x18] sm:$0xff]
              %121 = vst [vmem:[%s113 + $0x18] sm:$0xff] %v120
              %v122 = vld [vmem:[%s112 + $0x20] sm:$0xff]
              %123 = vst [vmem:[%s113 + $0x20] sm:$0xff] %v122
              %v124 = vld [vmem:[%s112 + $0x28] sm:$0xff]
              %125 = vst [vmem:[%s113 + $0x28] sm:$0xff] %v124
              %v126 = vld [vmem:[%s112 + $0x30] sm:$0xff]
              %127 = vst [vmem:[%s113 + $0x30] sm:$0xff] %v126
              %v128 = vld [vmem:[%s112 + $0x38] sm:$0xff]
              %129 = vst [vmem:[%s113 + $0x38] sm:$0xff] %v128
            $region29: #{custom-call.3} parent=23 // loop_footer
              %s111 = sadd.s32 1, %s107
            $region30: #{custom-call.3} parent=23 // loop_footer_branch
              %106 = sbr.rel target = $region26
            $region31: #{custom-call.3} parent=23 // loop_exit
              _
          $region24: #{custom-call.3} parent=19 // pred_fallthru
            _
          // Predicated region
          $region32: #{custom-call.3} parent=19 // pred_check
            _
          $region33: #{custom-call.3} parent=19 // pred_check_branch
            %131 = sbr.rel target = $region35
          $region34: #{custom-call.3} parent=19 // pred_region
            _
          $region35: #{custom-call.3} parent=19 // pred_fallthru
            _
        $region20: #{custom-call.3} parent=15 // pred_fallthru
          _
        %132 = vnop
        %s133 = sand.u32 %s21, 1
        %s134 = sand.u32 %s21, 1
        %s135 = smul.addr %s134, 64
        %s136 = scalar_lea.vmem [#allocation1], %s135
        %s137 = smul.addr %s21, 64
        %s138 = scalar_lea.vmem %s1, %s137
        // Predicated region
        $region36: #{custom-call.3} parent=15 // pred_check
          _
        $region37: #{custom-call.3} parent=15 // pred_check_branch
          %140 = sbr.rel (0) target = $region39
        $region38: #{custom-call.3} parent=15 // pred_region
          // Predicated region
          $region40: #{custom-call.3} parent=38 // pred_check
            _
          $region41: #{custom-call.3} parent=38 // pred_check_branch
            %142 = sbr.rel (0) target = $region43
          $region42: #{custom-call.3} parent=38 // pred_region
            loop: start=0, step=1, limit=1
            $region44: #{custom-call.3} parent=42 // loop_pre_header
              _
            $region45: #{custom-call.3} parent=42 // loop_header
              %s144 = sphi 0, %s148
              %p145 = scmp.ge.s32.totalorder %s144, 1
              %s149 = sphi %s138, %s138
              %s150 = sphi %s136, %s136
            $region46: #{custom-call.3} parent=42 // loop_header_branch
              %147 = sbr.rel (%p145) target = $region50
            $region47: #{custom-call.3} parent=42 // loop_body
              %v151 = vld [vmem:[%s149] sm:$0xff]
              %152 = vst [vmem:[%s150] sm:$0xff] %v151
              %v153 = vld [vmem:[%s149 + $0x8] sm:$0xff]
              %154 = vst [vmem:[%s150 + $0x8] sm:$0xff] %v153
              %v155 = vld [vmem:[%s149 + $0x10] sm:$0xff]
              %156 = vst [vmem:[%s150 + $0x10] sm:$0xff] %v155
              %v157 = vld [vmem:[%s149 + $0x18] sm:$0xff]
              %158 = vst [vmem:[%s150 + $0x18] sm:$0xff] %v157
              %v159 = vld [vmem:[%s149 + $0x20] sm:$0xff]
              %160 = vst [vmem:[%s150 + $0x20] sm:$0xff] %v159
              %v161 = vld [vmem:[%s149 + $0x28] sm:$0xff]
              %162 = vst [vmem:[%s150 + $0x28] sm:$0xff] %v161
              %v163 = vld [vmem:[%s149 + $0x30] sm:$0xff]
              %164 = vst [vmem:[%s150 + $0x30] sm:$0xff] %v163
              %v165 = vld [vmem:[%s149 + $0x38] sm:$0xff]
              %166 = vst [vmem:[%s150 + $0x38] sm:$0xff] %v165
            $region48: #{custom-call.3} parent=42 // loop_footer
              %s148 = sadd.s32 1, %s144
            $region49: #{custom-call.3} parent=42 // loop_footer_branch
              %143 = sbr.rel target = $region45
            $region50: #{custom-call.3} parent=42 // loop_exit
              _
          $region43: #{custom-call.3} parent=38 // pred_fallthru
            _
          // Predicated region
          $region51: #{custom-call.3} parent=38 // pred_check
            _
          $region52: #{custom-call.3} parent=38 // pred_check_branch
            %168 = sbr.rel target = $region54
          $region53: #{custom-call.3} parent=38 // pred_region
            _
          $region54: #{custom-call.3} parent=38 // pred_fallthru
            _
        $region39: #{custom-call.3} parent=15 // pred_fallthru
          _
        %169 = vnop
        %s170 = sand.u32 %s21, 1
        %s171 = sand.u32 %s21, 1
        %s172 = smul.addr %s171, 64
        %s173 = scalar_lea.vmem [#allocation2], %s172
        %s174 = smul.addr %s21, 64
        %s175 = scalar_lea.vmem %s2, %s174
        // Predicated region
        $region55: #{custom-call.3} parent=15 // pred_check
          _
        $region56: #{custom-call.3} parent=15 // pred_check_branch
          %177 = sbr.rel (0) target = $region58
        $region57: #{custom-call.3} parent=15 // pred_region
          // Predicated region
          $region59: #{custom-call.3} parent=57 // pred_check
            _
          $region60: #{custom-call.3} parent=57 // pred_check_branch
            %179 = sbr.rel (0) target = $region62
          $region61: #{custom-call.3} parent=57 // pred_region
            loop: start=0, step=1, limit=1
            $region63: #{custom-call.3} parent=61 // loop_pre_header
              _
            $region64: #{custom-call.3} parent=61 // loop_header
              %s181 = sphi 0, %s185
              %p182 = scmp.ge.s32.totalorder %s181, 1
              %s186 = sphi %s175, %s175
              %s187 = sphi %s173, %s173
            $region65: #{custom-call.3} parent=61 // loop_header_branch
              %184 = sbr.rel (%p182) target = $region69
            $region66: #{custom-call.3} parent=61 // loop_body
              %v188 = vld [vmem:[%s186] sm:$0xff]
              %189 = vst [vmem:[%s187] sm:$0xff] %v188
              %v190 = vld [vmem:[%s186 + $0x8] sm:$0xff]
              %191 = vst [vmem:[%s187 + $0x8] sm:$0xff] %v190
              %v192 = vld [vmem:[%s186 + $0x10] sm:$0xff]
              %193 = vst [vmem:[%s187 + $0x10] sm:$0xff] %v192
              %v194 = vld [vmem:[%s186 + $0x18] sm:$0xff]
              %195 = vst [vmem:[%s187 + $0x18] sm:$0xff] %v194
              %v196 = vld [vmem:[%s186 + $0x20] sm:$0xff]
              %197 = vst [vmem:[%s187 + $0x20] sm:$0xff] %v196
              %v198 = vld [vmem:[%s186 + $0x28] sm:$0xff]
              %199 = vst [vmem:[%s187 + $0x28] sm:$0xff] %v198
              %v200 = vld [vmem:[%s186 + $0x30] sm:$0xff]
              %201 = vst [vmem:[%s187 + $0x30] sm:$0xff] %v200
              %v202 = vld [vmem:[%s186 + $0x38] sm:$0xff]
              %203 = vst [vmem:[%s187 + $0x38] sm:$0xff] %v202
            $region67: #{custom-call.3} parent=61 // loop_footer
              %s185 = sadd.s32 1, %s181
            $region68: #{custom-call.3} parent=61 // loop_footer_branch
              %180 = sbr.rel target = $region64
            $region69: #{custom-call.3} parent=61 // loop_exit
              _
          $region62: #{custom-call.3} parent=57 // pred_fallthru
            _
          // Predicated region
          $region70: #{custom-call.3} parent=57 // pred_check
            _
          $region71: #{custom-call.3} parent=57 // pred_check_branch
            %205 = sbr.rel target = $region73
          $region72: #{custom-call.3} parent=57 // pred_region
            _
          $region73: #{custom-call.3} parent=57 // pred_fallthru
            _
        $region58: #{custom-call.3} parent=15 // pred_fallthru
          _
        %206 = vnop
        %s207 = sand.u32 %s21, 1
        %s208 = sand.u32 %s21, 1
        %s209 = smul.addr %s208, 64
        %s210 = scalar_lea.vmem [#allocation3], %s209
        %s211 = smul.addr %s21, 64
        %s212 = scalar_lea.vmem %s3, %s211
        // Predicated region
        $region74: #{custom-call.3} parent=15 // pred_check
          _
        $region75: #{custom-call.3} parent=15 // pred_check_branch
          %214 = sbr.rel (0) target = $region77
        $region76: #{custom-call.3} parent=15 // pred_region
          // Predicated region
          $region78: #{custom-call.3} parent=76 // pred_check
            _
          $region79: #{custom-call.3} parent=76 // pred_check_branch
            %216 = sbr.rel (0) target = $region81
          $region80: #{custom-call.3} parent=76 // pred_region
            loop: start=0, step=1, limit=1
            $region82: #{custom-call.3} parent=80 // loop_pre_header
              _
            $region83: #{custom-call.3} parent=80 // loop_header
              %s218 = sphi 0, %s222
              %p219 = scmp.ge.s32.totalorder %s218, 1
              %s223 = sphi %s212, %s212
              %s224 = sphi %s210, %s210
            $region84: #{custom-call.3} parent=80 // loop_header_branch
              %221 = sbr.rel (%p219) target = $region88
            $region85: #{custom-call.3} parent=80 // loop_body
              %v225 = vld [vmem:[%s223] sm:$0xff]
              %226 = vst [vmem:[%s224] sm:$0xff] %v225
              %v227 = vld [vmem:[%s223 + $0x8] sm:$0xff]
              %228 = vst [vmem:[%s224 + $0x8] sm:$0xff] %v227
              %v229 = vld [vmem:[%s223 + $0x10] sm:$0xff]
              %230 = vst [vmem:[%s224 + $0x10] sm:$0xff] %v229
              %v231 = vld [vmem:[%s223 + $0x18] sm:$0xff]
              %232 = vst [vmem:[%s224 + $0x18] sm:$0xff] %v231
              %v233 = vld [vmem:[%s223 + $0x20] sm:$0xff]
              %234 = vst [vmem:[%s224 + $0x20] sm:$0xff] %v233
              %v235 = vld [vmem:[%s223 + $0x28] sm:$0xff]
              %236 = vst [vmem:[%s224 + $0x28] sm:$0xff] %v235
              %v237 = vld [vmem:[%s223 + $0x30] sm:$0xff]
              %238 = vst [vmem:[%s224 + $0x30] sm:$0xff] %v237
              %v239 = vld [vmem:[%s223 + $0x38] sm:$0xff]
              %240 = vst [vmem:[%s224 + $0x38] sm:$0xff] %v239
            $region86: #{custom-call.3} parent=80 // loop_footer
              %s222 = sadd.s32 1, %s218
            $region87: #{custom-call.3} parent=80 // loop_footer_branch
              %217 = sbr.rel target = $region83
            $region88: #{custom-call.3} parent=80 // loop_exit
              _
          $region81: #{custom-call.3} parent=76 // pred_fallthru
            _
          // Predicated region
          $region89: #{custom-call.3} parent=76 // pred_check
            _
          $region90: #{custom-call.3} parent=76 // pred_check_branch
            %242 = sbr.rel target = $region92
          $region91: #{custom-call.3} parent=76 // pred_region
            _
          $region92: #{custom-call.3} parent=76 // pred_fallthru
            _
        $region77: #{custom-call.3} parent=15 // pred_fallthru
          _
        %243 = vnop
      $region16: #{custom-call.3} parent=5 // pred_fallthru
        _
      %p244 = scmp.le.s32.totalorder 1, %s21
      %p245 = scmp.lt.s32.totalorder %s21, 3
      %p246 = pnand %p244, %p245
      %p247 = pneg %p246
      // Predicated region
      $region93: #{custom-call.3} parent=5 // pred_check
        _
      $region94: #{custom-call.3} parent=5 // pred_check_branch
        %249 = sbr.rel (%p246) target = $region96
      $region95: #{custom-call.3} parent=5 // pred_region
        #allocation15 [shape = 'f32[64,64]{1,0}', space=vmem, size = 0x8000, scoped, tag = 'a top-left matrix']
        #allocation16 [shape = 'f32[64,64]{1,0}', space=vmem, size = 0x8000, scoped, tag = 'a top-right matrix']
        #allocation17 [shape = 'f32[64,64]{1,0}', space=vmem, size = 0x8000, scoped, tag = 'a bottom-left matrix']
        #allocation18 [shape = 'f32[64,64]{1,0}', space=vmem, size = 0x8000, scoped, tag = 'a bottom-right matrix']
        %s250 = ssub.s32 %s21, 1
        %s251 = sand.u32 %s26, 1
        %s252 = sand.u32 %s26, 1
        %s253 = smul.addr %s252, 64
        %s254 = scalar_lea.vmem [#allocation0], %s253
        %s255 = sand.u32 %s26, 1
        %s256 = sand.u32 %s26, 1
        %s257 = smul.addr %s256, 64
        %s258 = scalar_lea.vmem [#allocation1], %s257
        %s259 = sand.u32 %s26, 1
        %s260 = sand.u32 %s26, 1
        %s261 = smul.addr %s260, 64
        %s262 = scalar_lea.vmem [#allocation2], %s261
        %s263 = sand.u32 %s26, 1
        %s264 = sand.u32 %s26, 1
        %s265 = smul.addr %s264, 64
        %s266 = scalar_lea.vmem [#allocation3], %s265
        %s267 = sand.u32 %s26, 1
        %s268 = sand.u32 %s26, 1
        %s269 = smul.addr %s268, 64
        %s270 = scalar_lea.vmem [#allocation0], %s269
        %s271 = sand.u32 %s26, 1
        %s272 = sand.u32 %s26, 1
        %s273 = smul.addr %s272, 64
        %s274 = scalar_lea.vmem [#allocation1], %s273
        %s275 = sand.u32 %s26, 1
        %s276 = sand.u32 %s26, 1
        %s277 = smul.addr %s276, 64
        %s278 = scalar_lea.vmem [#allocation2], %s277
        %s279 = sand.u32 %s26, 1
        %s280 = sand.u32 %s26, 1
        %s281 = smul.addr %s280, 64
        %s282 = scalar_lea.vmem [#allocation3], %s281
        %p283 = pneg %p49
        %p284 = pneg %p46
        %s285 = sand.u32 %s36, 1
        %s286 = sand.u32 %s36, 1
        %s287 = smul.addr %s286, 2
        %s288 = scalar_lea.vmem [#allocation5], %s287
        %p289 = pneg %p77
        %p290 = pneg %p74
        %s291 = sand.u32 %s64, 1
        %s292 = sand.u32 %s64, 1
        %s293 = smul.addr %s292, 2
        %s294 = scalar_lea.vmem [#allocation7], %s293
        %s295 = sand.u32 %s26, 1
        %s296 = scalar_lea.sflag [#allocation9], %s295
        %s297 = sand.u32 %s26, 1
        %s298 = smul.addr %s297, 64
        %s299 = scalar_lea.vmem [#allocation8], %s298
        %s300 = sand.u32 %s26, 1
        %s301 = scalar_lea.sflag [#allocation11], %s300
        %s302 = sand.u32 %s26, 1
        %s303 = smul.addr %s302, 64
        %s304 = scalar_lea.vmem [#allocation10], %s303
        %s305 = sand.u32 %s26, 1
        %s306 = scalar_lea.sflag [#allocation11], %s305
        %s307 = sand.u32 %s26, 1
        %s308 = smul.addr %s307, 64
        %s309 = scalar_lea.vmem [#allocation12], %s308
        %s310 = sand.u32 %s26, 1
        %s311 = scalar_lea.sflag [#allocation14], %s310
        %s312 = sand.u32 %s26, 1
        %s313 = smul.addr %s312, 64
        %s314 = scalar_lea.vmem [#allocation13], %s313
        %s315 = sshrl.u32 %s26, 3
        %s316 = sshrl.u32 %s26, 3
        %s317 = smov [#allocation15]
        %v318 = vld [vmem:[%s254] sm:$0xff]
        %319 = vst [vmem:[%s317] sm:$0xff] %v318
        %s320 = scalar_lea.vmem %s317, 8
        %s321 = scalar_lea.vmem %s254, 8 [#allocation0]
        %v322 = vld [vmem:[%s321] sm:$0xff]
        %323 = vst [vmem:[%s320] sm:$0xff] %v322
        %s324 = scalar_lea.vmem %s317, 16
        %s325 = scalar_lea.vmem %s254, 16 [#allocation0]
        %v326 = vld [vmem:[%s325] sm:$0xff]
        %327 = vst [vmem:[%s324] sm:$0xff] %v326
        %s328 = scalar_lea.vmem %s317, 24
        %s329 = scalar_lea.vmem %s254, 24 [#allocation0]
        %v330 = vld [vmem:[%s329] sm:$0xff]
        %331 = vst [vmem:[%s328] sm:$0xff] %v330
        %s332 = scalar_lea.vmem %s317, 32
        %s333 = scalar_lea.vmem %s254, 32 [#allocation0]
        %v334 = vld [vmem:[%s333] sm:$0xff]
        %335 = vst [vmem:[%s332] sm:$0xff] %v334
        %s336 = scalar_lea.vmem %s317, 40
        %s337 = scalar_lea.vmem %s254, 40 [#allocation0]
        %v338 = vld [vmem:[%s337] sm:$0xff]
        %339 = vst [vmem:[%s336] sm:$0xff] %v338
        %s340 = scalar_lea.vmem %s317, 48
        %s341 = scalar_lea.vmem %s254, 48 [#allocation0]
        %v342 = vld [vmem:[%s341] sm:$0xff]
        %343 = vst [vmem:[%s340] sm:$0xff] %v342
        %s344 = scalar_lea.vmem %s317, 56
        %s345 = scalar_lea.vmem %s254, 56 [#allocation0]
        %v346 = vld [vmem:[%s345] sm:$0xff]
        %347 = vst [vmem:[%s344] sm:$0xff] %v346
        %s348 = smov [#allocation16]
        %v349 = vld [vmem:[%s258] sm:$0xff]
        %350 = vst [vmem:[%s348] sm:$0xff] %v349
        %s351 = scalar_lea.vmem %s348, 8
        %s352 = scalar_lea.vmem %s258, 8 [#allocation1]
        %v353 = vld [vmem:[%s352] sm:$0xff]
        %354 = vst [vmem:[%s351] sm:$0xff] %v353
        %s355 = scalar_lea.vmem %s348, 16
        %s356 = scalar_lea.vmem %s258, 16 [#allocation1]
        %v357 = vld [vmem:[%s356] sm:$0xff]
        %358 = vst [vmem:[%s355] sm:$0xff] %v357
        %s359 = scalar_lea.vmem %s348, 24
        %s360 = scalar_lea.vmem %s258, 24 [#allocation1]
        %v361 = vld [vmem:[%s360] sm:$0xff]
        %362 = vst [vmem:[%s359] sm:$0xff] %v361
        %s363 = scalar_lea.vmem %s348, 32
        %s364 = scalar_lea.vmem %s258, 32 [#allocation1]
        %v365 = vld [vmem:[%s364] sm:$0xff]
        %366 = vst [vmem:[%s363] sm:$0xff] %v365
        %s367 = scalar_lea.vmem %s348, 40
        %s368 = scalar_lea.vmem %s258, 40 [#allocation1]
        %v369 = vld [vmem:[%s368] sm:$0xff]
        %370 = vst [vmem:[%s367] sm:$0xff] %v369
        %s371 = scalar_lea.vmem %s348, 48
        %s372 = scalar_lea.vmem %s258, 48 [#allocation1]
        %v373 = vld [vmem:[%s372] sm:$0xff]
        %374 = vst [vmem:[%s371] sm:$0xff] %v373
        %s375 = scalar_lea.vmem %s348, 56
        %s376 = scalar_lea.vmem %s258, 56 [#allocation1]
        %v377 = vld [vmem:[%s376] sm:$0xff]
        %378 = vst [vmem:[%s375] sm:$0xff] %v377
        %s379 = smov [#allocation17]
        %v380 = vld [vmem:[%s262] sm:$0xff]
        %381 = vst [vmem:[%s379] sm:$0xff] %v380
        %s382 = scalar_lea.vmem %s379, 8
        %s383 = scalar_lea.vmem %s262, 8 [#allocation2]
        %v384 = vld [vmem:[%s383] sm:$0xff]
        %385 = vst [vmem:[%s382] sm:$0xff] %v384
        %s386 = scalar_lea.vmem %s379, 16
        %s387 = scalar_lea.vmem %s262, 16 [#allocation2]
        %v388 = vld [vmem:[%s387] sm:$0xff]
        %389 = vst [vmem:[%s386] sm:$0xff] %v388
        %s390 = scalar_lea.vmem %s379, 24
        %s391 = scalar_lea.vmem %s262, 24 [#allocation2]
        %v392 = vld [vmem:[%s391] sm:$0xff]
        %393 = vst [vmem:[%s390] sm:$0xff] %v392
        %s394 = scalar_lea.vmem %s379, 32
        %s395 = scalar_lea.vmem %s262, 32 [#allocation2]
        %v396 = vld [vmem:[%s395] sm:$0xff]
        %397 = vst [vmem:[%s394] sm:$0xff] %v396
        %s398 = scalar_lea.vmem %s379, 40
        %s399 = scalar_lea.vmem %s262, 40 [#allocation2]
        %v400 = vld [vmem:[%s399] sm:$0xff]
        %401 = vst [vmem:[%s398] sm:$0xff] %v400
        %s402 = scalar_lea.vmem %s379, 48
        %s403 = scalar_lea.vmem %s262, 48 [#allocation2]
        %v404 = vld [vmem:[%s403] sm:$0xff]
        %405 = vst [vmem:[%s402] sm:$0xff] %v404
        %s406 = scalar_lea.vmem %s379, 56
        %s407 = scalar_lea.vmem %s262, 56 [#allocation2]
        %v408 = vld [vmem:[%s407] sm:$0xff]
        %409 = vst [vmem:[%s406] sm:$0xff] %v408
        %s410 = smov [#allocation18]
        %v411 = vld [vmem:[%s266] sm:$0xff]
        %412 = vst [vmem:[%s410] sm:$0xff] %v411
        %s413 = scalar_lea.vmem %s410, 8
        %s414 = scalar_lea.vmem %s266, 8 [#allocation3]
        %v415 = vld [vmem:[%s414] sm:$0xff]
        %416 = vst [vmem:[%s413] sm:$0xff] %v415
        %s417 = scalar_lea.vmem %s410, 16
        %s418 = scalar_lea.vmem %s266, 16 [#allocation3]
        %v419 = vld [vmem:[%s418] sm:$0xff]
        %420 = vst [vmem:[%s417] sm:$0xff] %v419
        %s421 = scalar_lea.vmem %s410, 24
        %s422 = scalar_lea.vmem %s266, 24 [#allocation3]
        %v423 = vld [vmem:[%s422] sm:$0xff]
        %424 = vst [vmem:[%s421] sm:$0xff] %v423
        %s425 = scalar_lea.vmem %s410, 32
        %s426 = scalar_lea.vmem %s266, 32 [#allocation3]
        %v427 = vld [vmem:[%s426] sm:$0xff]
        %428 = vst [vmem:[%s425] sm:$0xff] %v427
        %s429 = scalar_lea.vmem %s410, 40
        %s430 = scalar_lea.vmem %s266, 40 [#allocation3]
        %v431 = vld [vmem:[%s430] sm:$0xff]
        %432 = vst [vmem:[%s429] sm:$0xff] %v431
        %s433 = scalar_lea.vmem %s410, 48
        %s434 = scalar_lea.vmem %s266, 48 [#allocation3]
        %v435 = vld [vmem:[%s434] sm:$0xff]
        %436 = vst [vmem:[%s433] sm:$0xff] %v435
        %s437 = scalar_lea.vmem %s410, 56
        %s438 = scalar_lea.vmem %s266, 56 [#allocation3]
        %v439 = vld [vmem:[%s438] sm:$0xff]
        %440 = vst [vmem:[%s437] sm:$0xff] %v439
        %441 = vst [vmem:[%s299] sm:$0xff] 0.0
        %s442 = scalar_lea.vmem %s299, 8 [#allocation8]
        %443 = vst [vmem:[%s442] sm:$0xff] 0.0
        %s444 = scalar_lea.vmem %s299, 16 [#allocation8]
        %445 = vst [vmem:[%s444] sm:$0xff] 0.0
        %s446 = scalar_lea.vmem %s299, 24 [#allocation8]
        %447 = vst [vmem:[%s446] sm:$0xff] 0.0
        %s448 = scalar_lea.vmem %s299, 32 [#allocation8]
        %449 = vst [vmem:[%s448] sm:$0xff] 0.0
        %s450 = scalar_lea.vmem %s299, 40 [#allocation8]
        %451 = vst [vmem:[%s450] sm:$0xff] 0.0
        %s452 = scalar_lea.vmem %s299, 48 [#allocation8]
        %453 = vst [vmem:[%s452] sm:$0xff] 0.0
        %s454 = scalar_lea.vmem %s299, 56 [#allocation8]
        %455 = vst [vmem:[%s454] sm:$0xff] 0.0
        %456 = vst [vmem:[%s304] sm:$0xff] 0.0
        %s457 = scalar_lea.vmem %s304, 8 [#allocation10]
        %458 = vst [vmem:[%s457] sm:$0xff] 0.0
        %s459 = scalar_lea.vmem %s304, 16 [#allocation10]
        %460 = vst [vmem:[%s459] sm:$0xff] 0.0
        %s461 = scalar_lea.vmem %s304, 24 [#allocation10]
        %462 = vst [vmem:[%s461] sm:$0xff] 0.0
        %s463 = scalar_lea.vmem %s304, 32 [#allocation10]
        %464 = vst [vmem:[%s463] sm:$0xff] 0.0
        %s465 = scalar_lea.vmem %s304, 40 [#allocation10]
        %466 = vst [vmem:[%s465] sm:$0xff] 0.0
        %s467 = scalar_lea.vmem %s304, 48 [#allocation10]
        %468 = vst [vmem:[%s467] sm:$0xff] 0.0
        %s469 = scalar_lea.vmem %s304, 56 [#allocation10]
        %470 = vst [vmem:[%s469] sm:$0xff] 0.0
        %471 = vst [vmem:[%s309] sm:$0xff] 0.0
        %s472 = scalar_lea.vmem %s309, 8 [#allocation12]
        %473 = vst [vmem:[%s472] sm:$0xff] 0.0
        %s474 = scalar_lea.vmem %s309, 16 [#allocation12]
        %475 = vst [vmem:[%s474] sm:$0xff] 0.0
        %s476 = scalar_lea.vmem %s309, 24 [#allocation12]
        %477 = vst [vmem:[%s476] sm:$0xff] 0.0
        %s478 = scalar_lea.vmem %s309, 32 [#allocation12]
        %479 = vst [vmem:[%s478] sm:$0xff] 0.0
        %s480 = scalar_lea.vmem %s309, 40 [#allocation12]
        %481 = vst [vmem:[%s480] sm:$0xff] 0.0
        %s482 = scalar_lea.vmem %s309, 48 [#allocation12]
        %483 = vst [vmem:[%s482] sm:$0xff] 0.0
        %s484 = scalar_lea.vmem %s309, 56 [#allocation12]
        %485 = vst [vmem:[%s484] sm:$0xff] 0.0
        %486 = vst [vmem:[%s314] sm:$0xff] 0.0
        %s487 = scalar_lea.vmem %s314, 8 [#allocation13]
        %488 = vst [vmem:[%s487] sm:$0xff] 0.0
        %s489 = scalar_lea.vmem %s314, 16 [#allocation13]
        %490 = vst [vmem:[%s489] sm:$0xff] 0.0
        %s491 = scalar_lea.vmem %s314, 24 [#allocation13]
        %492 = vst [vmem:[%s491] sm:$0xff] 0.0
        %s493 = scalar_lea.vmem %s314, 32 [#allocation13]
        %494 = vst [vmem:[%s493] sm:$0xff] 0.0
        %s495 = scalar_lea.vmem %s314, 40 [#allocation13]
        %496 = vst [vmem:[%s495] sm:$0xff] 0.0
        %s497 = scalar_lea.vmem %s314, 48 [#allocation13]
        %498 = vst [vmem:[%s497] sm:$0xff] 0.0
        %s499 = scalar_lea.vmem %s314, 56 [#allocation13]
        %500 = vst [vmem:[%s499] sm:$0xff] 0.0
        %s501 = smov %s299
        %v502 = vlaneseq
        %v503 = vand.u32 %v502, 127
        %v504 = vmov %v503
        %v505 = vlaneseq
        %v506 = vshrl.u32 %v505, 7
        %v507 = vmov %v506
        %v508 = vld [vmem:[%s501] sm:$0xff]
        %vm511 = vcmp.eq.s32.totalorder %v507, %v504
        %v512 = vsel %vm511, 1.0, %v508
        %513 = vst [vmem:[%s501] sm:$0xff] %v512
        %s514 = scalar_lea.vmem %s501, 8
        %v515 = vld [vmem:[%s514] sm:$0xff]
        %v517 = vadd.s32 %v507, 8
        %vm518 = vcmp.eq.s32.totalorder %v517, %v504
        %v519 = vsel %vm518, 1.0, %v515
        %520 = vst [vmem:[%s514] sm:$0xff] %v519
        %s521 = scalar_lea.vmem %s501, 16
        %v522 = vld [vmem:[%s521] sm:$0xff]
        %v524 = vadd.s32 %v507, 16
        %vm525 = vcmp.eq.s32.totalorder %v524, %v504
        %v526 = vsel %vm525, 1.0, %v522
        %527 = vst [vmem:[%s521] sm:$0xff] %v526
        %s528 = scalar_lea.vmem %s501, 24
        %v529 = vld [vmem:[%s528] sm:$0xff]
        %v531 = vadd.s32 %v507, 24
        %vm532 = vcmp.eq.s32.totalorder %v531, %v504
        %v533 = vsel %vm532, 1.0, %v529
        %534 = vst [vmem:[%s528] sm:$0xff] %v533
        %s535 = scalar_lea.vmem %s501, 32
        %v536 = vld [vmem:[%s535] sm:$0xff]
        %v538 = vadd.s32 %v507, 32
        %vm539 = vcmp.eq.s32.totalorder %v538, %v504
        %v540 = vsel %vm539, 1.0, %v536
        %541 = vst [vmem:[%s535] sm:$0xff] %v540
        %s542 = scalar_lea.vmem %s501, 40
        %v543 = vld [vmem:[%s542] sm:$0xff]
        %v545 = vadd.s32 %v507, 40
        %vm546 = vcmp.eq.s32.totalorder %v545, %v504
        %v547 = vsel %vm546, 1.0, %v543
        %548 = vst [vmem:[%s542] sm:$0xff] %v547
        %s549 = scalar_lea.vmem %s501, 48
        %v550 = vld [vmem:[%s549] sm:$0xff]
        %v552 = vadd.s32 %v507, 48
        %vm553 = vcmp.eq.s32.totalorder %v552, %v504
        %v554 = vsel %vm553, 1.0, %v550
        %555 = vst [vmem:[%s549] sm:$0xff] %v554
        %s556 = scalar_lea.vmem %s501, 56
        %v557 = vld [vmem:[%s556] sm:$0xff]
        %v559 = vadd.s32 %v507, 56
        %vm560 = vcmp.eq.s32.totalorder %v559, %v504
        %v561 = vsel %vm560, 1.0, %v557
        %562 = vst [vmem:[%s556] sm:$0xff] %v561
        %s563 = smov %s314
        %v564 = vlaneseq
        %v565 = vand.u32 %v564, 127
        %v566 = vmov %v565
        %v567 = vlaneseq
        %v568 = vshrl.u32 %v567, 7
        %v569 = vmov %v568
        %v570 = vld [vmem:[%s563] sm:$0xff]
        %vm573 = vcmp.eq.s32.totalorder %v569, %v566
        %v574 = vsel %vm573, 1.0, %v570
        %575 = vst [vmem:[%s563] sm:$0xff] %v574
        %s576 = scalar_lea.vmem %s563, 8
        %v577 = vld [vmem:[%s576] sm:$0xff]
        %v579 = vadd.s32 %v569, 8
        %vm580 = vcmp.eq.s32.totalorder %v579, %v566
        %v581 = vsel %vm580, 1.0, %v577
        %582 = vst [vmem:[%s576] sm:$0xff] %v581
        %s583 = scalar_lea.vmem %s563, 16
        %v584 = vld [vmem:[%s583] sm:$0xff]
        %v586 = vadd.s32 %v569, 16
        %vm587 = vcmp.eq.s32.totalorder %v586, %v566
        %v588 = vsel %vm587, 1.0, %v584
        %589 = vst [vmem:[%s583] sm:$0xff] %v588
        %s590 = scalar_lea.vmem %s563, 24
        %v591 = vld [vmem:[%s590] sm:$0xff]
        %v593 = vadd.s32 %v569, 24
        %vm594 = vcmp.eq.s32.totalorder %v593, %v566
        %v595 = vsel %vm594, 1.0, %v591
        %596 = vst [vmem:[%s590] sm:$0xff] %v595
        %s597 = scalar_lea.vmem %s563, 32
        %v598 = vld [vmem:[%s597] sm:$0xff]
        %v600 = vadd.s32 %v569, 32
        %vm601 = vcmp.eq.s32.totalorder %v600, %v566
        %v602 = vsel %vm601, 1.0, %v598
        %603 = vst [vmem:[%s597] sm:$0xff] %v602
        %s604 = scalar_lea.vmem %s563, 40
        %v605 = vld [vmem:[%s604] sm:$0xff]
        %v607 = vadd.s32 %v569, 40
        %vm608 = vcmp.eq.s32.totalorder %v607, %v566
        %v609 = vsel %vm608, 1.0, %v605
        %610 = vst [vmem:[%s604] sm:$0xff] %v609
        %s611 = scalar_lea.vmem %s563, 48
        %v612 = vld [vmem:[%s611] sm:$0xff]
        %v614 = vadd.s32 %v569, 48
        %vm615 = vcmp.eq.s32.totalorder %v614, %v566
        %v616 = vsel %vm615, 1.0, %v612
        %617 = vst [vmem:[%s611] sm:$0xff] %v616
        %s618 = scalar_lea.vmem %s563, 56
        %v619 = vld [vmem:[%s618] sm:$0xff]
        %v621 = vadd.s32 %v569, 56
        %vm622 = vcmp.eq.s32.totalorder %v621, %v566
        %v623 = vsel %vm622, 1.0, %v619
        %624 = vst [vmem:[%s618] sm:$0xff] %v623
        // While loop
        $region97: #{custom-call.3} parent=95 // loop_pre_header
          _
        $region98: #{custom-call.3} parent=95 // loop_header
          %s626 = sphi 0, %s3660
          %v627 = vlaneseq
          %v628 = vand.u32 %v627, 127
          %v629 = vmov %v628
          %v630 = vlaneseq
          %v631 = vshrl.u32 %v630, 7
          %v632 = vmov %v631
          %s633 = smov [#allocation15]
          %v634 = vlaneseq
          %v635 = vand.u32 %v634, 127
          %vm636 = vcmp.ge.s32.totalorder %v635, 0
          %vm637 = vcmp.lt.s32.totalorder %v635, 64
          %vm638 = vmand %vm636, %vm637
          %v639 = vld [vmem:[%s633] sm:$0xff]
          %v640 = vsel %vm638, %v639, 0.0
          %v641 = vmul.f32 %v640, %v640
          %vm644 = vcmp.eq.s32.totalorder %v632, %v629
          %v645 = vsel %vm644, 0.0, %v641
          %s646 = scalar_lea.vmem %s633, 8
          %v647 = vld [vmem:[%s646] sm:$0xff]
          %v648 = vsel %vm638, %v647, 0.0
          %v649 = vmul.f32 %v648, %v648
          %v651 = vadd.s32 %v632, 8
          %vm652 = vcmp.eq.s32.totalorder %v651, %v629
          %v653 = vsel %vm652, 0.0, %v649
          %v654 = vadd.f32 %v645, %v653
          %v655 = vadd.f32 %v641, %v649
          %s656 = scalar_lea.vmem %s633, 16
          %v657 = vld [vmem:[%s656] sm:$0xff]
          %v658 = vsel %vm638, %v657, 0.0
          %v659 = vmul.f32 %v658, %v658
          %v661 = vadd.s32 %v632, 16
          %vm662 = vcmp.eq.s32.totalorder %v661, %v629
          %v663 = vsel %vm662, 0.0, %v659
          %v664 = vadd.f32 %v654, %v663
          %v665 = vadd.f32 %v655, %v659
          %s666 = scalar_lea.vmem %s633, 24
          %v667 = vld [vmem:[%s666] sm:$0xff]
          %v668 = vsel %vm638, %v667, 0.0
          %v669 = vmul.f32 %v668, %v668
          %v671 = vadd.s32 %v632, 24
          %vm672 = vcmp.eq.s32.totalorder %v671, %v629
          %v673 = vsel %vm672, 0.0, %v669
          %v674 = vadd.f32 %v664, %v673
          %v675 = vadd.f32 %v665, %v669
          %s676 = scalar_lea.vmem %s633, 32
          %v677 = vld [vmem:[%s676] sm:$0xff]
          %v678 = vsel %vm638, %v677, 0.0
          %v679 = vmul.f32 %v678, %v678
          %v681 = vadd.s32 %v632, 32
          %vm682 = vcmp.eq.s32.totalorder %v681, %v629
          %v683 = vsel %vm682, 0.0, %v679
          %v684 = vadd.f32 %v674, %v683
          %v685 = vadd.f32 %v675, %v679
          %s686 = scalar_lea.vmem %s633, 40
          %v687 = vld [vmem:[%s686] sm:$0xff]
          %v688 = vsel %vm638, %v687, 0.0
          %v689 = vmul.f32 %v688, %v688
          %v691 = vadd.s32 %v632, 40
          %vm692 = vcmp.eq.s32.totalorder %v691, %v629
          %v693 = vsel %vm692, 0.0, %v689
          %v694 = vadd.f32 %v684, %v693
          %v695 = vadd.f32 %v685, %v689
          %s696 = scalar_lea.vmem %s633, 48
          %v697 = vld [vmem:[%s696] sm:$0xff]
          %v698 = vsel %vm638, %v697, 0.0
          %v699 = vmul.f32 %v698, %v698
          %v701 = vadd.s32 %v632, 48
          %vm702 = vcmp.eq.s32.totalorder %v701, %v629
          %v703 = vsel %vm702, 0.0, %v699
          %v704 = vadd.f32 %v694, %v703
          %v705 = vadd.f32 %v695, %v699
          %s706 = scalar_lea.vmem %s633, 56
          %v707 = vld [vmem:[%s706] sm:$0xff]
          %v708 = vsel %vm638, %v707, 0.0
          %v709 = vmul.f32 %v708, %v708
          %v711 = vadd.s32 %v632, 56
          %vm712 = vcmp.eq.s32.totalorder %v711, %v629
          %v713 = vsel %vm712, 0.0, %v709
          %v714 = vadd.f32 %v704, %v713
          %v715 = vadd.f32 %v705, %v709
          %v716 = vlaneseq
          %v717 = vand.u32 %v716, 127
          %v718 = vmov %v717
          %v719 = vlaneseq
          %v720 = vshrl.u32 %v719, 7
          %v721 = vmov %v720
          %s722 = smov [#allocation16]
          %v723 = vlaneseq
          %v724 = vand.u32 %v723, 127
          %vm725 = vcmp.ge.s32.totalorder %v724, 0
          %vm726 = vcmp.lt.s32.totalorder %v724, 64
          %vm727 = vmand %vm725, %vm726
          %v728 = vld [vmem:[%s722] sm:$0xff]
          %v729 = vsel %vm727, %v728, 0.0
          %v730 = vmul.f32 %v729, %v729
          %v731 = vadd.f32 %v714, %v730
          %v732 = vadd.f32 %v715, %v730
          %s733 = scalar_lea.vmem %s722, 8
          %v734 = vld [vmem:[%s733] sm:$0xff]
          %v735 = vsel %vm727, %v734, 0.0
          %v736 = vmul.f32 %v735, %v735
          %v737 = vadd.f32 %v731, %v736
          %v738 = vadd.f32 %v732, %v736
          %s739 = scalar_lea.vmem %s722, 16
          %v740 = vld [vmem:[%s739] sm:$0xff]
          %v741 = vsel %vm727, %v740, 0.0
          %v742 = vmul.f32 %v741, %v741
          %v743 = vadd.f32 %v737, %v742
          %v744 = vadd.f32 %v738, %v742
          %s745 = scalar_lea.vmem %s722, 24
          %v746 = vld [vmem:[%s745] sm:$0xff]
          %v747 = vsel %vm727, %v746, 0.0
          %v748 = vmul.f32 %v747, %v747
          %v749 = vadd.f32 %v743, %v748
          %v750 = vadd.f32 %v744, %v748
          %s751 = scalar_lea.vmem %s722, 32
          %v752 = vld [vmem:[%s751] sm:$0xff]
          %v753 = vsel %vm727, %v752, 0.0
          %v754 = vmul.f32 %v753, %v753
          %v755 = vadd.f32 %v749, %v754
          %v756 = vadd.f32 %v750, %v754
          %s757 = scalar_lea.vmem %s722, 40
          %v758 = vld [vmem:[%s757] sm:$0xff]
          %v759 = vsel %vm727, %v758, 0.0
          %v760 = vmul.f32 %v759, %v759
          %v761 = vadd.f32 %v755, %v760
          %v762 = vadd.f32 %v756, %v760
          %s763 = scalar_lea.vmem %s722, 48
          %v764 = vld [vmem:[%s763] sm:$0xff]
          %v765 = vsel %vm727, %v764, 0.0
          %v766 = vmul.f32 %v765, %v765
          %v767 = vadd.f32 %v761, %v766
          %v768 = vadd.f32 %v762, %v766
          %s769 = scalar_lea.vmem %s722, 56
          %v770 = vld [vmem:[%s769] sm:$0xff]
          %v771 = vsel %vm727, %v770, 0.0
          %v772 = vmul.f32 %v771, %v771
          %v773 = vadd.f32 %v767, %v772
          %v774 = vadd.f32 %v768, %v772
          %v775 = vlaneseq
          %v776 = vand.u32 %v775, 127
          %v777 = vmov %v776
          %v778 = vlaneseq
          %v779 = vshrl.u32 %v778, 7
          %v780 = vmov %v779
          %s781 = smov [#allocation17]
          %v782 = vlaneseq
          %v783 = vand.u32 %v782, 127
          %vm784 = vcmp.ge.s32.totalorder %v783, 0
          %vm785 = vcmp.lt.s32.totalorder %v783, 64
          %vm786 = vmand %vm784, %vm785
          %v787 = vld [vmem:[%s781] sm:$0xff]
          %v788 = vsel %vm786, %v787, 0.0
          %v789 = vmul.f32 %v788, %v788
          %v790 = vadd.f32 %v773, %v789
          %v791 = vadd.f32 %v774, %v789
          %s792 = scalar_lea.vmem %s781, 8
          %v793 = vld [vmem:[%s792] sm:$0xff]
          %v794 = vsel %vm786, %v793, 0.0
          %v795 = vmul.f32 %v794, %v794
          %v796 = vadd.f32 %v790, %v795
          %v797 = vadd.f32 %v791, %v795
          %s798 = scalar_lea.vmem %s781, 16
          %v799 = vld [vmem:[%s798] sm:$0xff]
          %v800 = vsel %vm786, %v799, 0.0
          %v801 = vmul.f32 %v800, %v800
          %v802 = vadd.f32 %v796, %v801
          %v803 = vadd.f32 %v797, %v801
          %s804 = scalar_lea.vmem %s781, 24
          %v805 = vld [vmem:[%s804] sm:$0xff]
          %v806 = vsel %vm786, %v805, 0.0
          %v807 = vmul.f32 %v806, %v806
          %v808 = vadd.f32 %v802, %v807
          %v809 = vadd.f32 %v803, %v807
          %s810 = scalar_lea.vmem %s781, 32
          %v811 = vld [vmem:[%s810] sm:$0xff]
          %v812 = vsel %vm786, %v811, 0.0
          %v813 = vmul.f32 %v812, %v812
          %v814 = vadd.f32 %v808, %v813
          %v815 = vadd.f32 %v809, %v813
          %s816 = scalar_lea.vmem %s781, 40
          %v817 = vld [vmem:[%s816] sm:$0xff]
          %v818 = vsel %vm786, %v817, 0.0
          %v819 = vmul.f32 %v818, %v818
          %v820 = vadd.f32 %v814, %v819
          %v821 = vadd.f32 %v815, %v819
          %s822 = scalar_lea.vmem %s781, 48
          %v823 = vld [vmem:[%s822] sm:$0xff]
          %v824 = vsel %vm786, %v823, 0.0
          %v825 = vmul.f32 %v824, %v824
          %v826 = vadd.f32 %v820, %v825
          %v827 = vadd.f32 %v821, %v825
          %s828 = scalar_lea.vmem %s781, 56
          %v829 = vld [vmem:[%s828] sm:$0xff]
          %v830 = vsel %vm786, %v829, 0.0
          %v831 = vmul.f32 %v830, %v830
          %v832 = vadd.f32 %v826, %v831
          %v833 = vadd.f32 %v827, %v831
          %v834 = vlaneseq
          %v835 = vand.u32 %v834, 127
          %v836 = vmov %v835
          %v837 = vlaneseq
          %v838 = vshrl.u32 %v837, 7
          %v839 = vmov %v838
          %s840 = smov [#allocation18]
          %v841 = vlaneseq
          %v842 = vand.u32 %v841, 127
          %vm843 = vcmp.ge.s32.totalorder %v842, 0
          %vm844 = vcmp.lt.s32.totalorder %v842, 64
          %vm845 = vmand %vm843, %vm844
          %v846 = vld [vmem:[%s840] sm:$0xff]
          %v847 = vsel %vm845, %v846, 0.0
          %v848 = vmul.f32 %v847, %v847
          %vm851 = vcmp.eq.s32.totalorder %v839, %v836
          %v852 = vsel %vm851, 0.0, %v848
          %v853 = vadd.f32 %v832, %v852
          %v854 = vadd.f32 %v833, %v848
          %s855 = scalar_lea.vmem %s840, 8
          %v856 = vld [vmem:[%s855] sm:$0xff]
          %v857 = vsel %vm845, %v856, 0.0
          %v858 = vmul.f32 %v857, %v857
          %v860 = vadd.s32 %v839, 8
          %vm861 = vcmp.eq.s32.totalorder %v860, %v836
          %v862 = vsel %vm861, 0.0, %v858
          %v863 = vadd.f32 %v853, %v862
          %v864 = vadd.f32 %v854, %v858
          %s865 = scalar_lea.vmem %s840, 16
          %v866 = vld [vmem:[%s865] sm:$0xff]
          %v867 = vsel %vm845, %v866, 0.0
          %v868 = vmul.f32 %v867, %v867
          %v870 = vadd.s32 %v839, 16
          %vm871 = vcmp.eq.s32.totalorder %v870, %v836
          %v872 = vsel %vm871, 0.0, %v868
          %v873 = vadd.f32 %v863, %v872
          %v874 = vadd.f32 %v864, %v868
          %s875 = scalar_lea.vmem %s840, 24
          %v876 = vld [vmem:[%s875] sm:$0xff]
          %v877 = vsel %vm845, %v876, 0.0
          %v878 = vmul.f32 %v877, %v877
          %v880 = vadd.s32 %v839, 24
          %vm881 = vcmp.eq.s32.totalorder %v880, %v836
          %v882 = vsel %vm881, 0.0, %v878
          %v883 = vadd.f32 %v873, %v882
          %v884 = vadd.f32 %v874, %v878
          %s885 = scalar_lea.vmem %s840, 32
          %v886 = vld [vmem:[%s885] sm:$0xff]
          %v887 = vsel %vm845, %v886, 0.0
          %v888 = vmul.f32 %v887, %v887
          %v890 = vadd.s32 %v839, 32
          %vm891 = vcmp.eq.s32.totalorder %v890, %v836
          %v892 = vsel %vm891, 0.0, %v888
          %v893 = vadd.f32 %v883, %v892
          %v894 = vadd.f32 %v884, %v888
          %s895 = scalar_lea.vmem %s840, 40
          %v896 = vld [vmem:[%s895] sm:$0xff]
          %v897 = vsel %vm845, %v896, 0.0
          %v898 = vmul.f32 %v897, %v897
          %v900 = vadd.s32 %v839, 40
          %vm901 = vcmp.eq.s32.totalorder %v900, %v836
          %v902 = vsel %vm901, 0.0, %v898
          %v903 = vadd.f32 %v893, %v902
          %v904 = vadd.f32 %v894, %v898
          %s905 = scalar_lea.vmem %s840, 48
          %v906 = vld [vmem:[%s905] sm:$0xff]
          %v907 = vsel %vm845, %v906, 0.0
          %v908 = vmul.f32 %v907, %v907
          %v910 = vadd.s32 %v839, 48
          %vm911 = vcmp.eq.s32.totalorder %v910, %v836
          %v912 = vsel %vm911, 0.0, %v908
          %v913 = vadd.f32 %v903, %v912
          %v914 = vadd.f32 %v904, %v908
          %s915 = scalar_lea.vmem %s840, 56
          %v916 = vld [vmem:[%s915] sm:$0xff]
          %v917 = vsel %vm845, %v916, 0.0
          %v918 = vmul.f32 %v917, %v917
          %v920 = vadd.s32 %v839, 56
          %vm921 = vcmp.eq.s32.totalorder %v920, %v836
          %v922 = vsel %vm921, 0.0, %v918
          %v923 = vadd.f32 %v913, %v922
          %v924 = vadd.f32 %v914, %v918
          %925 = vadd.xlane.f32.xlu0 %v924
          %v926 = vpop.xlane.xlu0 %925
          %v927 = vrot.slane %v926, 4
          %v928 = vadd.f32 %v926, %v927
          %v929 = vrot.slane %v928, 2
          %v930 = vadd.f32 %v928, %v929
          %v931 = vrot.slane %v930, 1
          %v932 = vadd.f32 %v930, %v931
          %933 = vadd.xlane.f32.xlu0 %v923
          %v934 = vpop.xlane.xlu0 %933
          %v935 = vrot.slane %v934, 4
          %v936 = vadd.f32 %v934, %v935
          %v937 = vrot.slane %v936, 2
          %v938 = vadd.f32 %v936, %v937
          %v939 = vrot.slane %v938, 1
          %v940 = vadd.f32 %v938, %v939
          %s941 = vtos %v940
          %s942 = vtos %v932
          %s943 = smul.f32 1e-10, %s942
          %p944 = scmp.le.f32.partialorder %s941, %s943
          %p945 = scmp.ge.s32.totalorder %s626, 15
          %p946 = por %p944, %p945
        $region99: #{custom-call.3} parent=95 // loop_header_branch
          %3662 = sbr.rel (%p946) target = $region103
        $region100: #{custom-call.3} parent=95 // loop_body
          loop: start=0, step=1, limit=127
          $region104: #{custom-call.3} parent=100 // loop_pre_header
            _
          $region105: #{custom-call.3} parent=100 // loop_header
            %s948 = sphi 0, %s952
            %p949 = scmp.ge.s32.totalorder %s948, 127
          $region106: #{custom-call.3} parent=100 // loop_header_branch
            %951 = sbr.rel (%p949) target = $region110
          $region107: #{custom-call.3} parent=100 // loop_body
            #allocation19 [shape = 'f32[1024]{0}', space=vmem, size = 0x1000, scoped, tag = 'a_tl_diag vmem']
            #allocation20 [shape = 'f32[1024]{0}', space=vmem, size = 0x1000, scoped, tag = 'a_tr_diag vmem']
            #allocation21 [shape = 'f32[1024]{0}', space=vmem, size = 0x1000, scoped, tag = 'a_br_diag vmem']
            #allocation22 [shape = 'f32[1024]{0}', space=vmem, size = 0x1000, scoped, tag = 'rt1 vmem']
            #allocation23 [shape = 'f32[1024]{0}', space=vmem, size = 0x1000, scoped, tag = 'rt2 vmem']
            #allocation24 [shape = 'f32[1024]{0}', space=vmem, size = 0x1000, scoped, tag = 'c vmem']
            #allocation25 [shape = 'f32[1024]{0}', space=vmem, size = 0x1000, scoped, tag = 's vmem']
            #allocation26 [shape = 'f32[32768]{0}', space=vmem, size = 0x20000, scoped, tag = 'c broadcast']
            #allocation27 [shape = 'f32[32768]{0}', space=vmem, size = 0x20000, scoped, tag = 's broadcast']
            %s953 = smov [#allocation15]
            %s954 = smov [#allocation19]
            %v955 = vlaneseq
            %v956 = vand.u32 %v955, 127
            %v957 = vmov %v956
            %v958 = vlaneseq
            %v959 = vshrl.u32 %v958, 7
            %v960 = vmov %v959
            %v961 = vld [vmem:[%s953] sm:$0xff]
            %vm964 = vcmp.eq.s32.totalorder %v960, %v957
            %v965 = vsel %vm964, %v961, 0.0
            %s966 = scalar_lea.vmem %s953, 8
            %v967 = vld [vmem:[%s966] sm:$0xff]
            %v969 = vadd.s32 %v960, 8
            %vm970 = vcmp.eq.s32.totalorder %v969, %v957
            %v971 = vsel %vm970, %v967, %v965
            %s972 = scalar_lea.vmem %s953, 16
            %v973 = vld [vmem:[%s972] sm:$0xff]
            %v975 = vadd.s32 %v960, 16
            %vm976 = vcmp.eq.s32.totalorder %v975, %v957
            %v977 = vsel %vm976, %v973, %v971
            %s978 = scalar_lea.vmem %s953, 24
            %v979 = vld [vmem:[%s978] sm:$0xff]
            %v981 = vadd.s32 %v960, 24
            %vm982 = vcmp.eq.s32.totalorder %v981, %v957
            %v983 = vsel %vm982, %v979, %v977
            %s984 = scalar_lea.vmem %s953, 32
            %v985 = vld [vmem:[%s984] sm:$0xff]
            %v987 = vadd.s32 %v960, 32
            %vm988 = vcmp.eq.s32.totalorder %v987, %v957
            %v989 = vsel %vm988, %v985, %v983
            %s990 = scalar_lea.vmem %s953, 40
            %v991 = vld [vmem:[%s990] sm:$0xff]
            %v993 = vadd.s32 %v960, 40
            %vm994 = vcmp.eq.s32.totalorder %v993, %v957
            %v995 = vsel %vm994, %v991, %v989
            %s996 = scalar_lea.vmem %s953, 48
            %v997 = vld [vmem:[%s996] sm:$0xff]
            %v999 = vadd.s32 %v960, 48
            %vm1000 = vcmp.eq.s32.totalorder %v999, %v957
            %v1001 = vsel %vm1000, %v997, %v995
            %s1002 = scalar_lea.vmem %s953, 56
            %v1003 = vld [vmem:[%s1002] sm:$0xff]
            %v1005 = vadd.s32 %v960, 56
            %vm1006 = vcmp.eq.s32.totalorder %v1005, %v957
            %v1007 = vsel %vm1006, %v1003, %v1001
            %v1008 = vrot.slane %v1007, 4
            %v1009 = vadd.f32 %v1007, %v1008
            %v1010 = vrot.slane %v1009, 2
            %v1011 = vadd.f32 %v1009, %v1010
            %v1012 = vrot.slane %v1011, 1
            %v1013 = vadd.f32 %v1011, %v1012
            %1014 = vst [vmem:[%s954] sm:$0x1] %v1013
            %s1015 = smov [#allocation16]
            %s1016 = smov [#allocation20]
            %v1017 = vlaneseq
            %v1018 = vand.u32 %v1017, 127
            %v1019 = vmov %v1018
            %v1020 = vlaneseq
            %v1021 = vshrl.u32 %v1020, 7
            %v1022 = vmov %v1021
            %v1023 = vld [vmem:[%s1015] sm:$0xff]
            %vm1026 = vcmp.eq.s32.totalorder %v1022, %v1019
            %v1027 = vsel %vm1026, %v1023, 0.0
            %s1028 = scalar_lea.vmem %s1015, 8
            %v1029 = vld [vmem:[%s1028] sm:$0xff]
            %v1031 = vadd.s32 %v1022, 8
            %vm1032 = vcmp.eq.s32.totalorder %v1031, %v1019
            %v1033 = vsel %vm1032, %v1029, %v1027
            %s1034 = scalar_lea.vmem %s1015, 16
            %v1035 = vld [vmem:[%s1034] sm:$0xff]
            %v1037 = vadd.s32 %v1022, 16
            %vm1038 = vcmp.eq.s32.totalorder %v1037, %v1019
            %v1039 = vsel %vm1038, %v1035, %v1033
            %s1040 = scalar_lea.vmem %s1015, 24
            %v1041 = vld [vmem:[%s1040] sm:$0xff]
            %v1043 = vadd.s32 %v1022, 24
            %vm1044 = vcmp.eq.s32.totalorder %v1043, %v1019
            %v1045 = vsel %vm1044, %v1041, %v1039
            %s1046 = scalar_lea.vmem %s1015, 32
            %v1047 = vld [vmem:[%s1046] sm:$0xff]
            %v1049 = vadd.s32 %v1022, 32
            %vm1050 = vcmp.eq.s32.totalorder %v1049, %v1019
            %v1051 = vsel %vm1050, %v1047, %v1045
            %s1052 = scalar_lea.vmem %s1015, 40
            %v1053 = vld [vmem:[%s1052] sm:$0xff]
            %v1055 = vadd.s32 %v1022, 40
            %vm1056 = vcmp.eq.s32.totalorder %v1055, %v1019
            %v1057 = vsel %vm1056, %v1053, %v1051
            %s1058 = scalar_lea.vmem %s1015, 48
            %v1059 = vld [vmem:[%s1058] sm:$0xff]
            %v1061 = vadd.s32 %v1022, 48
            %vm1062 = vcmp.eq.s32.totalorder %v1061, %v1019
            %v1063 = vsel %vm1062, %v1059, %v1057
            %s1064 = scalar_lea.vmem %s1015, 56
            %v1065 = vld [vmem:[%s1064] sm:$0xff]
            %v1067 = vadd.s32 %v1022, 56
            %vm1068 = vcmp.eq.s32.totalorder %v1067, %v1019
            %v1069 = vsel %vm1068, %v1065, %v1063
            %v1070 = vrot.slane %v1069, 4
            %v1071 = vadd.f32 %v1069, %v1070
            %v1072 = vrot.slane %v1071, 2
            %v1073 = vadd.f32 %v1071, %v1072
            %v1074 = vrot.slane %v1073, 1
            %v1075 = vadd.f32 %v1073, %v1074
            %1076 = vst [vmem:[%s1016] sm:$0x1] %v1075
            %s1077 = smov [#allocation18]
            %s1078 = smov [#allocation21]
            %v1079 = vlaneseq
            %v1080 = vand.u32 %v1079, 127
            %v1081 = vmov %v1080
            %v1082 = vlaneseq
            %v1083 = vshrl.u32 %v1082, 7
            %v1084 = vmov %v1083
            %v1085 = vld [vmem:[%s1077] sm:$0xff]
            %vm1088 = vcmp.eq.s32.totalorder %v1084, %v1081
            %v1089 = vsel %vm1088, %v1085, 0.0
            %s1090 = scalar_lea.vmem %s1077, 8
            %v1091 = vld [vmem:[%s1090] sm:$0xff]
            %v1093 = vadd.s32 %v1084, 8
            %vm1094 = vcmp.eq.s32.totalorder %v1093, %v1081
            %v1095 = vsel %vm1094, %v1091, %v1089
            %s1096 = scalar_lea.vmem %s1077, 16
            %v1097 = vld [vmem:[%s1096] sm:$0xff]
            %v1099 = vadd.s32 %v1084, 16
            %vm1100 = vcmp.eq.s32.totalorder %v1099, %v1081
            %v1101 = vsel %vm1100, %v1097, %v1095
            %s1102 = scalar_lea.vmem %s1077, 24
            %v1103 = vld [vmem:[%s1102] sm:$0xff]
            %v1105 = vadd.s32 %v1084, 24
            %vm1106 = vcmp.eq.s32.totalorder %v1105, %v1081
            %v1107 = vsel %vm1106, %v1103, %v1101
            %s1108 = scalar_lea.vmem %s1077, 32
            %v1109 = vld [vmem:[%s1108] sm:$0xff]
            %v1111 = vadd.s32 %v1084, 32
            %vm1112 = vcmp.eq.s32.totalorder %v1111, %v1081
            %v1113 = vsel %vm1112, %v1109, %v1107
            %s1114 = scalar_lea.vmem %s1077, 40
            %v1115 = vld [vmem:[%s1114] sm:$0xff]
            %v1117 = vadd.s32 %v1084, 40
            %vm1118 = vcmp.eq.s32.totalorder %v1117, %v1081
            %v1119 = vsel %vm1118, %v1115, %v1113
            %s1120 = scalar_lea.vmem %s1077, 48
            %v1121 = vld [vmem:[%s1120] sm:$0xff]
            %v1123 = vadd.s32 %v1084, 48
            %vm1124 = vcmp.eq.s32.totalorder %v1123, %v1081
            %v1125 = vsel %vm1124, %v1121, %v1119
            %s1126 = scalar_lea.vmem %s1077, 56
            %v1127 = vld [vmem:[%s1126] sm:$0xff]
            %v1129 = vadd.s32 %v1084, 56
            %vm1130 = vcmp.eq.s32.totalorder %v1129, %v1081
            %v1131 = vsel %vm1130, %v1127, %v1125
            %v1132 = vrot.slane %v1131, 4
            %v1133 = vadd.f32 %v1131, %v1132
            %v1134 = vrot.slane %v1133, 2
            %v1135 = vadd.f32 %v1133, %v1134
            %v1136 = vrot.slane %v1135, 1
            %v1137 = vadd.f32 %v1135, %v1136
            %1138 = vst [vmem:[%s1078] sm:$0x1] %v1137
            %s1139 = smov [#allocation24]
            %s1140 = smov [#allocation25]
            %s1141 = smov [#allocation19]
            %v1142 = vld [vmem:[%s1141] sm:$0xff]
            %s1143 = smov [#allocation20]
            %v1144 = vld [vmem:[%s1143] sm:$0xff]
            %s1145 = smov [#allocation21]
            %v1146 = vld [vmem:[%s1145] sm:$0xff]
            %v1147 = vsub.f32 %v1146, %v1142
            %v1148 = vmul.f32 2.0, %v1144
            %v1149 = vrcp.pop %v1148
            %v1150 = vmul.f32 %v1147, %v1149
            %vm1151 = vcmp.ge.f32.partialorder %v1150, 0.0
            %v1152 = vmul.f32 %v1150, %v1150
            %v1153 = vadd.f32 1.0, %v1152
            %v1154 = vrsqrt.pop %v1153
            %v1155 = vmul.f32 %v1153, %v1154
            %vm1156 = vcmp.eq.f32.partialorder %v1153, inf
            %v1157 = vsel %vm1156, %v1153, %v1155
            %vm1158 = vcmp.eq.f32.partialorder %v1153, 0.0
            %v1159 = vand.u32 %v1153, 2147483648
            %v1160 = vsel %vm1158, %v1159, %v1157
            %v1161 = vxor.u32 %v1160, 2147483648
            %v1162 = vsel %vm1151, %v1160, %v1161
            %v1163 = vadd.f32 %v1150, %v1162
            %v1164 = vrcp.pop %v1163
            %v1165 = vand.u32 2147483647, %v1142
            %v1166 = vand.u32 2147483647, %v1144
            %v1167 = vand.u32 2147483647, %v1146
            %v1168 = vmin.f32 %v1165, %v1167
            %v1169 = vmul.f32 1.1920929e-08, %v1168
            %vm1170 = vcmp.le.f32.partialorder %v1166, %v1169
            %v1171 = vsel %vm1170, 0.0, %v1164
            %v1172 = vmul.f32 %v1171, %v1171
            %v1173 = vadd.f32 1.0, %v1172
            %v1174 = vrsqrt.pop %v1173
            %v1175 = vmul.f32 %v1171, %v1174
            %v1176 = vmul.f32 %v1171, %v1144
            %v1177 = vsub.f32 %v1142, %v1176
            %v1178 = vmul.f32 %v1171, %v1144
            %v1179 = vadd.f32 %v1146, %v1178
            %s1180 = smov [#allocation22]
            %1181 = vst [vmem:[%s1180] sm:$0xff] %v1177
            %s1182 = smov [#allocation23]
            %1183 = vst [vmem:[%s1182] sm:$0xff] %v1179
            %s1184 = smov %s1139
            %1185 = vst [vmem:[%s1184] sm:$0xff] %v1174
            %s1186 = smov %s1140
            %1187 = vst [vmem:[%s1186] sm:$0xff] %v1175
            %s1188 = smov [#allocation24]
            %v1189 = vld [vmem:[%s1188] ss:$0 sm:$0xff]
            %v1190 = vlaneseq
            %v1191 = vand.u32 %v1190, 127
            %v1192 = vmov %v1191
            %v1193 = vlaneseq
            %v1194 = vshrl.u32 %v1193, 7
            %v1195 = vmov %v1194
            %vm1197 = vcmp.eq.s32.totalorder %v1195, %v1192
            %v1198 = vsel %vm1197, %v1189, 0.0
            %1199 = vadd.xlane.f32.xlu0 %v1198
            %v1200 = vpop.xlane.xlu0 %1199
            %s1201 = smov [#allocation26]
            %1202 = vst [vmem:[%s1201] sm:$0xff] %v1200
            %s1203 = smov [#allocation24]
            %v1204 = vld [vmem:[%s1203] ss:$0 sm:$0xff]
            %v1205 = vlaneseq
            %v1206 = vand.u32 %v1205, 127
            %v1207 = vmov %v1206
            %v1208 = vlaneseq
            %v1209 = vshrl.u32 %v1208, 7
            %v1210 = vmov %v1209
            %v1211 = vadd.s32 %v1210, 8
            %vm1212 = vcmp.eq.s32.totalorder %v1211, %v1207
            %v1213 = vsel %vm1212, %v1204, 0.0
            %1214 = vadd.xlane.f32.xlu0 %v1213
            %v1215 = vpop.xlane.xlu0 %1214
            %s1216 = smov [#allocation26]
            %s1217 = scalar_lea.vmem %s1216, 8
            %1218 = vst [vmem:[%s1217] sm:$0xff] %v1215
            %s1219 = smov [#allocation24]
            %v1220 = vld [vmem:[%s1219] ss:$0 sm:$0xff]
            %v1221 = vlaneseq
            %v1222 = vand.u32 %v1221, 127
            %v1223 = vmov %v1222
            %v1224 = vlaneseq
            %v1225 = vshrl.u32 %v1224, 7
            %v1226 = vmov %v1225
            %v1227 = vadd.s32 %v1226, 16
            %vm1228 = vcmp.eq.s32.totalorder %v1227, %v1223
            %v1229 = vsel %vm1228, %v1220, 0.0
            %1230 = vadd.xlane.f32.xlu0 %v1229
            %v1231 = vpop.xlane.xlu0 %1230
            %s1232 = smov [#allocation26]
            %s1233 = scalar_lea.vmem %s1232, 16
            %1234 = vst [vmem:[%s1233] sm:$0xff] %v1231
            %s1235 = smov [#allocation24]
            %v1236 = vld [vmem:[%s1235] ss:$0 sm:$0xff]
            %v1237 = vlaneseq
            %v1238 = vand.u32 %v1237, 127
            %v1239 = vmov %v1238
            %v1240 = vlaneseq
            %v1241 = vshrl.u32 %v1240, 7
            %v1242 = vmov %v1241
            %v1243 = vadd.s32 %v1242, 24
            %vm1244 = vcmp.eq.s32.totalorder %v1243, %v1239
            %v1245 = vsel %vm1244, %v1236, 0.0
            %1246 = vadd.xlane.f32.xlu0 %v1245
            %v1247 = vpop.xlane.xlu0 %1246
            %s1248 = smov [#allocation26]
            %s1249 = scalar_lea.vmem %s1248, 24
            %1250 = vst [vmem:[%s1249] sm:$0xff] %v1247
            %s1251 = smov [#allocation24]
            %v1252 = vld [vmem:[%s1251] ss:$0 sm:$0xff]
            %v1253 = vlaneseq
            %v1254 = vand.u32 %v1253, 127
            %v1255 = vmov %v1254
            %v1256 = vlaneseq
            %v1257 = vshrl.u32 %v1256, 7
            %v1258 = vmov %v1257
            %v1259 = vadd.s32 %v1258, 32
            %vm1260 = vcmp.eq.s32.totalorder %v1259, %v1255
            %v1261 = vsel %vm1260, %v1252, 0.0
            %1262 = vadd.xlane.f32.xlu0 %v1261
            %v1263 = vpop.xlane.xlu0 %1262
            %s1264 = smov [#allocation26]
            %s1265 = scalar_lea.vmem %s1264, 32
            %1266 = vst [vmem:[%s1265] sm:$0xff] %v1263
            %s1267 = smov [#allocation24]
            %v1268 = vld [vmem:[%s1267] ss:$0 sm:$0xff]
            %v1269 = vlaneseq
            %v1270 = vand.u32 %v1269, 127
            %v1271 = vmov %v1270
            %v1272 = vlaneseq
            %v1273 = vshrl.u32 %v1272, 7
            %v1274 = vmov %v1273
            %v1275 = vadd.s32 %v1274, 40
            %vm1276 = vcmp.eq.s32.totalorder %v1275, %v1271
            %v1277 = vsel %vm1276, %v1268, 0.0
            %1278 = vadd.xlane.f32.xlu0 %v1277
            %v1279 = vpop.xlane.xlu0 %1278
            %s1280 = smov [#allocation26]
            %s1281 = scalar_lea.vmem %s1280, 40
            %1282 = vst [vmem:[%s1281] sm:$0xff] %v1279
            %s1283 = smov [#allocation24]
            %v1284 = vld [vmem:[%s1283] ss:$0 sm:$0xff]
            %v1285 = vlaneseq
            %v1286 = vand.u32 %v1285, 127
            %v1287 = vmov %v1286
            %v1288 = vlaneseq
            %v1289 = vshrl.u32 %v1288, 7
            %v1290 = vmov %v1289
            %v1291 = vadd.s32 %v1290, 48
            %vm1292 = vcmp.eq.s32.totalorder %v1291, %v1287
            %v1293 = vsel %vm1292, %v1284, 0.0
            %1294 = vadd.xlane.f32.xlu0 %v1293
            %v1295 = vpop.xlane.xlu0 %1294
            %s1296 = smov [#allocation26]
            %s1297 = scalar_lea.vmem %s1296, 48
            %1298 = vst [vmem:[%s1297] sm:$0xff] %v1295
            %s1299 = smov [#allocation24]
            %v1300 = vld [vmem:[%s1299] ss:$0 sm:$0xff]
            %v1301 = vlaneseq
            %v1302 = vand.u32 %v1301, 127
            %v1303 = vmov %v1302
            %v1304 = vlaneseq
            %v1305 = vshrl.u32 %v1304, 7
            %v1306 = vmov %v1305
            %v1307 = vadd.s32 %v1306, 56
            %vm1308 = vcmp.eq.s32.totalorder %v1307, %v1303
            %v1309 = vsel %vm1308, %v1300, 0.0
            %1310 = vadd.xlane.f32.xlu0 %v1309
            %v1311 = vpop.xlane.xlu0 %1310
            %s1312 = smov [#allocation26]
            %s1313 = scalar_lea.vmem %s1312, 56
            %1314 = vst [vmem:[%s1313] sm:$0xff] %v1311
            %s1315 = smov [#allocation25]
            %v1316 = vld [vmem:[%s1315] ss:$0 sm:$0xff]
            %v1317 = vlaneseq
            %v1318 = vand.u32 %v1317, 127
            %v1319 = vmov %v1318
            %v1320 = vlaneseq
            %v1321 = vshrl.u32 %v1320, 7
            %v1322 = vmov %v1321
            %vm1324 = vcmp.eq.s32.totalorder %v1322, %v1319
            %v1325 = vsel %vm1324, %v1316, 0.0
            %1326 = vadd.xlane.f32.xlu0 %v1325
            %v1327 = vpop.xlane.xlu0 %1326
            %s1328 = smov [#allocation27]
            %1329 = vst [vmem:[%s1328] sm:$0xff] %v1327
            %s1330 = smov [#allocation25]
            %v1331 = vld [vmem:[%s1330] ss:$0 sm:$0xff]
            %v1332 = vlaneseq
            %v1333 = vand.u32 %v1332, 127
            %v1334 = vmov %v1333
            %v1335 = vlaneseq
            %v1336 = vshrl.u32 %v1335, 7
            %v1337 = vmov %v1336
            %v1338 = vadd.s32 %v1337, 8
            %vm1339 = vcmp.eq.s32.totalorder %v1338, %v1334
            %v1340 = vsel %vm1339, %v1331, 0.0
            %1341 = vadd.xlane.f32.xlu0 %v1340
            %v1342 = vpop.xlane.xlu0 %1341
            %s1343 = smov [#allocation27]
            %s1344 = scalar_lea.vmem %s1343, 8
            %1345 = vst [vmem:[%s1344] sm:$0xff] %v1342
            %s1346 = smov [#allocation25]
            %v1347 = vld [vmem:[%s1346] ss:$0 sm:$0xff]
            %v1348 = vlaneseq
            %v1349 = vand.u32 %v1348, 127
            %v1350 = vmov %v1349
            %v1351 = vlaneseq
            %v1352 = vshrl.u32 %v1351, 7
            %v1353 = vmov %v1352
            %v1354 = vadd.s32 %v1353, 16
            %vm1355 = vcmp.eq.s32.totalorder %v1354, %v1350
            %v1356 = vsel %vm1355, %v1347, 0.0
            %1357 = vadd.xlane.f32.xlu0 %v1356
            %v1358 = vpop.xlane.xlu0 %1357
            %s1359 = smov [#allocation27]
            %s1360 = scalar_lea.vmem %s1359, 16
            %1361 = vst [vmem:[%s1360] sm:$0xff] %v1358
            %s1362 = smov [#allocation25]
            %v1363 = vld [vmem:[%s1362] ss:$0 sm:$0xff]
            %v1364 = vlaneseq
            %v1365 = vand.u32 %v1364, 127
            %v1366 = vmov %v1365
            %v1367 = vlaneseq
            %v1368 = vshrl.u32 %v1367, 7
            %v1369 = vmov %v1368
            %v1370 = vadd.s32 %v1369, 24
            %vm1371 = vcmp.eq.s32.totalorder %v1370, %v1366
            %v1372 = vsel %vm1371, %v1363, 0.0
            %1373 = vadd.xlane.f32.xlu0 %v1372
            %v1374 = vpop.xlane.xlu0 %1373
            %s1375 = smov [#allocation27]
            %s1376 = scalar_lea.vmem %s1375, 24
            %1377 = vst [vmem:[%s1376] sm:$0xff] %v1374
            %s1378 = smov [#allocation25]
            %v1379 = vld [vmem:[%s1378] ss:$0 sm:$0xff]
            %v1380 = vlaneseq
            %v1381 = vand.u32 %v1380, 127
            %v1382 = vmov %v1381
            %v1383 = vlaneseq
            %v1384 = vshrl.u32 %v1383, 7
            %v1385 = vmov %v1384
            %v1386 = vadd.s32 %v1385, 32
            %vm1387 = vcmp.eq.s32.totalorder %v1386, %v1382
            %v1388 = vsel %vm1387, %v1379, 0.0
            %1389 = vadd.xlane.f32.xlu0 %v1388
            %v1390 = vpop.xlane.xlu0 %1389
            %s1391 = smov [#allocation27]
            %s1392 = scalar_lea.vmem %s1391, 32
            %1393 = vst [vmem:[%s1392] sm:$0xff] %v1390
            %s1394 = smov [#allocation25]
            %v1395 = vld [vmem:[%s1394] ss:$0 sm:$0xff]
            %v1396 = vlaneseq
            %v1397 = vand.u32 %v1396, 127
            %v1398 = vmov %v1397
            %v1399 = vlaneseq
            %v1400 = vshrl.u32 %v1399, 7
            %v1401 = vmov %v1400
            %v1402 = vadd.s32 %v1401, 40
            %vm1403 = vcmp.eq.s32.totalorder %v1402, %v1398
            %v1404 = vsel %vm1403, %v1395, 0.0
            %1405 = vadd.xlane.f32.xlu0 %v1404
            %v1406 = vpop.xlane.xlu0 %1405
            %s1407 = smov [#allocation27]
            %s1408 = scalar_lea.vmem %s1407, 40
            %1409 = vst [vmem:[%s1408] sm:$0xff] %v1406
            %s1410 = smov [#allocation25]
            %v1411 = vld [vmem:[%s1410] ss:$0 sm:$0xff]
            %v1412 = vlaneseq
            %v1413 = vand.u32 %v1412, 127
            %v1414 = vmov %v1413
            %v1415 = vlaneseq
            %v1416 = vshrl.u32 %v1415, 7
            %v1417 = vmov %v1416
            %v1418 = vadd.s32 %v1417, 48
            %vm1419 = vcmp.eq.s32.totalorder %v1418, %v1414
            %v1420 = vsel %vm1419, %v1411, 0.0
            %1421 = vadd.xlane.f32.xlu0 %v1420
            %v1422 = vpop.xlane.xlu0 %1421
            %s1423 = smov [#allocation27]
            %s1424 = scalar_lea.vmem %s1423, 48
            %1425 = vst [vmem:[%s1424] sm:$0xff] %v1422
            %s1426 = smov [#allocation25]
            %v1427 = vld [vmem:[%s1426] ss:$0 sm:$0xff]
            %v1428 = vlaneseq
            %v1429 = vand.u32 %v1428, 127
            %v1430 = vmov %v1429
            %v1431 = vlaneseq
            %v1432 = vshrl.u32 %v1431, 7
            %v1433 = vmov %v1432
            %v1434 = vadd.s32 %v1433, 56
            %vm1435 = vcmp.eq.s32.totalorder %v1434, %v1430
            %v1436 = vsel %vm1435, %v1427, 0.0
            %1437 = vadd.xlane.f32.xlu0 %v1436
            %v1438 = vpop.xlane.xlu0 %1437
            %s1439 = smov [#allocation27]
            %s1440 = scalar_lea.vmem %s1439, 56
            %1441 = vst [vmem:[%s1440] sm:$0xff] %v1438
            %s1442 = smov [#allocation26]
            %v1443 = vld [vmem:[%s1442] sm:$0xff]
            %s1444 = smov [#allocation27]
            %v1445 = vld [vmem:[%s1444] sm:$0xff]
            %s1446 = smov [#allocation15]
            %s1447 = smov [#allocation16]
            %s1448 = smov [#allocation17]
            %s1449 = smov [#allocation18]
            %v1450 = vld [vmem:[%s1446] sm:$0xff]
            %v1451 = vld [vmem:[%s1447] sm:$0xff]
            %v1452 = vld [vmem:[%s1448] sm:$0xff]
            %v1453 = vld [vmem:[%s1449] sm:$0xff]
            %v1454 = vmul.f32 %v1443, %v1450
            %v1455 = vmul.f32 %v1445, %v1452
            %v1456 = vsub.f32 %v1454, %v1455
            %v1457 = vmul.f32 %v1443, %v1451
            %v1458 = vmul.f32 %v1445, %v1453
            %v1459 = vsub.f32 %v1457, %v1458
            %v1460 = vmul.f32 %v1445, %v1450
            %v1461 = vmul.f32 %v1443, %v1452
            %v1462 = vadd.f32 %v1460, %v1461
            %v1463 = vmul.f32 %v1445, %v1451
            %v1464 = vmul.f32 %v1443, %v1453
            %v1465 = vadd.f32 %v1463, %v1464
            %1466 = vst [vmem:[%s1446] sm:$0xff] %v1456
            %1467 = vst [vmem:[%s1447] sm:$0xff] %v1459
            %1468 = vst [vmem:[%s1448] sm:$0xff] %v1462
            %1469 = vst [vmem:[%s1449] sm:$0xff] %v1465
            %s1470 = smov [#allocation26]
            %s1471 = scalar_lea.vmem %s1470, 8
            %v1472 = vld [vmem:[%s1471] sm:$0xff]
            %s1473 = smov [#allocation27]
            %s1474 = scalar_lea.vmem %s1473, 8
            %v1475 = vld [vmem:[%s1474] sm:$0xff]
            %s1476 = smov [#allocation15]
            %s1477 = scalar_lea.vmem %s1476, 8
            %s1478 = smov [#allocation16]
            %s1479 = scalar_lea.vmem %s1478, 8
            %s1480 = smov [#allocation17]
            %s1481 = scalar_lea.vmem %s1480, 8
            %s1482 = smov [#allocation18]
            %s1483 = scalar_lea.vmem %s1482, 8
            %v1484 = vld [vmem:[%s1477] sm:$0xff]
            %v1485 = vld [vmem:[%s1479] sm:$0xff]
            %v1486 = vld [vmem:[%s1481] sm:$0xff]
            %v1487 = vld [vmem:[%s1483] sm:$0xff]
            %v1488 = vmul.f32 %v1472, %v1484
            %v1489 = vmul.f32 %v1475, %v1486
            %v1490 = vsub.f32 %v1488, %v1489
            %v1491 = vmul.f32 %v1472, %v1485
            %v1492 = vmul.f32 %v1475, %v1487
            %v1493 = vsub.f32 %v1491, %v1492
            %v1494 = vmul.f32 %v1475, %v1484
            %v1495 = vmul.f32 %v1472, %v1486
            %v1496 = vadd.f32 %v1494, %v1495
            %v1497 = vmul.f32 %v1475, %v1485
            %v1498 = vmul.f32 %v1472, %v1487
            %v1499 = vadd.f32 %v1497, %v1498
            %1500 = vst [vmem:[%s1477] sm:$0xff] %v1490
            %1501 = vst [vmem:[%s1479] sm:$0xff] %v1493
            %1502 = vst [vmem:[%s1481] sm:$0xff] %v1496
            %1503 = vst [vmem:[%s1483] sm:$0xff] %v1499
            %s1504 = smov [#allocation26]
            %s1505 = scalar_lea.vmem %s1504, 16
            %v1506 = vld [vmem:[%s1505] sm:$0xff]
            %s1507 = smov [#allocation27]
            %s1508 = scalar_lea.vmem %s1507, 16
            %v1509 = vld [vmem:[%s1508] sm:$0xff]
            %s1510 = smov [#allocation15]
            %s1511 = scalar_lea.vmem %s1510, 16
            %s1512 = smov [#allocation16]
            %s1513 = scalar_lea.vmem %s1512, 16
            %s1514 = smov [#allocation17]
            %s1515 = scalar_lea.vmem %s1514, 16
            %s1516 = smov [#allocation18]
            %s1517 = scalar_lea.vmem %s1516, 16
            %v1518 = vld [vmem:[%s1511] sm:$0xff]
            %v1519 = vld [vmem:[%s1513] sm:$0xff]
            %v1520 = vld [vmem:[%s1515] sm:$0xff]
            %v1521 = vld [vmem:[%s1517] sm:$0xff]
            %v1522 = vmul.f32 %v1506, %v1518
            %v1523 = vmul.f32 %v1509, %v1520
            %v1524 = vsub.f32 %v1522, %v1523
            %v1525 = vmul.f32 %v1506, %v1519
            %v1526 = vmul.f32 %v1509, %v1521
            %v1527 = vsub.f32 %v1525, %v1526
            %v1528 = vmul.f32 %v1509, %v1518
            %v1529 = vmul.f32 %v1506, %v1520
            %v1530 = vadd.f32 %v1528, %v1529
            %v1531 = vmul.f32 %v1509, %v1519
            %v1532 = vmul.f32 %v1506, %v1521
            %v1533 = vadd.f32 %v1531, %v1532
            %1534 = vst [vmem:[%s1511] sm:$0xff] %v1524
            %1535 = vst [vmem:[%s1513] sm:$0xff] %v1527
            %1536 = vst [vmem:[%s1515] sm:$0xff] %v1530
            %1537 = vst [vmem:[%s1517] sm:$0xff] %v1533
            %s1538 = smov [#allocation26]
            %s1539 = scalar_lea.vmem %s1538, 24
            %v1540 = vld [vmem:[%s1539] sm:$0xff]
            %s1541 = smov [#allocation27]
            %s1542 = scalar_lea.vmem %s1541, 24
            %v1543 = vld [vmem:[%s1542] sm:$0xff]
            %s1544 = smov [#allocation15]
            %s1545 = scalar_lea.vmem %s1544, 24
            %s1546 = smov [#allocation16]
            %s1547 = scalar_lea.vmem %s1546, 24
            %s1548 = smov [#allocation17]
            %s1549 = scalar_lea.vmem %s1548, 24
            %s1550 = smov [#allocation18]
            %s1551 = scalar_lea.vmem %s1550, 24
            %v1552 = vld [vmem:[%s1545] sm:$0xff]
            %v1553 = vld [vmem:[%s1547] sm:$0xff]
            %v1554 = vld [vmem:[%s1549] sm:$0xff]
            %v1555 = vld [vmem:[%s1551] sm:$0xff]
            %v1556 = vmul.f32 %v1540, %v1552
            %v1557 = vmul.f32 %v1543, %v1554
            %v1558 = vsub.f32 %v1556, %v1557
            %v1559 = vmul.f32 %v1540, %v1553
            %v1560 = vmul.f32 %v1543, %v1555
            %v1561 = vsub.f32 %v1559, %v1560
            %v1562 = vmul.f32 %v1543, %v1552
            %v1563 = vmul.f32 %v1540, %v1554
            %v1564 = vadd.f32 %v1562, %v1563
            %v1565 = vmul.f32 %v1543, %v1553
            %v1566 = vmul.f32 %v1540, %v1555
            %v1567 = vadd.f32 %v1565, %v1566
            %1568 = vst [vmem:[%s1545] sm:$0xff] %v1558
            %1569 = vst [vmem:[%s1547] sm:$0xff] %v1561
            %1570 = vst [vmem:[%s1549] sm:$0xff] %v1564
            %1571 = vst [vmem:[%s1551] sm:$0xff] %v1567
            %s1572 = smov [#allocation26]
            %s1573 = scalar_lea.vmem %s1572, 32
            %v1574 = vld [vmem:[%s1573] sm:$0xff]
            %s1575 = smov [#allocation27]
            %s1576 = scalar_lea.vmem %s1575, 32
            %v1577 = vld [vmem:[%s1576] sm:$0xff]
            %s1578 = smov [#allocation15]
            %s1579 = scalar_lea.vmem %s1578, 32
            %s1580 = smov [#allocation16]
            %s1581 = scalar_lea.vmem %s1580, 32
            %s1582 = smov [#allocation17]
            %s1583 = scalar_lea.vmem %s1582, 32
            %s1584 = smov [#allocation18]
            %s1585 = scalar_lea.vmem %s1584, 32
            %v1586 = vld [vmem:[%s1579] sm:$0xff]
            %v1587 = vld [vmem:[%s1581] sm:$0xff]
            %v1588 = vld [vmem:[%s1583] sm:$0xff]
            %v1589 = vld [vmem:[%s1585] sm:$0xff]
            %v1590 = vmul.f32 %v1574, %v1586
            %v1591 = vmul.f32 %v1577, %v1588
            %v1592 = vsub.f32 %v1590, %v1591
            %v1593 = vmul.f32 %v1574, %v1587
            %v1594 = vmul.f32 %v1577, %v1589
            %v1595 = vsub.f32 %v1593, %v1594
            %v1596 = vmul.f32 %v1577, %v1586
            %v1597 = vmul.f32 %v1574, %v1588
            %v1598 = vadd.f32 %v1596, %v1597
            %v1599 = vmul.f32 %v1577, %v1587
            %v1600 = vmul.f32 %v1574, %v1589
            %v1601 = vadd.f32 %v1599, %v1600
            %1602 = vst [vmem:[%s1579] sm:$0xff] %v1592
            %1603 = vst [vmem:[%s1581] sm:$0xff] %v1595
            %1604 = vst [vmem:[%s1583] sm:$0xff] %v1598
            %1605 = vst [vmem:[%s1585] sm:$0xff] %v1601
            %s1606 = smov [#allocation26]
            %s1607 = scalar_lea.vmem %s1606, 40
            %v1608 = vld [vmem:[%s1607] sm:$0xff]
            %s1609 = smov [#allocation27]
            %s1610 = scalar_lea.vmem %s1609, 40
            %v1611 = vld [vmem:[%s1610] sm:$0xff]
            %s1612 = smov [#allocation15]
            %s1613 = scalar_lea.vmem %s1612, 40
            %s1614 = smov [#allocation16]
            %s1615 = scalar_lea.vmem %s1614, 40
            %s1616 = smov [#allocation17]
            %s1617 = scalar_lea.vmem %s1616, 40
            %s1618 = smov [#allocation18]
            %s1619 = scalar_lea.vmem %s1618, 40
            %v1620 = vld [vmem:[%s1613] sm:$0xff]
            %v1621 = vld [vmem:[%s1615] sm:$0xff]
            %v1622 = vld [vmem:[%s1617] sm:$0xff]
            %v1623 = vld [vmem:[%s1619] sm:$0xff]
            %v1624 = vmul.f32 %v1608, %v1620
            %v1625 = vmul.f32 %v1611, %v1622
            %v1626 = vsub.f32 %v1624, %v1625
            %v1627 = vmul.f32 %v1608, %v1621
            %v1628 = vmul.f32 %v1611, %v1623
            %v1629 = vsub.f32 %v1627, %v1628
            %v1630 = vmul.f32 %v1611, %v1620
            %v1631 = vmul.f32 %v1608, %v1622
            %v1632 = vadd.f32 %v1630, %v1631
            %v1633 = vmul.f32 %v1611, %v1621
            %v1634 = vmul.f32 %v1608, %v1623
            %v1635 = vadd.f32 %v1633, %v1634
            %1636 = vst [vmem:[%s1613] sm:$0xff] %v1626
            %1637 = vst [vmem:[%s1615] sm:$0xff] %v1629
            %1638 = vst [vmem:[%s1617] sm:$0xff] %v1632
            %1639 = vst [vmem:[%s1619] sm:$0xff] %v1635
            %s1640 = smov [#allocation26]
            %s1641 = scalar_lea.vmem %s1640, 48
            %v1642 = vld [vmem:[%s1641] sm:$0xff]
            %s1643 = smov [#allocation27]
            %s1644 = scalar_lea.vmem %s1643, 48
            %v1645 = vld [vmem:[%s1644] sm:$0xff]
            %s1646 = smov [#allocation15]
            %s1647 = scalar_lea.vmem %s1646, 48
            %s1648 = smov [#allocation16]
            %s1649 = scalar_lea.vmem %s1648, 48
            %s1650 = smov [#allocation17]
            %s1651 = scalar_lea.vmem %s1650, 48
            %s1652 = smov [#allocation18]
            %s1653 = scalar_lea.vmem %s1652, 48
            %v1654 = vld [vmem:[%s1647] sm:$0xff]
            %v1655 = vld [vmem:[%s1649] sm:$0xff]
            %v1656 = vld [vmem:[%s1651] sm:$0xff]
            %v1657 = vld [vmem:[%s1653] sm:$0xff]
            %v1658 = vmul.f32 %v1642, %v1654
            %v1659 = vmul.f32 %v1645, %v1656
            %v1660 = vsub.f32 %v1658, %v1659
            %v1661 = vmul.f32 %v1642, %v1655
            %v1662 = vmul.f32 %v1645, %v1657
            %v1663 = vsub.f32 %v1661, %v1662
            %v1664 = vmul.f32 %v1645, %v1654
            %v1665 = vmul.f32 %v1642, %v1656
            %v1666 = vadd.f32 %v1664, %v1665
            %v1667 = vmul.f32 %v1645, %v1655
            %v1668 = vmul.f32 %v1642, %v1657
            %v1669 = vadd.f32 %v1667, %v1668
            %1670 = vst [vmem:[%s1647] sm:$0xff] %v1660
            %1671 = vst [vmem:[%s1649] sm:$0xff] %v1663
            %1672 = vst [vmem:[%s1651] sm:$0xff] %v1666
            %1673 = vst [vmem:[%s1653] sm:$0xff] %v1669
            %s1674 = smov [#allocation26]
            %s1675 = scalar_lea.vmem %s1674, 56
            %v1676 = vld [vmem:[%s1675] sm:$0xff]
            %s1677 = smov [#allocation27]
            %s1678 = scalar_lea.vmem %s1677, 56
            %v1679 = vld [vmem:[%s1678] sm:$0xff]
            %s1680 = smov [#allocation15]
            %s1681 = scalar_lea.vmem %s1680, 56
            %s1682 = smov [#allocation16]
            %s1683 = scalar_lea.vmem %s1682, 56
            %s1684 = smov [#allocation17]
            %s1685 = scalar_lea.vmem %s1684, 56
            %s1686 = smov [#allocation18]
            %s1687 = scalar_lea.vmem %s1686, 56
            %v1688 = vld [vmem:[%s1681] sm:$0xff]
            %v1689 = vld [vmem:[%s1683] sm:$0xff]
            %v1690 = vld [vmem:[%s1685] sm:$0xff]
            %v1691 = vld [vmem:[%s1687] sm:$0xff]
            %v1692 = vmul.f32 %v1676, %v1688
            %v1693 = vmul.f32 %v1679, %v1690
            %v1694 = vsub.f32 %v1692, %v1693
            %v1695 = vmul.f32 %v1676, %v1689
            %v1696 = vmul.f32 %v1679, %v1691
            %v1697 = vsub.f32 %v1695, %v1696
            %v1698 = vmul.f32 %v1679, %v1688
            %v1699 = vmul.f32 %v1676, %v1690
            %v1700 = vadd.f32 %v1698, %v1699
            %v1701 = vmul.f32 %v1679, %v1689
            %v1702 = vmul.f32 %v1676, %v1691
            %v1703 = vadd.f32 %v1701, %v1702
            %1704 = vst [vmem:[%s1681] sm:$0xff] %v1694
            %1705 = vst [vmem:[%s1683] sm:$0xff] %v1697
            %1706 = vst [vmem:[%s1685] sm:$0xff] %v1700
            %1707 = vst [vmem:[%s1687] sm:$0xff] %v1703
            %s1708 = smov [#allocation24]
            %v1709 = vld [vmem:[%s1708] ss:$0 sm:$0xff]
            %s1710 = smov [#allocation25]
            %v1711 = vld [vmem:[%s1710] ss:$0 sm:$0xff]
            %s1712 = smov [#allocation15]
            %s1713 = smov [#allocation16]
            %s1714 = smov [#allocation17]
            %s1715 = smov [#allocation18]
            %v1716 = vld [vmem:[%s1712] sm:$0xff]
            %v1717 = vld [vmem:[%s1713] sm:$0xff]
            %v1718 = vld [vmem:[%s1714] sm:$0xff]
            %v1719 = vld [vmem:[%s1715] sm:$0xff]
            %v1720 = vmul.f32 %v1709, %v1716
            %v1721 = vmul.f32 %v1711, %v1717
            %v1722 = vsub.f32 %v1720, %v1721
            %v1723 = vmul.f32 %v1711, %v1716
            %v1724 = vmul.f32 %v1709, %v1717
            %v1725 = vadd.f32 %v1723, %v1724
            %v1726 = vmul.f32 %v1709, %v1718
            %v1727 = vmul.f32 %v1711, %v1719
            %v1728 = vsub.f32 %v1726, %v1727
            %v1729 = vmul.f32 %v1711, %v1718
            %v1730 = vmul.f32 %v1709, %v1719
            %v1731 = vadd.f32 %v1729, %v1730
            %1732 = vst [vmem:[%s1712] sm:$0xff] %v1722
            %1733 = vst [vmem:[%s1713] sm:$0xff] %v1725
            %1734 = vst [vmem:[%s1714] sm:$0xff] %v1728
            %1735 = vst [vmem:[%s1715] sm:$0xff] %v1731
            %s1736 = smov [#allocation15]
            %s1737 = scalar_lea.vmem %s1736, 8
            %s1738 = smov [#allocation16]
            %s1739 = scalar_lea.vmem %s1738, 8
            %s1740 = smov [#allocation17]
            %s1741 = scalar_lea.vmem %s1740, 8
            %s1742 = smov [#allocation18]
            %s1743 = scalar_lea.vmem %s1742, 8
            %v1744 = vld [vmem:[%s1737] sm:$0xff]
            %v1745 = vld [vmem:[%s1739] sm:$0xff]
            %v1746 = vld [vmem:[%s1741] sm:$0xff]
            %v1747 = vld [vmem:[%s1743] sm:$0xff]
            %v1748 = vmul.f32 %v1709, %v1744
            %v1749 = vmul.f32 %v1711, %v1745
            %v1750 = vsub.f32 %v1748, %v1749
            %v1751 = vmul.f32 %v1711, %v1744
            %v1752 = vmul.f32 %v1709, %v1745
            %v1753 = vadd.f32 %v1751, %v1752
            %v1754 = vmul.f32 %v1709, %v1746
            %v1755 = vmul.f32 %v1711, %v1747
            %v1756 = vsub.f32 %v1754, %v1755
            %v1757 = vmul.f32 %v1711, %v1746
            %v1758 = vmul.f32 %v1709, %v1747
            %v1759 = vadd.f32 %v1757, %v1758
            %1760 = vst [vmem:[%s1737] sm:$0xff] %v1750
            %1761 = vst [vmem:[%s1739] sm:$0xff] %v1753
            %1762 = vst [vmem:[%s1741] sm:$0xff] %v1756
            %1763 = vst [vmem:[%s1743] sm:$0xff] %v1759
            %s1764 = smov [#allocation15]
            %s1765 = scalar_lea.vmem %s1764, 16
            %s1766 = smov [#allocation16]
            %s1767 = scalar_lea.vmem %s1766, 16
            %s1768 = smov [#allocation17]
            %s1769 = scalar_lea.vmem %s1768, 16
            %s1770 = smov [#allocation18]
            %s1771 = scalar_lea.vmem %s1770, 16
            %v1772 = vld [vmem:[%s1765] sm:$0xff]
            %v1773 = vld [vmem:[%s1767] sm:$0xff]
            %v1774 = vld [vmem:[%s1769] sm:$0xff]
            %v1775 = vld [vmem:[%s1771] sm:$0xff]
            %v1776 = vmul.f32 %v1709, %v1772
            %v1777 = vmul.f32 %v1711, %v1773
            %v1778 = vsub.f32 %v1776, %v1777
            %v1779 = vmul.f32 %v1711, %v1772
            %v1780 = vmul.f32 %v1709, %v1773
            %v1781 = vadd.f32 %v1779, %v1780
            %v1782 = vmul.f32 %v1709, %v1774
            %v1783 = vmul.f32 %v1711, %v1775
            %v1784 = vsub.f32 %v1782, %v1783
            %v1785 = vmul.f32 %v1711, %v1774
            %v1786 = vmul.f32 %v1709, %v1775
            %v1787 = vadd.f32 %v1785, %v1786
            %1788 = vst [vmem:[%s1765] sm:$0xff] %v1778
            %1789 = vst [vmem:[%s1767] sm:$0xff] %v1781
            %1790 = vst [vmem:[%s1769] sm:$0xff] %v1784
            %1791 = vst [vmem:[%s1771] sm:$0xff] %v1787
            %s1792 = smov [#allocation15]
            %s1793 = scalar_lea.vmem %s1792, 24
            %s1794 = smov [#allocation16]
            %s1795 = scalar_lea.vmem %s1794, 24
            %s1796 = smov [#allocation17]
            %s1797 = scalar_lea.vmem %s1796, 24
            %s1798 = smov [#allocation18]
            %s1799 = scalar_lea.vmem %s1798, 24
            %v1800 = vld [vmem:[%s1793] sm:$0xff]
            %v1801 = vld [vmem:[%s1795] sm:$0xff]
            %v1802 = vld [vmem:[%s1797] sm:$0xff]
            %v1803 = vld [vmem:[%s1799] sm:$0xff]
            %v1804 = vmul.f32 %v1709, %v1800
            %v1805 = vmul.f32 %v1711, %v1801
            %v1806 = vsub.f32 %v1804, %v1805
            %v1807 = vmul.f32 %v1711, %v1800
            %v1808 = vmul.f32 %v1709, %v1801
            %v1809 = vadd.f32 %v1807, %v1808
            %v1810 = vmul.f32 %v1709, %v1802
            %v1811 = vmul.f32 %v1711, %v1803
            %v1812 = vsub.f32 %v1810, %v1811
            %v1813 = vmul.f32 %v1711, %v1802
            %v1814 = vmul.f32 %v1709, %v1803
            %v1815 = vadd.f32 %v1813, %v1814
            %1816 = vst [vmem:[%s1793] sm:$0xff] %v1806
            %1817 = vst [vmem:[%s1795] sm:$0xff] %v1809
            %1818 = vst [vmem:[%s1797] sm:$0xff] %v1812
            %1819 = vst [vmem:[%s1799] sm:$0xff] %v1815
            %s1820 = smov [#allocation15]
            %s1821 = scalar_lea.vmem %s1820, 32
            %s1822 = smov [#allocation16]
            %s1823 = scalar_lea.vmem %s1822, 32
            %s1824 = smov [#allocation17]
            %s1825 = scalar_lea.vmem %s1824, 32
            %s1826 = smov [#allocation18]
            %s1827 = scalar_lea.vmem %s1826, 32
            %v1828 = vld [vmem:[%s1821] sm:$0xff]
            %v1829 = vld [vmem:[%s1823] sm:$0xff]
            %v1830 = vld [vmem:[%s1825] sm:$0xff]
            %v1831 = vld [vmem:[%s1827] sm:$0xff]
            %v1832 = vmul.f32 %v1709, %v1828
            %v1833 = vmul.f32 %v1711, %v1829
            %v1834 = vsub.f32 %v1832, %v1833
            %v1835 = vmul.f32 %v1711, %v1828
            %v1836 = vmul.f32 %v1709, %v1829
            %v1837 = vadd.f32 %v1835, %v1836
            %v1838 = vmul.f32 %v1709, %v1830
            %v1839 = vmul.f32 %v1711, %v1831
            %v1840 = vsub.f32 %v1838, %v1839
            %v1841 = vmul.f32 %v1711, %v1830
            %v1842 = vmul.f32 %v1709, %v1831
            %v1843 = vadd.f32 %v1841, %v1842
            %1844 = vst [vmem:[%s1821] sm:$0xff] %v1834
            %1845 = vst [vmem:[%s1823] sm:$0xff] %v1837
            %1846 = vst [vmem:[%s1825] sm:$0xff] %v1840
            %1847 = vst [vmem:[%s1827] sm:$0xff] %v1843
            %s1848 = smov [#allocation15]
            %s1849 = scalar_lea.vmem %s1848, 40
            %s1850 = smov [#allocation16]
            %s1851 = scalar_lea.vmem %s1850, 40
            %s1852 = smov [#allocation17]
            %s1853 = scalar_lea.vmem %s1852, 40
            %s1854 = smov [#allocation18]
            %s1855 = scalar_lea.vmem %s1854, 40
            %v1856 = vld [vmem:[%s1849] sm:$0xff]
            %v1857 = vld [vmem:[%s1851] sm:$0xff]
            %v1858 = vld [vmem:[%s1853] sm:$0xff]
            %v1859 = vld [vmem:[%s1855] sm:$0xff]
            %v1860 = vmul.f32 %v1709, %v1856
            %v1861 = vmul.f32 %v1711, %v1857
            %v1862 = vsub.f32 %v1860, %v1861
            %v1863 = vmul.f32 %v1711, %v1856
            %v1864 = vmul.f32 %v1709, %v1857
            %v1865 = vadd.f32 %v1863, %v1864
            %v1866 = vmul.f32 %v1709, %v1858
            %v1867 = vmul.f32 %v1711, %v1859
            %v1868 = vsub.f32 %v1866, %v1867
            %v1869 = vmul.f32 %v1711, %v1858
            %v1870 = vmul.f32 %v1709, %v1859
            %v1871 = vadd.f32 %v1869, %v1870
            %1872 = vst [vmem:[%s1849] sm:$0xff] %v1862
            %1873 = vst [vmem:[%s1851] sm:$0xff] %v1865
            %1874 = vst [vmem:[%s1853] sm:$0xff] %v1868
            %1875 = vst [vmem:[%s1855] sm:$0xff] %v1871
            %s1876 = smov [#allocation15]
            %s1877 = scalar_lea.vmem %s1876, 48
            %s1878 = smov [#allocation16]
            %s1879 = scalar_lea.vmem %s1878, 48
            %s1880 = smov [#allocation17]
            %s1881 = scalar_lea.vmem %s1880, 48
            %s1882 = smov [#allocation18]
            %s1883 = scalar_lea.vmem %s1882, 48
            %v1884 = vld [vmem:[%s1877] sm:$0xff]
            %v1885 = vld [vmem:[%s1879] sm:$0xff]
            %v1886 = vld [vmem:[%s1881] sm:$0xff]
            %v1887 = vld [vmem:[%s1883] sm:$0xff]
            %v1888 = vmul.f32 %v1709, %v1884
            %v1889 = vmul.f32 %v1711, %v1885
            %v1890 = vsub.f32 %v1888, %v1889
            %v1891 = vmul.f32 %v1711, %v1884
            %v1892 = vmul.f32 %v1709, %v1885
            %v1893 = vadd.f32 %v1891, %v1892
            %v1894 = vmul.f32 %v1709, %v1886
            %v1895 = vmul.f32 %v1711, %v1887
            %v1896 = vsub.f32 %v1894, %v1895
            %v1897 = vmul.f32 %v1711, %v1886
            %v1898 = vmul.f32 %v1709, %v1887
            %v1899 = vadd.f32 %v1897, %v1898
            %1900 = vst [vmem:[%s1877] sm:$0xff] %v1890
            %1901 = vst [vmem:[%s1879] sm:$0xff] %v1893
            %1902 = vst [vmem:[%s1881] sm:$0xff] %v1896
            %1903 = vst [vmem:[%s1883] sm:$0xff] %v1899
            %s1904 = smov [#allocation15]
            %s1905 = scalar_lea.vmem %s1904, 56
            %s1906 = smov [#allocation16]
            %s1907 = scalar_lea.vmem %s1906, 56
            %s1908 = smov [#allocation17]
            %s1909 = scalar_lea.vmem %s1908, 56
            %s1910 = smov [#allocation18]
            %s1911 = scalar_lea.vmem %s1910, 56
            %v1912 = vld [vmem:[%s1905] sm:$0xff]
            %v1913 = vld [vmem:[%s1907] sm:$0xff]
            %v1914 = vld [vmem:[%s1909] sm:$0xff]
            %v1915 = vld [vmem:[%s1911] sm:$0xff]
            %v1916 = vmul.f32 %v1709, %v1912
            %v1917 = vmul.f32 %v1711, %v1913
            %v1918 = vsub.f32 %v1916, %v1917
            %v1919 = vmul.f32 %v1711, %v1912
            %v1920 = vmul.f32 %v1709, %v1913
            %v1921 = vadd.f32 %v1919, %v1920
            %v1922 = vmul.f32 %v1709, %v1914
            %v1923 = vmul.f32 %v1711, %v1915
            %v1924 = vsub.f32 %v1922, %v1923
            %v1925 = vmul.f32 %v1711, %v1914
            %v1926 = vmul.f32 %v1709, %v1915
            %v1927 = vadd.f32 %v1925, %v1926
            %1928 = vst [vmem:[%s1905] sm:$0xff] %v1918
            %1929 = vst [vmem:[%s1907] sm:$0xff] %v1921
            %1930 = vst [vmem:[%s1909] sm:$0xff] %v1924
            %1931 = vst [vmem:[%s1911] sm:$0xff] %v1927
            %s1932 = smov [#allocation15]
            %s1933 = smov [#allocation22]
            %v1934 = vlaneseq
            %v1935 = vand.u32 %v1934, 127
            %v1936 = vmov %v1935
            %v1937 = vlaneseq
            %v1938 = vshrl.u32 %v1937, 7
            %v1939 = vmov %v1938
            %v1940 = vld [vmem:[%s1933] ss:$0 sm:$0xff]
            %v1941 = vld [vmem:[%s1932] sm:$0xff]
            %vm1944 = vcmp.eq.s32.totalorder %v1939, %v1936
            %v1945 = vsel %vm1944, %v1940, %v1941
            %1946 = vst [vmem:[%s1932] sm:$0xff] %v1945
            %v1947 = vld [vmem:[%s1933] ss:$0 sm:$0xff]
            %s1948 = scalar_lea.vmem %s1932, 8
            %v1949 = vld [vmem:[%s1948] sm:$0xff]
            %v1951 = vadd.s32 %v1939, 8
            %vm1952 = vcmp.eq.s32.totalorder %v1951, %v1936
            %v1953 = vsel %vm1952, %v1947, %v1949
            %1954 = vst [vmem:[%s1948] sm:$0xff] %v1953
            %v1955 = vld [vmem:[%s1933] ss:$0 sm:$0xff]
            %s1956 = scalar_lea.vmem %s1932, 16
            %v1957 = vld [vmem:[%s1956] sm:$0xff]
            %v1959 = vadd.s32 %v1939, 16
            %vm1960 = vcmp.eq.s32.totalorder %v1959, %v1936
            %v1961 = vsel %vm1960, %v1955, %v1957
            %1962 = vst [vmem:[%s1956] sm:$0xff] %v1961
            %v1963 = vld [vmem:[%s1933] ss:$0 sm:$0xff]
            %s1964 = scalar_lea.vmem %s1932, 24
            %v1965 = vld [vmem:[%s1964] sm:$0xff]
            %v1967 = vadd.s32 %v1939, 24
            %vm1968 = vcmp.eq.s32.totalorder %v1967, %v1936
            %v1969 = vsel %vm1968, %v1963, %v1965
            %1970 = vst [vmem:[%s1964] sm:$0xff] %v1969
            %v1971 = vld [vmem:[%s1933] ss:$0 sm:$0xff]
            %s1972 = scalar_lea.vmem %s1932, 32
            %v1973 = vld [vmem:[%s1972] sm:$0xff]
            %v1975 = vadd.s32 %v1939, 32
            %vm1976 = vcmp.eq.s32.totalorder %v1975, %v1936
            %v1977 = vsel %vm1976, %v1971, %v1973
            %1978 = vst [vmem:[%s1972] sm:$0xff] %v1977
            %v1979 = vld [vmem:[%s1933] ss:$0 sm:$0xff]
            %s1980 = scalar_lea.vmem %s1932, 40
            %v1981 = vld [vmem:[%s1980] sm:$0xff]
            %v1983 = vadd.s32 %v1939, 40
            %vm1984 = vcmp.eq.s32.totalorder %v1983, %v1936
            %v1985 = vsel %vm1984, %v1979, %v1981
            %1986 = vst [vmem:[%s1980] sm:$0xff] %v1985
            %v1987 = vld [vmem:[%s1933] ss:$0 sm:$0xff]
            %s1988 = scalar_lea.vmem %s1932, 48
            %v1989 = vld [vmem:[%s1988] sm:$0xff]
            %v1991 = vadd.s32 %v1939, 48
            %vm1992 = vcmp.eq.s32.totalorder %v1991, %v1936
            %v1993 = vsel %vm1992, %v1987, %v1989
            %1994 = vst [vmem:[%s1988] sm:$0xff] %v1993
            %v1995 = vld [vmem:[%s1933] ss:$0 sm:$0xff]
            %s1996 = scalar_lea.vmem %s1932, 56
            %v1997 = vld [vmem:[%s1996] sm:$0xff]
            %v1999 = vadd.s32 %v1939, 56
            %vm2000 = vcmp.eq.s32.totalorder %v1999, %v1936
            %v2001 = vsel %vm2000, %v1995, %v1997
            %2002 = vst [vmem:[%s1996] sm:$0xff] %v2001
            %s2003 = smov [#allocation16]
            %v2004 = vlaneseq
            %v2005 = vand.u32 %v2004, 127
            %v2006 = vmov %v2005
            %v2007 = vlaneseq
            %v2008 = vshrl.u32 %v2007, 7
            %v2009 = vmov %v2008
            %v2010 = vld [vmem:[%s2003] sm:$0xff]
            %vm2013 = vcmp.eq.s32.totalorder %v2009, %v2006
            %v2014 = vsel %vm2013, 0.0, %v2010
            %2015 = vst [vmem:[%s2003] sm:$0xff] %v2014
            %s2016 = scalar_lea.vmem %s2003, 8
            %v2017 = vld [vmem:[%s2016] sm:$0xff]
            %v2019 = vadd.s32 %v2009, 8
            %vm2020 = vcmp.eq.s32.totalorder %v2019, %v2006
            %v2021 = vsel %vm2020, 0.0, %v2017
            %2022 = vst [vmem:[%s2016] sm:$0xff] %v2021
            %s2023 = scalar_lea.vmem %s2003, 16
            %v2024 = vld [vmem:[%s2023] sm:$0xff]
            %v2026 = vadd.s32 %v2009, 16
            %vm2027 = vcmp.eq.s32.totalorder %v2026, %v2006
            %v2028 = vsel %vm2027, 0.0, %v2024
            %2029 = vst [vmem:[%s2023] sm:$0xff] %v2028
            %s2030 = scalar_lea.vmem %s2003, 24
            %v2031 = vld [vmem:[%s2030] sm:$0xff]
            %v2033 = vadd.s32 %v2009, 24
            %vm2034 = vcmp.eq.s32.totalorder %v2033, %v2006
            %v2035 = vsel %vm2034, 0.0, %v2031
            %2036 = vst [vmem:[%s2030] sm:$0xff] %v2035
            %s2037 = scalar_lea.vmem %s2003, 32
            %v2038 = vld [vmem:[%s2037] sm:$0xff]
            %v2040 = vadd.s32 %v2009, 32
            %vm2041 = vcmp.eq.s32.totalorder %v2040, %v2006
            %v2042 = vsel %vm2041, 0.0, %v2038
            %2043 = vst [vmem:[%s2037] sm:$0xff] %v2042
            %s2044 = scalar_lea.vmem %s2003, 40
            %v2045 = vld [vmem:[%s2044] sm:$0xff]
            %v2047 = vadd.s32 %v2009, 40
            %vm2048 = vcmp.eq.s32.totalorder %v2047, %v2006
            %v2049 = vsel %vm2048, 0.0, %v2045
            %2050 = vst [vmem:[%s2044] sm:$0xff] %v2049
            %s2051 = scalar_lea.vmem %s2003, 48
            %v2052 = vld [vmem:[%s2051] sm:$0xff]
            %v2054 = vadd.s32 %v2009, 48
            %vm2055 = vcmp.eq.s32.totalorder %v2054, %v2006
            %v2056 = vsel %vm2055, 0.0, %v2052
            %2057 = vst [vmem:[%s2051] sm:$0xff] %v2056
            %s2058 = scalar_lea.vmem %s2003, 56
            %v2059 = vld [vmem:[%s2058] sm:$0xff]
            %v2061 = vadd.s32 %v2009, 56
            %vm2062 = vcmp.eq.s32.totalorder %v2061, %v2006
            %v2063 = vsel %vm2062, 0.0, %v2059
            %2064 = vst [vmem:[%s2058] sm:$0xff] %v2063
            %s2065 = smov [#allocation17]
            %v2066 = vlaneseq
            %v2067 = vand.u32 %v2066, 127
            %v2068 = vmov %v2067
            %v2069 = vlaneseq
            %v2070 = vshrl.u32 %v2069, 7
            %v2071 = vmov %v2070
            %v2072 = vld [vmem:[%s2065] sm:$0xff]
            %vm2075 = vcmp.eq.s32.totalorder %v2071, %v2068
            %v2076 = vsel %vm2075, 0.0, %v2072
            %2077 = vst [vmem:[%s2065] sm:$0xff] %v2076
            %s2078 = scalar_lea.vmem %s2065, 8
            %v2079 = vld [vmem:[%s2078] sm:$0xff]
            %v2081 = vadd.s32 %v2071, 8
            %vm2082 = vcmp.eq.s32.totalorder %v2081, %v2068
            %v2083 = vsel %vm2082, 0.0, %v2079
            %2084 = vst [vmem:[%s2078] sm:$0xff] %v2083
            %s2085 = scalar_lea.vmem %s2065, 16
            %v2086 = vld [vmem:[%s2085] sm:$0xff]
            %v2088 = vadd.s32 %v2071, 16
            %vm2089 = vcmp.eq.s32.totalorder %v2088, %v2068
            %v2090 = vsel %vm2089, 0.0, %v2086
            %2091 = vst [vmem:[%s2085] sm:$0xff] %v2090
            %s2092 = scalar_lea.vmem %s2065, 24
            %v2093 = vld [vmem:[%s2092] sm:$0xff]
            %v2095 = vadd.s32 %v2071, 24
            %vm2096 = vcmp.eq.s32.totalorder %v2095, %v2068
            %v2097 = vsel %vm2096, 0.0, %v2093
            %2098 = vst [vmem:[%s2092] sm:$0xff] %v2097
            %s2099 = scalar_lea.vmem %s2065, 32
            %v2100 = vld [vmem:[%s2099] sm:$0xff]
            %v2102 = vadd.s32 %v2071, 32
            %vm2103 = vcmp.eq.s32.totalorder %v2102, %v2068
            %v2104 = vsel %vm2103, 0.0, %v2100
            %2105 = vst [vmem:[%s2099] sm:$0xff] %v2104
            %s2106 = scalar_lea.vmem %s2065, 40
            %v2107 = vld [vmem:[%s2106] sm:$0xff]
            %v2109 = vadd.s32 %v2071, 40
            %vm2110 = vcmp.eq.s32.totalorder %v2109, %v2068
            %v2111 = vsel %vm2110, 0.0, %v2107
            %2112 = vst [vmem:[%s2106] sm:$0xff] %v2111
            %s2113 = scalar_lea.vmem %s2065, 48
            %v2114 = vld [vmem:[%s2113] sm:$0xff]
            %v2116 = vadd.s32 %v2071, 48
            %vm2117 = vcmp.eq.s32.totalorder %v2116, %v2068
            %v2118 = vsel %vm2117, 0.0, %v2114
            %2119 = vst [vmem:[%s2113] sm:$0xff] %v2118
            %s2120 = scalar_lea.vmem %s2065, 56
            %v2121 = vld [vmem:[%s2120] sm:$0xff]
            %v2123 = vadd.s32 %v2071, 56
            %vm2124 = vcmp.eq.s32.totalorder %v2123, %v2068
            %v2125 = vsel %vm2124, 0.0, %v2121
            %2126 = vst [vmem:[%s2120] sm:$0xff] %v2125
            %s2127 = smov [#allocation18]
            %s2128 = smov [#allocation23]
            %v2129 = vlaneseq
            %v2130 = vand.u32 %v2129, 127
            %v2131 = vmov %v2130
            %v2132 = vlaneseq
            %v2133 = vshrl.u32 %v2132, 7
            %v2134 = vmov %v2133
            %v2135 = vld [vmem:[%s2128] ss:$0 sm:$0xff]
            %v2136 = vld [vmem:[%s2127] sm:$0xff]
            %vm2139 = vcmp.eq.s32.totalorder %v2134, %v2131
            %v2140 = vsel %vm2139, %v2135, %v2136
            %2141 = vst [vmem:[%s2127] sm:$0xff] %v2140
            %v2142 = vld [vmem:[%s2128] ss:$0 sm:$0xff]
            %s2143 = scalar_lea.vmem %s2127, 8
            %v2144 = vld [vmem:[%s2143] sm:$0xff]
            %v2146 = vadd.s32 %v2134, 8
            %vm2147 = vcmp.eq.s32.totalorder %v2146, %v2131
            %v2148 = vsel %vm2147, %v2142, %v2144
            %2149 = vst [vmem:[%s2143] sm:$0xff] %v2148
            %v2150 = vld [vmem:[%s2128] ss:$0 sm:$0xff]
            %s2151 = scalar_lea.vmem %s2127, 16
            %v2152 = vld [vmem:[%s2151] sm:$0xff]
            %v2154 = vadd.s32 %v2134, 16
            %vm2155 = vcmp.eq.s32.totalorder %v2154, %v2131
            %v2156 = vsel %vm2155, %v2150, %v2152
            %2157 = vst [vmem:[%s2151] sm:$0xff] %v2156
            %v2158 = vld [vmem:[%s2128] ss:$0 sm:$0xff]
            %s2159 = scalar_lea.vmem %s2127, 24
            %v2160 = vld [vmem:[%s2159] sm:$0xff]
            %v2162 = vadd.s32 %v2134, 24
            %vm2163 = vcmp.eq.s32.totalorder %v2162, %v2131
            %v2164 = vsel %vm2163, %v2158, %v2160
            %2165 = vst [vmem:[%s2159] sm:$0xff] %v2164
            %v2166 = vld [vmem:[%s2128] ss:$0 sm:$0xff]
            %s2167 = scalar_lea.vmem %s2127, 32
            %v2168 = vld [vmem:[%s2167] sm:$0xff]
            %v2170 = vadd.s32 %v2134, 32
            %vm2171 = vcmp.eq.s32.totalorder %v2170, %v2131
            %v2172 = vsel %vm2171, %v2166, %v2168
            %2173 = vst [vmem:[%s2167] sm:$0xff] %v2172
            %v2174 = vld [vmem:[%s2128] ss:$0 sm:$0xff]
            %s2175 = scalar_lea.vmem %s2127, 40
            %v2176 = vld [vmem:[%s2175] sm:$0xff]
            %v2178 = vadd.s32 %v2134, 40
            %vm2179 = vcmp.eq.s32.totalorder %v2178, %v2131
            %v2180 = vsel %vm2179, %v2174, %v2176
            %2181 = vst [vmem:[%s2175] sm:$0xff] %v2180
            %v2182 = vld [vmem:[%s2128] ss:$0 sm:$0xff]
            %s2183 = scalar_lea.vmem %s2127, 48
            %v2184 = vld [vmem:[%s2183] sm:$0xff]
            %v2186 = vadd.s32 %v2134, 48
            %vm2187 = vcmp.eq.s32.totalorder %v2186, %v2131
            %v2188 = vsel %vm2187, %v2182, %v2184
            %2189 = vst [vmem:[%s2183] sm:$0xff] %v2188
            %v2190 = vld [vmem:[%s2128] ss:$0 sm:$0xff]
            %s2191 = scalar_lea.vmem %s2127, 56
            %v2192 = vld [vmem:[%s2191] sm:$0xff]
            %v2194 = vadd.s32 %v2134, 56
            %vm2195 = vcmp.eq.s32.totalorder %v2194, %v2131
            %v2196 = vsel %vm2195, %v2190, %v2192
            %2197 = vst [vmem:[%s2191] sm:$0xff] %v2196
            %s2198 = smov [#allocation15]
            %s2199 = smov [#allocation16]
            %v2200 = vld [vmem:[%s2199] sm:$0xff]
            %2201 = vrot.lane.b32.xlu0 %v2200, 1
            %v2202 = vpop.permute.xlu0 %2201
            %v2203 = vld [vmem:[%s2198] sm:$0xff]
            %v2204 = vld [vmem:[%s2198] sm:$0xff]
            %2205 = vrot.lane.b32.xlu0 %v2204, 1
            %v2206 = vpop.permute.xlu0 %2205
            %v2207 = vlaneseq
            %v2208 = vand.u32 %v2207, 127
            %vm2209 = vcmp.eq.s32.totalorder %v2208, 0
            %v2210 = vsel %vm2209, %v2204, %v2206
            %v2211 = vlaneseq
            %v2212 = vand.u32 %v2211, 127
            %vm2213 = vcmp.eq.s32.totalorder %v2212, 1
            %v2214 = vsel %vm2213, %v2202, %v2210
            %v2215 = vlaneseq
            %v2216 = vand.u32 %v2215, 127
            %vm2217 = vcmp.ge.s32.totalorder %v2216, 0
            %vm2218 = vcmp.lt.s32.totalorder %v2216, 64
            %vm2219 = vmand %vm2217, %vm2218
            %v2220 = vsel %vm2219, %v2214, 0.0
            %v2221 = vld [vmem:[%s2199] sm:$0xff]
            %2222 = vrot.lane.b32.xlu0 %v2221, 127
            %v2223 = vpop.permute.xlu0 %2222
            %v2224 = vlaneseq
            %v2225 = vand.u32 %v2224, 127
            %vm2226 = vcmp.eq.s32.totalorder %v2225, 63
            %v2227 = vsel %vm2226, %v2203, %v2223
            %s2228 = smov [#allocation15]
            %s2229 = scalar_lea.vmem %s2228, 8
            %s2230 = smov [#allocation16]
            %s2231 = scalar_lea.vmem %s2230, 8
            %v2232 = vld [vmem:[%s2231] sm:$0xff]
            %2233 = vrot.lane.b32.xlu0 %v2232, 1
            %v2234 = vpop.permute.xlu0 %2233
            %v2235 = vld [vmem:[%s2229] sm:$0xff]
            %v2236 = vld [vmem:[%s2229] sm:$0xff]
            %2237 = vrot.lane.b32.xlu0 %v2236, 1
            %v2238 = vpop.permute.xlu0 %2237
            %v2239 = vlaneseq
            %v2240 = vand.u32 %v2239, 127
            %vm2241 = vcmp.eq.s32.totalorder %v2240, 0
            %v2242 = vsel %vm2241, %v2236, %v2238
            %v2243 = vlaneseq
            %v2244 = vand.u32 %v2243, 127
            %vm2245 = vcmp.eq.s32.totalorder %v2244, 1
            %v2246 = vsel %vm2245, %v2234, %v2242
            %v2247 = vlaneseq
            %v2248 = vand.u32 %v2247, 127
            %vm2249 = vcmp.ge.s32.totalorder %v2248, 0
            %vm2250 = vcmp.lt.s32.totalorder %v2248, 64
            %vm2251 = vmand %vm2249, %vm2250
            %v2252 = vsel %vm2251, %v2246, 0.0
            %v2253 = vld [vmem:[%s2231] sm:$0xff]
            %2254 = vrot.lane.b32.xlu0 %v2253, 127
            %v2255 = vpop.permute.xlu0 %2254
            %v2256 = vlaneseq
            %v2257 = vand.u32 %v2256, 127
            %vm2258 = vcmp.eq.s32.totalorder %v2257, 63
            %v2259 = vsel %vm2258, %v2235, %v2255
            %s2260 = smov [#allocation15]
            %s2261 = scalar_lea.vmem %s2260, 16
            %s2262 = smov [#allocation16]
            %s2263 = scalar_lea.vmem %s2262, 16
            %v2264 = vld [vmem:[%s2263] sm:$0xff]
            %2265 = vrot.lane.b32.xlu0 %v2264, 1
            %v2266 = vpop.permute.xlu0 %2265
            %v2267 = vld [vmem:[%s2261] sm:$0xff]
            %v2268 = vld [vmem:[%s2261] sm:$0xff]
            %2269 = vrot.lane.b32.xlu0 %v2268, 1
            %v2270 = vpop.permute.xlu0 %2269
            %v2271 = vlaneseq
            %v2272 = vand.u32 %v2271, 127
            %vm2273 = vcmp.eq.s32.totalorder %v2272, 0
            %v2274 = vsel %vm2273, %v2268, %v2270
            %v2275 = vlaneseq
            %v2276 = vand.u32 %v2275, 127
            %vm2277 = vcmp.eq.s32.totalorder %v2276, 1
            %v2278 = vsel %vm2277, %v2266, %v2274
            %v2279 = vlaneseq
            %v2280 = vand.u32 %v2279, 127
            %vm2281 = vcmp.ge.s32.totalorder %v2280, 0
            %vm2282 = vcmp.lt.s32.totalorder %v2280, 64
            %vm2283 = vmand %vm2281, %vm2282
            %v2284 = vsel %vm2283, %v2278, 0.0
            %v2285 = vld [vmem:[%s2263] sm:$0xff]
            %2286 = vrot.lane.b32.xlu0 %v2285, 127
            %v2287 = vpop.permute.xlu0 %2286
            %v2288 = vlaneseq
            %v2289 = vand.u32 %v2288, 127
            %vm2290 = vcmp.eq.s32.totalorder %v2289, 63
            %v2291 = vsel %vm2290, %v2267, %v2287
            %s2292 = smov [#allocation15]
            %s2293 = scalar_lea.vmem %s2292, 24
            %s2294 = smov [#allocation16]
            %s2295 = scalar_lea.vmem %s2294, 24
            %v2296 = vld [vmem:[%s2295] sm:$0xff]
            %2297 = vrot.lane.b32.xlu0 %v2296, 1
            %v2298 = vpop.permute.xlu0 %2297
            %v2299 = vld [vmem:[%s2293] sm:$0xff]
            %v2300 = vld [vmem:[%s2293] sm:$0xff]
            %2301 = vrot.lane.b32.xlu0 %v2300, 1
            %v2302 = vpop.permute.xlu0 %2301
            %v2303 = vlaneseq
            %v2304 = vand.u32 %v2303, 127
            %vm2305 = vcmp.eq.s32.totalorder %v2304, 0
            %v2306 = vsel %vm2305, %v2300, %v2302
            %v2307 = vlaneseq
            %v2308 = vand.u32 %v2307, 127
            %vm2309 = vcmp.eq.s32.totalorder %v2308, 1
            %v2310 = vsel %vm2309, %v2298, %v2306
            %v2311 = vlaneseq
            %v2312 = vand.u32 %v2311, 127
            %vm2313 = vcmp.ge.s32.totalorder %v2312, 0
            %vm2314 = vcmp.lt.s32.totalorder %v2312, 64
            %vm2315 = vmand %vm2313, %vm2314
            %v2316 = vsel %vm2315, %v2310, 0.0
            %v2317 = vld [vmem:[%s2295] sm:$0xff]
            %2318 = vrot.lane.b32.xlu0 %v2317, 127
            %v2319 = vpop.permute.xlu0 %2318
            %v2320 = vlaneseq
            %v2321 = vand.u32 %v2320, 127
            %vm2322 = vcmp.eq.s32.totalorder %v2321, 63
            %v2323 = vsel %vm2322, %v2299, %v2319
            %s2324 = smov [#allocation15]
            %s2325 = scalar_lea.vmem %s2324, 32
            %s2326 = smov [#allocation16]
            %s2327 = scalar_lea.vmem %s2326, 32
            %v2328 = vld [vmem:[%s2327] sm:$0xff]
            %2329 = vrot.lane.b32.xlu0 %v2328, 1
            %v2330 = vpop.permute.xlu0 %2329
            %v2331 = vld [vmem:[%s2325] sm:$0xff]
            %v2332 = vld [vmem:[%s2325] sm:$0xff]
            %2333 = vrot.lane.b32.xlu0 %v2332, 1
            %v2334 = vpop.permute.xlu0 %2333
            %v2335 = vlaneseq
            %v2336 = vand.u32 %v2335, 127
            %vm2337 = vcmp.eq.s32.totalorder %v2336, 0
            %v2338 = vsel %vm2337, %v2332, %v2334
            %v2339 = vlaneseq
            %v2340 = vand.u32 %v2339, 127
            %vm2341 = vcmp.eq.s32.totalorder %v2340, 1
            %v2342 = vsel %vm2341, %v2330, %v2338
            %v2343 = vlaneseq
            %v2344 = vand.u32 %v2343, 127
            %vm2345 = vcmp.ge.s32.totalorder %v2344, 0
            %vm2346 = vcmp.lt.s32.totalorder %v2344, 64
            %vm2347 = vmand %vm2345, %vm2346
            %v2348 = vsel %vm2347, %v2342, 0.0
            %v2349 = vld [vmem:[%s2327] sm:$0xff]
            %2350 = vrot.lane.b32.xlu0 %v2349, 127
            %v2351 = vpop.permute.xlu0 %2350
            %v2352 = vlaneseq
            %v2353 = vand.u32 %v2352, 127
            %vm2354 = vcmp.eq.s32.totalorder %v2353, 63
            %v2355 = vsel %vm2354, %v2331, %v2351
            %s2356 = smov [#allocation15]
            %s2357 = scalar_lea.vmem %s2356, 40
            %s2358 = smov [#allocation16]
            %s2359 = scalar_lea.vmem %s2358, 40
            %v2360 = vld [vmem:[%s2359] sm:$0xff]
            %2361 = vrot.lane.b32.xlu0 %v2360, 1
            %v2362 = vpop.permute.xlu0 %2361
            %v2363 = vld [vmem:[%s2357] sm:$0xff]
            %v2364 = vld [vmem:[%s2357] sm:$0xff]
            %2365 = vrot.lane.b32.xlu0 %v2364, 1
            %v2366 = vpop.permute.xlu0 %2365
            %v2367 = vlaneseq
            %v2368 = vand.u32 %v2367, 127
            %vm2369 = vcmp.eq.s32.totalorder %v2368, 0
            %v2370 = vsel %vm2369, %v2364, %v2366
            %v2371 = vlaneseq
            %v2372 = vand.u32 %v2371, 127
            %vm2373 = vcmp.eq.s32.totalorder %v2372, 1
            %v2374 = vsel %vm2373, %v2362, %v2370
            %v2375 = vlaneseq
            %v2376 = vand.u32 %v2375, 127
            %vm2377 = vcmp.ge.s32.totalorder %v2376, 0
            %vm2378 = vcmp.lt.s32.totalorder %v2376, 64
            %vm2379 = vmand %vm2377, %vm2378
            %v2380 = vsel %vm2379, %v2374, 0.0
            %v2381 = vld [vmem:[%s2359] sm:$0xff]
            %2382 = vrot.lane.b32.xlu0 %v2381, 127
            %v2383 = vpop.permute.xlu0 %2382
            %v2384 = vlaneseq
            %v2385 = vand.u32 %v2384, 127
            %vm2386 = vcmp.eq.s32.totalorder %v2385, 63
            %v2387 = vsel %vm2386, %v2363, %v2383
            %s2388 = smov [#allocation15]
            %s2389 = scalar_lea.vmem %s2388, 48
            %s2390 = smov [#allocation16]
            %s2391 = scalar_lea.vmem %s2390, 48
            %v2392 = vld [vmem:[%s2391] sm:$0xff]
            %2393 = vrot.lane.b32.xlu0 %v2392, 1
            %v2394 = vpop.permute.xlu0 %2393
            %v2395 = vld [vmem:[%s2389] sm:$0xff]
            %v2396 = vld [vmem:[%s2389] sm:$0xff]
            %2397 = vrot.lane.b32.xlu0 %v2396, 1
            %v2398 = vpop.permute.xlu0 %2397
            %v2399 = vlaneseq
            %v2400 = vand.u32 %v2399, 127
            %vm2401 = vcmp.eq.s32.totalorder %v2400, 0
            %v2402 = vsel %vm2401, %v2396, %v2398
            %v2403 = vlaneseq
            %v2404 = vand.u32 %v2403, 127
            %vm2405 = vcmp.eq.s32.totalorder %v2404, 1
            %v2406 = vsel %vm2405, %v2394, %v2402
            %v2407 = vlaneseq
            %v2408 = vand.u32 %v2407, 127
            %vm2409 = vcmp.ge.s32.totalorder %v2408, 0
            %vm2410 = vcmp.lt.s32.totalorder %v2408, 64
            %vm2411 = vmand %vm2409, %vm2410
            %v2412 = vsel %vm2411, %v2406, 0.0
            %v2413 = vld [vmem:[%s2391] sm:$0xff]
            %2414 = vrot.lane.b32.xlu0 %v2413, 127
            %v2415 = vpop.permute.xlu0 %2414
            %v2416 = vlaneseq
            %v2417 = vand.u32 %v2416, 127
            %vm2418 = vcmp.eq.s32.totalorder %v2417, 63
            %v2419 = vsel %vm2418, %v2395, %v2415
            %s2420 = smov [#allocation15]
            %s2421 = scalar_lea.vmem %s2420, 56
            %s2422 = smov [#allocation16]
            %s2423 = scalar_lea.vmem %s2422, 56
            %v2424 = vld [vmem:[%s2423] sm:$0xff]
            %2425 = vrot.lane.b32.xlu0 %v2424, 1
            %v2426 = vpop.permute.xlu0 %2425
            %v2427 = vld [vmem:[%s2421] sm:$0xff]
            %v2428 = vld [vmem:[%s2421] sm:$0xff]
            %2429 = vrot.lane.b32.xlu0 %v2428, 1
            %v2430 = vpop.permute.xlu0 %2429
            %v2431 = vlaneseq
            %v2432 = vand.u32 %v2431, 127
            %vm2433 = vcmp.eq.s32.totalorder %v2432, 0
            %v2434 = vsel %vm2433, %v2428, %v2430
            %v2435 = vlaneseq
            %v2436 = vand.u32 %v2435, 127
            %vm2437 = vcmp.eq.s32.totalorder %v2436, 1
            %v2438 = vsel %vm2437, %v2426, %v2434
            %v2439 = vlaneseq
            %v2440 = vand.u32 %v2439, 127
            %vm2441 = vcmp.ge.s32.totalorder %v2440, 0
            %vm2442 = vcmp.lt.s32.totalorder %v2440, 64
            %vm2443 = vmand %vm2441, %vm2442
            %v2444 = vsel %vm2443, %v2438, 0.0
            %v2445 = vld [vmem:[%s2423] sm:$0xff]
            %2446 = vrot.lane.b32.xlu0 %v2445, 127
            %v2447 = vpop.permute.xlu0 %2446
            %v2448 = vlaneseq
            %v2449 = vand.u32 %v2448, 127
            %vm2450 = vcmp.eq.s32.totalorder %v2449, 63
            %v2451 = vsel %vm2450, %v2427, %v2447
            %2452 = vst [vmem:[%s2198] sm:$0xff] %v2220
            %2453 = vst [vmem:[%s2199] sm:$0xff] %v2227
            %2454 = vst [vmem:[%s2229] sm:$0xff] %v2252
            %2455 = vst [vmem:[%s2231] sm:$0xff] %v2259
            %2456 = vst [vmem:[%s2261] sm:$0xff] %v2284
            %2457 = vst [vmem:[%s2263] sm:$0xff] %v2291
            %2458 = vst [vmem:[%s2293] sm:$0xff] %v2316
            %2459 = vst [vmem:[%s2295] sm:$0xff] %v2323
            %2460 = vst [vmem:[%s2325] sm:$0xff] %v2348
            %2461 = vst [vmem:[%s2327] sm:$0xff] %v2355
            %2462 = vst [vmem:[%s2357] sm:$0xff] %v2380
            %2463 = vst [vmem:[%s2359] sm:$0xff] %v2387
            %2464 = vst [vmem:[%s2389] sm:$0xff] %v2412
            %2465 = vst [vmem:[%s2391] sm:$0xff] %v2419
            %2466 = vst [vmem:[%s2421] sm:$0xff] %v2444
            %2467 = vst [vmem:[%s2423] sm:$0xff] %v2451
            %s2468 = smov [#allocation17]
            %s2469 = smov [#allocation18]
            %v2470 = vld [vmem:[%s2469] sm:$0xff]
            %2471 = vrot.lane.b32.xlu0 %v2470, 1
            %v2472 = vpop.permute.xlu0 %2471
            %v2473 = vld [vmem:[%s2468] sm:$0xff]
            %v2474 = vld [vmem:[%s2468] sm:$0xff]
            %2475 = vrot.lane.b32.xlu0 %v2474, 1
            %v2476 = vpop.permute.xlu0 %2475
            %v2477 = vlaneseq
            %v2478 = vand.u32 %v2477, 127
            %vm2479 = vcmp.eq.s32.totalorder %v2478, 0
            %v2480 = vsel %vm2479, %v2474, %v2476
            %v2481 = vlaneseq
            %v2482 = vand.u32 %v2481, 127
            %vm2483 = vcmp.eq.s32.totalorder %v2482, 1
            %v2484 = vsel %vm2483, %v2472, %v2480
            %v2485 = vlaneseq
            %v2486 = vand.u32 %v2485, 127
            %vm2487 = vcmp.ge.s32.totalorder %v2486, 0
            %vm2488 = vcmp.lt.s32.totalorder %v2486, 64
            %vm2489 = vmand %vm2487, %vm2488
            %v2490 = vsel %vm2489, %v2484, 0.0
            %v2491 = vld [vmem:[%s2469] sm:$0xff]
            %2492 = vrot.lane.b32.xlu0 %v2491, 127
            %v2493 = vpop.permute.xlu0 %2492
            %v2494 = vlaneseq
            %v2495 = vand.u32 %v2494, 127
            %vm2496 = vcmp.eq.s32.totalorder %v2495, 63
            %v2497 = vsel %vm2496, %v2473, %v2493
            %s2498 = smov [#allocation17]
            %s2499 = scalar_lea.vmem %s2498, 8
            %s2500 = smov [#allocation18]
            %s2501 = scalar_lea.vmem %s2500, 8
            %v2502 = vld [vmem:[%s2501] sm:$0xff]
            %2503 = vrot.lane.b32.xlu0 %v2502, 1
            %v2504 = vpop.permute.xlu0 %2503
            %v2505 = vld [vmem:[%s2499] sm:$0xff]
            %v2506 = vld [vmem:[%s2499] sm:$0xff]
            %2507 = vrot.lane.b32.xlu0 %v2506, 1
            %v2508 = vpop.permute.xlu0 %2507
            %v2509 = vlaneseq
            %v2510 = vand.u32 %v2509, 127
            %vm2511 = vcmp.eq.s32.totalorder %v2510, 0
            %v2512 = vsel %vm2511, %v2506, %v2508
            %v2513 = vlaneseq
            %v2514 = vand.u32 %v2513, 127
            %vm2515 = vcmp.eq.s32.totalorder %v2514, 1
            %v2516 = vsel %vm2515, %v2504, %v2512
            %v2517 = vlaneseq
            %v2518 = vand.u32 %v2517, 127
            %vm2519 = vcmp.ge.s32.totalorder %v2518, 0
            %vm2520 = vcmp.lt.s32.totalorder %v2518, 64
            %vm2521 = vmand %vm2519, %vm2520
            %v2522 = vsel %vm2521, %v2516, 0.0
            %v2523 = vld [vmem:[%s2501] sm:$0xff]
            %2524 = vrot.lane.b32.xlu0 %v2523, 127
            %v2525 = vpop.permute.xlu0 %2524
            %v2526 = vlaneseq
            %v2527 = vand.u32 %v2526, 127
            %vm2528 = vcmp.eq.s32.totalorder %v2527, 63
            %v2529 = vsel %vm2528, %v2505, %v2525
            %s2530 = smov [#allocation17]
            %s2531 = scalar_lea.vmem %s2530, 16
            %s2532 = smov [#allocation18]
            %s2533 = scalar_lea.vmem %s2532, 16
            %v2534 = vld [vmem:[%s2533] sm:$0xff]
            %2535 = vrot.lane.b32.xlu0 %v2534, 1
            %v2536 = vpop.permute.xlu0 %2535
            %v2537 = vld [vmem:[%s2531] sm:$0xff]
            %v2538 = vld [vmem:[%s2531] sm:$0xff]
            %2539 = vrot.lane.b32.xlu0 %v2538, 1
            %v2540 = vpop.permute.xlu0 %2539
            %v2541 = vlaneseq
            %v2542 = vand.u32 %v2541, 127
            %vm2543 = vcmp.eq.s32.totalorder %v2542, 0
            %v2544 = vsel %vm2543, %v2538, %v2540
            %v2545 = vlaneseq
            %v2546 = vand.u32 %v2545, 127
            %vm2547 = vcmp.eq.s32.totalorder %v2546, 1
            %v2548 = vsel %vm2547, %v2536, %v2544
            %v2549 = vlaneseq
            %v2550 = vand.u32 %v2549, 127
            %vm2551 = vcmp.ge.s32.totalorder %v2550, 0
            %vm2552 = vcmp.lt.s32.totalorder %v2550, 64
            %vm2553 = vmand %vm2551, %vm2552
            %v2554 = vsel %vm2553, %v2548, 0.0
            %v2555 = vld [vmem:[%s2533] sm:$0xff]
            %2556 = vrot.lane.b32.xlu0 %v2555, 127
            %v2557 = vpop.permute.xlu0 %2556
            %v2558 = vlaneseq
            %v2559 = vand.u32 %v2558, 127
            %vm2560 = vcmp.eq.s32.totalorder %v2559, 63
            %v2561 = vsel %vm2560, %v2537, %v2557
            %s2562 = smov [#allocation17]
            %s2563 = scalar_lea.vmem %s2562, 24
            %s2564 = smov [#allocation18]
            %s2565 = scalar_lea.vmem %s2564, 24
            %v2566 = vld [vmem:[%s2565] sm:$0xff]
            %2567 = vrot.lane.b32.xlu0 %v2566, 1
            %v2568 = vpop.permute.xlu0 %2567
            %v2569 = vld [vmem:[%s2563] sm:$0xff]
            %v2570 = vld [vmem:[%s2563] sm:$0xff]
            %2571 = vrot.lane.b32.xlu0 %v2570, 1
            %v2572 = vpop.permute.xlu0 %2571
            %v2573 = vlaneseq
            %v2574 = vand.u32 %v2573, 127
            %vm2575 = vcmp.eq.s32.totalorder %v2574, 0
            %v2576 = vsel %vm2575, %v2570, %v2572
            %v2577 = vlaneseq
            %v2578 = vand.u32 %v2577, 127
            %vm2579 = vcmp.eq.s32.totalorder %v2578, 1
            %v2580 = vsel %vm2579, %v2568, %v2576
            %v2581 = vlaneseq
            %v2582 = vand.u32 %v2581, 127
            %vm2583 = vcmp.ge.s32.totalorder %v2582, 0
            %vm2584 = vcmp.lt.s32.totalorder %v2582, 64
            %vm2585 = vmand %vm2583, %vm2584
            %v2586 = vsel %vm2585, %v2580, 0.0
            %v2587 = vld [vmem:[%s2565] sm:$0xff]
            %2588 = vrot.lane.b32.xlu0 %v2587, 127
            %v2589 = vpop.permute.xlu0 %2588
            %v2590 = vlaneseq
            %v2591 = vand.u32 %v2590, 127
            %vm2592 = vcmp.eq.s32.totalorder %v2591, 63
            %v2593 = vsel %vm2592, %v2569, %v2589
            %s2594 = smov [#allocation17]
            %s2595 = scalar_lea.vmem %s2594, 32
            %s2596 = smov [#allocation18]
            %s2597 = scalar_lea.vmem %s2596, 32
            %v2598 = vld [vmem:[%s2597] sm:$0xff]
            %2599 = vrot.lane.b32.xlu0 %v2598, 1
            %v2600 = vpop.permute.xlu0 %2599
            %v2601 = vld [vmem:[%s2595] sm:$0xff]
            %v2602 = vld [vmem:[%s2595] sm:$0xff]
            %2603 = vrot.lane.b32.xlu0 %v2602, 1
            %v2604 = vpop.permute.xlu0 %2603
            %v2605 = vlaneseq
            %v2606 = vand.u32 %v2605, 127
            %vm2607 = vcmp.eq.s32.totalorder %v2606, 0
            %v2608 = vsel %vm2607, %v2602, %v2604
            %v2609 = vlaneseq
            %v2610 = vand.u32 %v2609, 127
            %vm2611 = vcmp.eq.s32.totalorder %v2610, 1
            %v2612 = vsel %vm2611, %v2600, %v2608
            %v2613 = vlaneseq
            %v2614 = vand.u32 %v2613, 127
            %vm2615 = vcmp.ge.s32.totalorder %v2614, 0
            %vm2616 = vcmp.lt.s32.totalorder %v2614, 64
            %vm2617 = vmand %vm2615, %vm2616
            %v2618 = vsel %vm2617, %v2612, 0.0
            %v2619 = vld [vmem:[%s2597] sm:$0xff]
            %2620 = vrot.lane.b32.xlu0 %v2619, 127
            %v2621 = vpop.permute.xlu0 %2620
            %v2622 = vlaneseq
            %v2623 = vand.u32 %v2622, 127
            %vm2624 = vcmp.eq.s32.totalorder %v2623, 63
            %v2625 = vsel %vm2624, %v2601, %v2621
            %s2626 = smov [#allocation17]
            %s2627 = scalar_lea.vmem %s2626, 40
            %s2628 = smov [#allocation18]
            %s2629 = scalar_lea.vmem %s2628, 40
            %v2630 = vld [vmem:[%s2629] sm:$0xff]
            %2631 = vrot.lane.b32.xlu0 %v2630, 1
            %v2632 = vpop.permute.xlu0 %2631
            %v2633 = vld [vmem:[%s2627] sm:$0xff]
            %v2634 = vld [vmem:[%s2627] sm:$0xff]
            %2635 = vrot.lane.b32.xlu0 %v2634, 1
            %v2636 = vpop.permute.xlu0 %2635
            %v2637 = vlaneseq
            %v2638 = vand.u32 %v2637, 127
            %vm2639 = vcmp.eq.s32.totalorder %v2638, 0
            %v2640 = vsel %vm2639, %v2634, %v2636
            %v2641 = vlaneseq
            %v2642 = vand.u32 %v2641, 127
            %vm2643 = vcmp.eq.s32.totalorder %v2642, 1
            %v2644 = vsel %vm2643, %v2632, %v2640
            %v2645 = vlaneseq
            %v2646 = vand.u32 %v2645, 127
            %vm2647 = vcmp.ge.s32.totalorder %v2646, 0
            %vm2648 = vcmp.lt.s32.totalorder %v2646, 64
            %vm2649 = vmand %vm2647, %vm2648
            %v2650 = vsel %vm2649, %v2644, 0.0
            %v2651 = vld [vmem:[%s2629] sm:$0xff]
            %2652 = vrot.lane.b32.xlu0 %v2651, 127
            %v2653 = vpop.permute.xlu0 %2652
            %v2654 = vlaneseq
            %v2655 = vand.u32 %v2654, 127
            %vm2656 = vcmp.eq.s32.totalorder %v2655, 63
            %v2657 = vsel %vm2656, %v2633, %v2653
            %s2658 = smov [#allocation17]
            %s2659 = scalar_lea.vmem %s2658, 48
            %s2660 = smov [#allocation18]
            %s2661 = scalar_lea.vmem %s2660, 48
            %v2662 = vld [vmem:[%s2661] sm:$0xff]
            %2663 = vrot.lane.b32.xlu0 %v2662, 1
            %v2664 = vpop.permute.xlu0 %2663
            %v2665 = vld [vmem:[%s2659] sm:$0xff]
            %v2666 = vld [vmem:[%s2659] sm:$0xff]
            %2667 = vrot.lane.b32.xlu0 %v2666, 1
            %v2668 = vpop.permute.xlu0 %2667
            %v2669 = vlaneseq
            %v2670 = vand.u32 %v2669, 127
            %vm2671 = vcmp.eq.s32.totalorder %v2670, 0
            %v2672 = vsel %vm2671, %v2666, %v2668
            %v2673 = vlaneseq
            %v2674 = vand.u32 %v2673, 127
            %vm2675 = vcmp.eq.s32.totalorder %v2674, 1
            %v2676 = vsel %vm2675, %v2664, %v2672
            %v2677 = vlaneseq
            %v2678 = vand.u32 %v2677, 127
            %vm2679 = vcmp.ge.s32.totalorder %v2678, 0
            %vm2680 = vcmp.lt.s32.totalorder %v2678, 64
            %vm2681 = vmand %vm2679, %vm2680
            %v2682 = vsel %vm2681, %v2676, 0.0
            %v2683 = vld [vmem:[%s2661] sm:$0xff]
            %2684 = vrot.lane.b32.xlu0 %v2683, 127
            %v2685 = vpop.permute.xlu0 %2684
            %v2686 = vlaneseq
            %v2687 = vand.u32 %v2686, 127
            %vm2688 = vcmp.eq.s32.totalorder %v2687, 63
            %v2689 = vsel %vm2688, %v2665, %v2685
            %s2690 = smov [#allocation17]
            %s2691 = scalar_lea.vmem %s2690, 56
            %s2692 = smov [#allocation18]
            %s2693 = scalar_lea.vmem %s2692, 56
            %v2694 = vld [vmem:[%s2693] sm:$0xff]
            %2695 = vrot.lane.b32.xlu0 %v2694, 1
            %v2696 = vpop.permute.xlu0 %2695
            %v2697 = vld [vmem:[%s2691] sm:$0xff]
            %v2698 = vld [vmem:[%s2691] sm:$0xff]
            %2699 = vrot.lane.b32.xlu0 %v2698, 1
            %v2700 = vpop.permute.xlu0 %2699
            %v2701 = vlaneseq
            %v2702 = vand.u32 %v2701, 127
            %vm2703 = vcmp.eq.s32.totalorder %v2702, 0
            %v2704 = vsel %vm2703, %v2698, %v2700
            %v2705 = vlaneseq
            %v2706 = vand.u32 %v2705, 127
            %vm2707 = vcmp.eq.s32.totalorder %v2706, 1
            %v2708 = vsel %vm2707, %v2696, %v2704
            %v2709 = vlaneseq
            %v2710 = vand.u32 %v2709, 127
            %vm2711 = vcmp.ge.s32.totalorder %v2710, 0
            %vm2712 = vcmp.lt.s32.totalorder %v2710, 64
            %vm2713 = vmand %vm2711, %vm2712
            %v2714 = vsel %vm2713, %v2708, 0.0
            %v2715 = vld [vmem:[%s2693] sm:$0xff]
            %2716 = vrot.lane.b32.xlu0 %v2715, 127
            %v2717 = vpop.permute.xlu0 %2716
            %v2718 = vlaneseq
            %v2719 = vand.u32 %v2718, 127
            %vm2720 = vcmp.eq.s32.totalorder %v2719, 63
            %v2721 = vsel %vm2720, %v2697, %v2717
            %2722 = vst [vmem:[%s2468] sm:$0xff] %v2490
            %2723 = vst [vmem:[%s2469] sm:$0xff] %v2497
            %2724 = vst [vmem:[%s2499] sm:$0xff] %v2522
            %2725 = vst [vmem:[%s2501] sm:$0xff] %v2529
            %2726 = vst [vmem:[%s2531] sm:$0xff] %v2554
            %2727 = vst [vmem:[%s2533] sm:$0xff] %v2561
            %2728 = vst [vmem:[%s2563] sm:$0xff] %v2586
            %2729 = vst [vmem:[%s2565] sm:$0xff] %v2593
            %2730 = vst [vmem:[%s2595] sm:$0xff] %v2618
            %2731 = vst [vmem:[%s2597] sm:$0xff] %v2625
            %2732 = vst [vmem:[%s2627] sm:$0xff] %v2650
            %2733 = vst [vmem:[%s2629] sm:$0xff] %v2657
            %2734 = vst [vmem:[%s2659] sm:$0xff] %v2682
            %2735 = vst [vmem:[%s2661] sm:$0xff] %v2689
            %2736 = vst [vmem:[%s2691] sm:$0xff] %v2714
            %2737 = vst [vmem:[%s2693] sm:$0xff] %v2721
            %s2738 = smov [#allocation15]
            %s2739 = smov [#allocation17]
            %v2740 = vld [vmem:[%s2738] ss:$0 sm:$0xff]
            %s2742 = scalar_lea.vmem %s2738, 4294967295
            %v2743 = vld [vmem:[%s2742] sm:$0xfe]
            %v2744 = vlaneseq
            %v2745 = vshrl.u32 %v2744, 7
            %vm2746 = vcmp.eq.s32.totalorder %v2745, 0
            %v2747 = vsel %vm2746, %v2740, %v2743
            %s2748 = scalar_lea.vmem %s2738, 7
            %v2749 = vld [vmem:[%s2748] ss:$0 sm:$0xff]
            %2750 = vst [vmem:[%s2738] sm:$0xff] %v2747
            %s2751 = scalar_lea.vmem %s2738, 8
            %s2753 = scalar_lea.vmem %s2751, 4294967295
            %v2754 = vld [vmem:[%s2753] sm:$0xfe]
            %v2755 = vlaneseq
            %v2756 = vshrl.u32 %v2755, 7
            %vm2757 = vcmp.eq.s32.totalorder %v2756, 0
            %v2758 = vsel %vm2757, %v2749, %v2754
            %s2759 = scalar_lea.vmem %s2751, 7
            %v2760 = vld [vmem:[%s2759] ss:$0 sm:$0xff]
            %2761 = vst [vmem:[%s2751] sm:$0xff] %v2758
            %s2762 = scalar_lea.vmem %s2738, 16
            %s2764 = scalar_lea.vmem %s2762, 4294967295
            %v2765 = vld [vmem:[%s2764] sm:$0xfe]
            %v2766 = vlaneseq
            %v2767 = vshrl.u32 %v2766, 7
            %vm2768 = vcmp.eq.s32.totalorder %v2767, 0
            %v2769 = vsel %vm2768, %v2760, %v2765
            %s2770 = scalar_lea.vmem %s2762, 7
            %v2771 = vld [vmem:[%s2770] ss:$0 sm:$0xff]
            %2772 = vst [vmem:[%s2762] sm:$0xff] %v2769
            %s2773 = scalar_lea.vmem %s2738, 24
            %s2775 = scalar_lea.vmem %s2773, 4294967295
            %v2776 = vld [vmem:[%s2775] sm:$0xfe]
            %v2777 = vlaneseq
            %v2778 = vshrl.u32 %v2777, 7
            %vm2779 = vcmp.eq.s32.totalorder %v2778, 0
            %v2780 = vsel %vm2779, %v2771, %v2776
            %s2781 = scalar_lea.vmem %s2773, 7
            %v2782 = vld [vmem:[%s2781] ss:$0 sm:$0xff]
            %2783 = vst [vmem:[%s2773] sm:$0xff] %v2780
            %s2784 = scalar_lea.vmem %s2738, 32
            %s2786 = scalar_lea.vmem %s2784, 4294967295
            %v2787 = vld [vmem:[%s2786] sm:$0xfe]
            %v2788 = vlaneseq
            %v2789 = vshrl.u32 %v2788, 7
            %vm2790 = vcmp.eq.s32.totalorder %v2789, 0
            %v2791 = vsel %vm2790, %v2782, %v2787
            %s2792 = scalar_lea.vmem %s2784, 7
            %v2793 = vld [vmem:[%s2792] ss:$0 sm:$0xff]
            %2794 = vst [vmem:[%s2784] sm:$0xff] %v2791
            %s2795 = scalar_lea.vmem %s2738, 40
            %s2797 = scalar_lea.vmem %s2795, 4294967295
            %v2798 = vld [vmem:[%s2797] sm:$0xfe]
            %v2799 = vlaneseq
            %v2800 = vshrl.u32 %v2799, 7
            %vm2801 = vcmp.eq.s32.totalorder %v2800, 0
            %v2802 = vsel %vm2801, %v2793, %v2798
            %s2803 = scalar_lea.vmem %s2795, 7
            %v2804 = vld [vmem:[%s2803] ss:$0 sm:$0xff]
            %2805 = vst [vmem:[%s2795] sm:$0xff] %v2802
            %s2806 = scalar_lea.vmem %s2738, 48
            %s2808 = scalar_lea.vmem %s2806, 4294967295
            %v2809 = vld [vmem:[%s2808] sm:$0xfe]
            %v2810 = vlaneseq
            %v2811 = vshrl.u32 %v2810, 7
            %vm2812 = vcmp.eq.s32.totalorder %v2811, 0
            %v2813 = vsel %vm2812, %v2804, %v2809
            %s2814 = scalar_lea.vmem %s2806, 7
            %v2815 = vld [vmem:[%s2814] ss:$0 sm:$0xff]
            %2816 = vst [vmem:[%s2806] sm:$0xff] %v2813
            %s2817 = scalar_lea.vmem %s2738, 56
            %s2819 = scalar_lea.vmem %s2817, 4294967295
            %v2820 = vld [vmem:[%s2819] sm:$0xfe]
            %v2821 = vlaneseq
            %v2822 = vshrl.u32 %v2821, 7
            %vm2823 = vcmp.eq.s32.totalorder %v2822, 0
            %v2824 = vsel %vm2823, %v2815, %v2820
            %s2825 = scalar_lea.vmem %s2817, 7
            %v2826 = vld [vmem:[%s2825] ss:$0 sm:$0xff]
            %2827 = vst [vmem:[%s2817] sm:$0xff] %v2824
            %v2828 = vld [vmem:[%s2739] ss:$0 sm:$0xff]
            %s2829 = scalar_lea.vmem %s2738, 1
            %2830 = vst [vmem:[%s2829] sm:$0x1] %v2828
            %s2831 = scalar_lea.vmem %s2739, 56
            %s2832 = scalar_lea.vmem %s2831, 1
            %v2833 = vld [vmem:[%s2832] sm:$0x7f]
            %v2834 = vlaneseq
            %v2835 = vshrl.u32 %v2834, 7
            %vm2836 = vcmp.eq.s32.totalorder %v2835, 7
            %v2837 = vsel %vm2836, %v2826, %v2833
            %v2838 = vld [vmem:[%s2831] ss:$0 sm:$0xff]
            %2839 = vst [vmem:[%s2831] sm:$0xff] %v2837
            %s2840 = scalar_lea.vmem %s2739, 48
            %s2841 = scalar_lea.vmem %s2840, 1
            %v2842 = vld [vmem:[%s2841] sm:$0x7f]
            %v2843 = vlaneseq
            %v2844 = vshrl.u32 %v2843, 7
            %vm2845 = vcmp.eq.s32.totalorder %v2844, 7
            %v2846 = vsel %vm2845, %v2838, %v2842
            %v2847 = vld [vmem:[%s2840] ss:$0 sm:$0xff]
            %2848 = vst [vmem:[%s2840] sm:$0xff] %v2846
            %s2849 = scalar_lea.vmem %s2739, 40
            %s2850 = scalar_lea.vmem %s2849, 1
            %v2851 = vld [vmem:[%s2850] sm:$0x7f]
            %v2852 = vlaneseq
            %v2853 = vshrl.u32 %v2852, 7
            %vm2854 = vcmp.eq.s32.totalorder %v2853, 7
            %v2855 = vsel %vm2854, %v2847, %v2851
            %v2856 = vld [vmem:[%s2849] ss:$0 sm:$0xff]
            %2857 = vst [vmem:[%s2849] sm:$0xff] %v2855
            %s2858 = scalar_lea.vmem %s2739, 32
            %s2859 = scalar_lea.vmem %s2858, 1
            %v2860 = vld [vmem:[%s2859] sm:$0x7f]
            %v2861 = vlaneseq
            %v2862 = vshrl.u32 %v2861, 7
            %vm2863 = vcmp.eq.s32.totalorder %v2862, 7
            %v2864 = vsel %vm2863, %v2856, %v2860
            %v2865 = vld [vmem:[%s2858] ss:$0 sm:$0xff]
            %2866 = vst [vmem:[%s2858] sm:$0xff] %v2864
            %s2867 = scalar_lea.vmem %s2739, 24
            %s2868 = scalar_lea.vmem %s2867, 1
            %v2869 = vld [vmem:[%s2868] sm:$0x7f]
            %v2870 = vlaneseq
            %v2871 = vshrl.u32 %v2870, 7
            %vm2872 = vcmp.eq.s32.totalorder %v2871, 7
            %v2873 = vsel %vm2872, %v2865, %v2869
            %v2874 = vld [vmem:[%s2867] ss:$0 sm:$0xff]
            %2875 = vst [vmem:[%s2867] sm:$0xff] %v2873
            %s2876 = scalar_lea.vmem %s2739, 16
            %s2877 = scalar_lea.vmem %s2876, 1
            %v2878 = vld [vmem:[%s2877] sm:$0x7f]
            %v2879 = vlaneseq
            %v2880 = vshrl.u32 %v2879, 7
            %vm2881 = vcmp.eq.s32.totalorder %v2880, 7
            %v2882 = vsel %vm2881, %v2874, %v2878
            %v2883 = vld [vmem:[%s2876] ss:$0 sm:$0xff]
            %2884 = vst [vmem:[%s2876] sm:$0xff] %v2882
            %s2885 = scalar_lea.vmem %s2739, 8
            %s2886 = scalar_lea.vmem %s2885, 1
            %v2887 = vld [vmem:[%s2886] sm:$0x7f]
            %v2888 = vlaneseq
            %v2889 = vshrl.u32 %v2888, 7
            %vm2890 = vcmp.eq.s32.totalorder %v2889, 7
            %v2891 = vsel %vm2890, %v2883, %v2887
            %v2892 = vld [vmem:[%s2885] ss:$0 sm:$0xff]
            %2893 = vst [vmem:[%s2885] sm:$0xff] %v2891
            %s2894 = scalar_lea.vmem %s2739, 1
            %v2895 = vld [vmem:[%s2894] sm:$0x7f]
            %v2896 = vlaneseq
            %v2897 = vshrl.u32 %v2896, 7
            %vm2898 = vcmp.eq.s32.totalorder %v2897, 7
            %v2899 = vsel %vm2898, %v2892, %v2895
            %v2900 = vld [vmem:[%s2739] ss:$0 sm:$0xff]
            %2901 = vst [vmem:[%s2739] sm:$0xff] %v2899
            %s2902 = smov [#allocation16]
            %s2903 = smov [#allocation18]
            %v2904 = vld [vmem:[%s2902] ss:$0 sm:$0xff]
            %s2906 = scalar_lea.vmem %s2902, 4294967295
            %v2907 = vld [vmem:[%s2906] sm:$0xfe]
            %v2908 = vlaneseq
            %v2909 = vshrl.u32 %v2908, 7
            %vm2910 = vcmp.eq.s32.totalorder %v2909, 0
            %v2911 = vsel %vm2910, %v2904, %v2907
            %s2912 = scalar_lea.vmem %s2902, 7
            %v2913 = vld [vmem:[%s2912] ss:$0 sm:$0xff]
            %2914 = vst [vmem:[%s2902] sm:$0xff] %v2911
            %s2915 = scalar_lea.vmem %s2902, 8
            %s2917 = scalar_lea.vmem %s2915, 4294967295
            %v2918 = vld [vmem:[%s2917] sm:$0xfe]
            %v2919 = vlaneseq
            %v2920 = vshrl.u32 %v2919, 7
            %vm2921 = vcmp.eq.s32.totalorder %v2920, 0
            %v2922 = vsel %vm2921, %v2913, %v2918
            %s2923 = scalar_lea.vmem %s2915, 7
            %v2924 = vld [vmem:[%s2923] ss:$0 sm:$0xff]
            %2925 = vst [vmem:[%s2915] sm:$0xff] %v2922
            %s2926 = scalar_lea.vmem %s2902, 16
            %s2928 = scalar_lea.vmem %s2926, 4294967295
            %v2929 = vld [vmem:[%s2928] sm:$0xfe]
            %v2930 = vlaneseq
            %v2931 = vshrl.u32 %v2930, 7
            %vm2932 = vcmp.eq.s32.totalorder %v2931, 0
            %v2933 = vsel %vm2932, %v2924, %v2929
            %s2934 = scalar_lea.vmem %s2926, 7
            %v2935 = vld [vmem:[%s2934] ss:$0 sm:$0xff]
            %2936 = vst [vmem:[%s2926] sm:$0xff] %v2933
            %s2937 = scalar_lea.vmem %s2902, 24
            %s2939 = scalar_lea.vmem %s2937, 4294967295
            %v2940 = vld [vmem:[%s2939] sm:$0xfe]
            %v2941 = vlaneseq
            %v2942 = vshrl.u32 %v2941, 7
            %vm2943 = vcmp.eq.s32.totalorder %v2942, 0
            %v2944 = vsel %vm2943, %v2935, %v2940
            %s2945 = scalar_lea.vmem %s2937, 7
            %v2946 = vld [vmem:[%s2945] ss:$0 sm:$0xff]
            %2947 = vst [vmem:[%s2937] sm:$0xff] %v2944
            %s2948 = scalar_lea.vmem %s2902, 32
            %s2950 = scalar_lea.vmem %s2948, 4294967295
            %v2951 = vld [vmem:[%s2950] sm:$0xfe]
            %v2952 = vlaneseq
            %v2953 = vshrl.u32 %v2952, 7
            %vm2954 = vcmp.eq.s32.totalorder %v2953, 0
            %v2955 = vsel %vm2954, %v2946, %v2951
            %s2956 = scalar_lea.vmem %s2948, 7
            %v2957 = vld [vmem:[%s2956] ss:$0 sm:$0xff]
            %2958 = vst [vmem:[%s2948] sm:$0xff] %v2955
            %s2959 = scalar_lea.vmem %s2902, 40
            %s2961 = scalar_lea.vmem %s2959, 4294967295
            %v2962 = vld [vmem:[%s2961] sm:$0xfe]
            %v2963 = vlaneseq
            %v2964 = vshrl.u32 %v2963, 7
            %vm2965 = vcmp.eq.s32.totalorder %v2964, 0
            %v2966 = vsel %vm2965, %v2957, %v2962
            %s2967 = scalar_lea.vmem %s2959, 7
            %v2968 = vld [vmem:[%s2967] ss:$0 sm:$0xff]
            %2969 = vst [vmem:[%s2959] sm:$0xff] %v2966
            %s2970 = scalar_lea.vmem %s2902, 48
            %s2972 = scalar_lea.vmem %s2970, 4294967295
            %v2973 = vld [vmem:[%s2972] sm:$0xfe]
            %v2974 = vlaneseq
            %v2975 = vshrl.u32 %v2974, 7
            %vm2976 = vcmp.eq.s32.totalorder %v2975, 0
            %v2977 = vsel %vm2976, %v2968, %v2973
            %s2978 = scalar_lea.vmem %s2970, 7
            %v2979 = vld [vmem:[%s2978] ss:$0 sm:$0xff]
            %2980 = vst [vmem:[%s2970] sm:$0xff] %v2977
            %s2981 = scalar_lea.vmem %s2902, 56
            %s2983 = scalar_lea.vmem %s2981, 4294967295
            %v2984 = vld [vmem:[%s2983] sm:$0xfe]
            %v2985 = vlaneseq
            %v2986 = vshrl.u32 %v2985, 7
            %vm2987 = vcmp.eq.s32.totalorder %v2986, 0
            %v2988 = vsel %vm2987, %v2979, %v2984
            %s2989 = scalar_lea.vmem %s2981, 7
            %v2990 = vld [vmem:[%s2989] ss:$0 sm:$0xff]
            %2991 = vst [vmem:[%s2981] sm:$0xff] %v2988
            %v2992 = vld [vmem:[%s2903] ss:$0 sm:$0xff]
            %s2993 = scalar_lea.vmem %s2902, 1
            %2994 = vst [vmem:[%s2993] sm:$0x1] %v2992
            %s2995 = scalar_lea.vmem %s2903, 56
            %s2996 = scalar_lea.vmem %s2995, 1
            %v2997 = vld [vmem:[%s2996] sm:$0x7f]
            %v2998 = vlaneseq
            %v2999 = vshrl.u32 %v2998, 7
            %vm3000 = vcmp.eq.s32.totalorder %v2999, 7
            %v3001 = vsel %vm3000, %v2990, %v2997
            %v3002 = vld [vmem:[%s2995] ss:$0 sm:$0xff]
            %3003 = vst [vmem:[%s2995] sm:$0xff] %v3001
            %s3004 = scalar_lea.vmem %s2903, 48
            %s3005 = scalar_lea.vmem %s3004, 1
            %v3006 = vld [vmem:[%s3005] sm:$0x7f]
            %v3007 = vlaneseq
            %v3008 = vshrl.u32 %v3007, 7
            %vm3009 = vcmp.eq.s32.totalorder %v3008, 7
            %v3010 = vsel %vm3009, %v3002, %v3006
            %v3011 = vld [vmem:[%s3004] ss:$0 sm:$0xff]
            %3012 = vst [vmem:[%s3004] sm:$0xff] %v3010
            %s3013 = scalar_lea.vmem %s2903, 40
            %s3014 = scalar_lea.vmem %s3013, 1
            %v3015 = vld [vmem:[%s3014] sm:$0x7f]
            %v3016 = vlaneseq
            %v3017 = vshrl.u32 %v3016, 7
            %vm3018 = vcmp.eq.s32.totalorder %v3017, 7
            %v3019 = vsel %vm3018, %v3011, %v3015
            %v3020 = vld [vmem:[%s3013] ss:$0 sm:$0xff]
            %3021 = vst [vmem:[%s3013] sm:$0xff] %v3019
            %s3022 = scalar_lea.vmem %s2903, 32
            %s3023 = scalar_lea.vmem %s3022, 1
            %v3024 = vld [vmem:[%s3023] sm:$0x7f]
            %v3025 = vlaneseq
            %v3026 = vshrl.u32 %v3025, 7
            %vm3027 = vcmp.eq.s32.totalorder %v3026, 7
            %v3028 = vsel %vm3027, %v3020, %v3024
            %v3029 = vld [vmem:[%s3022] ss:$0 sm:$0xff]
            %3030 = vst [vmem:[%s3022] sm:$0xff] %v3028
            %s3031 = scalar_lea.vmem %s2903, 24
            %s3032 = scalar_lea.vmem %s3031, 1
            %v3033 = vld [vmem:[%s3032] sm:$0x7f]
            %v3034 = vlaneseq
            %v3035 = vshrl.u32 %v3034, 7
            %vm3036 = vcmp.eq.s32.totalorder %v3035, 7
            %v3037 = vsel %vm3036, %v3029, %v3033
            %v3038 = vld [vmem:[%s3031] ss:$0 sm:$0xff]
            %3039 = vst [vmem:[%s3031] sm:$0xff] %v3037
            %s3040 = scalar_lea.vmem %s2903, 16
            %s3041 = scalar_lea.vmem %s3040, 1
            %v3042 = vld [vmem:[%s3041] sm:$0x7f]
            %v3043 = vlaneseq
            %v3044 = vshrl.u32 %v3043, 7
            %vm3045 = vcmp.eq.s32.totalorder %v3044, 7
            %v3046 = vsel %vm3045, %v3038, %v3042
            %v3047 = vld [vmem:[%s3040] ss:$0 sm:$0xff]
            %3048 = vst [vmem:[%s3040] sm:$0xff] %v3046
            %s3049 = scalar_lea.vmem %s2903, 8
            %s3050 = scalar_lea.vmem %s3049, 1
            %v3051 = vld [vmem:[%s3050] sm:$0x7f]
            %v3052 = vlaneseq
            %v3053 = vshrl.u32 %v3052, 7
            %vm3054 = vcmp.eq.s32.totalorder %v3053, 7
            %v3055 = vsel %vm3054, %v3047, %v3051
            %v3056 = vld [vmem:[%s3049] ss:$0 sm:$0xff]
            %3057 = vst [vmem:[%s3049] sm:$0xff] %v3055
            %s3058 = scalar_lea.vmem %s2903, 1
            %v3059 = vld [vmem:[%s3058] sm:$0x7f]
            %v3060 = vlaneseq
            %v3061 = vshrl.u32 %v3060, 7
            %vm3062 = vcmp.eq.s32.totalorder %v3061, 7
            %v3063 = vsel %vm3062, %v3056, %v3059
            %v3064 = vld [vmem:[%s2903] ss:$0 sm:$0xff]
            %3065 = vst [vmem:[%s2903] sm:$0xff] %v3063
            %s3066 = smov [#allocation26]
            %v3067 = vld [vmem:[%s3066] sm:$0xff]
            %s3068 = smov [#allocation27]
            %v3069 = vld [vmem:[%s3068] sm:$0xff]
            %s3070 = smov %s299
            %s3071 = smov %s304
            %s3072 = smov %s309
            %s3073 = smov %s314
            %v3074 = vld [vmem:[%s3070] sm:$0xff]
            %v3075 = vld [vmem:[%s3071] sm:$0xff]
            %v3076 = vld [vmem:[%s3072] sm:$0xff]
            %v3077 = vld [vmem:[%s3073] sm:$0xff]
            %v3078 = vmul.f32 %v3067, %v3074
            %v3079 = vmul.f32 %v3069, %v3076
            %v3080 = vsub.f32 %v3078, %v3079
            %v3081 = vmul.f32 %v3067, %v3075
            %v3082 = vmul.f32 %v3069, %v3077
            %v3083 = vsub.f32 %v3081, %v3082
            %v3084 = vmul.f32 %v3069, %v3074
            %v3085 = vmul.f32 %v3067, %v3076
            %v3086 = vadd.f32 %v3084, %v3085
            %v3087 = vmul.f32 %v3069, %v3075
            %v3088 = vmul.f32 %v3067, %v3077
            %v3089 = vadd.f32 %v3087, %v3088
            %3090 = vst [vmem:[%s3070] sm:$0xff] %v3080
            %3091 = vst [vmem:[%s3071] sm:$0xff] %v3083
            %3092 = vst [vmem:[%s3072] sm:$0xff] %v3086
            %3093 = vst [vmem:[%s3073] sm:$0xff] %v3089
            %s3094 = smov [#allocation26]
            %s3095 = scalar_lea.vmem %s3094, 8
            %v3096 = vld [vmem:[%s3095] sm:$0xff]
            %s3097 = smov [#allocation27]
            %s3098 = scalar_lea.vmem %s3097, 8
            %v3099 = vld [vmem:[%s3098] sm:$0xff]
            %s3100 = smov %s299
            %s3101 = scalar_lea.vmem %s3100, 8
            %s3102 = smov %s304
            %s3103 = scalar_lea.vmem %s3102, 8
            %s3104 = smov %s309
            %s3105 = scalar_lea.vmem %s3104, 8
            %s3106 = smov %s314
            %s3107 = scalar_lea.vmem %s3106, 8
            %v3108 = vld [vmem:[%s3101] sm:$0xff]
            %v3109 = vld [vmem:[%s3103] sm:$0xff]
            %v3110 = vld [vmem:[%s3105] sm:$0xff]
            %v3111 = vld [vmem:[%s3107] sm:$0xff]
            %v3112 = vmul.f32 %v3096, %v3108
            %v3113 = vmul.f32 %v3099, %v3110
            %v3114 = vsub.f32 %v3112, %v3113
            %v3115 = vmul.f32 %v3096, %v3109
            %v3116 = vmul.f32 %v3099, %v3111
            %v3117 = vsub.f32 %v3115, %v3116
            %v3118 = vmul.f32 %v3099, %v3108
            %v3119 = vmul.f32 %v3096, %v3110
            %v3120 = vadd.f32 %v3118, %v3119
            %v3121 = vmul.f32 %v3099, %v3109
            %v3122 = vmul.f32 %v3096, %v3111
            %v3123 = vadd.f32 %v3121, %v3122
            %3124 = vst [vmem:[%s3101] sm:$0xff] %v3114
            %3125 = vst [vmem:[%s3103] sm:$0xff] %v3117
            %3126 = vst [vmem:[%s3105] sm:$0xff] %v3120
            %3127 = vst [vmem:[%s3107] sm:$0xff] %v3123
            %s3128 = smov [#allocation26]
            %s3129 = scalar_lea.vmem %s3128, 16
            %v3130 = vld [vmem:[%s3129] sm:$0xff]
            %s3131 = smov [#allocation27]
            %s3132 = scalar_lea.vmem %s3131, 16
            %v3133 = vld [vmem:[%s3132] sm:$0xff]
            %s3134 = smov %s299
            %s3135 = scalar_lea.vmem %s3134, 16
            %s3136 = smov %s304
            %s3137 = scalar_lea.vmem %s3136, 16
            %s3138 = smov %s309
            %s3139 = scalar_lea.vmem %s3138, 16
            %s3140 = smov %s314
            %s3141 = scalar_lea.vmem %s3140, 16
            %v3142 = vld [vmem:[%s3135] sm:$0xff]
            %v3143 = vld [vmem:[%s3137] sm:$0xff]
            %v3144 = vld [vmem:[%s3139] sm:$0xff]
            %v3145 = vld [vmem:[%s3141] sm:$0xff]
            %v3146 = vmul.f32 %v3130, %v3142
            %v3147 = vmul.f32 %v3133, %v3144
            %v3148 = vsub.f32 %v3146, %v3147
            %v3149 = vmul.f32 %v3130, %v3143
            %v3150 = vmul.f32 %v3133, %v3145
            %v3151 = vsub.f32 %v3149, %v3150
            %v3152 = vmul.f32 %v3133, %v3142
            %v3153 = vmul.f32 %v3130, %v3144
            %v3154 = vadd.f32 %v3152, %v3153
            %v3155 = vmul.f32 %v3133, %v3143
            %v3156 = vmul.f32 %v3130, %v3145
            %v3157 = vadd.f32 %v3155, %v3156
            %3158 = vst [vmem:[%s3135] sm:$0xff] %v3148
            %3159 = vst [vmem:[%s3137] sm:$0xff] %v3151
            %3160 = vst [vmem:[%s3139] sm:$0xff] %v3154
            %3161 = vst [vmem:[%s3141] sm:$0xff] %v3157
            %s3162 = smov [#allocation26]
            %s3163 = scalar_lea.vmem %s3162, 24
            %v3164 = vld [vmem:[%s3163] sm:$0xff]
            %s3165 = smov [#allocation27]
            %s3166 = scalar_lea.vmem %s3165, 24
            %v3167 = vld [vmem:[%s3166] sm:$0xff]
            %s3168 = smov %s299
            %s3169 = scalar_lea.vmem %s3168, 24
            %s3170 = smov %s304
            %s3171 = scalar_lea.vmem %s3170, 24
            %s3172 = smov %s309
            %s3173 = scalar_lea.vmem %s3172, 24
            %s3174 = smov %s314
            %s3175 = scalar_lea.vmem %s3174, 24
            %v3176 = vld [vmem:[%s3169] sm:$0xff]
            %v3177 = vld [vmem:[%s3171] sm:$0xff]
            %v3178 = vld [vmem:[%s3173] sm:$0xff]
            %v3179 = vld [vmem:[%s3175] sm:$0xff]
            %v3180 = vmul.f32 %v3164, %v3176
            %v3181 = vmul.f32 %v3167, %v3178
            %v3182 = vsub.f32 %v3180, %v3181
            %v3183 = vmul.f32 %v3164, %v3177
            %v3184 = vmul.f32 %v3167, %v3179
            %v3185 = vsub.f32 %v3183, %v3184
            %v3186 = vmul.f32 %v3167, %v3176
            %v3187 = vmul.f32 %v3164, %v3178
            %v3188 = vadd.f32 %v3186, %v3187
            %v3189 = vmul.f32 %v3167, %v3177
            %v3190 = vmul.f32 %v3164, %v3179
            %v3191 = vadd.f32 %v3189, %v3190
            %3192 = vst [vmem:[%s3169] sm:$0xff] %v3182
            %3193 = vst [vmem:[%s3171] sm:$0xff] %v3185
            %3194 = vst [vmem:[%s3173] sm:$0xff] %v3188
            %3195 = vst [vmem:[%s3175] sm:$0xff] %v3191
            %s3196 = smov [#allocation26]
            %s3197 = scalar_lea.vmem %s3196, 32
            %v3198 = vld [vmem:[%s3197] sm:$0xff]
            %s3199 = smov [#allocation27]
            %s3200 = scalar_lea.vmem %s3199, 32
            %v3201 = vld [vmem:[%s3200] sm:$0xff]
            %s3202 = smov %s299
            %s3203 = scalar_lea.vmem %s3202, 32
            %s3204 = smov %s304
            %s3205 = scalar_lea.vmem %s3204, 32
            %s3206 = smov %s309
            %s3207 = scalar_lea.vmem %s3206, 32
            %s3208 = smov %s314
            %s3209 = scalar_lea.vmem %s3208, 32
            %v3210 = vld [vmem:[%s3203] sm:$0xff]
            %v3211 = vld [vmem:[%s3205] sm:$0xff]
            %v3212 = vld [vmem:[%s3207] sm:$0xff]
            %v3213 = vld [vmem:[%s3209] sm:$0xff]
            %v3214 = vmul.f32 %v3198, %v3210
            %v3215 = vmul.f32 %v3201, %v3212
            %v3216 = vsub.f32 %v3214, %v3215
            %v3217 = vmul.f32 %v3198, %v3211
            %v3218 = vmul.f32 %v3201, %v3213
            %v3219 = vsub.f32 %v3217, %v3218
            %v3220 = vmul.f32 %v3201, %v3210
            %v3221 = vmul.f32 %v3198, %v3212
            %v3222 = vadd.f32 %v3220, %v3221
            %v3223 = vmul.f32 %v3201, %v3211
            %v3224 = vmul.f32 %v3198, %v3213
            %v3225 = vadd.f32 %v3223, %v3224
            %3226 = vst [vmem:[%s3203] sm:$0xff] %v3216
            %3227 = vst [vmem:[%s3205] sm:$0xff] %v3219
            %3228 = vst [vmem:[%s3207] sm:$0xff] %v3222
            %3229 = vst [vmem:[%s3209] sm:$0xff] %v3225
            %s3230 = smov [#allocation26]
            %s3231 = scalar_lea.vmem %s3230, 40
            %v3232 = vld [vmem:[%s3231] sm:$0xff]
            %s3233 = smov [#allocation27]
            %s3234 = scalar_lea.vmem %s3233, 40
            %v3235 = vld [vmem:[%s3234] sm:$0xff]
            %s3236 = smov %s299
            %s3237 = scalar_lea.vmem %s3236, 40
            %s3238 = smov %s304
            %s3239 = scalar_lea.vmem %s3238, 40
            %s3240 = smov %s309
            %s3241 = scalar_lea.vmem %s3240, 40
            %s3242 = smov %s314
            %s3243 = scalar_lea.vmem %s3242, 40
            %v3244 = vld [vmem:[%s3237] sm:$0xff]
            %v3245 = vld [vmem:[%s3239] sm:$0xff]
            %v3246 = vld [vmem:[%s3241] sm:$0xff]
            %v3247 = vld [vmem:[%s3243] sm:$0xff]
            %v3248 = vmul.f32 %v3232, %v3244
            %v3249 = vmul.f32 %v3235, %v3246
            %v3250 = vsub.f32 %v3248, %v3249
            %v3251 = vmul.f32 %v3232, %v3245
            %v3252 = vmul.f32 %v3235, %v3247
            %v3253 = vsub.f32 %v3251, %v3252
            %v3254 = vmul.f32 %v3235, %v3244
            %v3255 = vmul.f32 %v3232, %v3246
            %v3256 = vadd.f32 %v3254, %v3255
            %v3257 = vmul.f32 %v3235, %v3245
            %v3258 = vmul.f32 %v3232, %v3247
            %v3259 = vadd.f32 %v3257, %v3258
            %3260 = vst [vmem:[%s3237] sm:$0xff] %v3250
            %3261 = vst [vmem:[%s3239] sm:$0xff] %v3253
            %3262 = vst [vmem:[%s3241] sm:$0xff] %v3256
            %3263 = vst [vmem:[%s3243] sm:$0xff] %v3259
            %s3264 = smov [#allocation26]
            %s3265 = scalar_lea.vmem %s3264, 48
            %v3266 = vld [vmem:[%s3265] sm:$0xff]
            %s3267 = smov [#allocation27]
            %s3268 = scalar_lea.vmem %s3267, 48
            %v3269 = vld [vmem:[%s3268] sm:$0xff]
            %s3270 = smov %s299
            %s3271 = scalar_lea.vmem %s3270, 48
            %s3272 = smov %s304
            %s3273 = scalar_lea.vmem %s3272, 48
            %s3274 = smov %s309
            %s3275 = scalar_lea.vmem %s3274, 48
            %s3276 = smov %s314
            %s3277 = scalar_lea.vmem %s3276, 48
            %v3278 = vld [vmem:[%s3271] sm:$0xff]
            %v3279 = vld [vmem:[%s3273] sm:$0xff]
            %v3280 = vld [vmem:[%s3275] sm:$0xff]
            %v3281 = vld [vmem:[%s3277] sm:$0xff]
            %v3282 = vmul.f32 %v3266, %v3278
            %v3283 = vmul.f32 %v3269, %v3280
            %v3284 = vsub.f32 %v3282, %v3283
            %v3285 = vmul.f32 %v3266, %v3279
            %v3286 = vmul.f32 %v3269, %v3281
            %v3287 = vsub.f32 %v3285, %v3286
            %v3288 = vmul.f32 %v3269, %v3278
            %v3289 = vmul.f32 %v3266, %v3280
            %v3290 = vadd.f32 %v3288, %v3289
            %v3291 = vmul.f32 %v3269, %v3279
            %v3292 = vmul.f32 %v3266, %v3281
            %v3293 = vadd.f32 %v3291, %v3292
            %3294 = vst [vmem:[%s3271] sm:$0xff] %v3284
            %3295 = vst [vmem:[%s3273] sm:$0xff] %v3287
            %3296 = vst [vmem:[%s3275] sm:$0xff] %v3290
            %3297 = vst [vmem:[%s3277] sm:$0xff] %v3293
            %s3298 = smov [#allocation26]
            %s3299 = scalar_lea.vmem %s3298, 56
            %v3300 = vld [vmem:[%s3299] sm:$0xff]
            %s3301 = smov [#allocation27]
            %s3302 = scalar_lea.vmem %s3301, 56
            %v3303 = vld [vmem:[%s3302] sm:$0xff]
            %s3304 = smov %s299
            %s3305 = scalar_lea.vmem %s3304, 56
            %s3306 = smov %s304
            %s3307 = scalar_lea.vmem %s3306, 56
            %s3308 = smov %s309
            %s3309 = scalar_lea.vmem %s3308, 56
            %s3310 = smov %s314
            %s3311 = scalar_lea.vmem %s3310, 56
            %v3312 = vld [vmem:[%s3305] sm:$0xff]
            %v3313 = vld [vmem:[%s3307] sm:$0xff]
            %v3314 = vld [vmem:[%s3309] sm:$0xff]
            %v3315 = vld [vmem:[%s3311] sm:$0xff]
            %v3316 = vmul.f32 %v3300, %v3312
            %v3317 = vmul.f32 %v3303, %v3314
            %v3318 = vsub.f32 %v3316, %v3317
            %v3319 = vmul.f32 %v3300, %v3313
            %v3320 = vmul.f32 %v3303, %v3315
            %v3321 = vsub.f32 %v3319, %v3320
            %v3322 = vmul.f32 %v3303, %v3312
            %v3323 = vmul.f32 %v3300, %v3314
            %v3324 = vadd.f32 %v3322, %v3323
            %v3325 = vmul.f32 %v3303, %v3313
            %v3326 = vmul.f32 %v3300, %v3315
            %v3327 = vadd.f32 %v3325, %v3326
            %3328 = vst [vmem:[%s3305] sm:$0xff] %v3318
            %3329 = vst [vmem:[%s3307] sm:$0xff] %v3321
            %3330 = vst [vmem:[%s3309] sm:$0xff] %v3324
            %3331 = vst [vmem:[%s3311] sm:$0xff] %v3327
            %s3332 = smov %s299
            %s3333 = smov %s309
            %v3334 = vld [vmem:[%s3332] ss:$0 sm:$0xff]
            %s3336 = scalar_lea.vmem %s3332, 4294967295
            %v3337 = vld [vmem:[%s3336] sm:$0xfe]
            %v3338 = vlaneseq
            %v3339 = vshrl.u32 %v3338, 7
            %vm3340 = vcmp.eq.s32.totalorder %v3339, 0
            %v3341 = vsel %vm3340, %v3334, %v3337
            %s3342 = scalar_lea.vmem %s3332, 7
            %v3343 = vld [vmem:[%s3342] ss:$0 sm:$0xff]
            %3344 = vst [vmem:[%s3332] sm:$0xff] %v3341
            %s3345 = scalar_lea.vmem %s3332, 8
            %s3347 = scalar_lea.vmem %s3345, 4294967295
            %v3348 = vld [vmem:[%s3347] sm:$0xfe]
            %v3349 = vlaneseq
            %v3350 = vshrl.u32 %v3349, 7
            %vm3351 = vcmp.eq.s32.totalorder %v3350, 0
            %v3352 = vsel %vm3351, %v3343, %v3348
            %s3353 = scalar_lea.vmem %s3345, 7
            %v3354 = vld [vmem:[%s3353] ss:$0 sm:$0xff]
            %3355 = vst [vmem:[%s3345] sm:$0xff] %v3352
            %s3356 = scalar_lea.vmem %s3332, 16
            %s3358 = scalar_lea.vmem %s3356, 4294967295
            %v3359 = vld [vmem:[%s3358] sm:$0xfe]
            %v3360 = vlaneseq
            %v3361 = vshrl.u32 %v3360, 7
            %vm3362 = vcmp.eq.s32.totalorder %v3361, 0
            %v3363 = vsel %vm3362, %v3354, %v3359
            %s3364 = scalar_lea.vmem %s3356, 7
            %v3365 = vld [vmem:[%s3364] ss:$0 sm:$0xff]
            %3366 = vst [vmem:[%s3356] sm:$0xff] %v3363
            %s3367 = scalar_lea.vmem %s3332, 24
            %s3369 = scalar_lea.vmem %s3367, 4294967295
            %v3370 = vld [vmem:[%s3369] sm:$0xfe]
            %v3371 = vlaneseq
            %v3372 = vshrl.u32 %v3371, 7
            %vm3373 = vcmp.eq.s32.totalorder %v3372, 0
            %v3374 = vsel %vm3373, %v3365, %v3370
            %s3375 = scalar_lea.vmem %s3367, 7
            %v3376 = vld [vmem:[%s3375] ss:$0 sm:$0xff]
            %3377 = vst [vmem:[%s3367] sm:$0xff] %v3374
            %s3378 = scalar_lea.vmem %s3332, 32
            %s3380 = scalar_lea.vmem %s3378, 4294967295
            %v3381 = vld [vmem:[%s3380] sm:$0xfe]
            %v3382 = vlaneseq
            %v3383 = vshrl.u32 %v3382, 7
            %vm3384 = vcmp.eq.s32.totalorder %v3383, 0
            %v3385 = vsel %vm3384, %v3376, %v3381
            %s3386 = scalar_lea.vmem %s3378, 7
            %v3387 = vld [vmem:[%s3386] ss:$0 sm:$0xff]
            %3388 = vst [vmem:[%s3378] sm:$0xff] %v3385
            %s3389 = scalar_lea.vmem %s3332, 40
            %s3391 = scalar_lea.vmem %s3389, 4294967295
            %v3392 = vld [vmem:[%s3391] sm:$0xfe]
            %v3393 = vlaneseq
            %v3394 = vshrl.u32 %v3393, 7
            %vm3395 = vcmp.eq.s32.totalorder %v3394, 0
            %v3396 = vsel %vm3395, %v3387, %v3392
            %s3397 = scalar_lea.vmem %s3389, 7
            %v3398 = vld [vmem:[%s3397] ss:$0 sm:$0xff]
            %3399 = vst [vmem:[%s3389] sm:$0xff] %v3396
            %s3400 = scalar_lea.vmem %s3332, 48
            %s3402 = scalar_lea.vmem %s3400, 4294967295
            %v3403 = vld [vmem:[%s3402] sm:$0xfe]
            %v3404 = vlaneseq
            %v3405 = vshrl.u32 %v3404, 7
            %vm3406 = vcmp.eq.s32.totalorder %v3405, 0
            %v3407 = vsel %vm3406, %v3398, %v3403
            %s3408 = scalar_lea.vmem %s3400, 7
            %v3409 = vld [vmem:[%s3408] ss:$0 sm:$0xff]
            %3410 = vst [vmem:[%s3400] sm:$0xff] %v3407
            %s3411 = scalar_lea.vmem %s3332, 56
            %s3413 = scalar_lea.vmem %s3411, 4294967295
            %v3414 = vld [vmem:[%s3413] sm:$0xfe]
            %v3415 = vlaneseq
            %v3416 = vshrl.u32 %v3415, 7
            %vm3417 = vcmp.eq.s32.totalorder %v3416, 0
            %v3418 = vsel %vm3417, %v3409, %v3414
            %s3419 = scalar_lea.vmem %s3411, 7
            %v3420 = vld [vmem:[%s3419] ss:$0 sm:$0xff]
            %3421 = vst [vmem:[%s3411] sm:$0xff] %v3418
            %v3422 = vld [vmem:[%s3333] ss:$0 sm:$0xff]
            %s3423 = scalar_lea.vmem %s3332, 1
            %3424 = vst [vmem:[%s3423] sm:$0x1] %v3422
            %s3425 = scalar_lea.vmem %s3333, 56
            %s3426 = scalar_lea.vmem %s3425, 1
            %v3427 = vld [vmem:[%s3426] sm:$0x7f]
            %v3428 = vlaneseq
            %v3429 = vshrl.u32 %v3428, 7
            %vm3430 = vcmp.eq.s32.totalorder %v3429, 7
            %v3431 = vsel %vm3430, %v3420, %v3427
            %v3432 = vld [vmem:[%s3425] ss:$0 sm:$0xff]
            %3433 = vst [vmem:[%s3425] sm:$0xff] %v3431
            %s3434 = scalar_lea.vmem %s3333, 48
            %s3435 = scalar_lea.vmem %s3434, 1
            %v3436 = vld [vmem:[%s3435] sm:$0x7f]
            %v3437 = vlaneseq
            %v3438 = vshrl.u32 %v3437, 7
            %vm3439 = vcmp.eq.s32.totalorder %v3438, 7
            %v3440 = vsel %vm3439, %v3432, %v3436
            %v3441 = vld [vmem:[%s3434] ss:$0 sm:$0xff]
            %3442 = vst [vmem:[%s3434] sm:$0xff] %v3440
            %s3443 = scalar_lea.vmem %s3333, 40
            %s3444 = scalar_lea.vmem %s3443, 1
            %v3445 = vld [vmem:[%s3444] sm:$0x7f]
            %v3446 = vlaneseq
            %v3447 = vshrl.u32 %v3446, 7
            %vm3448 = vcmp.eq.s32.totalorder %v3447, 7
            %v3449 = vsel %vm3448, %v3441, %v3445
            %v3450 = vld [vmem:[%s3443] ss:$0 sm:$0xff]
            %3451 = vst [vmem:[%s3443] sm:$0xff] %v3449
            %s3452 = scalar_lea.vmem %s3333, 32
            %s3453 = scalar_lea.vmem %s3452, 1
            %v3454 = vld [vmem:[%s3453] sm:$0x7f]
            %v3455 = vlaneseq
            %v3456 = vshrl.u32 %v3455, 7
            %vm3457 = vcmp.eq.s32.totalorder %v3456, 7
            %v3458 = vsel %vm3457, %v3450, %v3454
            %v3459 = vld [vmem:[%s3452] ss:$0 sm:$0xff]
            %3460 = vst [vmem:[%s3452] sm:$0xff] %v3458
            %s3461 = scalar_lea.vmem %s3333, 24
            %s3462 = scalar_lea.vmem %s3461, 1
            %v3463 = vld [vmem:[%s3462] sm:$0x7f]
            %v3464 = vlaneseq
            %v3465 = vshrl.u32 %v3464, 7
            %vm3466 = vcmp.eq.s32.totalorder %v3465, 7
            %v3467 = vsel %vm3466, %v3459, %v3463
            %v3468 = vld [vmem:[%s3461] ss:$0 sm:$0xff]
            %3469 = vst [vmem:[%s3461] sm:$0xff] %v3467
            %s3470 = scalar_lea.vmem %s3333, 16
            %s3471 = scalar_lea.vmem %s3470, 1
            %v3472 = vld [vmem:[%s3471] sm:$0x7f]
            %v3473 = vlaneseq
            %v3474 = vshrl.u32 %v3473, 7
            %vm3475 = vcmp.eq.s32.totalorder %v3474, 7
            %v3476 = vsel %vm3475, %v3468, %v3472
            %v3477 = vld [vmem:[%s3470] ss:$0 sm:$0xff]
            %3478 = vst [vmem:[%s3470] sm:$0xff] %v3476
            %s3479 = scalar_lea.vmem %s3333, 8
            %s3480 = scalar_lea.vmem %s3479, 1
            %v3481 = vld [vmem:[%s3480] sm:$0x7f]
            %v3482 = vlaneseq
            %v3483 = vshrl.u32 %v3482, 7
            %vm3484 = vcmp.eq.s32.totalorder %v3483, 7
            %v3485 = vsel %vm3484, %v3477, %v3481
            %v3486 = vld [vmem:[%s3479] ss:$0 sm:$0xff]
            %3487 = vst [vmem:[%s3479] sm:$0xff] %v3485
            %s3488 = scalar_lea.vmem %s3333, 1
            %v3489 = vld [vmem:[%s3488] sm:$0x7f]
            %v3490 = vlaneseq
            %v3491 = vshrl.u32 %v3490, 7
            %vm3492 = vcmp.eq.s32.totalorder %v3491, 7
            %v3493 = vsel %vm3492, %v3486, %v3489
            %v3494 = vld [vmem:[%s3333] ss:$0 sm:$0xff]
            %3495 = vst [vmem:[%s3333] sm:$0xff] %v3493
            %s3496 = smov %s304
            %s3497 = smov %s314
            %v3498 = vld [vmem:[%s3496] ss:$0 sm:$0xff]
            %s3500 = scalar_lea.vmem %s3496, 4294967295
            %v3501 = vld [vmem:[%s3500] sm:$0xfe]
            %v3502 = vlaneseq
            %v3503 = vshrl.u32 %v3502, 7
            %vm3504 = vcmp.eq.s32.totalorder %v3503, 0
            %v3505 = vsel %vm3504, %v3498, %v3501
            %s3506 = scalar_lea.vmem %s3496, 7
            %v3507 = vld [vmem:[%s3506] ss:$0 sm:$0xff]
            %3508 = vst [vmem:[%s3496] sm:$0xff] %v3505
            %s3509 = scalar_lea.vmem %s3496, 8
            %s3511 = scalar_lea.vmem %s3509, 4294967295
            %v3512 = vld [vmem:[%s3511] sm:$0xfe]
            %v3513 = vlaneseq
            %v3514 = vshrl.u32 %v3513, 7
            %vm3515 = vcmp.eq.s32.totalorder %v3514, 0
            %v3516 = vsel %vm3515, %v3507, %v3512
            %s3517 = scalar_lea.vmem %s3509, 7
            %v3518 = vld [vmem:[%s3517] ss:$0 sm:$0xff]
            %3519 = vst [vmem:[%s3509] sm:$0xff] %v3516
            %s3520 = scalar_lea.vmem %s3496, 16
            %s3522 = scalar_lea.vmem %s3520, 4294967295
            %v3523 = vld [vmem:[%s3522] sm:$0xfe]
            %v3524 = vlaneseq
            %v3525 = vshrl.u32 %v3524, 7
            %vm3526 = vcmp.eq.s32.totalorder %v3525, 0
            %v3527 = vsel %vm3526, %v3518, %v3523
            %s3528 = scalar_lea.vmem %s3520, 7
            %v3529 = vld [vmem:[%s3528] ss:$0 sm:$0xff]
            %3530 = vst [vmem:[%s3520] sm:$0xff] %v3527
            %s3531 = scalar_lea.vmem %s3496, 24
            %s3533 = scalar_lea.vmem %s3531, 4294967295
            %v3534 = vld [vmem:[%s3533] sm:$0xfe]
            %v3535 = vlaneseq
            %v3536 = vshrl.u32 %v3535, 7
            %vm3537 = vcmp.eq.s32.totalorder %v3536, 0
            %v3538 = vsel %vm3537, %v3529, %v3534
            %s3539 = scalar_lea.vmem %s3531, 7
            %v3540 = vld [vmem:[%s3539] ss:$0 sm:$0xff]
            %3541 = vst [vmem:[%s3531] sm:$0xff] %v3538
            %s3542 = scalar_lea.vmem %s3496, 32
            %s3544 = scalar_lea.vmem %s3542, 4294967295
            %v3545 = vld [vmem:[%s3544] sm:$0xfe]
            %v3546 = vlaneseq
            %v3547 = vshrl.u32 %v3546, 7
            %vm3548 = vcmp.eq.s32.totalorder %v3547, 0
            %v3549 = vsel %vm3548, %v3540, %v3545
            %s3550 = scalar_lea.vmem %s3542, 7
            %v3551 = vld [vmem:[%s3550] ss:$0 sm:$0xff]
            %3552 = vst [vmem:[%s3542] sm:$0xff] %v3549
            %s3553 = scalar_lea.vmem %s3496, 40
            %s3555 = scalar_lea.vmem %s3553, 4294967295
            %v3556 = vld [vmem:[%s3555] sm:$0xfe]
            %v3557 = vlaneseq
            %v3558 = vshrl.u32 %v3557, 7
            %vm3559 = vcmp.eq.s32.totalorder %v3558, 0
            %v3560 = vsel %vm3559, %v3551, %v3556
            %s3561 = scalar_lea.vmem %s3553, 7
            %v3562 = vld [vmem:[%s3561] ss:$0 sm:$0xff]
            %3563 = vst [vmem:[%s3553] sm:$0xff] %v3560
            %s3564 = scalar_lea.vmem %s3496, 48
            %s3566 = scalar_lea.vmem %s3564, 4294967295
            %v3567 = vld [vmem:[%s3566] sm:$0xfe]
            %v3568 = vlaneseq
            %v3569 = vshrl.u32 %v3568, 7
            %vm3570 = vcmp.eq.s32.totalorder %v3569, 0
            %v3571 = vsel %vm3570, %v3562, %v3567
            %s3572 = scalar_lea.vmem %s3564, 7
            %v3573 = vld [vmem:[%s3572] ss:$0 sm:$0xff]
            %3574 = vst [vmem:[%s3564] sm:$0xff] %v3571
            %s3575 = scalar_lea.vmem %s3496, 56
            %s3577 = scalar_lea.vmem %s3575, 4294967295
            %v3578 = vld [vmem:[%s3577] sm:$0xfe]
            %v3579 = vlaneseq
            %v3580 = vshrl.u32 %v3579, 7
            %vm3581 = vcmp.eq.s32.totalorder %v3580, 0
            %v3582 = vsel %vm3581, %v3573, %v3578
            %s3583 = scalar_lea.vmem %s3575, 7
            %v3584 = vld [vmem:[%s3583] ss:$0 sm:$0xff]
            %3585 = vst [vmem:[%s3575] sm:$0xff] %v3582
            %v3586 = vld [vmem:[%s3497] ss:$0 sm:$0xff]
            %s3587 = scalar_lea.vmem %s3496, 1
            %3588 = vst [vmem:[%s3587] sm:$0x1] %v3586
            %s3589 = scalar_lea.vmem %s3497, 56
            %s3590 = scalar_lea.vmem %s3589, 1
            %v3591 = vld [vmem:[%s3590] sm:$0x7f]
            %v3592 = vlaneseq
            %v3593 = vshrl.u32 %v3592, 7
            %vm3594 = vcmp.eq.s32.totalorder %v3593, 7
            %v3595 = vsel %vm3594, %v3584, %v3591
            %v3596 = vld [vmem:[%s3589] ss:$0 sm:$0xff]
            %3597 = vst [vmem:[%s3589] sm:$0xff] %v3595
            %s3598 = scalar_lea.vmem %s3497, 48
            %s3599 = scalar_lea.vmem %s3598, 1
            %v3600 = vld [vmem:[%s3599] sm:$0x7f]
            %v3601 = vlaneseq
            %v3602 = vshrl.u32 %v3601, 7
            %vm3603 = vcmp.eq.s32.totalorder %v3602, 7
            %v3604 = vsel %vm3603, %v3596, %v3600
            %v3605 = vld [vmem:[%s3598] ss:$0 sm:$0xff]
            %3606 = vst [vmem:[%s3598] sm:$0xff] %v3604
            %s3607 = scalar_lea.vmem %s3497, 40
            %s3608 = scalar_lea.vmem %s3607, 1
            %v3609 = vld [vmem:[%s3608] sm:$0x7f]
            %v3610 = vlaneseq
            %v3611 = vshrl.u32 %v3610, 7
            %vm3612 = vcmp.eq.s32.totalorder %v3611, 7
            %v3613 = vsel %vm3612, %v3605, %v3609
            %v3614 = vld [vmem:[%s3607] ss:$0 sm:$0xff]
            %3615 = vst [vmem:[%s3607] sm:$0xff] %v3613
            %s3616 = scalar_lea.vmem %s3497, 32
            %s3617 = scalar_lea.vmem %s3616, 1
            %v3618 = vld [vmem:[%s3617] sm:$0x7f]
            %v3619 = vlaneseq
            %v3620 = vshrl.u32 %v3619, 7
            %vm3621 = vcmp.eq.s32.totalorder %v3620, 7
            %v3622 = vsel %vm3621, %v3614, %v3618
            %v3623 = vld [vmem:[%s3616] ss:$0 sm:$0xff]
            %3624 = vst [vmem:[%s3616] sm:$0xff] %v3622
            %s3625 = scalar_lea.vmem %s3497, 24
            %s3626 = scalar_lea.vmem %s3625, 1
            %v3627 = vld [vmem:[%s3626] sm:$0x7f]
            %v3628 = vlaneseq
            %v3629 = vshrl.u32 %v3628, 7
            %vm3630 = vcmp.eq.s32.totalorder %v3629, 7
            %v3631 = vsel %vm3630, %v3623, %v3627
            %v3632 = vld [vmem:[%s3625] ss:$0 sm:$0xff]
            %3633 = vst [vmem:[%s3625] sm:$0xff] %v3631
            %s3634 = scalar_lea.vmem %s3497, 16
            %s3635 = scalar_lea.vmem %s3634, 1
            %v3636 = vld [vmem:[%s3635] sm:$0x7f]
            %v3637 = vlaneseq
            %v3638 = vshrl.u32 %v3637, 7
            %vm3639 = vcmp.eq.s32.totalorder %v3638, 7
            %v3640 = vsel %vm3639, %v3632, %v3636
            %v3641 = vld [vmem:[%s3634] ss:$0 sm:$0xff]
            %3642 = vst [vmem:[%s3634] sm:$0xff] %v3640
            %s3643 = scalar_lea.vmem %s3497, 8
            %s3644 = scalar_lea.vmem %s3643, 1
            %v3645 = vld [vmem:[%s3644] sm:$0x7f]
            %v3646 = vlaneseq
            %v3647 = vshrl.u32 %v3646, 7
            %vm3648 = vcmp.eq.s32.totalorder %v3647, 7
            %v3649 = vsel %vm3648, %v3641, %v3645
            %v3650 = vld [vmem:[%s3643] ss:$0 sm:$0xff]
            %3651 = vst [vmem:[%s3643] sm:$0xff] %v3649
            %s3652 = scalar_lea.vmem %s3497, 1
            %v3653 = vld [vmem:[%s3652] sm:$0x7f]
            %v3654 = vlaneseq
            %v3655 = vshrl.u32 %v3654, 7
            %vm3656 = vcmp.eq.s32.totalorder %v3655, 7
            %v3657 = vsel %vm3656, %v3650, %v3653
            %v3658 = vld [vmem:[%s3497] ss:$0 sm:$0xff]
            %3659 = vst [vmem:[%s3497] sm:$0xff] %v3657
          $region108: #{custom-call.3} parent=100 // loop_footer
            %s952 = sadd.s32 1, %s948
          $region109: #{custom-call.3} parent=100 // loop_footer_branch
            %947 = sbr.rel target = $region105
          $region110: #{custom-call.3} parent=100 // loop_exit
            _
          %s3660 = sadd.s32 %s626, 1
        $region101: #{custom-call.3} parent=95 // loop_footer
          _
        $region102: #{custom-call.3} parent=95 // loop_footer_branch
          %625 = sbr.rel target = $region98
        $region103: #{custom-call.3} parent=95 // loop_exit
          _
        %s3663 = sand.u32 %s26, 7
        %s3664 = scalar_lea.vmem [#allocation4], %s3663
        %s3665 = sand.u32 %s26, 7
        %s3666 = scalar_lea.vmem [#allocation6], %s3665
        %s3667 = smov [#allocation15]
        %s3668 = smov %s3664
        %v3669 = vlaneseq
        %v3670 = vand.u32 %v3669, 127
        %v3671 = vmov %v3670
        %v3672 = vlaneseq
        %v3673 = vshrl.u32 %v3672, 7
        %v3674 = vmov %v3673
        %v3675 = vld [vmem:[%s3667] sm:$0xff]
        %vm3678 = vcmp.eq.s32.totalorder %v3674, %v3671
        %v3679 = vsel %vm3678, %v3675, 0.0
        %s3680 = scalar_lea.vmem %s3667, 8
        %v3681 = vld [vmem:[%s3680] sm:$0xff]
        %v3683 = vadd.s32 %v3674, 8
        %vm3684 = vcmp.eq.s32.totalorder %v3683, %v3671
        %v3685 = vsel %vm3684, %v3681, %v3679
        %s3686 = scalar_lea.vmem %s3667, 16
        %v3687 = vld [vmem:[%s3686] sm:$0xff]
        %v3689 = vadd.s32 %v3674, 16
        %vm3690 = vcmp.eq.s32.totalorder %v3689, %v3671
        %v3691 = vsel %vm3690, %v3687, %v3685
        %s3692 = scalar_lea.vmem %s3667, 24
        %v3693 = vld [vmem:[%s3692] sm:$0xff]
        %v3695 = vadd.s32 %v3674, 24
        %vm3696 = vcmp.eq.s32.totalorder %v3695, %v3671
        %v3697 = vsel %vm3696, %v3693, %v3691
        %s3698 = scalar_lea.vmem %s3667, 32
        %v3699 = vld [vmem:[%s3698] sm:$0xff]
        %v3701 = vadd.s32 %v3674, 32
        %vm3702 = vcmp.eq.s32.totalorder %v3701, %v3671
        %v3703 = vsel %vm3702, %v3699, %v3697
        %s3704 = scalar_lea.vmem %s3667, 40
        %v3705 = vld [vmem:[%s3704] sm:$0xff]
        %v3707 = vadd.s32 %v3674, 40
        %vm3708 = vcmp.eq.s32.totalorder %v3707, %v3671
        %v3709 = vsel %vm3708, %v3705, %v3703
        %s3710 = scalar_lea.vmem %s3667, 48
        %v3711 = vld [vmem:[%s3710] sm:$0xff]
        %v3713 = vadd.s32 %v3674, 48
        %vm3714 = vcmp.eq.s32.totalorder %v3713, %v3671
        %v3715 = vsel %vm3714, %v3711, %v3709
        %s3716 = scalar_lea.vmem %s3667, 56
        %v3717 = vld [vmem:[%s3716] sm:$0xff]
        %v3719 = vadd.s32 %v3674, 56
        %vm3720 = vcmp.eq.s32.totalorder %v3719, %v3671
        %v3721 = vsel %vm3720, %v3717, %v3715
        %v3722 = vrot.slane %v3721, 4
        %v3723 = vadd.f32 %v3721, %v3722
        %v3724 = vrot.slane %v3723, 2
        %v3725 = vadd.f32 %v3723, %v3724
        %v3726 = vrot.slane %v3725, 1
        %v3727 = vadd.f32 %v3725, %v3726
        %3728 = vst [vmem:[%s3668] sm:$0x1] %v3727
        %s3729 = smov [#allocation18]
        %s3730 = smov %s3666
        %v3731 = vlaneseq
        %v3732 = vand.u32 %v3731, 127
        %v3733 = vmov %v3732
        %v3734 = vlaneseq
        %v3735 = vshrl.u32 %v3734, 7
        %v3736 = vmov %v3735
        %v3737 = vld [vmem:[%s3729] sm:$0xff]
        %vm3740 = vcmp.eq.s32.totalorder %v3736, %v3733
        %v3741 = vsel %vm3740, %v3737, 0.0
        %s3742 = scalar_lea.vmem %s3729, 8
        %v3743 = vld [vmem:[%s3742] sm:$0xff]
        %v3745 = vadd.s32 %v3736, 8
        %vm3746 = vcmp.eq.s32.totalorder %v3745, %v3733
        %v3747 = vsel %vm3746, %v3743, %v3741
        %s3748 = scalar_lea.vmem %s3729, 16
        %v3749 = vld [vmem:[%s3748] sm:$0xff]
        %v3751 = vadd.s32 %v3736, 16
        %vm3752 = vcmp.eq.s32.totalorder %v3751, %v3733
        %v3753 = vsel %vm3752, %v3749, %v3747
        %s3754 = scalar_lea.vmem %s3729, 24
        %v3755 = vld [vmem:[%s3754] sm:$0xff]
        %v3757 = vadd.s32 %v3736, 24
        %vm3758 = vcmp.eq.s32.totalorder %v3757, %v3733
        %v3759 = vsel %vm3758, %v3755, %v3753
        %s3760 = scalar_lea.vmem %s3729, 32
        %v3761 = vld [vmem:[%s3760] sm:$0xff]
        %v3763 = vadd.s32 %v3736, 32
        %vm3764 = vcmp.eq.s32.totalorder %v3763, %v3733
        %v3765 = vsel %vm3764, %v3761, %v3759
        %s3766 = scalar_lea.vmem %s3729, 40
        %v3767 = vld [vmem:[%s3766] sm:$0xff]
        %v3769 = vadd.s32 %v3736, 40
        %vm3770 = vcmp.eq.s32.totalorder %v3769, %v3733
        %v3771 = vsel %vm3770, %v3767, %v3765
        %s3772 = scalar_lea.vmem %s3729, 48
        %v3773 = vld [vmem:[%s3772] sm:$0xff]
        %v3775 = vadd.s32 %v3736, 48
        %vm3776 = vcmp.eq.s32.totalorder %v3775, %v3733
        %v3777 = vsel %vm3776, %v3773, %v3771
        %s3778 = scalar_lea.vmem %s3729, 56
        %v3779 = vld [vmem:[%s3778] sm:$0xff]
        %v3781 = vadd.s32 %v3736, 56
        %vm3782 = vcmp.eq.s32.totalorder %v3781, %v3733
        %v3783 = vsel %vm3782, %v3779, %v3777
        %v3784 = vrot.slane %v3783, 4
        %v3785 = vadd.f32 %v3783, %v3784
        %v3786 = vrot.slane %v3785, 2
        %v3787 = vadd.f32 %v3785, %v3786
        %v3788 = vrot.slane %v3787, 1
        %v3789 = vadd.f32 %v3787, %v3788
        %3790 = vst [vmem:[%s3730] sm:$0x1] %v3789
        %s3792 = sshllo.u32 0, 2
        %v3794 = vld [vmem:[#allocation4] sm:%s3792]
        %s3795 = sshllo.u32 0, 2
        %3796 = vst [vmem:[%s288] sm:%s3795] %v3794
        %s3798 = sshllo.u32 0, 2
        %v3800 = vld [vmem:[#allocation6] sm:%s3798]
        %s3801 = sshllo.u32 0, 2
        %3802 = vst [vmem:[%s294] sm:%s3801] %v3800
        %s3803 = sand.u32 %s36, 1
        %s3804 = sand.u32 %s36, 1
        %s3805 = smul.addr %s3804, 2
        %s3806 = scalar_lea.vmem [#allocation5], %s3805
        %s3807 = sand.u32 %s64, 1
        %s3808 = sand.u32 %s64, 1
        %s3809 = smul.addr %s3808, 2
        %s3810 = scalar_lea.vmem [#allocation7], %s3809
        %s3811 = sand.u32 %s26, 1
        %s3812 = scalar_lea.sflag [#allocation9], %s3811
        %s3813 = sand.u32 %s26, 1
        %s3814 = smul.addr %s3813, 64
        %s3815 = scalar_lea.vmem [#allocation8], %s3814
        %s3816 = sand.u32 %s26, 1
        %s3817 = scalar_lea.sflag [#allocation11], %s3816
        %s3818 = sand.u32 %s26, 1
        %s3819 = smul.addr %s3818, 64
        %s3820 = scalar_lea.vmem [#allocation10], %s3819
        %s3821 = sand.u32 %s26, 1
        %s3822 = scalar_lea.sflag [#allocation11], %s3821
        %s3823 = sand.u32 %s26, 1
        %s3824 = smul.addr %s3823, 64
        %s3825 = scalar_lea.vmem [#allocation12], %s3824
        %s3826 = sand.u32 %s26, 1
        %s3827 = scalar_lea.sflag [#allocation14], %s3826
        %s3828 = sand.u32 %s26, 1
        %s3829 = smul.addr %s3828, 64
        %s3830 = scalar_lea.vmem [#allocation13], %s3829
        // Predicated region
        $region111: #{custom-call.3} parent=95 // pred_check
          %p3831 = pneg %p46
        $region112: #{custom-call.3} parent=95 // pred_check_branch
          %3833 = sbr.rel (%p3831) target = $region114
        $region113: #{custom-call.3} parent=95 // pred_region
          %s3834 = sshrl.u32 %s26, 3
          %s3835 = smul.addr %s3834, 2
          %s3836 = scalar_lea.vmem %s4, %s3835
          // Predicated region
          $region115: #{custom-call.3} parent=113 // pred_check
            _
          $region116: #{custom-call.3} parent=113 // pred_check_branch
            %3838 = sbr.rel (0) target = $region118
          $region117: #{custom-call.3} parent=113 // pred_region
            // Predicated region
            $region119: #{custom-call.3} parent=117 // pred_check
              _
            $region120: #{custom-call.3} parent=117 // pred_check_branch
              %3840 = sbr.rel target = $region122
            $region121: #{custom-call.3} parent=117 // pred_region
              // Predicated region
              $region134: #{custom-call.3} parent=121 // pred_check
                _
              $region135: #{custom-call.3} parent=121 // pred_check_branch
                %3855 = sbr.rel (0) target = $region137
              $region136: #{custom-call.3} parent=121 // pred_region
                loop: start=0, step=1, limit=1
                $region138: #{custom-call.3} parent=136 // loop_pre_header
                  _
                $region139: #{custom-call.3} parent=136 // loop_header
                  %s3858 = sphi 0, %s3862
                  %p3859 = scmp.ge.s32.totalorder %s3858, 1
                  %s3863 = sphi %s3806, %s3806
                  %s3864 = sphi %s3836, %s3836
                $region140: #{custom-call.3} parent=136 // loop_header_branch
                  %3861 = sbr.rel (%p3859) target = $region144
                $region141: #{custom-call.3} parent=136 // loop_body
                  %v3865 = vld [vmem:[%s3863] sm:$0x3]
                  %3866 = vst [vmem:[%s3864] sm:$0x3] %v3865
                $region142: #{custom-call.3} parent=136 // loop_footer
                  %s3862 = sadd.s32 1, %s3858
                $region143: #{custom-call.3} parent=136 // loop_footer_branch
                  %3857 = sbr.rel target = $region139
                $region144: #{custom-call.3} parent=136 // loop_exit
                  _
              $region137: #{custom-call.3} parent=121 // pred_fallthru
                _
            $region122: #{custom-call.3} parent=117 // pred_fallthru
              _
            // Predicated region
            $region123: #{custom-call.3} parent=117 // pred_check
              _
            $region124: #{custom-call.3} parent=117 // pred_check_branch
              %3842 = sbr.rel (0) target = $region126
            $region125: #{custom-call.3} parent=117 // pred_region
              loop: start=0, step=1, limit=1
              $region127: #{custom-call.3} parent=125 // loop_pre_header
                _
              $region128: #{custom-call.3} parent=125 // loop_header
                %s3845 = sphi 0, %s3849
                %p3846 = scmp.ge.s32.totalorder %s3845, 1
                %s3850 = sphi %s3806, %s3806
                %s3851 = sphi %s3836, %s3836
              $region129: #{custom-call.3} parent=125 // loop_header_branch
                %3848 = sbr.rel (%p3846) target = $region133
              $region130: #{custom-call.3} parent=125 // loop_body
                %v3852 = vld [vmem:[%s3850] sm:$0x3]
                %3853 = vst [vmem:[%s3851] sm:$0x3] %v3852
              $region131: #{custom-call.3} parent=125 // loop_footer
                %s3849 = sadd.s32 1, %s3845
              $region132: #{custom-call.3} parent=125 // loop_footer_branch
                %3844 = sbr.rel target = $region128
              $region133: #{custom-call.3} parent=125 // loop_exit
                _
            $region126: #{custom-call.3} parent=117 // pred_fallthru
              _
          $region118: #{custom-call.3} parent=113 // pred_fallthru
            _
          %3867 = vnop
        $region114: #{custom-call.3} parent=95 // pred_fallthru
          _
        // Predicated region
        $region145: #{custom-call.3} parent=95 // pred_check
          %p3868 = pneg %p74
        $region146: #{custom-call.3} parent=95 // pred_check_branch
          %3870 = sbr.rel (%p3868) target = $region148
        $region147: #{custom-call.3} parent=95 // pred_region
          %s3871 = sshrl.u32 %s26, 3
          %s3872 = smul.addr %s3871, 2
          %s3873 = scalar_lea.vmem %s5, %s3872
          // Predicated region
          $region149: #{custom-call.3} parent=147 // pred_check
            _
          $region150: #{custom-call.3} parent=147 // pred_check_branch
            %3875 = sbr.rel (0) target = $region152
          $region151: #{custom-call.3} parent=147 // pred_region
            // Predicated region
            $region153: #{custom-call.3} parent=151 // pred_check
              _
            $region154: #{custom-call.3} parent=151 // pred_check_branch
              %3877 = sbr.rel target = $region156
            $region155: #{custom-call.3} parent=151 // pred_region
              // Predicated region
              $region168: #{custom-call.3} parent=155 // pred_check
                _
              $region169: #{custom-call.3} parent=155 // pred_check_branch
                %3892 = sbr.rel (0) target = $region171
              $region170: #{custom-call.3} parent=155 // pred_region
                loop: start=0, step=1, limit=1
                $region172: #{custom-call.3} parent=170 // loop_pre_header
                  _
                $region173: #{custom-call.3} parent=170 // loop_header
                  %s3895 = sphi 0, %s3899
                  %p3896 = scmp.ge.s32.totalorder %s3895, 1
                  %s3900 = sphi %s3810, %s3810
                  %s3901 = sphi %s3873, %s3873
                $region174: #{custom-call.3} parent=170 // loop_header_branch
                  %3898 = sbr.rel (%p3896) target = $region178
                $region175: #{custom-call.3} parent=170 // loop_body
                  %v3902 = vld [vmem:[%s3900] sm:$0x3]
                  %3903 = vst [vmem:[%s3901] sm:$0x3] %v3902
                $region176: #{custom-call.3} parent=170 // loop_footer
                  %s3899 = sadd.s32 1, %s3895
                $region177: #{custom-call.3} parent=170 // loop_footer_branch
                  %3894 = sbr.rel target = $region173
                $region178: #{custom-call.3} parent=170 // loop_exit
                  _
              $region171: #{custom-call.3} parent=155 // pred_fallthru
                _
            $region156: #{custom-call.3} parent=151 // pred_fallthru
              _
            // Predicated region
            $region157: #{custom-call.3} parent=151 // pred_check
              _
            $region158: #{custom-call.3} parent=151 // pred_check_branch
              %3879 = sbr.rel (0) target = $region160
            $region159: #{custom-call.3} parent=151 // pred_region
              loop: start=0, step=1, limit=1
              $region161: #{custom-call.3} parent=159 // loop_pre_header
                _
              $region162: #{custom-call.3} parent=159 // loop_header
                %s3882 = sphi 0, %s3886
                %p3883 = scmp.ge.s32.totalorder %s3882, 1
                %s3887 = sphi %s3810, %s3810
                %s3888 = sphi %s3873, %s3873
              $region163: #{custom-call.3} parent=159 // loop_header_branch
                %3885 = sbr.rel (%p3883) target = $region167
              $region164: #{custom-call.3} parent=159 // loop_body
                %v3889 = vld [vmem:[%s3887] sm:$0x3]
                %3890 = vst [vmem:[%s3888] sm:$0x3] %v3889
              $region165: #{custom-call.3} parent=159 // loop_footer
                %s3886 = sadd.s32 1, %s3882
              $region166: #{custom-call.3} parent=159 // loop_footer_branch
                %3881 = sbr.rel target = $region162
              $region167: #{custom-call.3} parent=159 // loop_exit
                _
            $region160: #{custom-call.3} parent=151 // pred_fallthru
              _
          $region152: #{custom-call.3} parent=147 // pred_fallthru
            _
          %3904 = vnop
        $region148: #{custom-call.3} parent=95 // pred_fallthru
          _
        %s3906 = ssub.s32 1024, 1024
        %3907 = vsyncadd %s3812, %s3906
        %s3908 = smul.addr %s26, 1024
        %s3909 = scalar_lea.hbm %s6, %s3908
        %s3911 = sshll.u32 %s3815, 4
        %s3912 = int_to_ptr.vmem [resolvable:$true] %s3911
        %3914 = dma.vmem_to_hbm [thread:$0]  %s3912, 1024, %s3909, %s3812
        %s3916 = ssub.s32 1024, 1024
        %3917 = vsyncadd %s3817, %s3916
        %s3918 = smul.addr %s26, 1024
        %s3919 = scalar_lea.hbm %s7, %s3918
        %s3921 = sshll.u32 %s3820, 4
        %s3922 = int_to_ptr.vmem [resolvable:$true] %s3921
        %3924 = dma.vmem_to_hbm [thread:$0]  %s3922, 1024, %s3919, %s3817
        %s3926 = ssub.s32 1024, 1024
        %3927 = vsyncadd %s3822, %s3926
        %s3928 = smul.addr %s26, 1024
        %s3929 = scalar_lea.hbm %s8, %s3928
        %s3931 = sshll.u32 %s3825, 4
        %s3932 = int_to_ptr.vmem [resolvable:$true] %s3931
        %3934 = dma.vmem_to_hbm [thread:$0]  %s3932, 1024, %s3929, %s3822
        %s3936 = ssub.s32 1024, 1024
        %3937 = vsyncadd %s3827, %s3936
        %s3938 = smul.addr %s26, 1024
        %s3939 = scalar_lea.hbm %s9, %s3938
        %s3941 = sshll.u32 %s3830, 4
        %s3942 = int_to_ptr.vmem [resolvable:$true] %s3941
        %3944 = dma.vmem_to_hbm [thread:$0]  %s3942, 1024, %s3939, %s3827
      $region96: #{custom-call.3} parent=5 // pred_fallthru
        _
      %p3945 = scmp.le.s32.totalorder 2, %s21
      // Predicated region
      $region179: #{custom-call.3} parent=5 // pred_check
        %p3946 = pneg %p3945
      $region180: #{custom-call.3} parent=5 // pred_check_branch
        %3948 = sbr.rel (%p3946) target = $region182
      $region181: #{custom-call.3} parent=5 // pred_region
        %s3949 = ssub.s32 %s21, 2
        // Predicated region
        $region183: #{custom-call.3} parent=181 // pred_check
          %p3950 = pneg %p52
        $region184: #{custom-call.3} parent=181 // pred_check_branch
          %3952 = sbr.rel (%p3950) target = $region186
        $region185: #{custom-call.3} parent=181 // pred_region
          %s3953 = sand.u32 %s37, 1
          %s3954 = sand.u32 %s37, 1
          %s3955 = smul.addr %s3954, 2
          %s3956 = scalar_lea.vmem [#allocation5], %s3955
        $region186: #{custom-call.3} parent=181 // pred_fallthru
          _
        // Predicated region
        $region187: #{custom-call.3} parent=181 // pred_check
          %p3957 = pneg %p80
        $region188: #{custom-call.3} parent=181 // pred_check_branch
          %3959 = sbr.rel (%p3957) target = $region190
        $region189: #{custom-call.3} parent=181 // pred_region
          %s3960 = sand.u32 %s65, 1
          %s3961 = sand.u32 %s65, 1
          %s3962 = smul.addr %s3961, 2
          %s3963 = scalar_lea.vmem [#allocation7], %s3962
        $region190: #{custom-call.3} parent=181 // pred_fallthru
          _
        %s3964 = sand.u32 %s27, 1
        %s3965 = scalar_lea.sflag [#allocation9], %s3964
        %s3966 = sand.u32 %s27, 1
        %s3967 = smul.addr %s3966, 64
        %s3968 = scalar_lea.vmem [#allocation8], %s3967
        %3969 = dma.done %s3965, 1024
        %s3970 = sand.u32 %s27, 1
        %s3971 = scalar_lea.sflag [#allocation11], %s3970
        %s3972 = sand.u32 %s27, 1
        %s3973 = smul.addr %s3972, 64
        %s3974 = scalar_lea.vmem [#allocation10], %s3973
        %3975 = dma.done %s3971, 1024
        %s3976 = sand.u32 %s27, 1
        %s3977 = scalar_lea.sflag [#allocation11], %s3976
        %s3978 = sand.u32 %s27, 1
        %s3979 = smul.addr %s3978, 64
        %s3980 = scalar_lea.vmem [#allocation12], %s3979
        %3981 = dma.done %s3977, 1024
        %s3982 = sand.u32 %s27, 1
        %s3983 = scalar_lea.sflag [#allocation14], %s3982
        %s3984 = sand.u32 %s27, 1
        %s3985 = smul.addr %s3984, 64
        %s3986 = scalar_lea.vmem [#allocation13], %s3985
        %3987 = dma.done %s3983, 1024
      $region182: #{custom-call.3} parent=5 // pred_fallthru
        _
    $region6: #{custom-call.3} parent=1 // loop_footer
      %s25 = sadd.s32 1, %s21
    $region7: #{custom-call.3} parent=1 // loop_footer_branch
      %20 = sbr.rel target = $region3
    $region8: #{custom-call.3} parent=1 // loop_exit
      _
    %3988 = vsyncpa [#allocation9], 1
    %s3989 = scalar_lea.sflag [#allocation9], 1
    %3990 = vsyncpa %s3989, 1
    %3991 = vsyncpa [#allocation11], 1
    %s3992 = scalar_lea.sflag [#allocation11], 1
    %3993 = vsyncpa %s3992, 1
    %3994 = vsyncpa [#allocation14], 1
    %s3995 = scalar_lea.sflag [#allocation14], 1
    %3996 = vsyncpa %s3995, 1

// kernel: sparsevlm_forward.7
$region0: #{sparsevlm_forward.7}
  #allocation0 [shape = 'u32[]', space=smem, size = 0x4, offset = 0x4, fixed_abs, tag = 'smem constant byte address 0x4 - core index']
  #allocation1 [shape = 'u32[144,128]{1,0:T(1,128)}', space=vmem, size = 0x12000, scoped, tag = 'internal scratch']
  %s0 = inlined_call_operand.vmem [shape: bf16[32,128], index: 0, kind: input, shape index: {}]
  %s1 = inlined_call_operand.vmem [shape: bf16[128,128], index: 1, kind: input, shape index: {}]
  %s2 = inlined_call_operand.vmem [shape: f32[1,128], index: 2, kind: input, shape index: {}]
  %s3 = inlined_call_operand.vmem [shape: f32[1,128], index: 3, kind: input, shape index: {}]
  %s4 = inlined_call_operand.vmem [shape: f32[1,128], index: 4, kind: input, shape index: {}]
  %s5 = inlined_call_operand.vmem [shape: bf16[32,128], index: 5, kind: output, shape index: {}]
  %s6 = sld [smem:[#allocation0]]
  $region30: #{sparsevlm_forward.7} parent=0
    _
  %s8 = ssub.s32 1, %s6
  %s9 = scalar_select 0, %s8, %s6
  // Predicated region
  $region2: #{sparsevlm_forward.7} parent=0 // pred_check
    _
  $region3: #{sparsevlm_forward.7} parent=0 // pred_check_branch
    %11 = sbr.rel (0) target = $region5
  $region4: #{sparsevlm_forward.7} parent=0 // pred_region
    _
  $region5: #{sparsevlm_forward.7} parent=0 // pred_fallthru
    _
  // Predicated region
  $region6: #{sparsevlm_forward.7} parent=0 // pred_check
    _
  $region7: #{sparsevlm_forward.7} parent=0 // pred_check_branch
    %13 = sbr.rel (0) target = $region9
  $region8: #{sparsevlm_forward.7} parent=0 // pred_region
    _
  $region9: #{sparsevlm_forward.7} parent=0 // pred_fallthru
    _
  // Predicated region
  $region10: #{sparsevlm_forward.7} parent=0 // pred_check
    _
  $region11: #{sparsevlm_forward.7} parent=0 // pred_check_branch
    %15 = sbr.rel (0) target = $region13
  $region12: #{sparsevlm_forward.7} parent=0 // pred_region
    _
  $region13: #{sparsevlm_forward.7} parent=0 // pred_fallthru
    _
  // Predicated region
  $region14: #{sparsevlm_forward.7} parent=0 // pred_check
    _
  $region15: #{sparsevlm_forward.7} parent=0 // pred_check_branch
    %17 = sbr.rel (0) target = $region17
  $region16: #{sparsevlm_forward.7} parent=0 // pred_region
    _
  $region17: #{sparsevlm_forward.7} parent=0 // pred_fallthru
    _
  // Predicated region
  $region18: #{sparsevlm_forward.7} parent=0 // pred_check
    _
  $region19: #{sparsevlm_forward.7} parent=0 // pred_check_branch
    %19 = sbr.rel (0) target = $region21
  $region20: #{sparsevlm_forward.7} parent=0 // pred_region
    _
  $region21: #{sparsevlm_forward.7} parent=0 // pred_fallthru
    _
  %v21 = vld [vmem:[%s0] sm:$0xf]
  %v22 = vld [vmem:[%s0 + $0x4] sm:$0xf]
  %v23 = vld [vmem:[%s0 + $0x8] sm:$0xf]
  %v24 = vld [vmem:[%s0 + $0xc] sm:$0xf]
  %v25 = vld [vmem:[%s1] sm:$0xf]
  %v26 = vld [vmem:[%s1 + $0x4] sm:$0xf]
  %v27 = vld [vmem:[%s1 + $0x8] sm:$0xf]
  %v28 = vld [vmem:[%s1 + $0xc] sm:$0xf]
  %v29 = vld [vmem:[%s1 + $0x10] sm:$0xf]
  %v30 = vld [vmem:[%s1 + $0x14] sm:$0xf]
  %v31 = vld [vmem:[%s1 + $0x18] sm:$0xf]
  %v32 = vld [vmem:[%s1 + $0x1c] sm:$0xf]
  %v33 = vld [vmem:[%s1 + $0x20] sm:$0xf]
  %v34 = vld [vmem:[%s1 + $0x24] sm:$0xf]
  %v35 = vld [vmem:[%s1 + $0x28] sm:$0xf]
  %v36 = vld [vmem:[%s1 + $0x2c] sm:$0xf]
  %v37 = vld [vmem:[%s1 + $0x30] sm:$0xf]
  %v38 = vld [vmem:[%s1 + $0x34] sm:$0xf]
  %v39 = vld [vmem:[%s1 + $0x38] sm:$0xf]
  %v40 = vld [vmem:[%s1 + $0x3c] sm:$0xf]
  %v41 = vld [vmem:[%s2] sm:$0x1]
  %v43 = vlaneseq
  %v44 = vshrl.u32 %v43, 7
  %v45 = vsub.s32 0, %v44
  %v46 = vrot.slane %v41, %v45
  %v52 = vunpack.c.l.b16 %v21
  %v53 = vunpack.c.l.b16 %v22
  %v54 = vunpack.c.l.b16 %v23
  %v55 = vunpack.c.l.b16 %v24
  %v56 = vpack.c.b16 %v53, %v52
  %v57 = vpack.c.b16 %v55, %v54
  %v76 = vunpack.c.l.b16 %v25
  %v77 = vunpack.c.l.b16 %v26
  %v78 = vunpack.c.l.b16 %v27
  %v79 = vunpack.c.l.b16 %v28
  %v80 = vunpack.c.l.b16 %v29
  %v81 = vunpack.c.l.b16 %v30
  %v82 = vunpack.c.l.b16 %v31
  %v83 = vunpack.c.l.b16 %v32
  %v84 = vunpack.c.l.b16 %v33
  %v85 = vunpack.c.l.b16 %v34
  %v86 = vunpack.c.l.b16 %v35
  %v87 = vunpack.c.l.b16 %v36
  %v88 = vunpack.c.l.b16 %v37
  %v89 = vunpack.c.l.b16 %v38
  %v90 = vunpack.c.l.b16 %v39
  %v91 = vunpack.c.l.b16 %v40
  %v92 = vpack.c.b16 %v77, %v76
  %v93 = vpack.c.b16 %v79, %v78
  %v94 = vpack.c.b16 %v81, %v80
  %v95 = vpack.c.b16 %v83, %v82
  %v96 = vpack.c.b16 %v85, %v84
  %v97 = vpack.c.b16 %v87, %v86
  %v98 = vpack.c.b16 %v89, %v88
  %v99 = vpack.c.b16 %v91, %v90
  %108 = vmatprep.subr.bf16.mxu0 0
  %109 = vmatpush1.bf16.msra.mxu0 %v92
  %110 = vmatprep.subr.bf16.mxu0 0
  %111 = vmatpush1.bf16.msra.mxu0 %v93
  %112 = vmatprep.subr.bf16.mxu0 0
  %113 = vmatpush1.bf16.msra.mxu0 %v94
  %114 = vmatprep.subr.bf16.mxu0 0
  %115 = vmatpush1.bf16.msra.mxu0 %v95
  %116 = vmatprep.subr.bf16.mxu0 0
  %117 = vmatpush1.bf16.msra.mxu0 %v96
  %118 = vmatprep.subr.bf16.mxu0 0
  %119 = vmatpush1.bf16.msra.mxu0 %v97
  %120 = vmatprep.subr.bf16.mxu0 0
  %121 = vmatpush1.bf16.msra.mxu0 %v98
  %122 = vmatprep.subr.bf16.mxu0 0
  %123 = vmatpush1.bf16.msra.mxu0 %v99
  %124 = vmatprep.subr.bf16.mxu0 0
  %125 = vmatpush1.bf16.msra.mxu0 0
  %126 = vmatprep.subr.bf16.mxu0 0
  %127 = vmatpush1.bf16.msra.mxu0 0
  %128 = vmatprep.subr.bf16.mxu0 0
  %129 = vmatpush1.bf16.msra.mxu0 0
  %130 = vmatprep.subr.bf16.mxu0 0
  %131 = vmatpush1.bf16.msra.mxu0 0
  %132 = vmatprep.subr.bf16.mxu0 0
  %133 = vmatpush1.bf16.msra.mxu0 0
  %134 = vmatprep.subr.bf16.mxu0 0
  %135 = vmatpush1.bf16.msra.mxu0 0
  %136 = vmatprep.subr.bf16.mxu0 0
  %137 = vmatpush1.bf16.msra.mxu0 0
  %138 = vmatprep.subr.bf16.mxu0 0
  %139 = vmatpush1.bf16.msra.mxu0 0
  %140 = vmatprep.mubr.bf16.mxu0 0
  %141 = vmatmul.mubr.bf16.gmra.mrb[0].mxu0 %v56
  %v142 = vpop.f32.mrb[0].mxu0
  %v143 = vadd.f32 %v46, %v142
  %v144 = vpop.f32.mrb[0].mxu0
  %v145 = vpop.f32.mrb[0].mxu0
  %v146 = vadd.f32 %v46, %v145
  %v147 = vpop.f32.mrb[0].mxu0
  %148 = vmatprep.mubr.bf16.mxu0 0
  %149 = vmatmul.mubr.bf16.gmra.mrb[0].mxu0 %v57
  %v150 = vpop.f32.mrb[0].mxu0
  %v151 = vadd.f32 %v46, %v150
  %v152 = vpop.f32.mrb[0].mxu0
  %v153 = vpop.f32.mrb[0].mxu0
  %v154 = vadd.f32 %v46, %v153
  %v155 = vpop.f32.mrb[0].mxu0
  %156 = vdwg.mxu0
  %157 = vadd.xlane.f32.xlu0 %v143
  %v158 = vpop.xlane.xlu0 %157
  %159 = vadd.xlane.f32.xlu0 %v146
  %v160 = vpop.xlane.xlu0 %159
  %161 = vadd.xlane.f32.xlu0 %v151
  %v162 = vpop.xlane.xlu0 %161
  %163 = vadd.xlane.f32.xlu0 %v154
  %v164 = vpop.xlane.xlu0 %163
  %v165 = vrcp.pop 128.0
  %v166 = vmul.f32 %v158, %v165
  %v167 = vmul.f32 %v160, %v165
  %v168 = vmul.f32 %v162, %v165
  %v169 = vmul.f32 %v164, %v165
  %v170 = vsub.f32 %v143, %v166
  %v171 = vsub.f32 %v146, %v167
  %v172 = vsub.f32 %v151, %v168
  %v173 = vsub.f32 %v154, %v169
  %v174 = vmul.f32 %v170, %v170
  %v175 = vmul.f32 %v171, %v171
  %v176 = vmul.f32 %v172, %v172
  %v177 = vmul.f32 %v173, %v173
  %178 = vadd.xlane.f32.xlu0 %v174
  %v179 = vpop.xlane.xlu0 %178
  %180 = vadd.xlane.f32.xlu0 %v175
  %v181 = vpop.xlane.xlu0 %180
  %182 = vadd.xlane.f32.xlu0 %v176
  %v183 = vpop.xlane.xlu0 %182
  %184 = vadd.xlane.f32.xlu0 %v177
  %v185 = vpop.xlane.xlu0 %184
  %v186 = vmul.f32 %v179, %v165
  %v187 = vmul.f32 %v181, %v165
  %v188 = vmul.f32 %v183, %v165
  %v189 = vmul.f32 %v185, %v165
  %v190 = vadd.f32 %v186, 1e-05
  %v191 = vadd.f32 %v187, 1e-05
  %v192 = vadd.f32 %v188, 1e-05
  %v193 = vadd.f32 %v189, 1e-05
  %v194 = vrsqrt.pop %v190
  %v195 = vrsqrt.pop %v191
  %v196 = vrsqrt.pop %v192
  %v197 = vrsqrt.pop %v193
  %v198 = vmul.f32 %v170, %v194
  %v199 = vmul.f32 %v171, %v195
  %v200 = vmul.f32 %v172, %v196
  %v201 = vmul.f32 %v173, %v197
  %v202 = vld [vmem:[%s3] sm:$0x1]
  %v204 = vlaneseq
  %v205 = vshrl.u32 %v204, 7
  %v206 = vsub.s32 0, %v205
  %v207 = vrot.slane %v202, %v206
  %v209 = vmul.f32 %v198, %v207
  %v210 = vmul.f32 %v199, %v207
  %v211 = vmul.f32 %v200, %v207
  %v212 = vmul.f32 %v201, %v207
  %v213 = vld [vmem:[%s4] sm:$0x1]
  %v215 = vlaneseq
  %v216 = vshrl.u32 %v215, 7
  %v217 = vsub.s32 0, %v216
  %v218 = vrot.slane %v213, %v217
  %v220 = vadd.f32 %v209, %v218
  %v221 = vadd.f32 %v210, %v218
  %v222 = vadd.f32 %v211, %v218
  %v223 = vadd.f32 %v212, %v218
  %v224 = vpack.c.bf16 %v221, %v220
  %v225 = vpack.c.bf16 %v223, %v222
  %v228 = vunpack.c.l.b16 %v224
  %v229 = vunpack.c.h.b16 %v224
  %v230 = vunpack.c.l.b16 %v225
  %v231 = vunpack.c.h.b16 %v225
  %v232 = vpack.c.b16 %v228, %v228
  %v233 = vpack.c.b16 %v229, %v229
  %v234 = vpack.c.b16 %v230, %v230
  %v235 = vpack.c.b16 %v231, %v231
  %240 = vst [vmem:[%s5] sm:$0xf] %v232
  %241 = vst [vmem:[%s5 + $0x4] sm:$0xf] %v233
  %242 = vst [vmem:[%s5 + $0x8] sm:$0xf] %v234
  %243 = vst [vmem:[%s5 + $0xc] sm:$0xf] %v235
  // Predicated region
  $region22: #{sparsevlm_forward.7} parent=0 // pred_check
    _
  $region23: #{sparsevlm_forward.7} parent=0 // pred_check_branch
    %245 = sbr.rel (0) target = $region25
  $region24: #{sparsevlm_forward.7} parent=0 // pred_region
    _
  $region25: #{sparsevlm_forward.7} parent=0 // pred_fallthru
    _
  // Predicated region
  $region26: #{sparsevlm_forward.7} parent=0 // pred_check
    _
  $region27: #{sparsevlm_forward.7} parent=0 // pred_check_branch
    %247 = sbr.rel (0) target = $region29
  $region28: #{sparsevlm_forward.7} parent=0 // pred_region
    _
  $region29: #{sparsevlm_forward.7} parent=0 // pred_fallthru
    _

// kernel: sparsevlm_forward.9
$region0: #{sparsevlm_forward.9}
  #allocation0 [shape = 'u32[]', space=smem, size = 0x4, offset = 0x4, fixed_abs, tag = 'smem constant byte address 0x4 - core index']
  #allocation1 [shape = 'u32[144,128]{1,0:T(1,128)}', space=vmem, size = 0x12000, scoped, tag = 'internal scratch']
  #allocation2 [shape = 'f32[48,256]{1,0:T(8,128)}', space=vmem, size = 0xc000, scoped, tag = 'scratch operand']
  %s0 = inlined_call_operand.vmem [shape: bf16[48,128], index: 0, kind: input, shape index: {}]
  %s1 = inlined_call_operand.vmem [shape: bf16[128,256], index: 1, kind: input, shape index: {}]
  %s2 = inlined_call_operand.vmem [shape: f32[1,256], index: 2, kind: input, shape index: {}]
  %s3 = inlined_call_operand.hbm [shape: f32[48,256], index: 3, kind: output, shape index: {}]
  %s4 = sld [smem:[#allocation0]]
  $region30: #{sparsevlm_forward.9} parent=0
    _
  %s6 = ssub.s32 1, %s4
  %s7 = scalar_select 0, %s6, %s4
  $region1: #{sparsevlm_forward.9} parent=0
    #allocation3 [shape = 'u8[49152]{0}', space=vmem, size = 0xc000, scoped, tag = 'output window, operand 0, single buffered']
    #allocation4 [shape = 's32[1]{0}', space=sflag, size = 0x4, scoped, tag = 'scoped memory for sparsevlm_forward.9']
    %8 = vsyncpa [#allocation4], 0
    // Predicated region
    $region2: #{sparsevlm_forward.9} parent=1 // pred_check
      _
    $region3: #{sparsevlm_forward.9} parent=1 // pred_check_branch
      %10 = sbr.rel (0) target = $region5
    $region4: #{sparsevlm_forward.9} parent=1 // pred_region
      _
    $region5: #{sparsevlm_forward.9} parent=1 // pred_fallthru
      _
    // Predicated region
    $region6: #{sparsevlm_forward.9} parent=1 // pred_check
      _
    $region7: #{sparsevlm_forward.9} parent=1 // pred_check_branch
      %12 = sbr.rel (0) target = $region9
    $region8: #{sparsevlm_forward.9} parent=1 // pred_region
      _
    $region9: #{sparsevlm_forward.9} parent=1 // pred_fallthru
      _
    // Predicated region
    $region10: #{sparsevlm_forward.9} parent=1 // pred_check
      _
    $region11: #{sparsevlm_forward.9} parent=1 // pred_check_branch
      %14 = sbr.rel (0) target = $region13
    $region12: #{sparsevlm_forward.9} parent=1 // pred_region
      _
    $region13: #{sparsevlm_forward.9} parent=1 // pred_fallthru
      _
    %p16 = scmp.eq.s32.totalorder 0, 0
    // Predicated region
    $region14: #{sparsevlm_forward.9} parent=1 // pred_check
      %p17 = pneg %p16
    $region15: #{sparsevlm_forward.9} parent=1 // pred_check_branch
      %19 = sbr.rel (%p17) target = $region17
    $region16: #{sparsevlm_forward.9} parent=1 // pred_region
      %20 = vst [vmem:[#allocation2] sm:$0xff] 0.0
      %21 = vst [vmem:[#allocation2 + $0x8] sm:$0xff] 0.0
      %22 = vst [vmem:[#allocation2 + $0x10] sm:$0xff] 0.0
      %23 = vst [vmem:[#allocation2 + $0x18] sm:$0xff] 0.0
      %24 = vst [vmem:[#allocation2 + $0x20] sm:$0xff] 0.0
      %25 = vst [vmem:[#allocation2 + $0x28] sm:$0xff] 0.0
      %26 = vst [vmem:[#allocation2 + $0x30] sm:$0xff] 0.0
      %27 = vst [vmem:[#allocation2 + $0x38] sm:$0xff] 0.0
      %28 = vst [vmem:[#allocation2 + $0x40] sm:$0xff] 0.0
      %29 = vst [vmem:[#allocation2 + $0x48] sm:$0xff] 0.0
      %30 = vst [vmem:[#allocation2 + $0x50] sm:$0xff] 0.0
      %31 = vst [vmem:[#allocation2 + $0x58] sm:$0xff] 0.0
    $region17: #{sparsevlm_forward.9} parent=1 // pred_fallthru
      _
    %v32 = vld [vmem:[#allocation2] sm:$0xff]
    %v33 = vld [vmem:[#allocation2 + $0x8] sm:$0xff]
    %v34 = vld [vmem:[#allocation2 + $0x10] sm:$0xff]
    %v35 = vld [vmem:[#allocation2 + $0x18] sm:$0xff]
    %v36 = vld [vmem:[#allocation2 + $0x20] sm:$0xff]
    %v37 = vld [vmem:[#allocation2 + $0x28] sm:$0xff]
    %v38 = vld [vmem:[#allocation2 + $0x30] sm:$0xff]
    %v39 = vld [vmem:[#allocation2 + $0x38] sm:$0xff]
    %v40 = vld [vmem:[#allocation2 + $0x40] sm:$0xff]
    %v41 = vld [vmem:[#allocation2 + $0x48] sm:$0xff]
    %v42 = vld [vmem:[#allocation2 + $0x50] sm:$0xff]
    %v43 = vld [vmem:[#allocation2 + $0x58] sm:$0xff]
    %v44 = vld [vmem:[%s0] sm:$0xf]
    %v45 = vld [vmem:[%s0 + $0x4] sm:$0xf]
    %v46 = vld [vmem:[%s0 + $0x8] sm:$0xf]
    %v47 = vld [vmem:[%s0 + $0xc] sm:$0xf]
    %v48 = vld [vmem:[%s0 + $0x10] sm:$0xf]
    %v49 = vld [vmem:[%s0 + $0x14] sm:$0xf]
    %v50 = vld [vmem:[%s1] sm:$0xff]
    %v51 = vld [vmem:[%s1 + $0x8] sm:$0xff]
    %v52 = vld [vmem:[%s1 + $0x10] sm:$0xff]
    %v53 = vld [vmem:[%s1 + $0x18] sm:$0xff]
    %v54 = vld [vmem:[%s1 + $0x20] sm:$0xff]
    %v55 = vld [vmem:[%s1 + $0x28] sm:$0xff]
    %v56 = vld [vmem:[%s1 + $0x30] sm:$0xff]
    %v57 = vld [vmem:[%s1 + $0x38] sm:$0xff]
    %v58 = vld [vmem:[%s1 + $0x40] sm:$0xff]
    %v59 = vld [vmem:[%s1 + $0x48] sm:$0xff]
    %v60 = vld [vmem:[%s1 + $0x50] sm:$0xff]
    %v61 = vld [vmem:[%s1 + $0x58] sm:$0xff]
    %v62 = vld [vmem:[%s1 + $0x60] sm:$0xff]
    %v63 = vld [vmem:[%s1 + $0x68] sm:$0xff]
    %v64 = vld [vmem:[%s1 + $0x70] sm:$0xff]
    %v65 = vld [vmem:[%s1 + $0x78] sm:$0xff]
    %v72 = vunpack.c.l.b16 %v44
    %v73 = vunpack.c.l.b16 %v45
    %v74 = vunpack.c.l.b16 %v46
    %v75 = vunpack.c.l.b16 %v47
    %v76 = vunpack.c.l.b16 %v48
    %v77 = vunpack.c.l.b16 %v49
    %v78 = vpack.c.b16 %v73, %v72
    %v79 = vpack.c.b16 %v75, %v74
    %v80 = vpack.c.b16 %v77, %v76
    %v100 = vunpack.c.l.b16 %v50
    %v101 = vunpack.c.h.b16 %v50
    %v102 = vunpack.c.l.b16 %v51
    %v103 = vunpack.c.h.b16 %v51
    %v104 = vunpack.c.l.b16 %v52
    %v105 = vunpack.c.h.b16 %v52
    %v106 = vunpack.c.l.b16 %v53
    %v107 = vunpack.c.h.b16 %v53
    %v108 = vunpack.c.l.b16 %v54
    %v109 = vunpack.c.h.b16 %v54
    %v110 = vunpack.c.l.b16 %v55
    %v111 = vunpack.c.h.b16 %v55
    %v112 = vunpack.c.l.b16 %v56
    %v113 = vunpack.c.h.b16 %v56
    %v114 = vunpack.c.l.b16 %v57
    %v115 = vunpack.c.h.b16 %v57
    %v116 = vunpack.c.l.b16 %v58
    %v117 = vunpack.c.h.b16 %v58
    %v118 = vunpack.c.l.b16 %v59
    %v119 = vunpack.c.h.b16 %v59
    %v120 = vunpack.c.l.b16 %v60
    %v121 = vunpack.c.h.b16 %v60
    %v122 = vunpack.c.l.b16 %v61
    %v123 = vunpack.c.h.b16 %v61
    %v124 = vunpack.c.l.b16 %v62
    %v125 = vunpack.c.h.b16 %v62
    %v126 = vunpack.c.l.b16 %v63
    %v127 = vunpack.c.h.b16 %v63
    %v128 = vunpack.c.l.b16 %v64
    %v129 = vunpack.c.h.b16 %v64
    %v130 = vunpack.c.l.b16 %v65
    %v131 = vunpack.c.h.b16 %v65
    %v132 = vpack.c.b16 %v102, %v100
    %v133 = vpack.c.b16 %v103, %v101
    %v134 = vpack.c.b16 %v106, %v104
    %v135 = vpack.c.b16 %v107, %v105
    %v136 = vpack.c.b16 %v110, %v108
    %v137 = vpack.c.b16 %v111, %v109
    %v138 = vpack.c.b16 %v114, %v112
    %v139 = vpack.c.b16 %v115, %v113
    %v140 = vpack.c.b16 %v118, %v116
    %v141 = vpack.c.b16 %v119, %v117
    %v142 = vpack.c.b16 %v122, %v120
    %v143 = vpack.c.b16 %v123, %v121
    %v144 = vpack.c.b16 %v126, %v124
    %v145 = vpack.c.b16 %v127, %v125
    %v146 = vpack.c.b16 %v130, %v128
    %v147 = vpack.c.b16 %v131, %v129
    %164 = vmatprep.subr.bf16.mxu0 %v133
    %165 = vmatpush1.bf16.msra.mxu0 %v132
    %166 = vmatprep.subr.bf16.mxu0 %v135
    %167 = vmatpush1.bf16.msra.mxu0 %v134
    %168 = vmatprep.subr.bf16.mxu0 %v137
    %169 = vmatpush1.bf16.msra.mxu0 %v136
    %170 = vmatprep.subr.bf16.mxu0 %v139
    %171 = vmatpush1.bf16.msra.mxu0 %v138
    %172 = vmatprep.subr.bf16.mxu0 %v141
    %173 = vmatpush1.bf16.msra.mxu0 %v140
    %174 = vmatprep.subr.bf16.mxu0 %v143
    %175 = vmatpush1.bf16.msra.mxu0 %v142
    %176 = vmatprep.subr.bf16.mxu0 %v145
    %177 = vmatpush1.bf16.msra.mxu0 %v144
    %178 = vmatprep.subr.bf16.mxu0 %v147
    %179 = vmatpush1.bf16.msra.mxu0 %v146
    %180 = vmatprep.subr.bf16.mxu0 0
    %181 = vmatpush1.bf16.msra.mxu0 0
    %182 = vmatprep.subr.bf16.mxu0 0
    %183 = vmatpush1.bf16.msra.mxu0 0
    %184 = vmatprep.subr.bf16.mxu0 0
    %185 = vmatpush1.bf16.msra.mxu0 0
    %186 = vmatprep.subr.bf16.mxu0 0
    %187 = vmatpush1.bf16.msra.mxu0 0
    %188 = vmatprep.subr.bf16.mxu0 0
    %189 = vmatpush1.bf16.msra.mxu0 0
    %190 = vmatprep.subr.bf16.mxu0 0
    %191 = vmatpush1.bf16.msra.mxu0 0
    %192 = vmatprep.subr.bf16.mxu0 0
    %193 = vmatpush1.bf16.msra.mxu0 0
    %194 = vmatprep.subr.bf16.mxu0 0
    %195 = vmatpush1.bf16.msra.mxu0 0
    %196 = vmatprep.mubr.bf16.mxu0 0
    %197 = vmatmul.mubr.bf16.gmra.mrb[0].mxu0 %v78
    %v198 = vpop.f32.mrb[0].mxu0
    %v199 = vadd.f32 0.0, %v198
    %v200 = vpop.f32.mrb[0].mxu0
    %v201 = vadd.f32 0.0, %v200
    %v202 = vpop.f32.mrb[0].mxu0
    %v203 = vadd.f32 0.0, %v202
    %v204 = vpop.f32.mrb[0].mxu0
    %v205 = vadd.f32 0.0, %v204
    %206 = vmatprep.mubr.bf16.mxu0 0
    %207 = vmatmul.mubr.bf16.gmra.mrb[0].mxu0 %v79
    %v208 = vpop.f32.mrb[0].mxu0
    %v209 = vadd.f32 0.0, %v208
    %v210 = vpop.f32.mrb[0].mxu0
    %v211 = vadd.f32 0.0, %v210
    %v212 = vpop.f32.mrb[0].mxu0
    %v213 = vadd.f32 0.0, %v212
    %v214 = vpop.f32.mrb[0].mxu0
    %v215 = vadd.f32 0.0, %v214
    %216 = vmatprep.mubr.bf16.mxu0 0
    %217 = vmatmul.mubr.bf16.gmra.mrb[0].mxu0 %v80
    %v218 = vpop.f32.mrb[0].mxu0
    %v219 = vadd.f32 0.0, %v218
    %v220 = vpop.f32.mrb[0].mxu0
    %v221 = vadd.f32 0.0, %v220
    %v222 = vpop.f32.mrb[0].mxu0
    %v223 = vadd.f32 0.0, %v222
    %v224 = vpop.f32.mrb[0].mxu0
    %v225 = vadd.f32 0.0, %v224
    %226 = vdwg.mxu0
    %v227 = vadd.f32 %v32, %v199
    %v228 = vadd.f32 %v33, %v201
    %v229 = vadd.f32 %v34, %v203
    %v230 = vadd.f32 %v35, %v205
    %v231 = vadd.f32 %v36, %v209
    %v232 = vadd.f32 %v37, %v211
    %v233 = vadd.f32 %v38, %v213
    %v234 = vadd.f32 %v39, %v215
    %v235 = vadd.f32 %v40, %v219
    %v236 = vadd.f32 %v41, %v221
    %v237 = vadd.f32 %v42, %v223
    %v238 = vadd.f32 %v43, %v225
    %239 = vst [vmem:[#allocation2] sm:$0xff] %v227
    %240 = vst [vmem:[#allocation2 + $0x8] sm:$0xff] %v228
    %241 = vst [vmem:[#allocation2 + $0x10] sm:$0xff] %v229
    %242 = vst [vmem:[#allocation2 + $0x18] sm:$0xff] %v230
    %243 = vst [vmem:[#allocation2 + $0x20] sm:$0xff] %v231
    %244 = vst [vmem:[#allocation2 + $0x28] sm:$0xff] %v232
    %245 = vst [vmem:[#allocation2 + $0x30] sm:$0xff] %v233
    %246 = vst [vmem:[#allocation2 + $0x38] sm:$0xff] %v234
    %247 = vst [vmem:[#allocation2 + $0x40] sm:$0xff] %v235
    %248 = vst [vmem:[#allocation2 + $0x48] sm:$0xff] %v236
    %249 = vst [vmem:[#allocation2 + $0x50] sm:$0xff] %v237
    %250 = vst [vmem:[#allocation2 + $0x58] sm:$0xff] %v238
    // Predicated region
    $region18: #{sparsevlm_forward.9} parent=1 // pred_check
      %p251 = pneg %p16
    $region19: #{sparsevlm_forward.9} parent=1 // pred_check_branch
      %253 = sbr.rel (%p251) target = $region21
    $region20: #{sparsevlm_forward.9} parent=1 // pred_region
      %v254 = vld [vmem:[#allocation2] sm:$0xff]
      %v255 = vld [vmem:[#allocation2 + $0x8] sm:$0xff]
      %v256 = vld [vmem:[#allocation2 + $0x10] sm:$0xff]
      %v257 = vld [vmem:[#allocation2 + $0x18] sm:$0xff]
      %v258 = vld [vmem:[#allocation2 + $0x20] sm:$0xff]
      %v259 = vld [vmem:[#allocation2 + $0x28] sm:$0xff]
      %v260 = vld [vmem:[#allocation2 + $0x30] sm:$0xff]
      %v261 = vld [vmem:[#allocation2 + $0x38] sm:$0xff]
      %v262 = vld [vmem:[#allocation2 + $0x40] sm:$0xff]
      %v263 = vld [vmem:[#allocation2 + $0x48] sm:$0xff]
      %v264 = vld [vmem:[#allocation2 + $0x50] sm:$0xff]
      %v265 = vld [vmem:[#allocation2 + $0x58] sm:$0xff]
      %v266 = vld [vmem:[%s2] sm:$0x3]
      %v268 = vlaneseq
      %v269 = vshrl.u32 %v268, 7
      %v270 = vsub.s32 0, %v269
      %v271 = vrot.slane %v266, %v270
      %v272 = vlaneseq
      %v273 = vshrl.u32 %v272, 7
      %v274 = vsub.s32 1, %v273
      %v275 = vrot.slane %v266, %v274
      %v278 = vadd.f32 %v254, %v271
      %v279 = vadd.f32 %v255, %v275
      %v280 = vadd.f32 %v256, %v271
      %v281 = vadd.f32 %v257, %v275
      %v282 = vadd.f32 %v258, %v271
      %v283 = vadd.f32 %v259, %v275
      %v284 = vadd.f32 %v260, %v271
      %v285 = vadd.f32 %v261, %v275
      %v286 = vadd.f32 %v262, %v271
      %v287 = vadd.f32 %v263, %v275
      %v288 = vadd.f32 %v264, %v271
      %v289 = vadd.f32 %v265, %v275
      %290 = vst [vmem:[#allocation3] sm:$0xff] %v278
      %291 = vst [vmem:[#allocation3 + $0x8] sm:$0xff] %v279
      %292 = vst [vmem:[#allocation3 + $0x10] sm:$0xff] %v280
      %293 = vst [vmem:[#allocation3 + $0x18] sm:$0xff] %v281
      %294 = vst [vmem:[#allocation3 + $0x20] sm:$0xff] %v282
      %295 = vst [vmem:[#allocation3 + $0x28] sm:$0xff] %v283
      %296 = vst [vmem:[#allocation3 + $0x30] sm:$0xff] %v284
      %297 = vst [vmem:[#allocation3 + $0x38] sm:$0xff] %v285
      %298 = vst [vmem:[#allocation3 + $0x40] sm:$0xff] %v286
      %299 = vst [vmem:[#allocation3 + $0x48] sm:$0xff] %v287
      %300 = vst [vmem:[#allocation3 + $0x50] sm:$0xff] %v288
      %301 = vst [vmem:[#allocation3 + $0x58] sm:$0xff] %v289
    $region21: #{sparsevlm_forward.9} parent=1 // pred_fallthru
      _
    // Predicated region
    $region22: #{sparsevlm_forward.9} parent=1 // pred_check
      _
    $region23: #{sparsevlm_forward.9} parent=1 // pred_check_branch
      %303 = sbr.rel (0) target = $region25
    $region24: #{sparsevlm_forward.9} parent=1 // pred_region
      %s305 = ssub.s32 1536, 1536
      %306 = vsyncadd [#allocation4], %s305
      %s307 = sshll.u32 [#allocation3], 4
      %s308 = int_to_ptr.vmem [resolvable:$true] %s307
      %313 = dma.vmem_to_hbm [thread:$0]  %s308, 1536, %s3, [#allocation4], 256, 256, 16
    $region25: #{sparsevlm_forward.9} parent=1 // pred_fallthru
      _
    // Predicated region
    $region26: #{sparsevlm_forward.9} parent=1 // pred_check
      _
    $region27: #{sparsevlm_forward.9} parent=1 // pred_check_branch
      %315 = sbr.rel (0) target = $region29
    $region28: #{sparsevlm_forward.9} parent=1 // pred_region
      %316 = dma.done [#allocation4], 1536
    $region29: #{sparsevlm_forward.9} parent=1 // pred_fallthru
      _
    %317 = vsyncpa [#allocation4], 1

</llo_original>
